<compile_context>
chip_gen: v7x
topology: tpu7x:2x2x1
jax: 0.10.0
libtpu: 0.0.40
codegen_flags: <defaults>
</compile_context>

<pallas_src>
import functools

import jax
import jax.numpy as jnp
from jax.experimental import pallas as pl
from jax.experimental.pallas import tpu as pltpu


# ---------------------------------------------------------------------------
# Fused kernel
# ---------------------------------------------------------------------------
def toy3bn_kernel(x_ref,                                    # (bt, 34, 128)  bf16
                  wb1_ref, bias1_ref, p1_ref,               # layer 1
                  wb2_ref, bias2_ref, p2_ref,               # layer 2
                  wb3_ref, bias3_ref, p3_ref,               # layer 3
                  w4_ref, b4_ref, w5_ref, b5_ref,           # fc head (padded to 128)
                  out_ref,                                   # (bt, 128)      f32
                  a2_ref, a3_ref):                           # VMEM scratch,  bf16
    f32, bf16 = jnp.float32, jnp.bfloat16
    bt = x_ref.shape[0]

    def conv_bn_relu_pool(a_ref, wb_ref, bias_ref, p_ref, H):
        """conv3x3('same') + folded BN + ReLU + 2x2 avg-pool in packed layout.

        a_ref : (bt, H+2, Kp) bf16 zero-bordered rows, lane = v*Cin + ci (lane-padded).
        wb_ref: (3*Kp, W*Cout) bf16 merged block-banded conv weights (BN folded).
        bias  : (1, W*Cout) f32 folded conv-bias/BN shift, tiled over w.
        p_ref : (W*Cout, lanes_next) bf16 column pair-average matrix (0.25 folded);
                also emits the next layer's horizontal zero border + lane padding.
        """
        Kp = a_ref.shape[2]
        N = wb_ref.shape[1]
        # One MXU push per layer: lane-concat the 3 row-shifted views (each a
        # 128-multiple wide) so the kh accumulation happens inside the MXU.
        lhs = jnp.concatenate([a_ref[:, kh:kh + H, :] for kh in range(3)],
                              axis=-1).reshape(bt * H, 3 * Kp)
        acc = jnp.dot(lhs, wb_ref[...], preferred_element_type=f32)
        acc = jnp.maximum(acc + bias_ref[...], 0.0)           # BN shift + ReLU (f32 VPU)
        # Vertical pool half: even-row + odd-row VPU add (no O(B^2) matrix).
        pairs = acc.reshape(bt * H // 2, 2, N)
        rowsum = (pairs[:, 0, :] + pairs[:, 1, :]).astype(bf16)
        # Horizontal pool half (x0.25, plus next layer's border/lane pad): MXU.
        return jnp.dot(rowsum, p_ref[...], preferred_element_type=f32)

    def store_padded(dst_ref, pooled, H2):
        lanes = dst_ref.shape[2]
        zrow = jnp.zeros((bt, 1, lanes), dst_ref.dtype)
        dst_ref[:, 0:1, :] = zrow                    # only the two vertical border rows
        dst_ref[:, H2 + 1:H2 + 2, :] = zrow
        dst_ref[:, 1:H2 + 1, :] = pooled.reshape(bt, H2, lanes).astype(dst_ref.dtype)

    # layer 1: 32x32x3 -> 16x16x16, repacked (with zero border) into a2_ref.
    store_padded(a2_ref, conv_bn_relu_pool(x_ref, wb1_ref, bias1_ref, p1_ref, 32), 16)
    # layer 2: 16x16x16 -> 8x8x32, repacked into a3_ref.
    store_padded(a3_ref, conv_bn_relu_pool(a2_ref, wb2_ref, bias2_ref, p2_ref, 16), 8)
    # layer 3: 8x8x32 -> 4x4x64 (feeds the fc head directly).
    feat = conv_bn_relu_pool(a3_ref, wb3_ref, bias3_ref, p3_ref, 8)
    feat = feat.reshape(bt, 4, 256).astype(bf16)              # (b, h, w*64 + c)

    # fc4 (+ReLU) and fc5, both padded to 128 output lanes (unmasked stores).
    # TODO(synk): a single K=1024 fc4 dot would need a sublane->lane reshape or a
    # two-contracting-dim dot_general, neither of which lowers reliably on Mosaic;
    # kept as 4 small MXU dots over the pooled rows.
    h = jnp.dot(feat[:, 0, :], w4_ref[0], preferred_element_type=f32)
    for hh in range(1, 4):
        h = h + jnp.dot(feat[:, hh, :], w4_ref[hh], preferred_element_type=f32)
    h = jnp.maximum(h + b4_ref[...], 0.0)
    out_ref[...] = jnp.dot(h.astype(bf16), w5_ref[...],
                           preferred_element_type=f32) + b5_ref[...]


# ---------------------------------------------------------------------------
# One-time weight preparation (plain JAX, outside the kernel)
# ---------------------------------------------------------------------------
def _pool_matrix(W, C, pad_out, out_lanes):
    """(W*C, out_lanes): averages adjacent w-blocks of a packed row (0.25 folded).

    With pad_out=True the output is the next layer's packed padded row: columns
    for v=0 / v=W//2+1 (horizontal 'same'-conv border) and the trailing
    lane-padding columns are zero.
    """
    Wp = W // 2
    Vout = Wp + 2 if pad_out else Wp
    w = jnp.arange(W)[:, None]
    v = jnp.arange(Vout)[None, :]
    s = v - 1 if pad_out else v
    blk = jnp.where((w // 2 == s) & (s >= 0) & (s < Wp), 0.25, 0.0)      # (W, Vout)
    eye = jnp.eye(C, dtype=jnp.float32)
    m = (blk[:, None, :, None] * eye[None, :, None, :]).reshape(W * C, Vout * C)
    return jnp.pad(m, ((0, 0), (0, out_lanes - Vout * C)))


def _banded_conv_weights(w_hwio, W):
    """Block-banded matrices for a 3x3 'same' conv in packed-row layout.

    Returns (3, (W+2)*Cin, W*Cout): matrix kh maps the packed padded input row
    h+kh (lane index v*Cin+ci) to the packed conv-output row h (w*Cout+co).
    """
    Cin, Cout = w_hwio.shape[2], w_hwio.shape[3]
    v = jnp.arange(W + 2)[:, None]          # padded input column
    wcol = jnp.arange(W)[None, :]           # output column
    kw = v - wcol
    valid = (kw >= 0) & (kw <= 2)
    kwc = jnp.clip(kw, 0, 2)
    mats = []
    for kh in range(3):
        blocks = w_hwio[kh][kwc]                              # (W+2, W, Cin, Cout)
        blocks = jnp.where(valid[:, :, None, None], blocks, 0.0)
        mats.append(blocks.transpose(0, 2, 1, 3).reshape((W + 2) * Cin, W * Cout))
    return jnp.stack(mats, axis=0)


def prepare_params(params, eps=1e-4):
    """Fold eval-mode BN into the convs; build merged banded conv, pool, fc mats."""
    # TODO(synk): training-mode BatchNorm (per-batch statistics) is not implemented;
    # BN is folded with running stats (inference semantics, eps=1e-4 as in the module).
    prep = {}
    specs = (("1", 32, 3, 16, 128, 384, True),    # name, W, Cin, Cout, Kp, lanes_next, pad
             ("2", 16, 16, 32, 384, 384, True),
             ("3", 8, 32, 64, 384, 256, False))
    for name, W, Cin, Cout, Kp, lanes_next, pad_out in specs:
        w, b = params["w" + name], params["b" + name]
        scale = params["bn%s_gamma" % name] / jnp.sqrt(params["bn%s_var" % name] + eps)
        shift = (b - params["bn%s_mean" % name]) * scale + params["bn%s_beta" % name]
        banded = _banded_conv_weights(w * scale, W)           # (3, (W+2)*Cin, W*Cout)
        banded = jnp.pad(banded, ((0, 0), (0, Kp - (W + 2) * Cin), (0, 0)))
        prep["wb" + name] = banded.reshape(3 * Kp, W * Cout).astype(jnp.bfloat16)
        prep["bias" + name] = jnp.tile(shift, (W,)).reshape(1, W * Cout)
        prep["p" + name] = _pool_matrix(W, Cout, pad_out, lanes_next).astype(jnp.bfloat16)
    # fc4: rows permuted from PyTorch's (c, h, w) flatten order to the packed
    # (h, w, c) feature order; output dim padded 100 -> 128 lanes.
    w4 = params["w4"].reshape(64, 4, 4, 100).transpose(1, 2, 0, 3).reshape(4, 256, 100)
    prep["w4"] = jnp.pad(w4, ((0, 0), (0, 0), (0, 28))).astype(jnp.bfloat16)
    prep["b4"] = jnp.pad(params["b4"], (0, 28)).reshape(1, 128)
    nc = params["w5"].shape[1]
    prep["w5"] = jnp.pad(params["w5"], ((0, 28), (0, 128 - nc))).astype(jnp.bfloat16)
    prep["b5"] = jnp.pad(params["b5"], (0, 128 - nc)).reshape(1, 128)
    return prep


# ---------------------------------------------------------------------------
# Forward wrapper
# ---------------------------------------------------------------------------
def _const_spec(arr):
    """Full-array block with a constant index_map -> stays resident across steps."""
    zeros = (0,) * arr.ndim

    def index_map(i):
        return zeros

    return pl.BlockSpec(arr.shape, index_map)


def _pick_batch_tile(B):
    # Per-step tile: large enough to help fill the MXU M dim at big batch, small
    # enough to keep spills well under the default 32 MiB scoped VMEM (incl. v7x).
    if B <= 16:
        return B
    for bt in (16, 8):
        if B % bt == 0:
            return bt
    return B


@functools.partial(jax.jit, static_argnames=("num_classes",))
def toy3bn_forward(x_nchw, prep, num_classes=10):
    B, C, H, W = x_nchw.shape
    assert (C, H, W) == (3, 32, 32)
    # NCHW -> packed padded rows (B, 34, 34*3), lane = v*Cin + ci, lane-pad to 128.
    x = jnp.transpose(x_nchw, (0, 2, 3, 1)).astype(jnp.float32)
    xp = jnp.pad(x, ((0, 0), (1, 1), (1, 1), (0, 0)))
    x1 = xp.reshape(B, 34, 34 * 3)
    x1 = jnp.pad(x1, ((0, 0), (0, 0), (0, 128 - 34 * 3))).astype(jnp.bfloat16)

    bt = _pick_batch_tile(B)
    weights = (prep["wb1"], prep["bias1"], prep["p1"],
               prep["wb2"], prep["bias2"], prep["p2"],
               prep["wb3"], prep["bias3"], prep["p3"],
               prep["w4"], prep["b4"], prep["w5"], prep["b5"])

    logits = pl.pallas_call(
        toy3bn_kernel,
        out_shape=jax.ShapeDtypeStruct((B, 128), jnp.float32),
        grid=(B // bt,),
        in_specs=[pl.BlockSpec((bt, 34, 128), lambda i: (i, 0, 0))]
                 + [_const_spec(w) for w in weights],
        out_specs=pl.BlockSpec((bt, 128), lambda i: (i, 0)),
        scratch_shapes=[
            pltpu.VMEM((bt, 18, 384), jnp.bfloat16),   # padded 16x16x16 activation
            pltpu.VMEM((bt, 10, 384), jnp.bfloat16),   # padded  8x8x32  activation
        ],
        compiler_params=pltpu.CompilerParams(dimension_semantics=("parallel",)),
    )(x1, *weights)
    return logits[:, :num_classes]


# ---------------------------------------------------------------------------
# Deterministic synthetic params mirroring _weights_init + BatchNorm defaults
# ---------------------------------------------------------------------------
def init_params(key, num_classes=10):
    ks = jax.random.split(key, 5)

    def conv_w(k, cin, cout):
        std = (2.0 / (cout * 9)) ** 0.5          # kaiming_normal_(mode='fan_out')
        return jax.random.normal(k, (3, 3, cin, cout), jnp.float32) * std

    def lin_w(k, fin, fout):
        std = (2.0 / (fin + fout)) ** 0.5        # xavier_normal_, stored (in, out)
        return jax.random.normal(k, (fin, fout), jnp.float32) * std

    p = dict(
        w1=conv_w(ks[0], 3, 16), b1=jnp.zeros((16,), jnp.float32),
        w2=conv_w(ks[1], 16, 32), b2=jnp.zeros((32,), jnp.float32),
        w3=conv_w(ks[2], 32, 64), b3=jnp.zeros((64,), jnp.float32),
        w4=lin_w(ks[3], 64 * 4 * 4, 100), b4=jnp.zeros((100,), jnp.float32),
        w5=lin_w(ks[4], 100, num_classes), b5=jnp.zeros((num_classes,), jnp.float32),
    )
    for name, c in (("1", 16), ("2", 32), ("3", 64)):   # nn.BatchNorm2d defaults
        p["bn%s_gamma" % name] = jnp.ones((c,), jnp.float32)
        p["bn%s_beta" % name] = jnp.zeros((c,), jnp.float32)
        p["bn%s_mean" % name] = jnp.zeros((c,), jnp.float32)
        p["bn%s_var" % name] = jnp.ones((c,), jnp.float32)
    return p


if __name__ == "__main__":
    key = jax.random.PRNGKey(0)
    kx, kp = jax.random.split(key)
    # CIFAR-like input implied by fc4's 64*4*4 (32 -> 16 -> 8 -> 4 spatial).
    x = jax.random.normal(kx, (2, 3, 32, 32), jnp.float32)   # NCHW, like PyTorch
    params = init_params(kp, num_classes=10)
    prep = prepare_params(params)
    y = toy3bn_forward(x, prep)
    jax.block_until_ready(y)
    assert y.shape == (2, 10) and y.dtype == jnp.float32
    print("KERNEL_OK")
</pallas_src>

<mosaic_0001>
module attributes {stable_mosaic.version = 11 : i64} {
  func.func @toy3bn_kernel(%arg0: i32, %arg1: memref<2x34x128xbf16, #tpu.memory_space<vmem>>, %arg2: memref<384x512xbf16, #tpu.memory_space<vmem>>, %arg3: memref<1x512xf32, #tpu.memory_space<vmem>>, %arg4: memref<512x384xbf16, #tpu.memory_space<vmem>>, %arg5: memref<1152x512xbf16, #tpu.memory_space<vmem>>, %arg6: memref<1x512xf32, #tpu.memory_space<vmem>>, %arg7: memref<512x384xbf16, #tpu.memory_space<vmem>>, %arg8: memref<1152x512xbf16, #tpu.memory_space<vmem>>, %arg9: memref<1x512xf32, #tpu.memory_space<vmem>>, %arg10: memref<512x256xbf16, #tpu.memory_space<vmem>>, %arg11: memref<4x256x128xbf16, #tpu.memory_space<vmem>>, %arg12: memref<1x128xf32, #tpu.memory_space<vmem>>, %arg13: memref<128x128xbf16, #tpu.memory_space<vmem>>, %arg14: memref<1x128xf32, #tpu.memory_space<vmem>>, %arg15: memref<2x128xf32, #tpu.memory_space<vmem>>, %arg16: memref<2x18x384xbf16, #tpu.memory_space<vmem>>, %arg17: memref<2x10x384xbf16, #tpu.memory_space<vmem>>) attributes {dimension_semantics = [#tpu.dimension_semantics<parallel>], iteration_bounds = array<i64: 1>, scalar_prefetch = 0 : i64, scratch_operands = 2 : i64, tpu.core_type = #tpu.core_type<tc>, window_params = [{transform_indices = @transform_0, window_bounds = array<i64: 2, 34, 128>}, {pipeline_mode = #tpu.pipeline_mode<synchronous>, transform_indices = @transform_1, window_bounds = array<i64: 384, 512>}, {pipeline_mode = #tpu.pipeline_mode<synchronous>, transform_indices = @transform_2, window_bounds = array<i64: 1, 512>}, {pipeline_mode = #tpu.pipeline_mode<synchronous>, transform_indices = @transform_3, window_bounds = array<i64: 512, 384>}, {pipeline_mode = #tpu.pipeline_mode<synchronous>, transform_indices = @transform_4, window_bounds = array<i64: 1152, 512>}, {pipeline_mode = #tpu.pipeline_mode<synchronous>, transform_indices = @transform_5, window_bounds = array<i64: 1, 512>}, {pipeline_mode = #tpu.pipeline_mode<synchronous>, transform_indices = @transform_6, window_bounds = array<i64: 512, 384>}, {pipeline_mode = #tpu.pipeline_mode<synchronous>, transform_indices = @transform_7, window_bounds = array<i64: 1152, 512>}, {pipeline_mode = #tpu.pipeline_mode<synchronous>, transform_indices = @transform_8, window_bounds = array<i64: 1, 512>}, {pipeline_mode = #tpu.pipeline_mode<synchronous>, transform_indices = @transform_9, window_bounds = array<i64: 512, 256>}, {pipeline_mode = #tpu.pipeline_mode<synchronous>, transform_indices = @transform_10, window_bounds = array<i64: 4, 256, 128>}, {pipeline_mode = #tpu.pipeline_mode<synchronous>, transform_indices = @transform_11, window_bounds = array<i64: 1, 128>}, {pipeline_mode = #tpu.pipeline_mode<synchronous>, transform_indices = @transform_12, window_bounds = array<i64: 128, 128>}, {pipeline_mode = #tpu.pipeline_mode<synchronous>, transform_indices = @transform_13, window_bounds = array<i64: 1, 128>}, {transform_indices = @transform_14, window_bounds = array<i64: 2, 128>}]} {
    %c0 = arith.constant 0 : index
    %c0_0 = arith.constant 0 : index
    %c0_1 = arith.constant 0 : index
    %0 = vector.load %arg1[%c0, %c0_0, %c0_1] : memref<2x34x128xbf16, #tpu.memory_space<vmem>>, vector<2x32x128xbf16>
    %c0_2 = arith.constant 0 : index
    %c1 = arith.constant 1 : index
    %c0_3 = arith.constant 0 : index
    %1 = vector.load %arg1[%c0_2, %c1, %c0_3] : memref<2x34x128xbf16, #tpu.memory_space<vmem>>, vector<2x32x128xbf16>
    %c0_4 = arith.constant 0 : index
    %c2 = arith.constant 2 : index
    %c0_5 = arith.constant 0 : index
    %2 = vector.load %arg1[%c0_4, %c2, %c0_5] : memref<2x34x128xbf16, #tpu.memory_space<vmem>>, vector<2x32x128xbf16>
    %3 = tpu.concatenate %0, %1, %2 in 2 : vector<2x32x128xbf16>, vector<2x32x128xbf16>, vector<2x32x128xbf16> -> vector<2x32x384xbf16>
    %4 = vector.shape_cast %3 : vector<2x32x384xbf16> to vector<64x384xbf16>
    %c0_6 = arith.constant 0 : index
    %c0_7 = arith.constant 0 : index
    %5 = vector.load %arg2[%c0_6, %c0_7] : memref<384x512xbf16, #tpu.memory_space<vmem>>, vector<384x512xbf16>
    %cst = arith.constant dense<0.000000e+00> : vector<64x512xf32>
    %6 = tpu.matmul %4, %5, %cst {dimension_numbers = #tpu.dot_dimension_numbers<[1], [0], [0], [1], [0, 0, 1, 1], [], []>} : vector<64x384xbf16>, vector<384x512xbf16>, vector<64x512xf32> -> vector<64x512xf32>
    %c0_8 = arith.constant 0 : index
    %c0_9 = arith.constant 0 : index
    %7 = vector.load %arg3[%c0_8, %c0_9] : memref<1x512xf32, #tpu.memory_space<vmem>>, vector<1x512xf32>
    %8 = vector.broadcast %7 : vector<1x512xf32> to vector<64x512xf32>
    %9 = arith.addf %6, %8 : vector<64x512xf32>
    %cst_10 = arith.constant 0.000000e+00 : f32
    %10 = vector.broadcast %cst_10 : f32 to vector<64x512xf32>
    %11 = arith.maximumf %9, %10 : vector<64x512xf32>
    %12 = vector.shape_cast %11 : vector<64x512xf32> to vector<32x2x512xf32>
    %13 = vector.extract_strided_slice %12 {offsets = [0, 0, 0], sizes = [32, 1, 512], strides = [1, 1, 1]} : vector<32x2x512xf32> to vector<32x1x512xf32>
    %14 = vector.shape_cast %13 : vector<32x1x512xf32> to vector<32x512xf32>
    %15 = vector.extract_strided_slice %12 {offsets = [0, 1, 0], sizes = [32, 1, 512], strides = [1, 1, 1]} : vector<32x2x512xf32> to vector<32x1x512xf32>
    %16 = vector.shape_cast %15 : vector<32x1x512xf32> to vector<32x512xf32>
    %17 = arith.addf %14, %16 : vector<32x512xf32>
    %18 = arith.truncf %17 : vector<32x512xf32> to vector<32x512xbf16>
    %c0_11 = arith.constant 0 : index
    %c0_12 = arith.constant 0 : index
    %19 = vector.load %arg4[%c0_11, %c0_12] : memref<512x384xbf16, #tpu.memory_space<vmem>>, vector<512x384xbf16>
    %cst_13 = arith.constant dense<0.000000e+00> : vector<32x384xf32>
    %20 = tpu.matmul %18, %19, %cst_13 {dimension_numbers = #tpu.dot_dimension_numbers<[1], [0], [0], [1], [0, 0, 1, 1], [], []>} : vector<32x512xbf16>, vector<512x384xbf16>, vector<32x384xf32> -> vector<32x384xf32>
    %cst_14 = arith.constant 0.000000e+00 : bf16
    %21 = vector.broadcast %cst_14 : bf16 to vector<2x1x384xbf16>
    %c0_15 = arith.constant 0 : index
    %c0_16 = arith.constant 0 : index
    %c0_17 = arith.constant 0 : index
    %22 = vector.load %arg16[%c0_15, %c0_16, %c0_17] : memref<2x18x384xbf16, #tpu.memory_space<vmem>>, vector<2x1x384xbf16>
    tpu.vector_store %arg16[%c0_15, %c0_16, %c0_17], %21 {strides = array<i32>} : memref<2x18x384xbf16, #tpu.memory_space<vmem>>, vector<2x1x384xbf16>,
    %c0_18 = arith.constant 0 : index
    %c17 = arith.constant 17 : index
    %c0_19 = arith.constant 0 : index
    %23 = vector.load %arg16[%c0_18, %c17, %c0_19] : memref<2x18x384xbf16, #tpu.memory_space<vmem>>, vector<2x1x384xbf16>
    tpu.vector_store %arg16[%c0_18, %c17, %c0_19], %21 {strides = array<i32>} : memref<2x18x384xbf16, #tpu.memory_space<vmem>>, vector<2x1x384xbf16>,
    %24 = vector.shape_cast %20 : vector<32x384xf32> to vector<2x16x384xf32>
    %25 = arith.truncf %24 : vector<2x16x384xf32> to vector<2x16x384xbf16>
    %c0_20 = arith.constant 0 : index
    %c1_21 = arith.constant 1 : index
    %c0_22 = arith.constant 0 : index
    %26 = vector.load %arg16[%c0_20, %c1_21, %c0_22] : memref<2x18x384xbf16, #tpu.memory_space<vmem>>, vector<2x16x384xbf16>
    tpu.vector_store %arg16[%c0_20, %c1_21, %c0_22], %25 {strides = array<i32>} : memref<2x18x384xbf16, #tpu.memory_space<vmem>>, vector<2x16x384xbf16>,
    %c0_23 = arith.constant 0 : index
    %c0_24 = arith.constant 0 : index
    %c0_25 = arith.constant 0 : index
    %27 = vector.load %arg16[%c0_23, %c0_24, %c0_25] : memref<2x18x384xbf16, #tpu.memory_space<vmem>>, vector<2x16x384xbf16>
    %c0_26 = arith.constant 0 : index
    %c1_27 = arith.constant 1 : index
    %c0_28 = arith.constant 0 : index
    %28 = vector.load %arg16[%c0_26, %c1_27, %c0_28] : memref<2x18x384xbf16, #tpu.memory_space<vmem>>, vector<2x16x384xbf16>
    %c0_29 = arith.constant 0 : index
    %c2_30 = arith.constant 2 : index
    %c0_31 = arith.constant 0 : index
    %29 = vector.load %arg16[%c0_29, %c2_30, %c0_31] : memref<2x18x384xbf16, #tpu.memory_space<vmem>>, vector<2x16x384xbf16>
    %30 = tpu.concatenate %27, %28, %29 in 2 : vector<2x16x384xbf16>, vector<2x16x384xbf16>, vector<2x16x384xbf16> -> vector<2x16x1152xbf16>
    %31 = vector.shape_cast %30 : vector<2x16x1152xbf16> to vector<32x1152xbf16>
    %c0_32 = arith.constant 0 : index
    %c0_33 = arith.constant 0 : index
    %32 = vector.load %arg5[%c0_32, %c0_33] : memref<1152x512xbf16, #tpu.memory_space<vmem>>, vector<1152x512xbf16>
    %cst_34 = arith.constant dense<0.000000e+00> : vector<32x512xf32>
    %33 = tpu.matmul %31, %32, %cst_34 {dimension_numbers = #tpu.dot_dimension_numbers<[1], [0], [0], [1], [0, 0, 1, 1], [], []>} : vector<32x1152xbf16>, vector<1152x512xbf16>, vector<32x512xf32> -> vector<32x512xf32>
    %c0_35 = arith.constant 0 : index
    %c0_36 = arith.constant 0 : index
    %34 = vector.load %arg6[%c0_35, %c0_36] : memref<1x512xf32, #tpu.memory_space<vmem>>, vector<1x512xf32>
    %35 = vector.broadcast %34 : vector<1x512xf32> to vector<32x512xf32>
    %36 = arith.addf %33, %35 : vector<32x512xf32>
    %cst_37 = arith.constant 0.000000e+00 : f32
    %37 = vector.broadcast %cst_37 : f32 to vector<32x512xf32>
    %38 = arith.maximumf %36, %37 : vector<32x512xf32>
    %39 = vector.shape_cast %38 : vector<32x512xf32> to vector<16x2x512xf32>
    %40 = vector.extract_strided_slice %39 {offsets = [0, 0, 0], sizes = [16, 1, 512], strides = [1, 1, 1]} : vector<16x2x512xf32> to vector<16x1x512xf32>
    %41 = vector.shape_cast %40 : vector<16x1x512xf32> to vector<16x512xf32>
    %42 = vector.extract_strided_slice %39 {offsets = [0, 1, 0], sizes = [16, 1, 512], strides = [1, 1, 1]} : vector<16x2x512xf32> to vector<16x1x512xf32>
    %43 = vector.shape_cast %42 : vector<16x1x512xf32> to vector<16x512xf32>
    %44 = arith.addf %41, %43 : vector<16x512xf32>
    %45 = arith.truncf %44 : vector<16x512xf32> to vector<16x512xbf16>
    %c0_38 = arith.constant 0 : index
    %c0_39 = arith.constant 0 : index
    %46 = vector.load %arg7[%c0_38, %c0_39] : memref<512x384xbf16, #tpu.memory_space<vmem>>, vector<512x384xbf16>
    %cst_40 = arith.constant dense<0.000000e+00> : vector<16x384xf32>
    %47 = tpu.matmul %45, %46, %cst_40 {dimension_numbers = #tpu.dot_dimension_numbers<[1], [0], [0], [1], [0, 0, 1, 1], [], []>} : vector<16x512xbf16>, vector<512x384xbf16>, vector<16x384xf32> -> vector<16x384xf32>
    %cst_41 = arith.constant 0.000000e+00 : bf16
    %48 = vector.broadcast %cst_41 : bf16 to vector<2x1x384xbf16>
    %c0_42 = arith.constant 0 : index
    %c0_43 = arith.constant 0 : index
    %c0_44 = arith.constant 0 : index
    %49 = vector.load %arg17[%c0_42, %c0_43, %c0_44] : memref<2x10x384xbf16, #tpu.memory_space<vmem>>, vector<2x1x384xbf16>
    tpu.vector_store %arg17[%c0_42, %c0_43, %c0_44], %48 {strides = array<i32>} : memref<2x10x384xbf16, #tpu.memory_space<vmem>>, vector<2x1x384xbf16>,
    %c0_45 = arith.constant 0 : index
    %c9 = arith.constant 9 : index
    %c0_46 = arith.constant 0 : index
    %50 = vector.load %arg17[%c0_45, %c9, %c0_46] : memref<2x10x384xbf16, #tpu.memory_space<vmem>>, vector<2x1x384xbf16>
    tpu.vector_store %arg17[%c0_45, %c9, %c0_46], %48 {strides = array<i32>} : memref<2x10x384xbf16, #tpu.memory_space<vmem>>, vector<2x1x384xbf16>,
    %51 = vector.shape_cast %47 : vector<16x384xf32> to vector<2x8x384xf32>
    %52 = arith.truncf %51 : vector<2x8x384xf32> to vector<2x8x384xbf16>
    %c0_47 = arith.constant 0 : index
    %c1_48 = arith.constant 1 : index
    %c0_49 = arith.constant 0 : index
    %53 = vector.load %arg17[%c0_47, %c1_48, %c0_49] : memref<2x10x384xbf16, #tpu.memory_space<vmem>>, vector<2x8x384xbf16>
    tpu.vector_store %arg17[%c0_47, %c1_48, %c0_49], %52 {strides = array<i32>} : memref<2x10x384xbf16, #tpu.memory_space<vmem>>, vector<2x8x384xbf16>,
    %c0_50 = arith.constant 0 : index
    %c0_51 = arith.constant 0 : index
    %c0_52 = arith.constant 0 : index
    %54 = vector.load %arg17[%c0_50, %c0_51, %c0_52] : memref<2x10x384xbf16, #tpu.memory_space<vmem>>, vector<2x8x384xbf16>
    %c0_53 = arith.constant 0 : index
    %c1_54 = arith.constant 1 : index
    %c0_55 = arith.constant 0 : index
    %55 = vector.load %arg17[%c0_53, %c1_54, %c0_55] : memref<2x10x384xbf16, #tpu.memory_space<vmem>>, vector<2x8x384xbf16>
    %c0_56 = arith.constant 0 : index
    %c2_57 = arith.constant 2 : index
    %c0_58 = arith.constant 0 : index
    %56 = vector.load %arg17[%c0_56, %c2_57, %c0_58] : memref<2x10x384xbf16, #tpu.memory_space<vmem>>, vector<2x8x384xbf16>
    %57 = tpu.concatenate %54, %55, %56 in 2 : vector<2x8x384xbf16>, vector<2x8x384xbf16>, vector<2x8x384xbf16> -> vector<2x8x1152xbf16>
    %58 = vector.shape_cast %57 : vector<2x8x1152xbf16> to vector<16x1152xbf16>
    %c0_59 = arith.constant 0 : index
    %c0_60 = arith.constant 0 : index
    %59 = vector.load %arg8[%c0_59, %c0_60] : memref<1152x512xbf16, #tpu.memory_space<vmem>>, vector<1152x512xbf16>
    %cst_61 = arith.constant dense<0.000000e+00> : vector<16x512xf32>
    %60 = tpu.matmul %58, %59, %cst_61 {dimension_numbers = #tpu.dot_dimension_numbers<[1], [0], [0], [1], [0, 0, 1, 1], [], []>} : vector<16x1152xbf16>, vector<1152x512xbf16>, vector<16x512xf32> -> vector<16x512xf32>
    %c0_62 = arith.constant 0 : index
    %c0_63 = arith.constant 0 : index
    %61 = vector.load %arg9[%c0_62, %c0_63] : memref<1x512xf32, #tpu.memory_space<vmem>>, vector<1x512xf32>
    %62 = vector.broadcast %61 : vector<1x512xf32> to vector<16x512xf32>
    %63 = arith.addf %60, %62 : vector<16x512xf32>
    %cst_64 = arith.constant 0.000000e+00 : f32
    %64 = vector.broadcast %cst_64 : f32 to vector<16x512xf32>
    %65 = arith.maximumf %63, %64 : vector<16x512xf32>
    %66 = vector.shape_cast %65 : vector<16x512xf32> to vector<8x2x512xf32>
    %67 = vector.extract_strided_slice %66 {offsets = [0, 0, 0], sizes = [8, 1, 512], strides = [1, 1, 1]} : vector<8x2x512xf32> to vector<8x1x512xf32>
    %68 = vector.shape_cast %67 : vector<8x1x512xf32> to vector<8x512xf32>
    %69 = vector.extract_strided_slice %66 {offsets = [0, 1, 0], sizes = [8, 1, 512], strides = [1, 1, 1]} : vector<8x2x512xf32> to vector<8x1x512xf32>
    %70 = vector.shape_cast %69 : vector<8x1x512xf32> to vector<8x512xf32>
    %71 = arith.addf %68, %70 : vector<8x512xf32>
    %72 = arith.truncf %71 : vector<8x512xf32> to vector<8x512xbf16>
    %c0_65 = arith.constant 0 : index
    %c0_66 = arith.constant 0 : index
    %73 = vector.load %arg10[%c0_65, %c0_66] : memref<512x256xbf16, #tpu.memory_space<vmem>>, vector<512x256xbf16>
    %cst_67 = arith.constant dense<0.000000e+00> : vector<8x256xf32>
    %74 = tpu.matmul %72, %73, %cst_67 {dimension_numbers = #tpu.dot_dimension_numbers<[1], [0], [0], [1], [0, 0, 1, 1], [], []>} : vector<8x512xbf16>, vector<512x256xbf16>, vector<8x256xf32> -> vector<8x256xf32>
    %75 = vector.shape_cast %74 : vector<8x256xf32> to vector<2x4x256xf32>
    %76 = arith.truncf %75 : vector<2x4x256xf32> to vector<2x4x256xbf16>
    %77 = vector.extract_strided_slice %76 {offsets = [0, 0, 0], sizes = [2, 1, 256], strides = [1, 1, 1]} : vector<2x4x256xbf16> to vector<2x1x256xbf16>
    %78 = vector.shape_cast %77 : vector<2x1x256xbf16> to vector<2x256xbf16>
    %c0_68 = arith.constant 0 : index
    %c0_69 = arith.constant 0 : index
    %c0_70 = arith.constant 0 : index
    %79 = vector.load %arg11[%c0_68, %c0_69, %c0_70] : memref<4x256x128xbf16, #tpu.memory_space<vmem>>, vector<1x256x128xbf16>
    %80 = vector.shape_cast %79 : vector<1x256x128xbf16> to vector<256x128xbf16>
    %cst_71 = arith.constant dense<0.000000e+00> : vector<2x128xf32>
    %81 = tpu.matmul %78, %80, %cst_71 {dimension_numbers = #tpu.dot_dimension_numbers<[1], [0], [0], [1], [0, 0, 1, 1], [], []>} : vector<2x256xbf16>, vector<256x128xbf16>, vector<2x128xf32> -> vector<2x128xf32>
    %82 = vector.extract_strided_slice %76 {offsets = [0, 1, 0], sizes = [2, 1, 256], strides = [1, 1, 1]} : vector<2x4x256xbf16> to vector<2x1x256xbf16>
    %83 = vector.shape_cast %82 : vector<2x1x256xbf16> to vector<2x256xbf16>
    %c1_72 = arith.constant 1 : index
    %c0_73 = arith.constant 0 : index
    %c0_74 = arith.constant 0 : index
    %84 = vector.load %arg11[%c1_72, %c0_73, %c0_74] : memref<4x256x128xbf16, #tpu.memory_space<vmem>>, vector<1x256x128xbf16>
    %85 = vector.shape_cast %84 : vector<1x256x128xbf16> to vector<256x128xbf16>
    %cst_75 = arith.constant dense<0.000000e+00> : vector<2x128xf32>
    %86 = tpu.matmul %83, %85, %cst_75 {dimension_numbers = #tpu.dot_dimension_numbers<[1], [0], [0], [1], [0, 0, 1, 1], [], []>} : vector<2x256xbf16>, vector<256x128xbf16>, vector<2x128xf32> -> vector<2x128xf32>
    %87 = arith.addf %81, %86 : vector<2x128xf32>
    %88 = vector.extract_strided_slice %76 {offsets = [0, 2, 0], sizes = [2, 1, 256], strides = [1, 1, 1]} : vector<2x4x256xbf16> to vector<2x1x256xbf16>
    %89 = vector.shape_cast %88 : vector<2x1x256xbf16> to vector<2x256xbf16>
    %c2_76 = arith.constant 2 : index
    %c0_77 = arith.constant 0 : index
    %c0_78 = arith.constant 0 : index
    %90 = vector.load %arg11[%c2_76, %c0_77, %c0_78] : memref<4x256x128xbf16, #tpu.memory_space<vmem>>, vector<1x256x128xbf16>
    %91 = vector.shape_cast %90 : vector<1x256x128xbf16> to vector<256x128xbf16>
    %cst_79 = arith.constant dense<0.000000e+00> : vector<2x128xf32>
    %92 = tpu.matmul %89, %91, %cst_79 {dimension_numbers = #tpu.dot_dimension_numbers<[1], [0], [0], [1], [0, 0, 1, 1], [], []>} : vector<2x256xbf16>, vector<256x128xbf16>, vector<2x128xf32> -> vector<2x128xf32>
    %93 = arith.addf %87, %92 : vector<2x128xf32>
    %94 = vector.extract_strided_slice %76 {offsets = [0, 3, 0], sizes = [2, 1, 256], strides = [1, 1, 1]} : vector<2x4x256xbf16> to vector<2x1x256xbf16>
    %95 = vector.shape_cast %94 : vector<2x1x256xbf16> to vector<2x256xbf16>
    %c3 = arith.constant 3 : index
    %c0_80 = arith.constant 0 : index
    %c0_81 = arith.constant 0 : index
    %96 = vector.load %arg11[%c3, %c0_80, %c0_81] : memref<4x256x128xbf16, #tpu.memory_space<vmem>>, vector<1x256x128xbf16>
    %97 = vector.shape_cast %96 : vector<1x256x128xbf16> to vector<256x128xbf16>
    %cst_82 = arith.constant dense<0.000000e+00> : vector<2x128xf32>
    %98 = tpu.matmul %95, %97, %cst_82 {dimension_numbers = #tpu.dot_dimension_numbers<[1], [0], [0], [1], [0, 0, 1, 1], [], []>} : vector<2x256xbf16>, vector<256x128xbf16>, vector<2x128xf32> -> vector<2x128xf32>
    %99 = arith.addf %93, %98 : vector<2x128xf32>
    %c0_83 = arith.constant 0 : index
    %c0_84 = arith.constant 0 : index
    %100 = vector.load %arg12[%c0_83, %c0_84] : memref<1x128xf32, #tpu.memory_space<vmem>>, vector<1x128xf32>
    %101 = vector.broadcast %100 : vector<1x128xf32> to vector<2x128xf32>
    %102 = arith.addf %99, %101 : vector<2x128xf32>
    %cst_85 = arith.constant 0.000000e+00 : f32
    %103 = vector.broadcast %cst_85 : f32 to vector<2x128xf32>
    %104 = arith.maximumf %102, %103 : vector<2x128xf32>
    %105 = arith.truncf %104 : vector<2x128xf32> to vector<2x128xbf16>
    %c0_86 = arith.constant 0 : index
    %c0_87 = arith.constant 0 : index
    %106 = vector.load %arg13[%c0_86, %c0_87] : memref<128x128xbf16, #tpu.memory_space<vmem>>, vector<128x128xbf16>
    %cst_88 = arith.constant dense<0.000000e+00> : vector<2x128xf32>
    %107 = tpu.matmul %105, %106, %cst_88 {dimension_numbers = #tpu.dot_dimension_numbers<[1], [0], [0], [1], [0, 0, 1, 1], [], []>} : vector<2x128xbf16>, vector<128x128xbf16>, vector<2x128xf32> -> vector<2x128xf32>
    %c0_89 = arith.constant 0 : index
    %c0_90 = arith.constant 0 : index
    %108 = vector.load %arg14[%c0_89, %c0_90] : memref<1x128xf32, #tpu.memory_space<vmem>>, vector<1x128xf32>
    %109 = vector.broadcast %108 : vector<1x128xf32> to vector<2x128xf32>
    %110 = arith.addf %107, %109 : vector<2x128xf32>
    %c0_91 = arith.constant 0 : index
    %c0_92 = arith.constant 0 : index
    %111 = vector.load %arg15[%c0_91, %c0_92] : memref<2x128xf32, #tpu.memory_space<vmem>>, vector<2x128xf32>
    tpu.vector_store %arg15[%c0_91, %c0_92], %110 {strides = array<i32>} : memref<2x128xf32, #tpu.memory_space<vmem>>, vector<2x128xf32>,
    return
  }
  func.func @transform_0(%arg0: i32) -> (i32, i32, i32) {
    %c0_i32 = arith.constant 0 : i32
    %c0_i32_0 = arith.constant 0 : i32
    %c0_i32_1 = arith.constant 0 : i32
    return %arg0, %c0_i32, %c0_i32_0 : i32, i32, i32
  }
  func.func @transform_1(%arg0: i32) -> (i32, i32) {
    %c0_i32 = arith.constant 0 : i32
    %c0_i32_0 = arith.constant 0 : i32
    %c0_i32_1 = arith.constant 0 : i32
    return %c0_i32, %c0_i32_0 : i32, i32
  }
  func.func @transform_2(%arg0: i32) -> (i32, i32) {
    %c0_i32 = arith.constant 0 : i32
    %c0_i32_0 = arith.constant 0 : i32
    %c0_i32_1 = arith.constant 0 : i32
    return %c0_i32, %c0_i32_0 : i32, i32
  }
  func.func @transform_3(%arg0: i32) -> (i32, i32) {
    %c0_i32 = arith.constant 0 : i32
    %c0_i32_0 = arith.constant 0 : i32
    %c0_i32_1 = arith.constant 0 : i32
    return %c0_i32, %c0_i32_0 : i32, i32
  }
  func.func @transform_4(%arg0: i32) -> (i32, i32) {
    %c0_i32 = arith.constant 0 : i32
    %c0_i32_0 = arith.constant 0 : i32
    %c0_i32_1 = arith.constant 0 : i32
    return %c0_i32, %c0_i32_0 : i32, i32
  }
  func.func @transform_5(%arg0: i32) -> (i32, i32) {
    %c0_i32 = arith.constant 0 : i32
    %c0_i32_0 = arith.constant 0 : i32
    %c0_i32_1 = arith.constant 0 : i32
    return %c0_i32, %c0_i32_0 : i32, i32
  }
  func.func @transform_6(%arg0: i32) -> (i32, i32) {
    %c0_i32 = arith.constant 0 : i32
    %c0_i32_0 = arith.constant 0 : i32
    %c0_i32_1 = arith.constant 0 : i32
    return %c0_i32, %c0_i32_0 : i32, i32
  }
  func.func @transform_7(%arg0: i32) -> (i32, i32) {
    %c0_i32 = arith.constant 0 : i32
    %c0_i32_0 = arith.constant 0 : i32
    %c0_i32_1 = arith.constant 0 : i32
    return %c0_i32, %c0_i32_0 : i32, i32
  }
  func.func @transform_8(%arg0: i32) -> (i32, i32) {
    %c0_i32 = arith.constant 0 : i32
    %c0_i32_0 = arith.constant 0 : i32
    %c0_i32_1 = arith.constant 0 : i32
    return %c0_i32, %c0_i32_0 : i32, i32
  }
  func.func @transform_9(%arg0: i32) -> (i32, i32) {
    %c0_i32 = arith.constant 0 : i32
    %c0_i32_0 = arith.constant 0 : i32
    %c0_i32_1 = arith.constant 0 : i32
    return %c0_i32, %c0_i32_0 : i32, i32
  }
  func.func @transform_10(%arg0: i32) -> (i32, i32, i32) {
    %c0_i32 = arith.constant 0 : i32
    %c0_i32_0 = arith.constant 0 : i32
    %c0_i32_1 = arith.constant 0 : i32
    %c0_i32_2 = arith.constant 0 : i32
    return %c0_i32, %c0_i32_0, %c0_i32_1 : i32, i32, i32
  }
  func.func @transform_11(%arg0: i32) -> (i32, i32) {
    %c0_i32 = arith.constant 0 : i32
    %c0_i32_0 = arith.constant 0 : i32
    %c0_i32_1 = arith.constant 0 : i32
    return %c0_i32, %c0_i32_0 : i32, i32
  }
  func.func @transform_12(%arg0: i32) -> (i32, i32) {
    %c0_i32 = arith.constant 0 : i32
    %c0_i32_0 = arith.constant 0 : i32
    %c0_i32_1 = arith.constant 0 : i32
    return %c0_i32, %c0_i32_0 : i32, i32
  }
  func.func @transform_13(%arg0: i32) -> (i32, i32) {
    %c0_i32 = arith.constant 0 : i32
    %c0_i32_0 = arith.constant 0 : i32
    %c0_i32_1 = arith.constant 0 : i32
    return %c0_i32, %c0_i32_0 : i32, i32
  }
  func.func @transform_14(%arg0: i32) -> (i32, i32) {
    %c0_i32 = arith.constant 0 : i32
    %c0_i32_0 = arith.constant 0 : i32
    return %arg0, %c0_i32 : i32, i32
  }
}

</mosaic_0001>

<llo_original>
// kernel: toy3bn_forward.1
$region0: #{toy3bn_forward.1}
  #allocation0 [shape = 'u32[]', space=smem, size = 0x4, offset = 0x4, fixed_abs, tag = 'smem constant byte address 0x4 - core index']
  #allocation1 [shape = 'u32[144,128]{1,0:T(1,128)}', space=vmem, size = 0x12000, scoped, tag = 'internal scratch']
  #allocation2 [shape = 'bf16[2,18,384]{2,1,0:T(8,128)(2,1)}', space=vmem, size = 0x9000, scoped, tag = 'scratch operand']
  #allocation3 [shape = 'bf16[2,10,384]{2,1,0:T(8,128)(2,1)}', space=vmem, size = 0x6000, scoped, tag = 'scratch operand']
  %s0 = inlined_call_operand.vmem [shape: bf16[2,34,128], index: 0, kind: input, shape index: {}]
  %s1 = inlined_call_operand.hbm [shape: bf16[384,512], index: 1, kind: input, shape index: {}]
  %s2 = inlined_call_operand.hbm [shape: f32[1,512], index: 2, kind: input, shape index: {}]
  %s3 = inlined_call_operand.hbm [shape: bf16[512,384], index: 3, kind: input, shape index: {}]
  %s4 = inlined_call_operand.hbm [shape: bf16[1152,512], index: 4, kind: input, shape index: {}]
  %s5 = inlined_call_operand.hbm [shape: f32[1,512], index: 5, kind: input, shape index: {}]
  %s6 = inlined_call_operand.hbm [shape: bf16[512,384], index: 6, kind: input, shape index: {}]
  %s7 = inlined_call_operand.hbm [shape: bf16[1152,512], index: 7, kind: input, shape index: {}]
  %s8 = inlined_call_operand.hbm [shape: f32[1,512], index: 8, kind: input, shape index: {}]
  %s9 = inlined_call_operand.hbm [shape: bf16[512,256], index: 9, kind: input, shape index: {}]
  %s10 = inlined_call_operand.hbm [shape: bf16[4,256,128], index: 10, kind: input, shape index: {}]
  %s11 = inlined_call_operand.hbm [shape: f32[1,128], index: 11, kind: input, shape index: {}]
  %s12 = inlined_call_operand.hbm [shape: bf16[128,128], index: 12, kind: input, shape index: {}]
  %s13 = inlined_call_operand.hbm [shape: f32[1,128], index: 13, kind: input, shape index: {}]
  %s14 = inlined_call_operand.hbm [shape: f32[2,128], index: 14, kind: output, shape index: {}]
  %s15 = sld [smem:[#allocation0]]
  $region118: #{toy3bn_forward.1} parent=0
    _
  %s17 = ssub.s32 1, %s15
  %s18 = scalar_select 0, %s17, %s15
  $region1: #{toy3bn_forward.1} parent=0
    #allocation4 [shape = 'u8[393216]{0}', space=vmem, size = 0x60000, scoped, tag = 'input window, operand 1, single buffered']
    #allocation5 [shape = 's32[1]{0}', space=sflag, size = 0x4, scoped, tag = 'scoped memory for toy3bn_forward.1']
    #allocation6 [shape = 's32[1]{0}', space=sflag, size = 0x4, scoped, tag = 'scoped memory for toy3bn_forward.1']
    #allocation7 [shape = 'u8[2048]{0}', space=vmem, size = 0x800, scoped, tag = 'input window, operand 2, single buffered']
    #allocation8 [shape = 's32[1]{0}', space=sflag, size = 0x4, scoped, tag = 'scoped memory for toy3bn_forward.1']
    #allocation9 [shape = 'u8[393216]{0}', space=vmem, size = 0x60000, scoped, tag = 'input window, operand 3, single buffered']
    #allocation10 [shape = 'u8[1179648]{0}', space=vmem, size = 0x120000, scoped, tag = 'input window, operand 4, single buffered']
    #allocation11 [shape = 's32[1]{0}', space=sflag, size = 0x4, scoped, tag = 'scoped memory for toy3bn_forward.1']
    #allocation12 [shape = 'u8[2048]{0}', space=vmem, size = 0x800, scoped, tag = 'input window, operand 5, single buffered']
    #allocation13 [shape = 'u8[393216]{0}', space=vmem, size = 0x60000, scoped, tag = 'input window, operand 6, single buffered']
    #allocation14 [shape = 's32[1]{0}', space=sflag, size = 0x4, scoped, tag = 'scoped memory for toy3bn_forward.1']
    #allocation15 [shape = 'u8[1179648]{0}', space=vmem, size = 0x120000, scoped, tag = 'input window, operand 7, single buffered']
    #allocation16 [shape = 'u8[2048]{0}', space=vmem, size = 0x800, scoped, tag = 'input window, operand 8, single buffered']
    #allocation17 [shape = 's32[1]{0}', space=sflag, size = 0x4, scoped, tag = 'scoped memory for toy3bn_forward.1']
    #allocation18 [shape = 'u8[262144]{0}', space=vmem, size = 0x40000, scoped, tag = 'input window, operand 9, single buffered']
    #allocation19 [shape = 'u8[262144]{0}', space=vmem, size = 0x40000, scoped, tag = 'input window, operand 10, single buffered']
    #allocation20 [shape = 's32[1]{0}', space=sflag, size = 0x4, scoped, tag = 'scoped memory for toy3bn_forward.1']
    #allocation21 [shape = 'u8[512]{0}', space=vmem, size = 0x400, scoped, tag = 'input window, operand 11, single buffered']
    #allocation22 [shape = 'u8[32768]{0}', space=vmem, size = 0x8000, scoped, tag = 'input window, operand 12, single buffered']
    #allocation23 [shape = 's32[1]{0}', space=sflag, size = 0x4, scoped, tag = 'scoped memory for toy3bn_forward.1']
    #allocation24 [shape = 'u8[512]{0}', space=vmem, size = 0x400, scoped, tag = 'input window, operand 13, single buffered']
    #allocation25 [shape = 'u8[1024]{0}', space=vmem, size = 0x400, scoped, tag = 'output window, operand 0, single buffered']
    %19 = vsyncpa [#allocation5], 0
    %20 = vsyncpa [#allocation8], 0
    %21 = vsyncpa [#allocation11], 0
    %22 = vsyncpa [#allocation14], 0
    %23 = vsyncpa [#allocation17], 0
    %24 = vsyncpa [#allocation20], 0
    %25 = vsyncpa [#allocation23], 0
    %26 = vsyncpa [#allocation6], 0
    // Predicated region
    $region2: #{toy3bn_forward.1} parent=1 // pred_check
      _
    $region3: #{toy3bn_forward.1} parent=1 // pred_check_branch
      %28 = sbr.rel (0) target = $region5
    $region4: #{toy3bn_forward.1} parent=1 // pred_region
      _
    $region5: #{toy3bn_forward.1} parent=1 // pred_fallthru
      _
    // Predicated region
    $region6: #{toy3bn_forward.1} parent=1 // pred_check
      _
    $region7: #{toy3bn_forward.1} parent=1 // pred_check_branch
      %30 = sbr.rel (0) target = $region9
    $region8: #{toy3bn_forward.1} parent=1 // pred_region
      %s32 = ssub.s32 12288, 12288
      %33 = vsyncadd [#allocation5], %s32
      %s34 = sshll.u32 [#allocation4], 4
      %s35 = int_to_ptr.vmem [resolvable:$true] %s34
      %40 = dma.hbm_to_vmem [thread:$0]  %s1, 12288, %s35, [#allocation5], 256, 256, 16
    $region9: #{toy3bn_forward.1} parent=1 // pred_fallthru
      _
    // Predicated region
    $region10: #{toy3bn_forward.1} parent=1 // pred_check
      _
    $region11: #{toy3bn_forward.1} parent=1 // pred_check_branch
      %42 = sbr.rel (0) target = $region13
    $region12: #{toy3bn_forward.1} parent=1 // pred_region
      %s44 = ssub.s32 64, 64
      %45 = vsyncadd [#allocation8], %s44
      %s47 = sshll.u32 [#allocation7], 4
      %s48 = int_to_ptr.vmem [resolvable:$true] %s47
      %50 = dma.hbm_to_vmem [thread:$0]  %s2, 64, %s48, [#allocation8]
    $region13: #{toy3bn_forward.1} parent=1 // pred_fallthru
      _
    // Predicated region
    $region14: #{toy3bn_forward.1} parent=1 // pred_check
      _
    $region15: #{toy3bn_forward.1} parent=1 // pred_check_branch
      %52 = sbr.rel (0) target = $region17
    $region16: #{toy3bn_forward.1} parent=1 // pred_region
      %s54 = ssub.s32 12288, 12288
      %55 = vsyncadd [#allocation8], %s54
      %s56 = sshll.u32 [#allocation9], 4
      %s57 = int_to_ptr.vmem [resolvable:$true] %s56
      %62 = dma.hbm_to_vmem [thread:$0]  %s3, 12288, %s57, [#allocation8], 192, 192, 12
    $region17: #{toy3bn_forward.1} parent=1 // pred_fallthru
      _
    // Predicated region
    $region18: #{toy3bn_forward.1} parent=1 // pred_check
      _
    $region19: #{toy3bn_forward.1} parent=1 // pred_check_branch
      %64 = sbr.rel (0) target = $region21
    $region20: #{toy3bn_forward.1} parent=1 // pred_region
      %s66 = ssub.s32 36864, 36864
      %67 = vsyncadd [#allocation11], %s66
      %s68 = sshll.u32 [#allocation10], 4
      %s69 = int_to_ptr.vmem [resolvable:$true] %s68
      %74 = dma.hbm_to_vmem [thread:$0]  %s4, 36864, %s69, [#allocation11], 256, 256, 16
    $region21: #{toy3bn_forward.1} parent=1 // pred_fallthru
      _
    // Predicated region
    $region22: #{toy3bn_forward.1} parent=1 // pred_check
      _
    $region23: #{toy3bn_forward.1} parent=1 // pred_check_branch
      %76 = sbr.rel (0) target = $region25
    $region24: #{toy3bn_forward.1} parent=1 // pred_region
      %s78 = ssub.s32 64, 64
      %79 = vsyncadd [#allocation11], %s78
      %s81 = sshll.u32 [#allocation12], 4
      %s82 = int_to_ptr.vmem [resolvable:$true] %s81
      %84 = dma.hbm_to_vmem [thread:$0]  %s5, 64, %s82, [#allocation11]
    $region25: #{toy3bn_forward.1} parent=1 // pred_fallthru
      _
    // Predicated region
    $region26: #{toy3bn_forward.1} parent=1 // pred_check
      _
    $region27: #{toy3bn_forward.1} parent=1 // pred_check_branch
      %86 = sbr.rel (0) target = $region29
    $region28: #{toy3bn_forward.1} parent=1 // pred_region
      %s88 = ssub.s32 12288, 12288
      %89 = vsyncadd [#allocation14], %s88
      %s90 = sshll.u32 [#allocation13], 4
      %s91 = int_to_ptr.vmem [resolvable:$true] %s90
      %96 = dma.hbm_to_vmem [thread:$0]  %s6, 12288, %s91, [#allocation14], 192, 192, 12
    $region29: #{toy3bn_forward.1} parent=1 // pred_fallthru
      _
    // Predicated region
    $region30: #{toy3bn_forward.1} parent=1 // pred_check
      _
    $region31: #{toy3bn_forward.1} parent=1 // pred_check_branch
      %98 = sbr.rel (0) target = $region33
    $region32: #{toy3bn_forward.1} parent=1 // pred_region
      %s100 = ssub.s32 36864, 36864
      %101 = vsyncadd [#allocation14], %s100
      %s102 = sshll.u32 [#allocation15], 4
      %s103 = int_to_ptr.vmem [resolvable:$true] %s102
      %108 = dma.hbm_to_vmem [thread:$0]  %s7, 36864, %s103, [#allocation14], 256, 256, 16
    $region33: #{toy3bn_forward.1} parent=1 // pred_fallthru
      _
    // Predicated region
    $region34: #{toy3bn_forward.1} parent=1 // pred_check
      _
    $region35: #{toy3bn_forward.1} parent=1 // pred_check_branch
      %110 = sbr.rel (0) target = $region37
    $region36: #{toy3bn_forward.1} parent=1 // pred_region
      %s112 = ssub.s32 64, 64
      %113 = vsyncadd [#allocation17], %s112
      %s115 = sshll.u32 [#allocation16], 4
      %s116 = int_to_ptr.vmem [resolvable:$true] %s115
      %118 = dma.hbm_to_vmem [thread:$0]  %s8, 64, %s116, [#allocation17]
    $region37: #{toy3bn_forward.1} parent=1 // pred_fallthru
      _
    // Predicated region
    $region38: #{toy3bn_forward.1} parent=1 // pred_check
      _
    $region39: #{toy3bn_forward.1} parent=1 // pred_check_branch
      %120 = sbr.rel (0) target = $region41
    $region40: #{toy3bn_forward.1} parent=1 // pred_region
      %s122 = ssub.s32 8192, 8192
      %123 = vsyncadd [#allocation17], %s122
      %s124 = sshll.u32 [#allocation18], 4
      %s125 = int_to_ptr.vmem [resolvable:$true] %s124
      %130 = dma.hbm_to_vmem [thread:$0]  %s9, 8192, %s125, [#allocation17], 128, 128, 8
    $region41: #{toy3bn_forward.1} parent=1 // pred_fallthru
      _
    // Predicated region
    $region42: #{toy3bn_forward.1} parent=1 // pred_check
      _
    $region43: #{toy3bn_forward.1} parent=1 // pred_check_branch
      %132 = sbr.rel (0) target = $region45
    $region44: #{toy3bn_forward.1} parent=1 // pred_region
      %s134 = ssub.s32 8192, 8192
      %135 = vsyncadd [#allocation20], %s134
      %s136 = sshll.u32 [#allocation19], 4
      %s137 = int_to_ptr.vmem [resolvable:$true] %s136
      %142 = dma.hbm_to_vmem [thread:$0]  %s10, 8192, %s137, [#allocation20], 64, 64, 4
    $region45: #{toy3bn_forward.1} parent=1 // pred_fallthru
      _
    // Predicated region
    $region46: #{toy3bn_forward.1} parent=1 // pred_check
      _
    $region47: #{toy3bn_forward.1} parent=1 // pred_check_branch
      %144 = sbr.rel (0) target = $region49
    $region48: #{toy3bn_forward.1} parent=1 // pred_region
      %s146 = ssub.s32 16, 16
      %147 = vsyncadd [#allocation20], %s146
      %s149 = sshll.u32 [#allocation21], 4
      %s150 = int_to_ptr.vmem [resolvable:$true] %s149
      %152 = dma.hbm_to_vmem [thread:$0]  %s11, 16, %s150, [#allocation20]
    $region49: #{toy3bn_forward.1} parent=1 // pred_fallthru
      _
    // Predicated region
    $region50: #{toy3bn_forward.1} parent=1 // pred_check
      _
    $region51: #{toy3bn_forward.1} parent=1 // pred_check_branch
      %154 = sbr.rel (0) target = $region53
    $region52: #{toy3bn_forward.1} parent=1 // pred_region
      %s156 = ssub.s32 1024, 1024
      %157 = vsyncadd [#allocation23], %s156
      %s158 = sshll.u32 [#allocation22], 4
      %s159 = int_to_ptr.vmem [resolvable:$true] %s158
      %164 = dma.hbm_to_vmem [thread:$0]  %s12, 1024, %s159, [#allocation23], 64, 64, 4
    $region53: #{toy3bn_forward.1} parent=1 // pred_fallthru
      _
    // Predicated region
    $region54: #{toy3bn_forward.1} parent=1 // pred_check
      _
    $region55: #{toy3bn_forward.1} parent=1 // pred_check_branch
      %166 = sbr.rel (0) target = $region57
    $region56: #{toy3bn_forward.1} parent=1 // pred_region
      %s168 = ssub.s32 16, 16
      %169 = vsyncadd [#allocation23], %s168
      %s171 = sshll.u32 [#allocation24], 4
      %s172 = int_to_ptr.vmem [resolvable:$true] %s171
      %174 = dma.hbm_to_vmem [thread:$0]  %s13, 16, %s172, [#allocation23]
    $region57: #{toy3bn_forward.1} parent=1 // pred_fallthru
      _
    // Predicated region
    $region58: #{toy3bn_forward.1} parent=1 // pred_check
      _
    $region59: #{toy3bn_forward.1} parent=1 // pred_check_branch
      %176 = sbr.rel (0) target = $region61
    $region60: #{toy3bn_forward.1} parent=1 // pred_region
      %177 = dma.done [#allocation5], 12288
    $region61: #{toy3bn_forward.1} parent=1 // pred_fallthru
      _
    // Predicated region
    $region62: #{toy3bn_forward.1} parent=1 // pred_check
      _
    $region63: #{toy3bn_forward.1} parent=1 // pred_check_branch
      %179 = sbr.rel (0) target = $region65
    $region64: #{toy3bn_forward.1} parent=1 // pred_region
      %180 = dma.done [#allocation8], 64
    $region65: #{toy3bn_forward.1} parent=1 // pred_fallthru
      _
    // Predicated region
    $region66: #{toy3bn_forward.1} parent=1 // pred_check
      _
    $region67: #{toy3bn_forward.1} parent=1 // pred_check_branch
      %182 = sbr.rel (0) target = $region69
    $region68: #{toy3bn_forward.1} parent=1 // pred_region
      %183 = dma.done [#allocation8], 12288
    $region69: #{toy3bn_forward.1} parent=1 // pred_fallthru
      _
    // Predicated region
    $region70: #{toy3bn_forward.1} parent=1 // pred_check
      _
    $region71: #{toy3bn_forward.1} parent=1 // pred_check_branch
      %185 = sbr.rel (0) target = $region73
    $region72: #{toy3bn_forward.1} parent=1 // pred_region
      %186 = dma.done [#allocation11], 36864
    $region73: #{toy3bn_forward.1} parent=1 // pred_fallthru
      _
    // Predicated region
    $region74: #{toy3bn_forward.1} parent=1 // pred_check
      _
    $region75: #{toy3bn_forward.1} parent=1 // pred_check_branch
      %188 = sbr.rel (0) target = $region77
    $region76: #{toy3bn_forward.1} parent=1 // pred_region
      %189 = dma.done [#allocation11], 64
    $region77: #{toy3bn_forward.1} parent=1 // pred_fallthru
      _
    // Predicated region
    $region78: #{toy3bn_forward.1} parent=1 // pred_check
      _
    $region79: #{toy3bn_forward.1} parent=1 // pred_check_branch
      %191 = sbr.rel (0) target = $region81
    $region80: #{toy3bn_forward.1} parent=1 // pred_region
      %192 = dma.done [#allocation14], 12288
    $region81: #{toy3bn_forward.1} parent=1 // pred_fallthru
      _
    // Predicated region
    $region82: #{toy3bn_forward.1} parent=1 // pred_check
      _
    $region83: #{toy3bn_forward.1} parent=1 // pred_check_branch
      %194 = sbr.rel (0) target = $region85
    $region84: #{toy3bn_forward.1} parent=1 // pred_region
      %195 = dma.done [#allocation14], 36864
    $region85: #{toy3bn_forward.1} parent=1 // pred_fallthru
      _
    // Predicated region
    $region86: #{toy3bn_forward.1} parent=1 // pred_check
      _
    $region87: #{toy3bn_forward.1} parent=1 // pred_check_branch
      %197 = sbr.rel (0) target = $region89
    $region88: #{toy3bn_forward.1} parent=1 // pred_region
      %198 = dma.done [#allocation17], 64
    $region89: #{toy3bn_forward.1} parent=1 // pred_fallthru
      _
    // Predicated region
    $region90: #{toy3bn_forward.1} parent=1 // pred_check
      _
    $region91: #{toy3bn_forward.1} parent=1 // pred_check_branch
      %200 = sbr.rel (0) target = $region93
    $region92: #{toy3bn_forward.1} parent=1 // pred_region
      %201 = dma.done [#allocation17], 8192
    $region93: #{toy3bn_forward.1} parent=1 // pred_fallthru
      _
    // Predicated region
    $region94: #{toy3bn_forward.1} parent=1 // pred_check
      _
    $region95: #{toy3bn_forward.1} parent=1 // pred_check_branch
      %203 = sbr.rel (0) target = $region97
    $region96: #{toy3bn_forward.1} parent=1 // pred_region
      %204 = dma.done [#allocation20], 8192
    $region97: #{toy3bn_forward.1} parent=1 // pred_fallthru
      _
    // Predicated region
    $region98: #{toy3bn_forward.1} parent=1 // pred_check
      _
    $region99: #{toy3bn_forward.1} parent=1 // pred_check_branch
      %206 = sbr.rel (0) target = $region101
    $region100: #{toy3bn_forward.1} parent=1 // pred_region
      %207 = dma.done [#allocation20], 16
    $region101: #{toy3bn_forward.1} parent=1 // pred_fallthru
      _
    // Predicated region
    $region102: #{toy3bn_forward.1} parent=1 // pred_check
      _
    $region103: #{toy3bn_forward.1} parent=1 // pred_check_branch
      %209 = sbr.rel (0) target = $region105
    $region104: #{toy3bn_forward.1} parent=1 // pred_region
      %210 = dma.done [#allocation23], 1024
    $region105: #{toy3bn_forward.1} parent=1 // pred_fallthru
      _
    // Predicated region
    $region106: #{toy3bn_forward.1} parent=1 // pred_check
      _
    $region107: #{toy3bn_forward.1} parent=1 // pred_check_branch
      %212 = sbr.rel (0) target = $region109
    $region108: #{toy3bn_forward.1} parent=1 // pred_region
      %213 = dma.done [#allocation23], 16
    $region109: #{toy3bn_forward.1} parent=1 // pred_fallthru
      _
    %v215 = vld [vmem:[%s0] sm:$0xf]
    %v216 = vld [vmem:[%s0 + $0x4] sm:$0xf]
    %v217 = vld [vmem:[%s0 + $0x8] sm:$0xf]
    %v218 = vld [vmem:[%s0 + $0xc] sm:$0xf]
    %v219 = vld [vmem:[%s0 + $0x14] sm:$0xf]
    %v220 = vld [vmem:[%s0 + $0x18] sm:$0xf]
    %v221 = vld [vmem:[%s0 + $0x1c] sm:$0xf]
    %v222 = vld [vmem:[%s0 + $0x20] sm:$0xf]
    %v223 = vld [vmem:[%s0 + $0x10] sm:$0x1]
    %v224 = vld [vmem:[%s0 + $0x24] sm:$0x1]
    %v225 = vld [vmem:[%s0] sm:$0xe]
    %v226 = vld [vmem:[%s0 + $0x14] sm:$0xe]
    %v235 = vunpack.c.l.b16 %v215
    %v236 = vunpack.c.l.b16 %v216
    %v237 = vunpack.c.l.b16 %v217
    %v238 = vunpack.c.l.b16 %v218
    %v239 = vunpack.c.l.b16 %v219
    %v240 = vunpack.c.l.b16 %v220
    %v241 = vunpack.c.l.b16 %v221
    %v242 = vunpack.c.l.b16 %v222
    %v243 = vpack.c.b16 %v236, %v235
    %v244 = vpack.c.b16 %v238, %v237
    %v245 = vpack.c.b16 %v240, %v239
    %v246 = vpack.c.b16 %v242, %v241
    %v253 = vunpack.c.l.b16 %v223
    %v254 = vunpack.c.l.b16 %v224
    %v255 = vpack.c.b16 %v253, %v253
    %v256 = vpack.c.b16 %v254, %v254
    %vm257 = vsmask.f32 7424
    %v259 = vshrl.u32 %v243, 16
    %v261 = vshll.u32 %v243, 16
    %v263 = vrot.slane %v261, 1
    %v264 = vor.u32 %v259, %v263
    %v266 = vshll.u32 %v244, 16
    %v268 = vrot.slane %v266, 1
    %v269 = vsel %vm257, %v264, %v268
    %v270 = vshrl.u32 %v244, 16
    %v272 = vor.u32 %v270, %v268
    %v274 = vshll.u32 %v255, 16
    %v276 = vrot.slane %v274, 1
    %v277 = vsel %vm257, %v272, %v276
    %v279 = vshrl.u32 %v245, 16
    %v281 = vshll.u32 %v245, 16
    %v283 = vrot.slane %v281, 1
    %v284 = vor.u32 %v279, %v283
    %v286 = vshll.u32 %v246, 16
    %v288 = vrot.slane %v286, 1
    %v289 = vsel %vm257, %v284, %v288
    %v290 = vshrl.u32 %v246, 16
    %v292 = vor.u32 %v290, %v288
    %v294 = vshll.u32 %v256, 16
    %v296 = vrot.slane %v294, 1
    %v297 = vsel %vm257, %v292, %v296
    %v304 = vunpack.c.l.b16 %v225
    %v305 = vunpack.c.l.b16 %v226
    %v306 = vpack.c.b16 %v236, %v304
    %v307 = vpack.c.b16 %v240, %v305
    %vm308 = vcmask 1046528
    %v309 = vrot.slane %v306, 1
    %v310 = vrot.slane %v244, 1
    %v311 = vsel %vm308, %v309, %v310
    %v312 = vrot.slane %v255, 1
    %v313 = vsel %vm308, %v310, %v312
    %v314 = vrot.slane %v307, 1
    %v315 = vrot.slane %v246, 1
    %v316 = vsel %vm308, %v314, %v315
    %v317 = vrot.slane %v256, 1
    %v318 = vsel %vm308, %v315, %v317
    %v323 = vld [vmem:[#allocation4] sm:$0xff]
    %v324 = vld [vmem:[#allocation4 + $0x8] sm:$0xff]
    %v325 = vld [vmem:[#allocation4 + $0x10] sm:$0xff]
    %v326 = vld [vmem:[#allocation4 + $0x18] sm:$0xff]
    %v327 = vld [vmem:[#allocation4 + $0x20] sm:$0xff]
    %v328 = vld [vmem:[#allocation4 + $0x28] sm:$0xff]
    %v329 = vld [vmem:[#allocation4 + $0x30] sm:$0xff]
    %v330 = vld [vmem:[#allocation4 + $0x38] sm:$0xff]
    %v331 = vld [vmem:[#allocation4 + $0x40] sm:$0xff]
    %v332 = vld [vmem:[#allocation4 + $0x48] sm:$0xff]
    %v333 = vld [vmem:[#allocation4 + $0x50] sm:$0xff]
    %v334 = vld [vmem:[#allocation4 + $0x58] sm:$0xff]
    %v335 = vld [vmem:[#allocation4 + $0x60] sm:$0xff]
    %v336 = vld [vmem:[#allocation4 + $0x68] sm:$0xff]
    %v337 = vld [vmem:[#allocation4 + $0x70] sm:$0xff]
    %v338 = vld [vmem:[#allocation4 + $0x78] sm:$0xff]
    %v339 = vld [vmem:[#allocation4 + $0x80] sm:$0xff]
    %v340 = vld [vmem:[#allocation4 + $0x88] sm:$0xff]
    %v341 = vld [vmem:[#allocation4 + $0x90] sm:$0xff]
    %v342 = vld [vmem:[#allocation4 + $0x98] sm:$0xff]
    %v343 = vld [vmem:[#allocation4 + $0xa0] sm:$0xff]
    %v344 = vld [vmem:[#allocation4 + $0xa8] sm:$0xff]
    %v345 = vld [vmem:[#allocation4 + $0xb0] sm:$0xff]
    %v346 = vld [vmem:[#allocation4 + $0xb8] sm:$0xff]
    %v347 = vld [vmem:[#allocation4 + $0xc0] sm:$0xff]
    %v348 = vld [vmem:[#allocation4 + $0xc8] sm:$0xff]
    %v349 = vld [vmem:[#allocation4 + $0xd0] sm:$0xff]
    %v350 = vld [vmem:[#allocation4 + $0xd8] sm:$0xff]
    %v351 = vld [vmem:[#allocation4 + $0xe0] sm:$0xff]
    %v352 = vld [vmem:[#allocation4 + $0xe8] sm:$0xff]
    %v353 = vld [vmem:[#allocation4 + $0xf0] sm:$0xff]
    %v354 = vld [vmem:[#allocation4 + $0xf8] sm:$0xff]
    %v355 = vld [vmem:[#allocation4 + $0x100] sm:$0xff]
    %v356 = vld [vmem:[#allocation4 + $0x108] sm:$0xff]
    %v357 = vld [vmem:[#allocation4 + $0x110] sm:$0xff]
    %v358 = vld [vmem:[#allocation4 + $0x118] sm:$0xff]
    %v359 = vld [vmem:[#allocation4 + $0x120] sm:$0xff]
    %v360 = vld [vmem:[#allocation4 + $0x128] sm:$0xff]
    %v361 = vld [vmem:[#allocation4 + $0x130] sm:$0xff]
    %v362 = vld [vmem:[#allocation4 + $0x138] sm:$0xff]
    %v363 = vld [vmem:[#allocation4 + $0x140] sm:$0xff]
    %v364 = vld [vmem:[#allocation4 + $0x148] sm:$0xff]
    %v365 = vld [vmem:[#allocation4 + $0x150] sm:$0xff]
    %v366 = vld [vmem:[#allocation4 + $0x158] sm:$0xff]
    %v367 = vld [vmem:[#allocation4 + $0x160] sm:$0xff]
    %v368 = vld [vmem:[#allocation4 + $0x168] sm:$0xff]
    %v369 = vld [vmem:[#allocation4 + $0x170] sm:$0xff]
    %v370 = vld [vmem:[#allocation4 + $0x178] sm:$0xff]
    %v371 = vld [vmem:[#allocation4 + $0x180] sm:$0xff]
    %v372 = vld [vmem:[#allocation4 + $0x188] sm:$0xff]
    %v373 = vld [vmem:[#allocation4 + $0x190] sm:$0xff]
    %v374 = vld [vmem:[#allocation4 + $0x198] sm:$0xff]
    %v375 = vld [vmem:[#allocation4 + $0x1a0] sm:$0xff]
    %v376 = vld [vmem:[#allocation4 + $0x1a8] sm:$0xff]
    %v377 = vld [vmem:[#allocation4 + $0x1b0] sm:$0xff]
    %v378 = vld [vmem:[#allocation4 + $0x1b8] sm:$0xff]
    %v379 = vld [vmem:[#allocation4 + $0x1c0] sm:$0xff]
    %v380 = vld [vmem:[#allocation4 + $0x1c8] sm:$0xff]
    %v381 = vld [vmem:[#allocation4 + $0x1d0] sm:$0xff]
    %v382 = vld [vmem:[#allocation4 + $0x1d8] sm:$0xff]
    %v383 = vld [vmem:[#allocation4 + $0x1e0] sm:$0xff]
    %v384 = vld [vmem:[#allocation4 + $0x1e8] sm:$0xff]
    %v385 = vld [vmem:[#allocation4 + $0x1f0] sm:$0xff]
    %v386 = vld [vmem:[#allocation4 + $0x1f8] sm:$0xff]
    %v387 = vld [vmem:[#allocation4 + $0x200] sm:$0xff]
    %v388 = vld [vmem:[#allocation4 + $0x208] sm:$0xff]
    %v389 = vld [vmem:[#allocation4 + $0x210] sm:$0xff]
    %v390 = vld [vmem:[#allocation4 + $0x218] sm:$0xff]
    %v391 = vld [vmem:[#allocation4 + $0x220] sm:$0xff]
    %v392 = vld [vmem:[#allocation4 + $0x228] sm:$0xff]
    %v393 = vld [vmem:[#allocation4 + $0x230] sm:$0xff]
    %v394 = vld [vmem:[#allocation4 + $0x238] sm:$0xff]
    %v395 = vld [vmem:[#allocation4 + $0x240] sm:$0xff]
    %v396 = vld [vmem:[#allocation4 + $0x248] sm:$0xff]
    %v397 = vld [vmem:[#allocation4 + $0x250] sm:$0xff]
    %v398 = vld [vmem:[#allocation4 + $0x258] sm:$0xff]
    %v399 = vld [vmem:[#allocation4 + $0x260] sm:$0xff]
    %v400 = vld [vmem:[#allocation4 + $0x268] sm:$0xff]
    %v401 = vld [vmem:[#allocation4 + $0x270] sm:$0xff]
    %v402 = vld [vmem:[#allocation4 + $0x278] sm:$0xff]
    %v403 = vld [vmem:[#allocation4 + $0x280] sm:$0xff]
    %v404 = vld [vmem:[#allocation4 + $0x288] sm:$0xff]
    %v405 = vld [vmem:[#allocation4 + $0x290] sm:$0xff]
    %v406 = vld [vmem:[#allocation4 + $0x298] sm:$0xff]
    %v407 = vld [vmem:[#allocation4 + $0x2a0] sm:$0xff]
    %v408 = vld [vmem:[#allocation4 + $0x2a8] sm:$0xff]
    %v409 = vld [vmem:[#allocation4 + $0x2b0] sm:$0xff]
    %v410 = vld [vmem:[#allocation4 + $0x2b8] sm:$0xff]
    %v411 = vld [vmem:[#allocation4 + $0x2c0] sm:$0xff]
    %v412 = vld [vmem:[#allocation4 + $0x2c8] sm:$0xff]
    %v413 = vld [vmem:[#allocation4 + $0x2d0] sm:$0xff]
    %v414 = vld [vmem:[#allocation4 + $0x2d8] sm:$0xff]
    %v415 = vld [vmem:[#allocation4 + $0x2e0] sm:$0xff]
    %v416 = vld [vmem:[#allocation4 + $0x2e8] sm:$0xff]
    %v417 = vld [vmem:[#allocation4 + $0x2f0] sm:$0xff]
    %v418 = vld [vmem:[#allocation4 + $0x2f8] sm:$0xff]
    %v419 = vld [vmem:[#allocation7] sm:$0xf]
    %v421 = vlaneseq
    %v422 = vshrl.u32 %v421, 7
    %v423 = vsub.s32 0, %v422
    %v424 = vrot.slane %v419, %v423
    %v425 = vlaneseq
    %v426 = vshrl.u32 %v425, 7
    %v427 = vsub.s32 1, %v426
    %v428 = vrot.slane %v419, %v427
    %v429 = vlaneseq
    %v430 = vshrl.u32 %v429, 7
    %v431 = vsub.s32 2, %v430
    %v432 = vrot.slane %v419, %v431
    %v433 = vlaneseq
    %v434 = vshrl.u32 %v433, 7
    %v435 = vsub.s32 3, %v434
    %v436 = vrot.slane %v419, %v435
    %v537 = vunpack.c.l.b16 %v323
    %v538 = vunpack.c.h.b16 %v323
    %v539 = vunpack.c.l.b16 %v324
    %v540 = vunpack.c.h.b16 %v324
    %v541 = vunpack.c.l.b16 %v325
    %v542 = vunpack.c.h.b16 %v325
    %v543 = vunpack.c.l.b16 %v326
    %v544 = vunpack.c.h.b16 %v326
    %v545 = vunpack.c.l.b16 %v327
    %v546 = vunpack.c.h.b16 %v327
    %v547 = vunpack.c.l.b16 %v328
    %v548 = vunpack.c.h.b16 %v328
    %v549 = vunpack.c.l.b16 %v329
    %v550 = vunpack.c.h.b16 %v329
    %v551 = vunpack.c.l.b16 %v330
    %v552 = vunpack.c.h.b16 %v330
    %v553 = vunpack.c.l.b16 %v331
    %v554 = vunpack.c.h.b16 %v331
    %v555 = vunpack.c.l.b16 %v332
    %v556 = vunpack.c.h.b16 %v332
    %v557 = vunpack.c.l.b16 %v333
    %v558 = vunpack.c.h.b16 %v333
    %v559 = vunpack.c.l.b16 %v334
    %v560 = vunpack.c.h.b16 %v334
    %v561 = vunpack.c.l.b16 %v335
    %v562 = vunpack.c.h.b16 %v335
    %v563 = vunpack.c.l.b16 %v336
    %v564 = vunpack.c.h.b16 %v336
    %v565 = vunpack.c.l.b16 %v337
    %v566 = vunpack.c.h.b16 %v337
    %v567 = vunpack.c.l.b16 %v338
    %v568 = vunpack.c.h.b16 %v338
    %v569 = vunpack.c.l.b16 %v339
    %v570 = vunpack.c.h.b16 %v339
    %v571 = vunpack.c.l.b16 %v340
    %v572 = vunpack.c.h.b16 %v340
    %v573 = vunpack.c.l.b16 %v341
    %v574 = vunpack.c.h.b16 %v341
    %v575 = vunpack.c.l.b16 %v342
    %v576 = vunpack.c.h.b16 %v342
    %v577 = vunpack.c.l.b16 %v343
    %v578 = vunpack.c.h.b16 %v343
    %v579 = vunpack.c.l.b16 %v344
    %v580 = vunpack.c.h.b16 %v344
    %v581 = vunpack.c.l.b16 %v345
    %v582 = vunpack.c.h.b16 %v345
    %v583 = vunpack.c.l.b16 %v346
    %v584 = vunpack.c.h.b16 %v346
    %v585 = vunpack.c.l.b16 %v347
    %v586 = vunpack.c.h.b16 %v347
    %v587 = vunpack.c.l.b16 %v348
    %v588 = vunpack.c.h.b16 %v348
    %v589 = vunpack.c.l.b16 %v349
    %v590 = vunpack.c.h.b16 %v349
    %v591 = vunpack.c.l.b16 %v350
    %v592 = vunpack.c.h.b16 %v350
    %v593 = vunpack.c.l.b16 %v351
    %v594 = vunpack.c.h.b16 %v351
    %v595 = vunpack.c.l.b16 %v352
    %v596 = vunpack.c.h.b16 %v352
    %v597 = vunpack.c.l.b16 %v353
    %v598 = vunpack.c.h.b16 %v353
    %v599 = vunpack.c.l.b16 %v354
    %v600 = vunpack.c.h.b16 %v354
    %v601 = vunpack.c.l.b16 %v355
    %v602 = vunpack.c.h.b16 %v355
    %v603 = vunpack.c.l.b16 %v356
    %v604 = vunpack.c.h.b16 %v356
    %v605 = vunpack.c.l.b16 %v357
    %v606 = vunpack.c.h.b16 %v357
    %v607 = vunpack.c.l.b16 %v358
    %v608 = vunpack.c.h.b16 %v358
    %v609 = vunpack.c.l.b16 %v359
    %v610 = vunpack.c.h.b16 %v359
    %v611 = vunpack.c.l.b16 %v360
    %v612 = vunpack.c.h.b16 %v360
    %v613 = vunpack.c.l.b16 %v361
    %v614 = vunpack.c.h.b16 %v361
    %v615 = vunpack.c.l.b16 %v362
    %v616 = vunpack.c.h.b16 %v362
    %v617 = vunpack.c.l.b16 %v363
    %v618 = vunpack.c.h.b16 %v363
    %v619 = vunpack.c.l.b16 %v364
    %v620 = vunpack.c.h.b16 %v364
    %v621 = vunpack.c.l.b16 %v365
    %v622 = vunpack.c.h.b16 %v365
    %v623 = vunpack.c.l.b16 %v366
    %v624 = vunpack.c.h.b16 %v366
    %v625 = vunpack.c.l.b16 %v367
    %v626 = vunpack.c.h.b16 %v367
    %v627 = vunpack.c.l.b16 %v368
    %v628 = vunpack.c.h.b16 %v368
    %v629 = vunpack.c.l.b16 %v369
    %v630 = vunpack.c.h.b16 %v369
    %v631 = vunpack.c.l.b16 %v370
    %v632 = vunpack.c.h.b16 %v370
    %v633 = vunpack.c.l.b16 %v371
    %v634 = vunpack.c.h.b16 %v371
    %v635 = vunpack.c.l.b16 %v372
    %v636 = vunpack.c.h.b16 %v372
    %v637 = vunpack.c.l.b16 %v373
    %v638 = vunpack.c.h.b16 %v373
    %v639 = vunpack.c.l.b16 %v374
    %v640 = vunpack.c.h.b16 %v374
    %v641 = vunpack.c.l.b16 %v375
    %v642 = vunpack.c.h.b16 %v375
    %v643 = vunpack.c.l.b16 %v376
    %v644 = vunpack.c.h.b16 %v376
    %v645 = vunpack.c.l.b16 %v377
    %v646 = vunpack.c.h.b16 %v377
    %v647 = vunpack.c.l.b16 %v378
    %v648 = vunpack.c.h.b16 %v378
    %v649 = vunpack.c.l.b16 %v379
    %v650 = vunpack.c.h.b16 %v379
    %v651 = vunpack.c.l.b16 %v380
    %v652 = vunpack.c.h.b16 %v380
    %v653 = vunpack.c.l.b16 %v381
    %v654 = vunpack.c.h.b16 %v381
    %v655 = vunpack.c.l.b16 %v382
    %v656 = vunpack.c.h.b16 %v382
    %v657 = vunpack.c.l.b16 %v383
    %v658 = vunpack.c.h.b16 %v383
    %v659 = vunpack.c.l.b16 %v384
    %v660 = vunpack.c.h.b16 %v384
    %v661 = vunpack.c.l.b16 %v385
    %v662 = vunpack.c.h.b16 %v385
    %v663 = vunpack.c.l.b16 %v386
    %v664 = vunpack.c.h.b16 %v386
    %v665 = vunpack.c.l.b16 %v387
    %v666 = vunpack.c.h.b16 %v387
    %v667 = vunpack.c.l.b16 %v388
    %v668 = vunpack.c.h.b16 %v388
    %v669 = vunpack.c.l.b16 %v389
    %v670 = vunpack.c.h.b16 %v389
    %v671 = vunpack.c.l.b16 %v390
    %v672 = vunpack.c.h.b16 %v390
    %v673 = vunpack.c.l.b16 %v391
    %v674 = vunpack.c.h.b16 %v391
    %v675 = vunpack.c.l.b16 %v392
    %v676 = vunpack.c.h.b16 %v392
    %v677 = vunpack.c.l.b16 %v393
    %v678 = vunpack.c.h.b16 %v393
    %v679 = vunpack.c.l.b16 %v394
    %v680 = vunpack.c.h.b16 %v394
    %v681 = vunpack.c.l.b16 %v395
    %v682 = vunpack.c.h.b16 %v395
    %v683 = vunpack.c.l.b16 %v396
    %v684 = vunpack.c.h.b16 %v396
    %v685 = vunpack.c.l.b16 %v397
    %v686 = vunpack.c.h.b16 %v397
    %v687 = vunpack.c.l.b16 %v398
    %v688 = vunpack.c.h.b16 %v398
    %v689 = vunpack.c.l.b16 %v399
    %v690 = vunpack.c.h.b16 %v399
    %v691 = vunpack.c.l.b16 %v400
    %v692 = vunpack.c.h.b16 %v400
    %v693 = vunpack.c.l.b16 %v401
    %v694 = vunpack.c.h.b16 %v401
    %v695 = vunpack.c.l.b16 %v402
    %v696 = vunpack.c.h.b16 %v402
    %v697 = vunpack.c.l.b16 %v403
    %v698 = vunpack.c.h.b16 %v403
    %v699 = vunpack.c.l.b16 %v404
    %v700 = vunpack.c.h.b16 %v404
    %v701 = vunpack.c.l.b16 %v405
    %v702 = vunpack.c.h.b16 %v405
    %v703 = vunpack.c.l.b16 %v406
    %v704 = vunpack.c.h.b16 %v406
    %v705 = vunpack.c.l.b16 %v407
    %v706 = vunpack.c.h.b16 %v407
    %v707 = vunpack.c.l.b16 %v408
    %v708 = vunpack.c.h.b16 %v408
    %v709 = vunpack.c.l.b16 %v409
    %v710 = vunpack.c.h.b16 %v409
    %v711 = vunpack.c.l.b16 %v410
    %v712 = vunpack.c.h.b16 %v410
    %v713 = vunpack.c.l.b16 %v411
    %v714 = vunpack.c.h.b16 %v411
    %v715 = vunpack.c.l.b16 %v412
    %v716 = vunpack.c.h.b16 %v412
    %v717 = vunpack.c.l.b16 %v413
    %v718 = vunpack.c.h.b16 %v413
    %v719 = vunpack.c.l.b16 %v414
    %v720 = vunpack.c.h.b16 %v414
    %v721 = vunpack.c.l.b16 %v415
    %v722 = vunpack.c.h.b16 %v415
    %v723 = vunpack.c.l.b16 %v416
    %v724 = vunpack.c.h.b16 %v416
    %v725 = vunpack.c.l.b16 %v417
    %v726 = vunpack.c.h.b16 %v417
    %v727 = vunpack.c.l.b16 %v418
    %v728 = vunpack.c.h.b16 %v418
    %v729 = vpack.c.b16 %v541, %v537
    %v730 = vpack.c.b16 %v542, %v538
    %v731 = vpack.c.b16 %v543, %v539
    %v732 = vpack.c.b16 %v544, %v540
    %v733 = vpack.c.b16 %v549, %v545
    %v734 = vpack.c.b16 %v550, %v546
    %v735 = vpack.c.b16 %v551, %v547
    %v736 = vpack.c.b16 %v552, %v548
    %v737 = vpack.c.b16 %v557, %v553
    %v738 = vpack.c.b16 %v558, %v554
    %v739 = vpack.c.b16 %v559, %v555
    %v740 = vpack.c.b16 %v560, %v556
    %v741 = vpack.c.b16 %v565, %v561
    %v742 = vpack.c.b16 %v566, %v562
    %v743 = vpack.c.b16 %v567, %v563
    %v744 = vpack.c.b16 %v568, %v564
    %v745 = vpack.c.b16 %v573, %v569
    %v746 = vpack.c.b16 %v574, %v570
    %v747 = vpack.c.b16 %v575, %v571
    %v748 = vpack.c.b16 %v576, %v572
    %v749 = vpack.c.b16 %v581, %v577
    %v750 = vpack.c.b16 %v582, %v578
    %v751 = vpack.c.b16 %v583, %v579
    %v752 = vpack.c.b16 %v584, %v580
    %v753 = vpack.c.b16 %v589, %v585
    %v754 = vpack.c.b16 %v590, %v586
    %v755 = vpack.c.b16 %v591, %v587
    %v756 = vpack.c.b16 %v592, %v588
    %v757 = vpack.c.b16 %v597, %v593
    %v758 = vpack.c.b16 %v598, %v594
    %v759 = vpack.c.b16 %v599, %v595
    %v760 = vpack.c.b16 %v600, %v596
    %v761 = vpack.c.b16 %v605, %v601
    %v762 = vpack.c.b16 %v606, %v602
    %v763 = vpack.c.b16 %v607, %v603
    %v764 = vpack.c.b16 %v608, %v604
    %v765 = vpack.c.b16 %v613, %v609
    %v766 = vpack.c.b16 %v614, %v610
    %v767 = vpack.c.b16 %v615, %v611
    %v768 = vpack.c.b16 %v616, %v612
    %v769 = vpack.c.b16 %v621, %v617
    %v770 = vpack.c.b16 %v622, %v618
    %v771 = vpack.c.b16 %v623, %v619
    %v772 = vpack.c.b16 %v624, %v620
    %v773 = vpack.c.b16 %v629, %v625
    %v774 = vpack.c.b16 %v630, %v626
    %v775 = vpack.c.b16 %v631, %v627
    %v776 = vpack.c.b16 %v632, %v628
    %v777 = vpack.c.b16 %v637, %v633
    %v778 = vpack.c.b16 %v638, %v634
    %v779 = vpack.c.b16 %v639, %v635
    %v780 = vpack.c.b16 %v640, %v636
    %v781 = vpack.c.b16 %v645, %v641
    %v782 = vpack.c.b16 %v646, %v642
    %v783 = vpack.c.b16 %v647, %v643
    %v784 = vpack.c.b16 %v648, %v644
    %v785 = vpack.c.b16 %v653, %v649
    %v786 = vpack.c.b16 %v654, %v650
    %v787 = vpack.c.b16 %v655, %v651
    %v788 = vpack.c.b16 %v656, %v652
    %v789 = vpack.c.b16 %v661, %v657
    %v790 = vpack.c.b16 %v662, %v658
    %v791 = vpack.c.b16 %v663, %v659
    %v792 = vpack.c.b16 %v664, %v660
    %v793 = vpack.c.b16 %v669, %v665
    %v794 = vpack.c.b16 %v670, %v666
    %v795 = vpack.c.b16 %v671, %v667
    %v796 = vpack.c.b16 %v672, %v668
    %v797 = vpack.c.b16 %v677, %v673
    %v798 = vpack.c.b16 %v678, %v674
    %v799 = vpack.c.b16 %v679, %v675
    %v800 = vpack.c.b16 %v680, %v676
    %v801 = vpack.c.b16 %v685, %v681
    %v802 = vpack.c.b16 %v686, %v682
    %v803 = vpack.c.b16 %v687, %v683
    %v804 = vpack.c.b16 %v688, %v684
    %v805 = vpack.c.b16 %v693, %v689
    %v806 = vpack.c.b16 %v694, %v690
    %v807 = vpack.c.b16 %v695, %v691
    %v808 = vpack.c.b16 %v696, %v692
    %v809 = vpack.c.b16 %v701, %v697
    %v810 = vpack.c.b16 %v702, %v698
    %v811 = vpack.c.b16 %v703, %v699
    %v812 = vpack.c.b16 %v704, %v700
    %v813 = vpack.c.b16 %v709, %v705
    %v814 = vpack.c.b16 %v710, %v706
    %v815 = vpack.c.b16 %v711, %v707
    %v816 = vpack.c.b16 %v712, %v708
    %v817 = vpack.c.b16 %v717, %v713
    %v818 = vpack.c.b16 %v718, %v714
    %v819 = vpack.c.b16 %v719, %v715
    %v820 = vpack.c.b16 %v720, %v716
    %v821 = vpack.c.b16 %v725, %v721
    %v822 = vpack.c.b16 %v726, %v722
    %v823 = vpack.c.b16 %v727, %v723
    %v824 = vpack.c.b16 %v728, %v724
    %921 = vmatprep.subr.bf16.mxu0 %v730
    %922 = vmatpush1.bf16.msra.mxu0 %v729
    %923 = vmatprep.subr.bf16.mxu0 %v734
    %924 = vmatpush1.bf16.msra.mxu0 %v733
    %925 = vmatprep.subr.bf16.mxu0 %v738
    %926 = vmatpush1.bf16.msra.mxu0 %v737
    %927 = vmatprep.subr.bf16.mxu0 %v742
    %928 = vmatpush1.bf16.msra.mxu0 %v741
    %929 = vmatprep.subr.bf16.mxu0 %v746
    %930 = vmatpush1.bf16.msra.mxu0 %v745
    %931 = vmatprep.subr.bf16.mxu0 %v750
    %932 = vmatpush1.bf16.msra.mxu0 %v749
    %933 = vmatprep.subr.bf16.mxu0 %v754
    %934 = vmatpush1.bf16.msra.mxu0 %v753
    %935 = vmatprep.subr.bf16.mxu0 %v758
    %936 = vmatpush1.bf16.msra.mxu0 %v757
    %937 = vmatprep.subr.bf16.mxu0 %v762
    %938 = vmatpush1.bf16.msra.mxu0 %v761
    %939 = vmatprep.subr.bf16.mxu0 %v766
    %940 = vmatpush1.bf16.msra.mxu0 %v765
    %941 = vmatprep.subr.bf16.mxu0 %v770
    %942 = vmatpush1.bf16.msra.mxu0 %v769
    %943 = vmatprep.subr.bf16.mxu0 %v774
    %944 = vmatpush1.bf16.msra.mxu0 %v773
    %945 = vmatprep.subr.bf16.mxu0 %v778
    %946 = vmatpush1.bf16.msra.mxu0 %v777
    %947 = vmatprep.subr.bf16.mxu0 %v782
    %948 = vmatpush1.bf16.msra.mxu0 %v781
    %949 = vmatprep.subr.bf16.mxu0 %v786
    %950 = vmatpush1.bf16.msra.mxu0 %v785
    %951 = vmatprep.subr.bf16.mxu0 %v790
    %952 = vmatpush1.bf16.msra.mxu0 %v789
    %953 = vmatprep.mubr.bf16.mxu0 %v269
    %954 = vmatmul.mubr.bf16.gmra.mrb[0].mxu0 %v243
    %v955 = vpop.f32.mrb[0].mxu0
    %v956 = vadd.f32 %v424, %v955
    %v957 = vpop.f32.mrb[0].mxu0
    %v958 = vadd.f32 %v428, %v957
    %v959 = vpop.f32.mrb[0].mxu0
    %v960 = vadd.f32 %v424, %v959
    %v961 = vpop.f32.mrb[0].mxu0
    %v962 = vadd.f32 %v428, %v961
    %963 = vmatprep.mubr.bf16.mxu0 %v277
    %964 = vmatmul.mubr.bf16.gmra.mrb[0].mxu0 %v244
    %v965 = vpop.f32.mrb[0].mxu0
    %v966 = vadd.f32 %v424, %v965
    %v967 = vpop.f32.mrb[0].mxu0
    %v968 = vadd.f32 %v428, %v967
    %v969 = vpop.f32.mrb[0].mxu0
    %v970 = vadd.f32 %v424, %v969
    %v971 = vpop.f32.mrb[0].mxu0
    %v972 = vadd.f32 %v428, %v971
    %973 = vmatprep.mubr.bf16.mxu0 %v289
    %974 = vmatmul.mubr.bf16.gmra.mrb[0].mxu0 %v245
    %v975 = vpop.f32.mrb[0].mxu0
    %v976 = vadd.f32 %v424, %v975
    %v977 = vpop.f32.mrb[0].mxu0
    %v978 = vadd.f32 %v428, %v977
    %v979 = vpop.f32.mrb[0].mxu0
    %v980 = vadd.f32 %v424, %v979
    %v981 = vpop.f32.mrb[0].mxu0
    %v982 = vadd.f32 %v428, %v981
    %983 = vmatprep.mubr.bf16.mxu0 %v297
    %984 = vmatmul.mubr.bf16.gmra.mrb[0].mxu0 %v246
    %v985 = vpop.f32.mrb[0].mxu0
    %v986 = vadd.f32 %v424, %v985
    %v987 = vpop.f32.mrb[0].mxu0
    %v988 = vadd.f32 %v428, %v987
    %v989 = vpop.f32.mrb[0].mxu0
    %v990 = vadd.f32 %v424, %v989
    %v991 = vpop.f32.mrb[0].mxu0
    %v992 = vadd.f32 %v428, %v991
    %993 = vdwg.mxu0
    %994 = vmatprep.subr.bf16.mxu0 %v794
    %995 = vmatpush1.bf16.msra.mxu0 %v793
    %996 = vmatprep.subr.bf16.mxu0 %v798
    %997 = vmatpush1.bf16.msra.mxu0 %v797
    %998 = vmatprep.subr.bf16.mxu0 %v802
    %999 = vmatpush1.bf16.msra.mxu0 %v801
    %1000 = vmatprep.subr.bf16.mxu0 %v806
    %1001 = vmatpush1.bf16.msra.mxu0 %v805
    %1002 = vmatprep.subr.bf16.mxu0 %v810
    %1003 = vmatpush1.bf16.msra.mxu0 %v809
    %1004 = vmatprep.subr.bf16.mxu0 %v814
    %1005 = vmatpush1.bf16.msra.mxu0 %v813
    %1006 = vmatprep.subr.bf16.mxu0 %v818
    %1007 = vmatpush1.bf16.msra.mxu0 %v817
    %1008 = vmatprep.subr.bf16.mxu0 %v822
    %1009 = vmatpush1.bf16.msra.mxu0 %v821
    %1010 = vmatprep.subr.bf16.mxu0 0
    %1011 = vmatpush1.bf16.msra.mxu0 0
    %1012 = vmatprep.subr.bf16.mxu0 0
    %1013 = vmatpush1.bf16.msra.mxu0 0
    %1014 = vmatprep.subr.bf16.mxu0 0
    %1015 = vmatpush1.bf16.msra.mxu0 0
    %1016 = vmatprep.subr.bf16.mxu0 0
    %1017 = vmatpush1.bf16.msra.mxu0 0
    %1018 = vmatprep.subr.bf16.mxu0 0
    %1019 = vmatpush1.bf16.msra.mxu0 0
    %1020 = vmatprep.subr.bf16.mxu0 0
    %1021 = vmatpush1.bf16.msra.mxu0 0
    %1022 = vmatprep.subr.bf16.mxu0 0
    %1023 = vmatpush1.bf16.msra.mxu0 0
    %1024 = vmatprep.subr.bf16.mxu0 0
    %1025 = vmatpush1.bf16.msra.mxu0 0
    %1026 = vmatprep.mubr.bf16.mxu0 0
    %1027 = vmatmul.mubr.bf16.gmra.mrb[0].mxu0 %v311
    %v1028 = vpop.f32.mrb[0].mxu0
    %v1029 = vadd.f32 %v956, %v1028
    %v1030 = vpop.f32.mrb[0].mxu0
    %v1031 = vadd.f32 %v958, %v1030
    %v1032 = vpop.f32.mrb[0].mxu0
    %v1033 = vadd.f32 %v960, %v1032
    %v1034 = vpop.f32.mrb[0].mxu0
    %v1035 = vadd.f32 %v962, %v1034
    %1036 = vmatprep.mubr.bf16.mxu0 0
    %1037 = vmatmul.mubr.bf16.gmra.mrb[0].mxu0 %v313
    %v1038 = vpop.f32.mrb[0].mxu0
    %v1039 = vadd.f32 %v966, %v1038
    %v1040 = vpop.f32.mrb[0].mxu0
    %v1041 = vadd.f32 %v968, %v1040
    %v1042 = vpop.f32.mrb[0].mxu0
    %v1043 = vadd.f32 %v970, %v1042
    %v1044 = vpop.f32.mrb[0].mxu0
    %v1045 = vadd.f32 %v972, %v1044
    %1046 = vmatprep.mubr.bf16.mxu0 0
    %1047 = vmatmul.mubr.bf16.gmra.mrb[0].mxu0 %v316
    %v1048 = vpop.f32.mrb[0].mxu0
    %v1049 = vadd.f32 %v976, %v1048
    %v1050 = vpop.f32.mrb[0].mxu0
    %v1051 = vadd.f32 %v978, %v1050
    %v1052 = vpop.f32.mrb[0].mxu0
    %v1053 = vadd.f32 %v980, %v1052
    %v1054 = vpop.f32.mrb[0].mxu0
    %v1055 = vadd.f32 %v982, %v1054
    %1056 = vmatprep.mubr.bf16.mxu0 0
    %1057 = vmatmul.mubr.bf16.gmra.mrb[0].mxu0 %v318
    %v1058 = vpop.f32.mrb[0].mxu0
    %v1059 = vadd.f32 %v986, %v1058
    %v1060 = vpop.f32.mrb[0].mxu0
    %v1061 = vadd.f32 %v988, %v1060
    %v1062 = vpop.f32.mrb[0].mxu0
    %v1063 = vadd.f32 %v990, %v1062
    %v1064 = vpop.f32.mrb[0].mxu0
    %v1065 = vadd.f32 %v992, %v1064
    %1066 = vdwg.mxu0
    %1067 = vmatprep.subr.bf16.mxu0 %v732
    %1068 = vmatpush1.bf16.msra.mxu0 %v731
    %1069 = vmatprep.subr.bf16.mxu0 %v736
    %1070 = vmatpush1.bf16.msra.mxu0 %v735
    %1071 = vmatprep.subr.bf16.mxu0 %v740
    %1072 = vmatpush1.bf16.msra.mxu0 %v739
    %1073 = vmatprep.subr.bf16.mxu0 %v744
    %1074 = vmatpush1.bf16.msra.mxu0 %v743
    %1075 = vmatprep.subr.bf16.mxu0 %v748
    %1076 = vmatpush1.bf16.msra.mxu0 %v747
    %1077 = vmatprep.subr.bf16.mxu0 %v752
    %1078 = vmatpush1.bf16.msra.mxu0 %v751
    %1079 = vmatprep.subr.bf16.mxu0 %v756
    %1080 = vmatpush1.bf16.msra.mxu0 %v755
    %1081 = vmatprep.subr.bf16.mxu0 %v760
    %1082 = vmatpush1.bf16.msra.mxu0 %v759
    %1083 = vmatprep.subr.bf16.mxu0 %v764
    %1084 = vmatpush1.bf16.msra.mxu0 %v763
    %1085 = vmatprep.subr.bf16.mxu0 %v768
    %1086 = vmatpush1.bf16.msra.mxu0 %v767
    %1087 = vmatprep.subr.bf16.mxu0 %v772
    %1088 = vmatpush1.bf16.msra.mxu0 %v771
    %1089 = vmatprep.subr.bf16.mxu0 %v776
    %1090 = vmatpush1.bf16.msra.mxu0 %v775
    %1091 = vmatprep.subr.bf16.mxu0 %v780
    %1092 = vmatpush1.bf16.msra.mxu0 %v779
    %1093 = vmatprep.subr.bf16.mxu0 %v784
    %1094 = vmatpush1.bf16.msra.mxu0 %v783
    %1095 = vmatprep.subr.bf16.mxu0 %v788
    %1096 = vmatpush1.bf16.msra.mxu0 %v787
    %1097 = vmatprep.subr.bf16.mxu0 %v792
    %1098 = vmatpush1.bf16.msra.mxu0 %v791
    %1099 = vmatprep.mubr.bf16.mxu0 %v269
    %1100 = vmatmul.mubr.bf16.gmra.mrb[0].mxu0 %v243
    %v1101 = vpop.f32.mrb[0].mxu0
    %v1102 = vadd.f32 %v432, %v1101
    %v1103 = vpop.f32.mrb[0].mxu0
    %v1104 = vadd.f32 %v436, %v1103
    %v1105 = vpop.f32.mrb[0].mxu0
    %v1106 = vadd.f32 %v432, %v1105
    %v1107 = vpop.f32.mrb[0].mxu0
    %v1108 = vadd.f32 %v436, %v1107
    %1109 = vmatprep.mubr.bf16.mxu0 %v277
    %1110 = vmatmul.mubr.bf16.gmra.mrb[0].mxu0 %v244
    %v1111 = vpop.f32.mrb[0].mxu0
    %v1112 = vadd.f32 %v432, %v1111
    %v1113 = vpop.f32.mrb[0].mxu0
    %v1114 = vadd.f32 %v436, %v1113
    %v1115 = vpop.f32.mrb[0].mxu0
    %v1116 = vadd.f32 %v432, %v1115
    %v1117 = vpop.f32.mrb[0].mxu0
    %v1118 = vadd.f32 %v436, %v1117
    %1119 = vmatprep.mubr.bf16.mxu0 %v289
    %1120 = vmatmul.mubr.bf16.gmra.mrb[0].mxu0 %v245
    %v1121 = vpop.f32.mrb[0].mxu0
    %v1122 = vadd.f32 %v432, %v1121
    %v1123 = vpop.f32.mrb[0].mxu0
    %v1124 = vadd.f32 %v436, %v1123
    %v1125 = vpop.f32.mrb[0].mxu0
    %v1126 = vadd.f32 %v432, %v1125
    %v1127 = vpop.f32.mrb[0].mxu0
    %v1128 = vadd.f32 %v436, %v1127
    %1129 = vmatprep.mubr.bf16.mxu0 %v297
    %1130 = vmatmul.mubr.bf16.gmra.mrb[0].mxu0 %v246
    %v1131 = vpop.f32.mrb[0].mxu0
    %v1132 = vadd.f32 %v432, %v1131
    %v1133 = vpop.f32.mrb[0].mxu0
    %v1134 = vadd.f32 %v436, %v1133
    %v1135 = vpop.f32.mrb[0].mxu0
    %v1136 = vadd.f32 %v432, %v1135
    %v1137 = vpop.f32.mrb[0].mxu0
    %v1138 = vadd.f32 %v436, %v1137
    %1139 = vdwg.mxu0
    %1140 = vmatprep.subr.bf16.mxu0 %v796
    %1141 = vmatpush1.bf16.msra.mxu0 %v795
    %1142 = vmatprep.subr.bf16.mxu0 %v800
    %1143 = vmatpush1.bf16.msra.mxu0 %v799
    %1144 = vmatprep.subr.bf16.mxu0 %v804
    %1145 = vmatpush1.bf16.msra.mxu0 %v803
    %1146 = vmatprep.subr.bf16.mxu0 %v808
    %1147 = vmatpush1.bf16.msra.mxu0 %v807
    %1148 = vmatprep.subr.bf16.mxu0 %v812
    %1149 = vmatpush1.bf16.msra.mxu0 %v811
    %1150 = vmatprep.subr.bf16.mxu0 %v816
    %1151 = vmatpush1.bf16.msra.mxu0 %v815
    %1152 = vmatprep.subr.bf16.mxu0 %v820
    %1153 = vmatpush1.bf16.msra.mxu0 %v819
    %1154 = vmatprep.subr.bf16.mxu0 %v824
    %1155 = vmatpush1.bf16.msra.mxu0 %v823
    %1156 = vmatprep.subr.bf16.mxu0 0
    %1157 = vmatpush1.bf16.msra.mxu0 0
    %1158 = vmatprep.subr.bf16.mxu0 0
    %1159 = vmatpush1.bf16.msra.mxu0 0
    %1160 = vmatprep.subr.bf16.mxu0 0
    %1161 = vmatpush1.bf16.msra.mxu0 0
    %1162 = vmatprep.subr.bf16.mxu0 0
    %1163 = vmatpush1.bf16.msra.mxu0 0
    %1164 = vmatprep.subr.bf16.mxu0 0
    %1165 = vmatpush1.bf16.msra.mxu0 0
    %1166 = vmatprep.subr.bf16.mxu0 0
    %1167 = vmatpush1.bf16.msra.mxu0 0
    %1168 = vmatprep.subr.bf16.mxu0 0
    %1169 = vmatpush1.bf16.msra.mxu0 0
    %1170 = vmatprep.subr.bf16.mxu0 0
    %1171 = vmatpush1.bf16.msra.mxu0 0
    %1172 = vmatprep.mubr.bf16.mxu0 0
    %1173 = vmatmul.mubr.bf16.gmra.mrb[0].mxu0 %v311
    %v1174 = vpop.f32.mrb[0].mxu0
    %v1175 = vadd.f32 %v1102, %v1174
    %v1176 = vpop.f32.mrb[0].mxu0
    %v1177 = vadd.f32 %v1104, %v1176
    %v1178 = vpop.f32.mrb[0].mxu0
    %v1179 = vadd.f32 %v1106, %v1178
    %v1180 = vpop.f32.mrb[0].mxu0
    %v1181 = vadd.f32 %v1108, %v1180
    %1182 = vmatprep.mubr.bf16.mxu0 0
    %1183 = vmatmul.mubr.bf16.gmra.mrb[0].mxu0 %v313
    %v1184 = vpop.f32.mrb[0].mxu0
    %v1185 = vadd.f32 %v1112, %v1184
    %v1186 = vpop.f32.mrb[0].mxu0
    %v1187 = vadd.f32 %v1114, %v1186
    %v1188 = vpop.f32.mrb[0].mxu0
    %v1189 = vadd.f32 %v1116, %v1188
    %v1190 = vpop.f32.mrb[0].mxu0
    %v1191 = vadd.f32 %v1118, %v1190
    %1192 = vmatprep.mubr.bf16.mxu0 0
    %1193 = vmatmul.mubr.bf16.gmra.mrb[0].mxu0 %v316
    %v1194 = vpop.f32.mrb[0].mxu0
    %v1195 = vadd.f32 %v1122, %v1194
    %v1196 = vpop.f32.mrb[0].mxu0
    %v1197 = vadd.f32 %v1124, %v1196
    %v1198 = vpop.f32.mrb[0].mxu0
    %v1199 = vadd.f32 %v1126, %v1198
    %v1200 = vpop.f32.mrb[0].mxu0
    %v1201 = vadd.f32 %v1128, %v1200
    %1202 = vmatprep.mubr.bf16.mxu0 0
    %1203 = vmatmul.mubr.bf16.gmra.mrb[0].mxu0 %v318
    %v1204 = vpop.f32.mrb[0].mxu0
    %v1205 = vadd.f32 %v1132, %v1204
    %v1206 = vpop.f32.mrb[0].mxu0
    %v1207 = vadd.f32 %v1134, %v1206
    %v1208 = vpop.f32.mrb[0].mxu0
    %v1209 = vadd.f32 %v1136, %v1208
    %v1210 = vpop.f32.mrb[0].mxu0
    %v1211 = vadd.f32 %v1138, %v1210
    %1212 = vdwg.mxu0
    %v1213 = vmax.f32 %v1029, 0.0
    %v1214 = vmax.f32 %v1031, 0.0
    %v1215 = vmax.f32 %v1175, 0.0
    %v1216 = vmax.f32 %v1177, 0.0
    %v1217 = vmax.f32 %v1033, 0.0
    %v1218 = vmax.f32 %v1035, 0.0
    %v1219 = vmax.f32 %v1179, 0.0
    %v1220 = vmax.f32 %v1181, 0.0
    %v1221 = vmax.f32 %v1039, 0.0
    %v1222 = vmax.f32 %v1041, 0.0
    %v1223 = vmax.f32 %v1185, 0.0
    %v1224 = vmax.f32 %v1187, 0.0
    %v1225 = vmax.f32 %v1043, 0.0
    %v1226 = vmax.f32 %v1045, 0.0
    %v1227 = vmax.f32 %v1189, 0.0
    %v1228 = vmax.f32 %v1191, 0.0
    %v1229 = vmax.f32 %v1049, 0.0
    %v1230 = vmax.f32 %v1051, 0.0
    %v1231 = vmax.f32 %v1195, 0.0
    %v1232 = vmax.f32 %v1197, 0.0
    %v1233 = vmax.f32 %v1053, 0.0
    %v1234 = vmax.f32 %v1055, 0.0
    %v1235 = vmax.f32 %v1199, 0.0
    %v1236 = vmax.f32 %v1201, 0.0
    %v1237 = vmax.f32 %v1059, 0.0
    %v1238 = vmax.f32 %v1061, 0.0
    %v1239 = vmax.f32 %v1205, 0.0
    %v1240 = vmax.f32 %v1207, 0.0
    %v1241 = vmax.f32 %v1063, 0.0
    %v1242 = vmax.f32 %v1065, 0.0
    %v1243 = vmax.f32 %v1209, 0.0
    %v1244 = vmax.f32 %v1211, 0.0
    %v1277 = vcombine.low %v1213, %v1214
    %v1278 = vcombine.high %v1213, %v1214
    %v1279 = vcombine.low %v1215, %v1216
    %v1280 = vcombine.high %v1215, %v1216
    %v1282 = vunpack.c.l.s4 1983009808
    %v1283 = vunpack.c.0.s8 %v1282
    %v1284 = vlaneseq
    %v1285 = vshrl.u32 %v1284, 7
    %v1286 = vsub.s32 %v1283, %v1285
    %v1287 = vrot.slane %v1277, %v1286
    %v1289 = vunpack.c.l.s4 1983009808
    %v1290 = vunpack.c.0.s8 %v1289
    %v1291 = vlaneseq
    %v1292 = vshrl.u32 %v1291, 7
    %v1293 = vsub.s32 %v1290, %v1292
    %v1294 = vrot.slane %v1278, %v1293
    %v1296 = vunpack.c.l.s4 1983009808
    %v1297 = vunpack.c.0.s8 %v1296
    %v1298 = vlaneseq
    %v1299 = vshrl.u32 %v1298, 7
    %v1300 = vsub.s32 %v1297, %v1299
    %v1301 = vrot.slane %v1279, %v1300
    %v1303 = vunpack.c.l.s4 1983009808
    %v1304 = vunpack.c.0.s8 %v1303
    %v1305 = vlaneseq
    %v1306 = vshrl.u32 %v1305, 7
    %v1307 = vsub.s32 %v1304, %v1306
    %v1308 = vrot.slane %v1280, %v1307
    %v1309 = vcombine.low %v1287, %v1301
    %v1310 = vcombine.high %v1287, %v1301
    %v1311 = vcombine.low %v1294, %v1308
    %v1312 = vcombine.high %v1294, %v1308
    %v1313 = vcombine.low %v1217, %v1218
    %v1314 = vcombine.high %v1217, %v1218
    %v1315 = vcombine.low %v1219, %v1220
    %v1316 = vcombine.high %v1219, %v1220
    %v1318 = vunpack.c.l.s4 1983009808
    %v1319 = vunpack.c.0.s8 %v1318
    %v1320 = vlaneseq
    %v1321 = vshrl.u32 %v1320, 7
    %v1322 = vsub.s32 %v1319, %v1321
    %v1323 = vrot.slane %v1313, %v1322
    %v1325 = vunpack.c.l.s4 1983009808
    %v1326 = vunpack.c.0.s8 %v1325
    %v1327 = vlaneseq
    %v1328 = vshrl.u32 %v1327, 7
    %v1329 = vsub.s32 %v1326, %v1328
    %v1330 = vrot.slane %v1314, %v1329
    %v1332 = vunpack.c.l.s4 1983009808
    %v1333 = vunpack.c.0.s8 %v1332
    %v1334 = vlaneseq
    %v1335 = vshrl.u32 %v1334, 7
    %v1336 = vsub.s32 %v1333, %v1335
    %v1337 = vrot.slane %v1315, %v1336
    %v1339 = vunpack.c.l.s4 1983009808
    %v1340 = vunpack.c.0.s8 %v1339
    %v1341 = vlaneseq
    %v1342 = vshrl.u32 %v1341, 7
    %v1343 = vsub.s32 %v1340, %v1342
    %v1344 = vrot.slane %v1316, %v1343
    %v1345 = vcombine.low %v1323, %v1337
    %v1346 = vcombine.high %v1323, %v1337
    %v1347 = vcombine.low %v1330, %v1344
    %v1348 = vcombine.high %v1330, %v1344
    %v1349 = vcombine.low %v1221, %v1222
    %v1350 = vcombine.high %v1221, %v1222
    %v1351 = vcombine.low %v1223, %v1224
    %v1352 = vcombine.high %v1223, %v1224
    %v1354 = vunpack.c.l.s4 1983009808
    %v1355 = vunpack.c.0.s8 %v1354
    %v1356 = vlaneseq
    %v1357 = vshrl.u32 %v1356, 7
    %v1358 = vsub.s32 %v1355, %v1357
    %v1359 = vrot.slane %v1349, %v1358
    %v1361 = vunpack.c.l.s4 1983009808
    %v1362 = vunpack.c.0.s8 %v1361
    %v1363 = vlaneseq
    %v1364 = vshrl.u32 %v1363, 7
    %v1365 = vsub.s32 %v1362, %v1364
    %v1366 = vrot.slane %v1350, %v1365
    %v1368 = vunpack.c.l.s4 1983009808
    %v1369 = vunpack.c.0.s8 %v1368
    %v1370 = vlaneseq
    %v1371 = vshrl.u32 %v1370, 7
    %v1372 = vsub.s32 %v1369, %v1371
    %v1373 = vrot.slane %v1351, %v1372
    %v1375 = vunpack.c.l.s4 1983009808
    %v1376 = vunpack.c.0.s8 %v1375
    %v1377 = vlaneseq
    %v1378 = vshrl.u32 %v1377, 7
    %v1379 = vsub.s32 %v1376, %v1378
    %v1380 = vrot.slane %v1352, %v1379
    %v1381 = vcombine.low %v1359, %v1373
    %v1382 = vcombine.high %v1359, %v1373
    %v1383 = vcombine.low %v1366, %v1380
    %v1384 = vcombine.high %v1366, %v1380
    %v1385 = vcombine.low %v1225, %v1226
    %v1386 = vcombine.high %v1225, %v1226
    %v1387 = vcombine.low %v1227, %v1228
    %v1388 = vcombine.high %v1227, %v1228
    %v1390 = vunpack.c.l.s4 1983009808
    %v1391 = vunpack.c.0.s8 %v1390
    %v1392 = vlaneseq
    %v1393 = vshrl.u32 %v1392, 7
    %v1394 = vsub.s32 %v1391, %v1393
    %v1395 = vrot.slane %v1385, %v1394
    %v1397 = vunpack.c.l.s4 1983009808
    %v1398 = vunpack.c.0.s8 %v1397
    %v1399 = vlaneseq
    %v1400 = vshrl.u32 %v1399, 7
    %v1401 = vsub.s32 %v1398, %v1400
    %v1402 = vrot.slane %v1386, %v1401
    %v1404 = vunpack.c.l.s4 1983009808
    %v1405 = vunpack.c.0.s8 %v1404
    %v1406 = vlaneseq
    %v1407 = vshrl.u32 %v1406, 7
    %v1408 = vsub.s32 %v1405, %v1407
    %v1409 = vrot.slane %v1387, %v1408
    %v1411 = vunpack.c.l.s4 1983009808
    %v1412 = vunpack.c.0.s8 %v1411
    %v1413 = vlaneseq
    %v1414 = vshrl.u32 %v1413, 7
    %v1415 = vsub.s32 %v1412, %v1414
    %v1416 = vrot.slane %v1388, %v1415
    %v1417 = vcombine.low %v1395, %v1409
    %v1418 = vcombine.high %v1395, %v1409
    %v1419 = vcombine.low %v1402, %v1416
    %v1420 = vcombine.high %v1402, %v1416
    %v1421 = vcombine.low %v1229, %v1230
    %v1422 = vcombine.high %v1229, %v1230
    %v1423 = vcombine.low %v1231, %v1232
    %v1424 = vcombine.high %v1231, %v1232
    %v1426 = vunpack.c.l.s4 1983009808
    %v1427 = vunpack.c.0.s8 %v1426
    %v1428 = vlaneseq
    %v1429 = vshrl.u32 %v1428, 7
    %v1430 = vsub.s32 %v1427, %v1429
    %v1431 = vrot.slane %v1421, %v1430
    %v1433 = vunpack.c.l.s4 1983009808
    %v1434 = vunpack.c.0.s8 %v1433
    %v1435 = vlaneseq
    %v1436 = vshrl.u32 %v1435, 7
    %v1437 = vsub.s32 %v1434, %v1436
    %v1438 = vrot.slane %v1422, %v1437
    %v1440 = vunpack.c.l.s4 1983009808
    %v1441 = vunpack.c.0.s8 %v1440
    %v1442 = vlaneseq
    %v1443 = vshrl.u32 %v1442, 7
    %v1444 = vsub.s32 %v1441, %v1443
    %v1445 = vrot.slane %v1423, %v1444
    %v1447 = vunpack.c.l.s4 1983009808
    %v1448 = vunpack.c.0.s8 %v1447
    %v1449 = vlaneseq
    %v1450 = vshrl.u32 %v1449, 7
    %v1451 = vsub.s32 %v1448, %v1450
    %v1452 = vrot.slane %v1424, %v1451
    %v1453 = vcombine.low %v1431, %v1445
    %v1454 = vcombine.high %v1431, %v1445
    %v1455 = vcombine.low %v1438, %v1452
    %v1456 = vcombine.high %v1438, %v1452
    %v1457 = vcombine.low %v1233, %v1234
    %v1458 = vcombine.high %v1233, %v1234
    %v1459 = vcombine.low %v1235, %v1236
    %v1460 = vcombine.high %v1235, %v1236
    %v1462 = vunpack.c.l.s4 1983009808
    %v1463 = vunpack.c.0.s8 %v1462
    %v1464 = vlaneseq
    %v1465 = vshrl.u32 %v1464, 7
    %v1466 = vsub.s32 %v1463, %v1465
    %v1467 = vrot.slane %v1457, %v1466
    %v1469 = vunpack.c.l.s4 1983009808
    %v1470 = vunpack.c.0.s8 %v1469
    %v1471 = vlaneseq
    %v1472 = vshrl.u32 %v1471, 7
    %v1473 = vsub.s32 %v1470, %v1472
    %v1474 = vrot.slane %v1458, %v1473
    %v1476 = vunpack.c.l.s4 1983009808
    %v1477 = vunpack.c.0.s8 %v1476
    %v1478 = vlaneseq
    %v1479 = vshrl.u32 %v1478, 7
    %v1480 = vsub.s32 %v1477, %v1479
    %v1481 = vrot.slane %v1459, %v1480
    %v1483 = vunpack.c.l.s4 1983009808
    %v1484 = vunpack.c.0.s8 %v1483
    %v1485 = vlaneseq
    %v1486 = vshrl.u32 %v1485, 7
    %v1487 = vsub.s32 %v1484, %v1486
    %v1488 = vrot.slane %v1460, %v1487
    %v1489 = vcombine.low %v1467, %v1481
    %v1490 = vcombine.high %v1467, %v1481
    %v1491 = vcombine.low %v1474, %v1488
    %v1492 = vcombine.high %v1474, %v1488
    %v1493 = vcombine.low %v1237, %v1238
    %v1494 = vcombine.high %v1237, %v1238
    %v1495 = vcombine.low %v1239, %v1240
    %v1496 = vcombine.high %v1239, %v1240
    %v1498 = vunpack.c.l.s4 1983009808
    %v1499 = vunpack.c.0.s8 %v1498
    %v1500 = vlaneseq
    %v1501 = vshrl.u32 %v1500, 7
    %v1502 = vsub.s32 %v1499, %v1501
    %v1503 = vrot.slane %v1493, %v1502
    %v1505 = vunpack.c.l.s4 1983009808
    %v1506 = vunpack.c.0.s8 %v1505
    %v1507 = vlaneseq
    %v1508 = vshrl.u32 %v1507, 7
    %v1509 = vsub.s32 %v1506, %v1508
    %v1510 = vrot.slane %v1494, %v1509
    %v1512 = vunpack.c.l.s4 1983009808
    %v1513 = vunpack.c.0.s8 %v1512
    %v1514 = vlaneseq
    %v1515 = vshrl.u32 %v1514, 7
    %v1516 = vsub.s32 %v1513, %v1515
    %v1517 = vrot.slane %v1495, %v1516
    %v1519 = vunpack.c.l.s4 1983009808
    %v1520 = vunpack.c.0.s8 %v1519
    %v1521 = vlaneseq
    %v1522 = vshrl.u32 %v1521, 7
    %v1523 = vsub.s32 %v1520, %v1522
    %v1524 = vrot.slane %v1496, %v1523
    %v1525 = vcombine.low %v1503, %v1517
    %v1526 = vcombine.high %v1503, %v1517
    %v1527 = vcombine.low %v1510, %v1524
    %v1528 = vcombine.high %v1510, %v1524
    %v1529 = vcombine.low %v1241, %v1242
    %v1530 = vcombine.high %v1241, %v1242
    %v1531 = vcombine.low %v1243, %v1244
    %v1532 = vcombine.high %v1243, %v1244
    %v1534 = vunpack.c.l.s4 1983009808
    %v1535 = vunpack.c.0.s8 %v1534
    %v1536 = vlaneseq
    %v1537 = vshrl.u32 %v1536, 7
    %v1538 = vsub.s32 %v1535, %v1537
    %v1539 = vrot.slane %v1529, %v1538
    %v1541 = vunpack.c.l.s4 1983009808
    %v1542 = vunpack.c.0.s8 %v1541
    %v1543 = vlaneseq
    %v1544 = vshrl.u32 %v1543, 7
    %v1545 = vsub.s32 %v1542, %v1544
    %v1546 = vrot.slane %v1530, %v1545
    %v1548 = vunpack.c.l.s4 1983009808
    %v1549 = vunpack.c.0.s8 %v1548
    %v1550 = vlaneseq
    %v1551 = vshrl.u32 %v1550, 7
    %v1552 = vsub.s32 %v1549, %v1551
    %v1553 = vrot.slane %v1531, %v1552
    %v1555 = vunpack.c.l.s4 1983009808
    %v1556 = vunpack.c.0.s8 %v1555
    %v1557 = vlaneseq
    %v1558 = vshrl.u32 %v1557, 7
    %v1559 = vsub.s32 %v1556, %v1558
    %v1560 = vrot.slane %v1532, %v1559
    %v1561 = vcombine.low %v1539, %v1553
    %v1562 = vcombine.high %v1539, %v1553
    %v1563 = vcombine.low %v1546, %v1560
    %v1564 = vcombine.high %v1546, %v1560
    %v1597 = vrot.slane %v1309, 7
    %v1598 = vrot.slane %v1597, 2
    %v1599 = vrot.slane %v1310, 7
    %v1600 = vrot.slane %v1599, 2
    %v1601 = vrot.slane %v1311, 7
    %v1602 = vrot.slane %v1601, 2
    %v1603 = vrot.slane %v1312, 7
    %v1604 = vrot.slane %v1603, 2
    %v1605 = vrot.slane %v1345, 7
    %v1606 = vrot.slane %v1605, 2
    %v1607 = vrot.slane %v1346, 7
    %v1608 = vrot.slane %v1607, 2
    %v1609 = vrot.slane %v1347, 7
    %v1610 = vrot.slane %v1609, 2
    %v1611 = vrot.slane %v1348, 7
    %v1612 = vrot.slane %v1611, 2
    %v1613 = vrot.slane %v1381, 7
    %v1614 = vrot.slane %v1613, 2
    %v1615 = vrot.slane %v1382, 7
    %v1616 = vrot.slane %v1615, 2
    %v1617 = vrot.slane %v1383, 7
    %v1618 = vrot.slane %v1617, 2
    %v1619 = vrot.slane %v1384, 7
    %v1620 = vrot.slane %v1619, 2
    %v1621 = vrot.slane %v1417, 7
    %v1622 = vrot.slane %v1621, 2
    %v1623 = vrot.slane %v1418, 7
    %v1624 = vrot.slane %v1623, 2
    %v1625 = vrot.slane %v1419, 7
    %v1626 = vrot.slane %v1625, 2
    %v1627 = vrot.slane %v1420, 7
    %v1628 = vrot.slane %v1627, 2
    %v1629 = vrot.slane %v1453, 7
    %v1630 = vrot.slane %v1629, 2
    %v1631 = vrot.slane %v1454, 7
    %v1632 = vrot.slane %v1631, 2
    %v1633 = vrot.slane %v1455, 7
    %v1634 = vrot.slane %v1633, 2
    %v1635 = vrot.slane %v1456, 7
    %v1636 = vrot.slane %v1635, 2
    %v1637 = vrot.slane %v1489, 7
    %v1638 = vrot.slane %v1637, 2
    %v1639 = vrot.slane %v1490, 7
    %v1640 = vrot.slane %v1639, 2
    %v1641 = vrot.slane %v1491, 7
    %v1642 = vrot.slane %v1641, 2
    %v1643 = vrot.slane %v1492, 7
    %v1644 = vrot.slane %v1643, 2
    %v1645 = vrot.slane %v1525, 7
    %v1646 = vrot.slane %v1645, 2
    %v1647 = vrot.slane %v1526, 7
    %v1648 = vrot.slane %v1647, 2
    %v1649 = vrot.slane %v1527, 7
    %v1650 = vrot.slane %v1649, 2
    %v1651 = vrot.slane %v1528, 7
    %v1652 = vrot.slane %v1651, 2
    %v1653 = vrot.slane %v1561, 7
    %v1654 = vrot.slane %v1653, 2
    %v1655 = vrot.slane %v1562, 7
    %v1656 = vrot.slane %v1655, 2
    %v1657 = vrot.slane %v1563, 7
    %v1658 = vrot.slane %v1657, 2
    %v1659 = vrot.slane %v1564, 7
    %v1660 = vrot.slane %v1659, 2
    %v1693 = vadd.f32 %v1309, %v1598
    %v1694 = vadd.f32 %v1310, %v1600
    %v1695 = vadd.f32 %v1311, %v1602
    %v1696 = vadd.f32 %v1312, %v1604
    %v1697 = vadd.f32 %v1345, %v1606
    %v1698 = vadd.f32 %v1346, %v1608
    %v1699 = vadd.f32 %v1347, %v1610
    %v1700 = vadd.f32 %v1348, %v1612
    %v1701 = vadd.f32 %v1381, %v1614
    %v1702 = vadd.f32 %v1382, %v1616
    %v1703 = vadd.f32 %v1383, %v1618
    %v1704 = vadd.f32 %v1384, %v1620
    %v1705 = vadd.f32 %v1417, %v1622
    %v1706 = vadd.f32 %v1418, %v1624
    %v1707 = vadd.f32 %v1419, %v1626
    %v1708 = vadd.f32 %v1420, %v1628
    %v1709 = vadd.f32 %v1453, %v1630
    %v1710 = vadd.f32 %v1454, %v1632
    %v1711 = vadd.f32 %v1455, %v1634
    %v1712 = vadd.f32 %v1456, %v1636
    %v1713 = vadd.f32 %v1489, %v1638
    %v1714 = vadd.f32 %v1490, %v1640
    %v1715 = vadd.f32 %v1491, %v1642
    %v1716 = vadd.f32 %v1492, %v1644
    %v1717 = vadd.f32 %v1525, %v1646
    %v1718 = vadd.f32 %v1526, %v1648
    %v1719 = vadd.f32 %v1527, %v1650
    %v1720 = vadd.f32 %v1528, %v1652
    %v1721 = vadd.f32 %v1561, %v1654
    %v1722 = vadd.f32 %v1562, %v1656
    %v1723 = vadd.f32 %v1563, %v1658
    %v1724 = vadd.f32 %v1564, %v1660
    %v1757 = vlaneseq
    %v1758 = vshrl.u32 %v1757, 7
    %v1759 = vsub.s32 0, %v1758
    %v1760 = vrot.slane %v1693, %v1759
    %v1761 = vlaneseq
    %v1762 = vshrl.u32 %v1761, 7
    %v1763 = vsub.s32 2, %v1762
    %v1764 = vrot.slane %v1693, %v1763
    %v1765 = vlaneseq
    %v1766 = vshrl.u32 %v1765, 7
    %v1767 = vsub.s32 4, %v1766
    %v1768 = vrot.slane %v1693, %v1767
    %v1769 = vlaneseq
    %v1770 = vshrl.u32 %v1769, 7
    %v1771 = vsub.s32 6, %v1770
    %v1772 = vrot.slane %v1693, %v1771
    %v1773 = vlaneseq
    %v1774 = vshrl.u32 %v1773, 7
    %v1775 = vsub.s32 0, %v1774
    %v1776 = vrot.slane %v1694, %v1775
    %v1777 = vlaneseq
    %v1778 = vshrl.u32 %v1777, 7
    %v1779 = vsub.s32 2, %v1778
    %v1780 = vrot.slane %v1694, %v1779
    %v1781 = vlaneseq
    %v1782 = vshrl.u32 %v1781, 7
    %v1783 = vsub.s32 4, %v1782
    %v1784 = vrot.slane %v1694, %v1783
    %v1785 = vlaneseq
    %v1786 = vshrl.u32 %v1785, 7
    %v1787 = vsub.s32 6, %v1786
    %v1788 = vrot.slane %v1694, %v1787
    %v1789 = vlaneseq
    %v1790 = vshrl.u32 %v1789, 7
    %v1791 = vsub.s32 0, %v1790
    %v1792 = vrot.slane %v1695, %v1791
    %v1793 = vlaneseq
    %v1794 = vshrl.u32 %v1793, 7
    %v1795 = vsub.s32 2, %v1794
    %v1796 = vrot.slane %v1695, %v1795
    %v1797 = vlaneseq
    %v1798 = vshrl.u32 %v1797, 7
    %v1799 = vsub.s32 4, %v1798
    %v1800 = vrot.slane %v1695, %v1799
    %v1801 = vlaneseq
    %v1802 = vshrl.u32 %v1801, 7
    %v1803 = vsub.s32 6, %v1802
    %v1804 = vrot.slane %v1695, %v1803
    %v1805 = vlaneseq
    %v1806 = vshrl.u32 %v1805, 7
    %v1807 = vsub.s32 0, %v1806
    %v1808 = vrot.slane %v1696, %v1807
    %v1809 = vlaneseq
    %v1810 = vshrl.u32 %v1809, 7
    %v1811 = vsub.s32 2, %v1810
    %v1812 = vrot.slane %v1696, %v1811
    %v1813 = vlaneseq
    %v1814 = vshrl.u32 %v1813, 7
    %v1815 = vsub.s32 4, %v1814
    %v1816 = vrot.slane %v1696, %v1815
    %v1817 = vlaneseq
    %v1818 = vshrl.u32 %v1817, 7
    %v1819 = vsub.s32 6, %v1818
    %v1820 = vrot.slane %v1696, %v1819
    %v1821 = vlaneseq
    %v1822 = vshrl.u32 %v1821, 7
    %v1823 = vsub.s32 0, %v1822
    %v1824 = vrot.slane %v1697, %v1823
    %v1825 = vlaneseq
    %v1826 = vshrl.u32 %v1825, 7
    %v1827 = vsub.s32 2, %v1826
    %v1828 = vrot.slane %v1697, %v1827
    %v1829 = vlaneseq
    %v1830 = vshrl.u32 %v1829, 7
    %v1831 = vsub.s32 4, %v1830
    %v1832 = vrot.slane %v1697, %v1831
    %v1833 = vlaneseq
    %v1834 = vshrl.u32 %v1833, 7
    %v1835 = vsub.s32 6, %v1834
    %v1836 = vrot.slane %v1697, %v1835
    %v1837 = vlaneseq
    %v1838 = vshrl.u32 %v1837, 7
    %v1839 = vsub.s32 0, %v1838
    %v1840 = vrot.slane %v1698, %v1839
    %v1841 = vlaneseq
    %v1842 = vshrl.u32 %v1841, 7
    %v1843 = vsub.s32 2, %v1842
    %v1844 = vrot.slane %v1698, %v1843
    %v1845 = vlaneseq
    %v1846 = vshrl.u32 %v1845, 7
    %v1847 = vsub.s32 4, %v1846
    %v1848 = vrot.slane %v1698, %v1847
    %v1849 = vlaneseq
    %v1850 = vshrl.u32 %v1849, 7
    %v1851 = vsub.s32 6, %v1850
    %v1852 = vrot.slane %v1698, %v1851
    %v1853 = vlaneseq
    %v1854 = vshrl.u32 %v1853, 7
    %v1855 = vsub.s32 0, %v1854
    %v1856 = vrot.slane %v1699, %v1855
    %v1857 = vlaneseq
    %v1858 = vshrl.u32 %v1857, 7
    %v1859 = vsub.s32 2, %v1858
    %v1860 = vrot.slane %v1699, %v1859
    %v1861 = vlaneseq
    %v1862 = vshrl.u32 %v1861, 7
    %v1863 = vsub.s32 4, %v1862
    %v1864 = vrot.slane %v1699, %v1863
    %v1865 = vlaneseq
    %v1866 = vshrl.u32 %v1865, 7
    %v1867 = vsub.s32 6, %v1866
    %v1868 = vrot.slane %v1699, %v1867
    %v1869 = vlaneseq
    %v1870 = vshrl.u32 %v1869, 7
    %v1871 = vsub.s32 0, %v1870
    %v1872 = vrot.slane %v1700, %v1871
    %v1873 = vlaneseq
    %v1874 = vshrl.u32 %v1873, 7
    %v1875 = vsub.s32 2, %v1874
    %v1876 = vrot.slane %v1700, %v1875
    %v1877 = vlaneseq
    %v1878 = vshrl.u32 %v1877, 7
    %v1879 = vsub.s32 4, %v1878
    %v1880 = vrot.slane %v1700, %v1879
    %v1881 = vlaneseq
    %v1882 = vshrl.u32 %v1881, 7
    %v1883 = vsub.s32 6, %v1882
    %v1884 = vrot.slane %v1700, %v1883
    %v1885 = vlaneseq
    %v1886 = vshrl.u32 %v1885, 7
    %v1887 = vsub.s32 0, %v1886
    %v1888 = vrot.slane %v1701, %v1887
    %v1889 = vlaneseq
    %v1890 = vshrl.u32 %v1889, 7
    %v1891 = vsub.s32 2, %v1890
    %v1892 = vrot.slane %v1701, %v1891
    %v1893 = vlaneseq
    %v1894 = vshrl.u32 %v1893, 7
    %v1895 = vsub.s32 4, %v1894
    %v1896 = vrot.slane %v1701, %v1895
    %v1897 = vlaneseq
    %v1898 = vshrl.u32 %v1897, 7
    %v1899 = vsub.s32 6, %v1898
    %v1900 = vrot.slane %v1701, %v1899
    %v1901 = vlaneseq
    %v1902 = vshrl.u32 %v1901, 7
    %v1903 = vsub.s32 0, %v1902
    %v1904 = vrot.slane %v1702, %v1903
    %v1905 = vlaneseq
    %v1906 = vshrl.u32 %v1905, 7
    %v1907 = vsub.s32 2, %v1906
    %v1908 = vrot.slane %v1702, %v1907
    %v1909 = vlaneseq
    %v1910 = vshrl.u32 %v1909, 7
    %v1911 = vsub.s32 4, %v1910
    %v1912 = vrot.slane %v1702, %v1911
    %v1913 = vlaneseq
    %v1914 = vshrl.u32 %v1913, 7
    %v1915 = vsub.s32 6, %v1914
    %v1916 = vrot.slane %v1702, %v1915
    %v1917 = vlaneseq
    %v1918 = vshrl.u32 %v1917, 7
    %v1919 = vsub.s32 0, %v1918
    %v1920 = vrot.slane %v1703, %v1919
    %v1921 = vlaneseq
    %v1922 = vshrl.u32 %v1921, 7
    %v1923 = vsub.s32 2, %v1922
    %v1924 = vrot.slane %v1703, %v1923
    %v1925 = vlaneseq
    %v1926 = vshrl.u32 %v1925, 7
    %v1927 = vsub.s32 4, %v1926
    %v1928 = vrot.slane %v1703, %v1927
    %v1929 = vlaneseq
    %v1930 = vshrl.u32 %v1929, 7
    %v1931 = vsub.s32 6, %v1930
    %v1932 = vrot.slane %v1703, %v1931
    %v1933 = vlaneseq
    %v1934 = vshrl.u32 %v1933, 7
    %v1935 = vsub.s32 0, %v1934
    %v1936 = vrot.slane %v1704, %v1935
    %v1937 = vlaneseq
    %v1938 = vshrl.u32 %v1937, 7
    %v1939 = vsub.s32 2, %v1938
    %v1940 = vrot.slane %v1704, %v1939
    %v1941 = vlaneseq
    %v1942 = vshrl.u32 %v1941, 7
    %v1943 = vsub.s32 4, %v1942
    %v1944 = vrot.slane %v1704, %v1943
    %v1945 = vlaneseq
    %v1946 = vshrl.u32 %v1945, 7
    %v1947 = vsub.s32 6, %v1946
    %v1948 = vrot.slane %v1704, %v1947
    %v1949 = vlaneseq
    %v1950 = vshrl.u32 %v1949, 7
    %v1951 = vsub.s32 0, %v1950
    %v1952 = vrot.slane %v1705, %v1951
    %v1953 = vlaneseq
    %v1954 = vshrl.u32 %v1953, 7
    %v1955 = vsub.s32 2, %v1954
    %v1956 = vrot.slane %v1705, %v1955
    %v1957 = vlaneseq
    %v1958 = vshrl.u32 %v1957, 7
    %v1959 = vsub.s32 4, %v1958
    %v1960 = vrot.slane %v1705, %v1959
    %v1961 = vlaneseq
    %v1962 = vshrl.u32 %v1961, 7
    %v1963 = vsub.s32 6, %v1962
    %v1964 = vrot.slane %v1705, %v1963
    %v1965 = vlaneseq
    %v1966 = vshrl.u32 %v1965, 7
    %v1967 = vsub.s32 0, %v1966
    %v1968 = vrot.slane %v1706, %v1967
    %v1969 = vlaneseq
    %v1970 = vshrl.u32 %v1969, 7
    %v1971 = vsub.s32 2, %v1970
    %v1972 = vrot.slane %v1706, %v1971
    %v1973 = vlaneseq
    %v1974 = vshrl.u32 %v1973, 7
    %v1975 = vsub.s32 4, %v1974
    %v1976 = vrot.slane %v1706, %v1975
    %v1977 = vlaneseq
    %v1978 = vshrl.u32 %v1977, 7
    %v1979 = vsub.s32 6, %v1978
    %v1980 = vrot.slane %v1706, %v1979
    %v1981 = vlaneseq
    %v1982 = vshrl.u32 %v1981, 7
    %v1983 = vsub.s32 0, %v1982
    %v1984 = vrot.slane %v1707, %v1983
    %v1985 = vlaneseq
    %v1986 = vshrl.u32 %v1985, 7
    %v1987 = vsub.s32 2, %v1986
    %v1988 = vrot.slane %v1707, %v1987
    %v1989 = vlaneseq
    %v1990 = vshrl.u32 %v1989, 7
    %v1991 = vsub.s32 4, %v1990
    %v1992 = vrot.slane %v1707, %v1991
    %v1993 = vlaneseq
    %v1994 = vshrl.u32 %v1993, 7
    %v1995 = vsub.s32 6, %v1994
    %v1996 = vrot.slane %v1707, %v1995
    %v1997 = vlaneseq
    %v1998 = vshrl.u32 %v1997, 7
    %v1999 = vsub.s32 0, %v1998
    %v2000 = vrot.slane %v1708, %v1999
    %v2001 = vlaneseq
    %v2002 = vshrl.u32 %v2001, 7
    %v2003 = vsub.s32 2, %v2002
    %v2004 = vrot.slane %v1708, %v2003
    %v2005 = vlaneseq
    %v2006 = vshrl.u32 %v2005, 7
    %v2007 = vsub.s32 4, %v2006
    %v2008 = vrot.slane %v1708, %v2007
    %v2009 = vlaneseq
    %v2010 = vshrl.u32 %v2009, 7
    %v2011 = vsub.s32 6, %v2010
    %v2012 = vrot.slane %v1708, %v2011
    %v2013 = vlaneseq
    %v2014 = vshrl.u32 %v2013, 7
    %v2015 = vsub.s32 0, %v2014
    %v2016 = vrot.slane %v1709, %v2015
    %v2017 = vlaneseq
    %v2018 = vshrl.u32 %v2017, 7
    %v2019 = vsub.s32 2, %v2018
    %v2020 = vrot.slane %v1709, %v2019
    %v2021 = vlaneseq
    %v2022 = vshrl.u32 %v2021, 7
    %v2023 = vsub.s32 4, %v2022
    %v2024 = vrot.slane %v1709, %v2023
    %v2025 = vlaneseq
    %v2026 = vshrl.u32 %v2025, 7
    %v2027 = vsub.s32 6, %v2026
    %v2028 = vrot.slane %v1709, %v2027
    %v2029 = vlaneseq
    %v2030 = vshrl.u32 %v2029, 7
    %v2031 = vsub.s32 0, %v2030
    %v2032 = vrot.slane %v1710, %v2031
    %v2033 = vlaneseq
    %v2034 = vshrl.u32 %v2033, 7
    %v2035 = vsub.s32 2, %v2034
    %v2036 = vrot.slane %v1710, %v2035
    %v2037 = vlaneseq
    %v2038 = vshrl.u32 %v2037, 7
    %v2039 = vsub.s32 4, %v2038
    %v2040 = vrot.slane %v1710, %v2039
    %v2041 = vlaneseq
    %v2042 = vshrl.u32 %v2041, 7
    %v2043 = vsub.s32 6, %v2042
    %v2044 = vrot.slane %v1710, %v2043
    %v2045 = vlaneseq
    %v2046 = vshrl.u32 %v2045, 7
    %v2047 = vsub.s32 0, %v2046
    %v2048 = vrot.slane %v1711, %v2047
    %v2049 = vlaneseq
    %v2050 = vshrl.u32 %v2049, 7
    %v2051 = vsub.s32 2, %v2050
    %v2052 = vrot.slane %v1711, %v2051
    %v2053 = vlaneseq
    %v2054 = vshrl.u32 %v2053, 7
    %v2055 = vsub.s32 4, %v2054
    %v2056 = vrot.slane %v1711, %v2055
    %v2057 = vlaneseq
    %v2058 = vshrl.u32 %v2057, 7
    %v2059 = vsub.s32 6, %v2058
    %v2060 = vrot.slane %v1711, %v2059
    %v2061 = vlaneseq
    %v2062 = vshrl.u32 %v2061, 7
    %v2063 = vsub.s32 0, %v2062
    %v2064 = vrot.slane %v1712, %v2063
    %v2065 = vlaneseq
    %v2066 = vshrl.u32 %v2065, 7
    %v2067 = vsub.s32 2, %v2066
    %v2068 = vrot.slane %v1712, %v2067
    %v2069 = vlaneseq
    %v2070 = vshrl.u32 %v2069, 7
    %v2071 = vsub.s32 4, %v2070
    %v2072 = vrot.slane %v1712, %v2071
    %v2073 = vlaneseq
    %v2074 = vshrl.u32 %v2073, 7
    %v2075 = vsub.s32 6, %v2074
    %v2076 = vrot.slane %v1712, %v2075
    %v2077 = vlaneseq
    %v2078 = vshrl.u32 %v2077, 7
    %v2079 = vsub.s32 0, %v2078
    %v2080 = vrot.slane %v1713, %v2079
    %v2081 = vlaneseq
    %v2082 = vshrl.u32 %v2081, 7
    %v2083 = vsub.s32 2, %v2082
    %v2084 = vrot.slane %v1713, %v2083
    %v2085 = vlaneseq
    %v2086 = vshrl.u32 %v2085, 7
    %v2087 = vsub.s32 4, %v2086
    %v2088 = vrot.slane %v1713, %v2087
    %v2089 = vlaneseq
    %v2090 = vshrl.u32 %v2089, 7
    %v2091 = vsub.s32 6, %v2090
    %v2092 = vrot.slane %v1713, %v2091
    %v2093 = vlaneseq
    %v2094 = vshrl.u32 %v2093, 7
    %v2095 = vsub.s32 0, %v2094
    %v2096 = vrot.slane %v1714, %v2095
    %v2097 = vlaneseq
    %v2098 = vshrl.u32 %v2097, 7
    %v2099 = vsub.s32 2, %v2098
    %v2100 = vrot.slane %v1714, %v2099
    %v2101 = vlaneseq
    %v2102 = vshrl.u32 %v2101, 7
    %v2103 = vsub.s32 4, %v2102
    %v2104 = vrot.slane %v1714, %v2103
    %v2105 = vlaneseq
    %v2106 = vshrl.u32 %v2105, 7
    %v2107 = vsub.s32 6, %v2106
    %v2108 = vrot.slane %v1714, %v2107
    %v2109 = vlaneseq
    %v2110 = vshrl.u32 %v2109, 7
    %v2111 = vsub.s32 0, %v2110
    %v2112 = vrot.slane %v1715, %v2111
    %v2113 = vlaneseq
    %v2114 = vshrl.u32 %v2113, 7
    %v2115 = vsub.s32 2, %v2114
    %v2116 = vrot.slane %v1715, %v2115
    %v2117 = vlaneseq
    %v2118 = vshrl.u32 %v2117, 7
    %v2119 = vsub.s32 4, %v2118
    %v2120 = vrot.slane %v1715, %v2119
    %v2121 = vlaneseq
    %v2122 = vshrl.u32 %v2121, 7
    %v2123 = vsub.s32 6, %v2122
    %v2124 = vrot.slane %v1715, %v2123
    %v2125 = vlaneseq
    %v2126 = vshrl.u32 %v2125, 7
    %v2127 = vsub.s32 0, %v2126
    %v2128 = vrot.slane %v1716, %v2127
    %v2129 = vlaneseq
    %v2130 = vshrl.u32 %v2129, 7
    %v2131 = vsub.s32 2, %v2130
    %v2132 = vrot.slane %v1716, %v2131
    %v2133 = vlaneseq
    %v2134 = vshrl.u32 %v2133, 7
    %v2135 = vsub.s32 4, %v2134
    %v2136 = vrot.slane %v1716, %v2135
    %v2137 = vlaneseq
    %v2138 = vshrl.u32 %v2137, 7
    %v2139 = vsub.s32 6, %v2138
    %v2140 = vrot.slane %v1716, %v2139
    %v2141 = vlaneseq
    %v2142 = vshrl.u32 %v2141, 7
    %v2143 = vsub.s32 0, %v2142
    %v2144 = vrot.slane %v1717, %v2143
    %v2145 = vlaneseq
    %v2146 = vshrl.u32 %v2145, 7
    %v2147 = vsub.s32 2, %v2146
    %v2148 = vrot.slane %v1717, %v2147
    %v2149 = vlaneseq
    %v2150 = vshrl.u32 %v2149, 7
    %v2151 = vsub.s32 4, %v2150
    %v2152 = vrot.slane %v1717, %v2151
    %v2153 = vlaneseq
    %v2154 = vshrl.u32 %v2153, 7
    %v2155 = vsub.s32 6, %v2154
    %v2156 = vrot.slane %v1717, %v2155
    %v2157 = vlaneseq
    %v2158 = vshrl.u32 %v2157, 7
    %v2159 = vsub.s32 0, %v2158
    %v2160 = vrot.slane %v1718, %v2159
    %v2161 = vlaneseq
    %v2162 = vshrl.u32 %v2161, 7
    %v2163 = vsub.s32 2, %v2162
    %v2164 = vrot.slane %v1718, %v2163
    %v2165 = vlaneseq
    %v2166 = vshrl.u32 %v2165, 7
    %v2167 = vsub.s32 4, %v2166
    %v2168 = vrot.slane %v1718, %v2167
    %v2169 = vlaneseq
    %v2170 = vshrl.u32 %v2169, 7
    %v2171 = vsub.s32 6, %v2170
    %v2172 = vrot.slane %v1718, %v2171
    %v2173 = vlaneseq
    %v2174 = vshrl.u32 %v2173, 7
    %v2175 = vsub.s32 0, %v2174
    %v2176 = vrot.slane %v1719, %v2175
    %v2177 = vlaneseq
    %v2178 = vshrl.u32 %v2177, 7
    %v2179 = vsub.s32 2, %v2178
    %v2180 = vrot.slane %v1719, %v2179
    %v2181 = vlaneseq
    %v2182 = vshrl.u32 %v2181, 7
    %v2183 = vsub.s32 4, %v2182
    %v2184 = vrot.slane %v1719, %v2183
    %v2185 = vlaneseq
    %v2186 = vshrl.u32 %v2185, 7
    %v2187 = vsub.s32 6, %v2186
    %v2188 = vrot.slane %v1719, %v2187
    %v2189 = vlaneseq
    %v2190 = vshrl.u32 %v2189, 7
    %v2191 = vsub.s32 0, %v2190
    %v2192 = vrot.slane %v1720, %v2191
    %v2193 = vlaneseq
    %v2194 = vshrl.u32 %v2193, 7
    %v2195 = vsub.s32 2, %v2194
    %v2196 = vrot.slane %v1720, %v2195
    %v2197 = vlaneseq
    %v2198 = vshrl.u32 %v2197, 7
    %v2199 = vsub.s32 4, %v2198
    %v2200 = vrot.slane %v1720, %v2199
    %v2201 = vlaneseq
    %v2202 = vshrl.u32 %v2201, 7
    %v2203 = vsub.s32 6, %v2202
    %v2204 = vrot.slane %v1720, %v2203
    %v2205 = vlaneseq
    %v2206 = vshrl.u32 %v2205, 7
    %v2207 = vsub.s32 0, %v2206
    %v2208 = vrot.slane %v1721, %v2207
    %v2209 = vlaneseq
    %v2210 = vshrl.u32 %v2209, 7
    %v2211 = vsub.s32 2, %v2210
    %v2212 = vrot.slane %v1721, %v2211
    %v2213 = vlaneseq
    %v2214 = vshrl.u32 %v2213, 7
    %v2215 = vsub.s32 4, %v2214
    %v2216 = vrot.slane %v1721, %v2215
    %v2217 = vlaneseq
    %v2218 = vshrl.u32 %v2217, 7
    %v2219 = vsub.s32 6, %v2218
    %v2220 = vrot.slane %v1721, %v2219
    %v2221 = vlaneseq
    %v2222 = vshrl.u32 %v2221, 7
    %v2223 = vsub.s32 0, %v2222
    %v2224 = vrot.slane %v1722, %v2223
    %v2225 = vlaneseq
    %v2226 = vshrl.u32 %v2225, 7
    %v2227 = vsub.s32 2, %v2226
    %v2228 = vrot.slane %v1722, %v2227
    %v2229 = vlaneseq
    %v2230 = vshrl.u32 %v2229, 7
    %v2231 = vsub.s32 4, %v2230
    %v2232 = vrot.slane %v1722, %v2231
    %v2233 = vlaneseq
    %v2234 = vshrl.u32 %v2233, 7
    %v2235 = vsub.s32 6, %v2234
    %v2236 = vrot.slane %v1722, %v2235
    %v2237 = vlaneseq
    %v2238 = vshrl.u32 %v2237, 7
    %v2239 = vsub.s32 0, %v2238
    %v2240 = vrot.slane %v1723, %v2239
    %v2241 = vlaneseq
    %v2242 = vshrl.u32 %v2241, 7
    %v2243 = vsub.s32 2, %v2242
    %v2244 = vrot.slane %v1723, %v2243
    %v2245 = vlaneseq
    %v2246 = vshrl.u32 %v2245, 7
    %v2247 = vsub.s32 4, %v2246
    %v2248 = vrot.slane %v1723, %v2247
    %v2249 = vlaneseq
    %v2250 = vshrl.u32 %v2249, 7
    %v2251 = vsub.s32 6, %v2250
    %v2252 = vrot.slane %v1723, %v2251
    %v2253 = vlaneseq
    %v2254 = vshrl.u32 %v2253, 7
    %v2255 = vsub.s32 0, %v2254
    %v2256 = vrot.slane %v1724, %v2255
    %v2257 = vlaneseq
    %v2258 = vshrl.u32 %v2257, 7
    %v2259 = vsub.s32 2, %v2258
    %v2260 = vrot.slane %v1724, %v2259
    %v2261 = vlaneseq
    %v2262 = vshrl.u32 %v2261, 7
    %v2263 = vsub.s32 4, %v2262
    %v2264 = vrot.slane %v1724, %v2263
    %v2265 = vlaneseq
    %v2266 = vshrl.u32 %v2265, 7
    %v2267 = vsub.s32 6, %v2266
    %v2268 = vrot.slane %v1724, %v2267
    %v2397 = vpack.c.bf16 %v1760, %v1760
    %v2398 = vpack.c.bf16 %v1764, %v1764
    %v2399 = vpack.c.bf16 %v1768, %v1768
    %v2400 = vpack.c.bf16 %v1772, %v1772
    %v2401 = vpack.c.bf16 %v1776, %v1776
    %v2402 = vpack.c.bf16 %v1780, %v1780
    %v2403 = vpack.c.bf16 %v1784, %v1784
    %v2404 = vpack.c.bf16 %v1788, %v1788
    %v2405 = vpack.c.bf16 %v1792, %v1792
    %v2406 = vpack.c.bf16 %v1796, %v1796
    %v2407 = vpack.c.bf16 %v1800, %v1800
    %v2408 = vpack.c.bf16 %v1804, %v1804
    %v2409 = vpack.c.bf16 %v1808, %v1808
    %v2410 = vpack.c.bf16 %v1812, %v1812
    %v2411 = vpack.c.bf16 %v1816, %v1816
    %v2412 = vpack.c.bf16 %v1820, %v1820
    %v2413 = vpack.c.bf16 %v1824, %v1824
    %v2414 = vpack.c.bf16 %v1828, %v1828
    %v2415 = vpack.c.bf16 %v1832, %v1832
    %v2416 = vpack.c.bf16 %v1836, %v1836
    %v2417 = vpack.c.bf16 %v1840, %v1840
    %v2418 = vpack.c.bf16 %v1844, %v1844
    %v2419 = vpack.c.bf16 %v1848, %v1848
    %v2420 = vpack.c.bf16 %v1852, %v1852
    %v2421 = vpack.c.bf16 %v1856, %v1856
    %v2422 = vpack.c.bf16 %v1860, %v1860
    %v2423 = vpack.c.bf16 %v1864, %v1864
    %v2424 = vpack.c.bf16 %v1868, %v1868
    %v2425 = vpack.c.bf16 %v1872, %v1872
    %v2426 = vpack.c.bf16 %v1876, %v1876
    %v2427 = vpack.c.bf16 %v1880, %v1880
    %v2428 = vpack.c.bf16 %v1884, %v1884
    %v2429 = vpack.c.bf16 %v1888, %v1888
    %v2430 = vpack.c.bf16 %v1892, %v1892
    %v2431 = vpack.c.bf16 %v1896, %v1896
    %v2432 = vpack.c.bf16 %v1900, %v1900
    %v2433 = vpack.c.bf16 %v1904, %v1904
    %v2434 = vpack.c.bf16 %v1908, %v1908
    %v2435 = vpack.c.bf16 %v1912, %v1912
    %v2436 = vpack.c.bf16 %v1916, %v1916
    %v2437 = vpack.c.bf16 %v1920, %v1920
    %v2438 = vpack.c.bf16 %v1924, %v1924
    %v2439 = vpack.c.bf16 %v1928, %v1928
    %v2440 = vpack.c.bf16 %v1932, %v1932
    %v2441 = vpack.c.bf16 %v1936, %v1936
    %v2442 = vpack.c.bf16 %v1940, %v1940
    %v2443 = vpack.c.bf16 %v1944, %v1944
    %v2444 = vpack.c.bf16 %v1948, %v1948
    %v2445 = vpack.c.bf16 %v1952, %v1952
    %v2446 = vpack.c.bf16 %v1956, %v1956
    %v2447 = vpack.c.bf16 %v1960, %v1960
    %v2448 = vpack.c.bf16 %v1964, %v1964
    %v2449 = vpack.c.bf16 %v1968, %v1968
    %v2450 = vpack.c.bf16 %v1972, %v1972
    %v2451 = vpack.c.bf16 %v1976, %v1976
    %v2452 = vpack.c.bf16 %v1980, %v1980
    %v2453 = vpack.c.bf16 %v1984, %v1984
    %v2454 = vpack.c.bf16 %v1988, %v1988
    %v2455 = vpack.c.bf16 %v1992, %v1992
    %v2456 = vpack.c.bf16 %v1996, %v1996
    %v2457 = vpack.c.bf16 %v2000, %v2000
    %v2458 = vpack.c.bf16 %v2004, %v2004
    %v2459 = vpack.c.bf16 %v2008, %v2008
    %v2460 = vpack.c.bf16 %v2012, %v2012
    %v2461 = vpack.c.bf16 %v2016, %v2016
    %v2462 = vpack.c.bf16 %v2020, %v2020
    %v2463 = vpack.c.bf16 %v2024, %v2024
    %v2464 = vpack.c.bf16 %v2028, %v2028
    %v2465 = vpack.c.bf16 %v2032, %v2032
    %v2466 = vpack.c.bf16 %v2036, %v2036
    %v2467 = vpack.c.bf16 %v2040, %v2040
    %v2468 = vpack.c.bf16 %v2044, %v2044
    %v2469 = vpack.c.bf16 %v2048, %v2048
    %v2470 = vpack.c.bf16 %v2052, %v2052
    %v2471 = vpack.c.bf16 %v2056, %v2056
    %v2472 = vpack.c.bf16 %v2060, %v2060
    %v2473 = vpack.c.bf16 %v2064, %v2064
    %v2474 = vpack.c.bf16 %v2068, %v2068
    %v2475 = vpack.c.bf16 %v2072, %v2072
    %v2476 = vpack.c.bf16 %v2076, %v2076
    %v2477 = vpack.c.bf16 %v2080, %v2080
    %v2478 = vpack.c.bf16 %v2084, %v2084
    %v2479 = vpack.c.bf16 %v2088, %v2088
    %v2480 = vpack.c.bf16 %v2092, %v2092
    %v2481 = vpack.c.bf16 %v2096, %v2096
    %v2482 = vpack.c.bf16 %v2100, %v2100
    %v2483 = vpack.c.bf16 %v2104, %v2104
    %v2484 = vpack.c.bf16 %v2108, %v2108
    %v2485 = vpack.c.bf16 %v2112, %v2112
    %v2486 = vpack.c.bf16 %v2116, %v2116
    %v2487 = vpack.c.bf16 %v2120, %v2120
    %v2488 = vpack.c.bf16 %v2124, %v2124
    %v2489 = vpack.c.bf16 %v2128, %v2128
    %v2490 = vpack.c.bf16 %v2132, %v2132
    %v2491 = vpack.c.bf16 %v2136, %v2136
    %v2492 = vpack.c.bf16 %v2140, %v2140
    %v2493 = vpack.c.bf16 %v2144, %v2144
    %v2494 = vpack.c.bf16 %v2148, %v2148
    %v2495 = vpack.c.bf16 %v2152, %v2152
    %v2496 = vpack.c.bf16 %v2156, %v2156
    %v2497 = vpack.c.bf16 %v2160, %v2160
    %v2498 = vpack.c.bf16 %v2164, %v2164
    %v2499 = vpack.c.bf16 %v2168, %v2168
    %v2500 = vpack.c.bf16 %v2172, %v2172
    %v2501 = vpack.c.bf16 %v2176, %v2176
    %v2502 = vpack.c.bf16 %v2180, %v2180
    %v2503 = vpack.c.bf16 %v2184, %v2184
    %v2504 = vpack.c.bf16 %v2188, %v2188
    %v2505 = vpack.c.bf16 %v2192, %v2192
    %v2506 = vpack.c.bf16 %v2196, %v2196
    %v2507 = vpack.c.bf16 %v2200, %v2200
    %v2508 = vpack.c.bf16 %v2204, %v2204
    %v2509 = vpack.c.bf16 %v2208, %v2208
    %v2510 = vpack.c.bf16 %v2212, %v2212
    %v2511 = vpack.c.bf16 %v2216, %v2216
    %v2512 = vpack.c.bf16 %v2220, %v2220
    %v2513 = vpack.c.bf16 %v2224, %v2224
    %v2514 = vpack.c.bf16 %v2228, %v2228
    %v2515 = vpack.c.bf16 %v2232, %v2232
    %v2516 = vpack.c.bf16 %v2236, %v2236
    %v2517 = vpack.c.bf16 %v2240, %v2240
    %v2518 = vpack.c.bf16 %v2244, %v2244
    %v2519 = vpack.c.bf16 %v2248, %v2248
    %v2520 = vpack.c.bf16 %v2252, %v2252
    %v2521 = vpack.c.bf16 %v2256, %v2256
    %v2522 = vpack.c.bf16 %v2260, %v2260
    %v2523 = vpack.c.bf16 %v2264, %v2264
    %v2524 = vpack.c.bf16 %v2268, %v2268
    %v2525 = vld [vmem:[#allocation9] sm:$0xff]
    %v2526 = vld [vmem:[#allocation9 + $0x8] sm:$0xf]
    %v2527 = vld [vmem:[#allocation9 + $0xc] sm:$0xff]
    %v2528 = vld [vmem:[#allocation9 + $0x14] sm:$0xf]
    %v2529 = vld [vmem:[#allocation9 + $0x18] sm:$0xff]
    %v2530 = vld [vmem:[#allocation9 + $0x20] sm:$0xf]
    %v2531 = vld [vmem:[#allocation9 + $0x24] sm:$0xff]
    %v2532 = vld [vmem:[#allocation9 + $0x2c] sm:$0xf]
    %v2533 = vld [vmem:[#allocation9 + $0x30] sm:$0xff]
    %v2534 = vld [vmem:[#allocation9 + $0x38] sm:$0xf]
    %v2535 = vld [vmem:[#allocation9 + $0x3c] sm:$0xff]
    %v2536 = vld [vmem:[#allocation9 + $0x44] sm:$0xf]
    %v2537 = vld [vmem:[#allocation9 + $0x48] sm:$0xff]
    %v2538 = vld [vmem:[#allocation9 + $0x50] sm:$0xf]
    %v2539 = vld [vmem:[#allocation9 + $0x54] sm:$0xff]
    %v2540 = vld [vmem:[#allocation9 + $0x5c] sm:$0xf]
    %v2541 = vld [vmem:[#allocation9 + $0x60] sm:$0xff]
    %v2542 = vld [vmem:[#allocation9 + $0x68] sm:$0xf]
    %v2543 = vld [vmem:[#allocation9 + $0x6c] sm:$0xff]
    %v2544 = vld [vmem:[#allocation9 + $0x74] sm:$0xf]
    %v2545 = vld [vmem:[#allocation9 + $0x78] sm:$0xff]
    %v2546 = vld [vmem:[#allocation9 + $0x80] sm:$0xf]
    %v2547 = vld [vmem:[#allocation9 + $0x84] sm:$0xff]
    %v2548 = vld [vmem:[#allocation9 + $0x8c] sm:$0xf]
    %v2549 = vld [vmem:[#allocation9 + $0x90] sm:$0xff]
    %v2550 = vld [vmem:[#allocation9 + $0x98] sm:$0xf]
    %v2551 = vld [vmem:[#allocation9 + $0x9c] sm:$0xff]
    %v2552 = vld [vmem:[#allocation9 + $0xa4] sm:$0xf]
    %v2553 = vld [vmem:[#allocation9 + $0xa8] sm:$0xff]
    %v2554 = vld [vmem:[#allocation9 + $0xb0] sm:$0xf]
    %v2555 = vld [vmem:[#allocation9 + $0xb4] sm:$0xff]
    %v2556 = vld [vmem:[#allocation9 + $0xbc] sm:$0xf]
    %v2557 = vld [vmem:[#allocation9 + $0xc0] sm:$0xff]
    %v2558 = vld [vmem:[#allocation9 + $0xc8] sm:$0xf]
    %v2559 = vld [vmem:[#allocation9 + $0xcc] sm:$0xff]
    %v2560 = vld [vmem:[#allocation9 + $0xd4] sm:$0xf]
    %v2561 = vld [vmem:[#allocation9 + $0xd8] sm:$0xff]
    %v2562 = vld [vmem:[#allocation9 + $0xe0] sm:$0xf]
    %v2563 = vld [vmem:[#allocation9 + $0xe4] sm:$0xff]
    %v2564 = vld [vmem:[#allocation9 + $0xec] sm:$0xf]
    %v2565 = vld [vmem:[#allocation9 + $0xf0] sm:$0xff]
    %v2566 = vld [vmem:[#allocation9 + $0xf8] sm:$0xf]
    %v2567 = vld [vmem:[#allocation9 + $0xfc] sm:$0xff]
    %v2568 = vld [vmem:[#allocation9 + $0x104] sm:$0xf]
    %v2569 = vld [vmem:[#allocation9 + $0x108] sm:$0xff]
    %v2570 = vld [vmem:[#allocation9 + $0x110] sm:$0xf]
    %v2571 = vld [vmem:[#allocation9 + $0x114] sm:$0xff]
    %v2572 = vld [vmem:[#allocation9 + $0x11c] sm:$0xf]
    %v2573 = vld [vmem:[#allocation9 + $0x120] sm:$0xff]
    %v2574 = vld [vmem:[#allocation9 + $0x128] sm:$0xf]
    %v2575 = vld [vmem:[#allocation9 + $0x12c] sm:$0xff]
    %v2576 = vld [vmem:[#allocation9 + $0x134] sm:$0xf]
    %v2577 = vld [vmem:[#allocation9 + $0x138] sm:$0xff]
    %v2578 = vld [vmem:[#allocation9 + $0x140] sm:$0xf]
    %v2579 = vld [vmem:[#allocation9 + $0x144] sm:$0xff]
    %v2580 = vld [vmem:[#allocation9 + $0x14c] sm:$0xf]
    %v2581 = vld [vmem:[#allocation9 + $0x150] sm:$0xff]
    %v2582 = vld [vmem:[#allocation9 + $0x158] sm:$0xf]
    %v2583 = vld [vmem:[#allocation9 + $0x15c] sm:$0xff]
    %v2584 = vld [vmem:[#allocation9 + $0x164] sm:$0xf]
    %v2585 = vld [vmem:[#allocation9 + $0x168] sm:$0xff]
    %v2586 = vld [vmem:[#allocation9 + $0x170] sm:$0xf]
    %v2587 = vld [vmem:[#allocation9 + $0x174] sm:$0xff]
    %v2588 = vld [vmem:[#allocation9 + $0x17c] sm:$0xf]
    %v2589 = vld [vmem:[#allocation9 + $0x180] sm:$0xff]
    %v2590 = vld [vmem:[#allocation9 + $0x188] sm:$0xf]
    %v2591 = vld [vmem:[#allocation9 + $0x18c] sm:$0xff]
    %v2592 = vld [vmem:[#allocation9 + $0x194] sm:$0xf]
    %v2593 = vld [vmem:[#allocation9 + $0x198] sm:$0xff]
    %v2594 = vld [vmem:[#allocation9 + $0x1a0] sm:$0xf]
    %v2595 = vld [vmem:[#allocation9 + $0x1a4] sm:$0xff]
    %v2596 = vld [vmem:[#allocation9 + $0x1ac] sm:$0xf]
    %v2597 = vld [vmem:[#allocation9 + $0x1b0] sm:$0xff]
    %v2598 = vld [vmem:[#allocation9 + $0x1b8] sm:$0xf]
    %v2599 = vld [vmem:[#allocation9 + $0x1bc] sm:$0xff]
    %v2600 = vld [vmem:[#allocation9 + $0x1c4] sm:$0xf]
    %v2601 = vld [vmem:[#allocation9 + $0x1c8] sm:$0xff]
    %v2602 = vld [vmem:[#allocation9 + $0x1d0] sm:$0xf]
    %v2603 = vld [vmem:[#allocation9 + $0x1d4] sm:$0xff]
    %v2604 = vld [vmem:[#allocation9 + $0x1dc] sm:$0xf]
    %v2605 = vld [vmem:[#allocation9 + $0x1e0] sm:$0xff]
    %v2606 = vld [vmem:[#allocation9 + $0x1e8] sm:$0xf]
    %v2607 = vld [vmem:[#allocation9 + $0x1ec] sm:$0xff]
    %v2608 = vld [vmem:[#allocation9 + $0x1f4] sm:$0xf]
    %v2609 = vld [vmem:[#allocation9 + $0x1f8] sm:$0xff]
    %v2610 = vld [vmem:[#allocation9 + $0x200] sm:$0xf]
    %v2611 = vld [vmem:[#allocation9 + $0x204] sm:$0xff]
    %v2612 = vld [vmem:[#allocation9 + $0x20c] sm:$0xf]
    %v2613 = vld [vmem:[#allocation9 + $0x210] sm:$0xff]
    %v2614 = vld [vmem:[#allocation9 + $0x218] sm:$0xf]
    %v2615 = vld [vmem:[#allocation9 + $0x21c] sm:$0xff]
    %v2616 = vld [vmem:[#allocation9 + $0x224] sm:$0xf]
    %v2617 = vld [vmem:[#allocation9 + $0x228] sm:$0xff]
    %v2618 = vld [vmem:[#allocation9 + $0x230] sm:$0xf]
    %v2619 = vld [vmem:[#allocation9 + $0x234] sm:$0xff]
    %v2620 = vld [vmem:[#allocation9 + $0x23c] sm:$0xf]
    %v2621 = vld [vmem:[#allocation9 + $0x240] sm:$0xff]
    %v2622 = vld [vmem:[#allocation9 + $0x248] sm:$0xf]
    %v2623 = vld [vmem:[#allocation9 + $0x24c] sm:$0xff]
    %v2624 = vld [vmem:[#allocation9 + $0x254] sm:$0xf]
    %v2625 = vld [vmem:[#allocation9 + $0x258] sm:$0xff]
    %v2626 = vld [vmem:[#allocation9 + $0x260] sm:$0xf]
    %v2627 = vld [vmem:[#allocation9 + $0x264] sm:$0xff]
    %v2628 = vld [vmem:[#allocation9 + $0x26c] sm:$0xf]
    %v2629 = vld [vmem:[#allocation9 + $0x270] sm:$0xff]
    %v2630 = vld [vmem:[#allocation9 + $0x278] sm:$0xf]
    %v2631 = vld [vmem:[#allocation9 + $0x27c] sm:$0xff]
    %v2632 = vld [vmem:[#allocation9 + $0x284] sm:$0xf]
    %v2633 = vld [vmem:[#allocation9 + $0x288] sm:$0xff]
    %v2634 = vld [vmem:[#allocation9 + $0x290] sm:$0xf]
    %v2635 = vld [vmem:[#allocation9 + $0x294] sm:$0xff]
    %v2636 = vld [vmem:[#allocation9 + $0x29c] sm:$0xf]
    %v2637 = vld [vmem:[#allocation9 + $0x2a0] sm:$0xff]
    %v2638 = vld [vmem:[#allocation9 + $0x2a8] sm:$0xf]
    %v2639 = vld [vmem:[#allocation9 + $0x2ac] sm:$0xff]
    %v2640 = vld [vmem:[#allocation9 + $0x2b4] sm:$0xf]
    %v2641 = vld [vmem:[#allocation9 + $0x2b8] sm:$0xff]
    %v2642 = vld [vmem:[#allocation9 + $0x2c0] sm:$0xf]
    %v2643 = vld [vmem:[#allocation9 + $0x2c4] sm:$0xff]
    %v2644 = vld [vmem:[#allocation9 + $0x2cc] sm:$0xf]
    %v2645 = vld [vmem:[#allocation9 + $0x2d0] sm:$0xff]
    %v2646 = vld [vmem:[#allocation9 + $0x2d8] sm:$0xf]
    %v2647 = vld [vmem:[#allocation9 + $0x2dc] sm:$0xff]
    %v2648 = vld [vmem:[#allocation9 + $0x2e4] sm:$0xf]
    %v2649 = vld [vmem:[#allocation9 + $0x2e8] sm:$0xff]
    %v2650 = vld [vmem:[#allocation9 + $0x2f0] sm:$0xf]
    %v2651 = vld [vmem:[#allocation9 + $0x2f4] sm:$0xff]
    %v2652 = vld [vmem:[#allocation9 + $0x2fc] sm:$0xf]
    %v2781 = vunpack.c.l.b16 %v2397
    %v2782 = vunpack.c.l.b16 %v2398
    %v2783 = vunpack.c.l.b16 %v2399
    %v2784 = vunpack.c.l.b16 %v2400
    %v2785 = vunpack.c.l.b16 %v2401
    %v2786 = vunpack.c.l.b16 %v2402
    %v2787 = vunpack.c.l.b16 %v2403
    %v2788 = vunpack.c.l.b16 %v2404
    %v2789 = vunpack.c.l.b16 %v2405
    %v2790 = vunpack.c.l.b16 %v2406
    %v2791 = vunpack.c.l.b16 %v2407
    %v2792 = vunpack.c.l.b16 %v2408
    %v2793 = vunpack.c.l.b16 %v2409
    %v2794 = vunpack.c.l.b16 %v2410
    %v2795 = vunpack.c.l.b16 %v2411
    %v2796 = vunpack.c.l.b16 %v2412
    %v2797 = vunpack.c.l.b16 %v2413
    %v2798 = vunpack.c.l.b16 %v2414
    %v2799 = vunpack.c.l.b16 %v2415
    %v2800 = vunpack.c.l.b16 %v2416
    %v2801 = vunpack.c.l.b16 %v2417
    %v2802 = vunpack.c.l.b16 %v2418
    %v2803 = vunpack.c.l.b16 %v2419
    %v2804 = vunpack.c.l.b16 %v2420
    %v2805 = vunpack.c.l.b16 %v2421
    %v2806 = vunpack.c.l.b16 %v2422
    %v2807 = vunpack.c.l.b16 %v2423
    %v2808 = vunpack.c.l.b16 %v2424
    %v2809 = vunpack.c.l.b16 %v2425
    %v2810 = vunpack.c.l.b16 %v2426
    %v2811 = vunpack.c.l.b16 %v2427
    %v2812 = vunpack.c.l.b16 %v2428
    %v2813 = vunpack.c.l.b16 %v2429
    %v2814 = vunpack.c.l.b16 %v2430
    %v2815 = vunpack.c.l.b16 %v2431
    %v2816 = vunpack.c.l.b16 %v2432
    %v2817 = vunpack.c.l.b16 %v2433
    %v2818 = vunpack.c.l.b16 %v2434
    %v2819 = vunpack.c.l.b16 %v2435
    %v2820 = vunpack.c.l.b16 %v2436
    %v2821 = vunpack.c.l.b16 %v2437
    %v2822 = vunpack.c.l.b16 %v2438
    %v2823 = vunpack.c.l.b16 %v2439
    %v2824 = vunpack.c.l.b16 %v2440
    %v2825 = vunpack.c.l.b16 %v2441
    %v2826 = vunpack.c.l.b16 %v2442
    %v2827 = vunpack.c.l.b16 %v2443
    %v2828 = vunpack.c.l.b16 %v2444
    %v2829 = vunpack.c.l.b16 %v2445
    %v2830 = vunpack.c.l.b16 %v2446
    %v2831 = vunpack.c.l.b16 %v2447
    %v2832 = vunpack.c.l.b16 %v2448
    %v2833 = vunpack.c.l.b16 %v2449
    %v2834 = vunpack.c.l.b16 %v2450
    %v2835 = vunpack.c.l.b16 %v2451
    %v2836 = vunpack.c.l.b16 %v2452
    %v2837 = vunpack.c.l.b16 %v2453
    %v2838 = vunpack.c.l.b16 %v2454
    %v2839 = vunpack.c.l.b16 %v2455
    %v2840 = vunpack.c.l.b16 %v2456
    %v2841 = vunpack.c.l.b16 %v2457
    %v2842 = vunpack.c.l.b16 %v2458
    %v2843 = vunpack.c.l.b16 %v2459
    %v2844 = vunpack.c.l.b16 %v2460
    %v2845 = vunpack.c.l.b16 %v2461
    %v2846 = vunpack.c.l.b16 %v2462
    %v2847 = vunpack.c.l.b16 %v2463
    %v2848 = vunpack.c.l.b16 %v2464
    %v2849 = vunpack.c.l.b16 %v2465
    %v2850 = vunpack.c.l.b16 %v2466
    %v2851 = vunpack.c.l.b16 %v2467
    %v2852 = vunpack.c.l.b16 %v2468
    %v2853 = vunpack.c.l.b16 %v2469
    %v2854 = vunpack.c.l.b16 %v2470
    %v2855 = vunpack.c.l.b16 %v2471
    %v2856 = vunpack.c.l.b16 %v2472
    %v2857 = vunpack.c.l.b16 %v2473
    %v2858 = vunpack.c.l.b16 %v2474
    %v2859 = vunpack.c.l.b16 %v2475
    %v2860 = vunpack.c.l.b16 %v2476
    %v2861 = vunpack.c.l.b16 %v2477
    %v2862 = vunpack.c.l.b16 %v2478
    %v2863 = vunpack.c.l.b16 %v2479
    %v2864 = vunpack.c.l.b16 %v2480
    %v2865 = vunpack.c.l.b16 %v2481
    %v2866 = vunpack.c.l.b16 %v2482
    %v2867 = vunpack.c.l.b16 %v2483
    %v2868 = vunpack.c.l.b16 %v2484
    %v2869 = vunpack.c.l.b16 %v2485
    %v2870 = vunpack.c.l.b16 %v2486
    %v2871 = vunpack.c.l.b16 %v2487
    %v2872 = vunpack.c.l.b16 %v2488
    %v2873 = vunpack.c.l.b16 %v2489
    %v2874 = vunpack.c.l.b16 %v2490
    %v2875 = vunpack.c.l.b16 %v2491
    %v2876 = vunpack.c.l.b16 %v2492
    %v2877 = vunpack.c.l.b16 %v2493
    %v2878 = vunpack.c.l.b16 %v2494
    %v2879 = vunpack.c.l.b16 %v2495
    %v2880 = vunpack.c.l.b16 %v2496
    %v2881 = vunpack.c.l.b16 %v2497
    %v2882 = vunpack.c.l.b16 %v2498
    %v2883 = vunpack.c.l.b16 %v2499
    %v2884 = vunpack.c.l.b16 %v2500
    %v2885 = vunpack.c.l.b16 %v2501
    %v2886 = vunpack.c.l.b16 %v2502
    %v2887 = vunpack.c.l.b16 %v2503
    %v2888 = vunpack.c.l.b16 %v2504
    %v2889 = vunpack.c.l.b16 %v2505
    %v2890 = vunpack.c.l.b16 %v2506
    %v2891 = vunpack.c.l.b16 %v2507
    %v2892 = vunpack.c.l.b16 %v2508
    %v2893 = vunpack.c.l.b16 %v2509
    %v2894 = vunpack.c.l.b16 %v2510
    %v2895 = vunpack.c.l.b16 %v2511
    %v2896 = vunpack.c.l.b16 %v2512
    %v2897 = vunpack.c.l.b16 %v2513
    %v2898 = vunpack.c.l.b16 %v2514
    %v2899 = vunpack.c.l.b16 %v2515
    %v2900 = vunpack.c.l.b16 %v2516
    %v2901 = vunpack.c.l.b16 %v2517
    %v2902 = vunpack.c.l.b16 %v2518
    %v2903 = vunpack.c.l.b16 %v2519
    %v2904 = vunpack.c.l.b16 %v2520
    %v2905 = vunpack.c.l.b16 %v2521
    %v2906 = vunpack.c.l.b16 %v2522
    %v2907 = vunpack.c.l.b16 %v2523
    %v2908 = vunpack.c.l.b16 %v2524
    %v2909 = vrot.slane %v2785, 7
    %vm2910 = vcmask 1041409
    %v2911 = vsel %vm2910, %v2909, %v2781
    %v2912 = vrot.slane %v2789, 6
    %vm2913 = vcmask 1042434
    %v2914 = vsel %vm2913, %v2912, %v2911
    %v2915 = vrot.slane %v2793, 5
    %vm2916 = vcmask 1043459
    %v2917 = vsel %vm2916, %v2915, %v2914
    %v2918 = vrot.slane %v2797, 4
    %vm2919 = vcmask 1044484
    %v2920 = vsel %vm2919, %v2918, %v2917
    %v2921 = vrot.slane %v2801, 3
    %vm2922 = vcmask 1045509
    %v2923 = vsel %vm2922, %v2921, %v2920
    %v2924 = vrot.slane %v2805, 2
    %vm2925 = vcmask 1046534
    %v2926 = vsel %vm2925, %v2924, %v2923
    %v2927 = vrot.slane %v2809, 1
    %vm2928 = vcmask 1047559
    %v2929 = vsel %vm2928, %v2927, %v2926
    %v2930 = vrot.slane %v2786, 7
    %v2931 = vsel %vm2910, %v2930, %v2782
    %v2932 = vrot.slane %v2790, 6
    %v2933 = vsel %vm2913, %v2932, %v2931
    %v2934 = vrot.slane %v2794, 5
    %v2935 = vsel %vm2916, %v2934, %v2933
    %v2936 = vrot.slane %v2798, 4
    %v2937 = vsel %vm2919, %v2936, %v2935
    %v2938 = vrot.slane %v2802, 3
    %v2939 = vsel %vm2922, %v2938, %v2937
    %v2940 = vrot.slane %v2806, 2
    %v2941 = vsel %vm2925, %v2940, %v2939
    %v2942 = vrot.slane %v2810, 1
    %v2943 = vsel %vm2928, %v2942, %v2941
    %v2944 = vrot.slane %v2787, 7
    %v2945 = vsel %vm2910, %v2944, %v2783
    %v2946 = vrot.slane %v2791, 6
    %v2947 = vsel %vm2913, %v2946, %v2945
    %v2948 = vrot.slane %v2795, 5
    %v2949 = vsel %vm2916, %v2948, %v2947
    %v2950 = vrot.slane %v2799, 4
    %v2951 = vsel %vm2919, %v2950, %v2949
    %v2952 = vrot.slane %v2803, 3
    %v2953 = vsel %vm2922, %v2952, %v2951
    %v2954 = vrot.slane %v2807, 2
    %v2955 = vsel %vm2925, %v2954, %v2953
    %v2956 = vrot.slane %v2811, 1
    %v2957 = vsel %vm2928, %v2956, %v2955
    %v2958 = vrot.slane %v2788, 7
    %v2959 = vsel %vm2910, %v2958, %v2784
    %v2960 = vrot.slane %v2792, 6
    %v2961 = vsel %vm2913, %v2960, %v2959
    %v2962 = vrot.slane %v2796, 5
    %v2963 = vsel %vm2916, %v2962, %v2961
    %v2964 = vrot.slane %v2800, 4
    %v2965 = vsel %vm2919, %v2964, %v2963
    %v2966 = vrot.slane %v2804, 3
    %v2967 = vsel %vm2922, %v2966, %v2965
    %v2968 = vrot.slane %v2808, 2
    %v2969 = vsel %vm2925, %v2968, %v2967
    %v2970 = vrot.slane %v2812, 1
    %v2971 = vsel %vm2928, %v2970, %v2969
    %v2972 = vrot.slane %v2817, 7
    %v2973 = vsel %vm2910, %v2972, %v2813
    %v2974 = vrot.slane %v2821, 6
    %v2975 = vsel %vm2913, %v2974, %v2973
    %v2976 = vrot.slane %v2825, 5
    %v2977 = vsel %vm2916, %v2976, %v2975
    %v2978 = vrot.slane %v2829, 4
    %v2979 = vsel %vm2919, %v2978, %v2977
    %v2980 = vrot.slane %v2833, 3
    %v2981 = vsel %vm2922, %v2980, %v2979
    %v2982 = vrot.slane %v2837, 2
    %v2983 = vsel %vm2925, %v2982, %v2981
    %v2984 = vrot.slane %v2841, 1
    %v2985 = vsel %vm2928, %v2984, %v2983
    %v2986 = vrot.slane %v2818, 7
    %v2987 = vsel %vm2910, %v2986, %v2814
    %v2988 = vrot.slane %v2822, 6
    %v2989 = vsel %vm2913, %v2988, %v2987
    %v2990 = vrot.slane %v2826, 5
    %v2991 = vsel %vm2916, %v2990, %v2989
    %v2992 = vrot.slane %v2830, 4
    %v2993 = vsel %vm2919, %v2992, %v2991
    %v2994 = vrot.slane %v2834, 3
    %v2995 = vsel %vm2922, %v2994, %v2993
    %v2996 = vrot.slane %v2838, 2
    %v2997 = vsel %vm2925, %v2996, %v2995
    %v2998 = vrot.slane %v2842, 1
    %v2999 = vsel %vm2928, %v2998, %v2997
    %v3000 = vrot.slane %v2819, 7
    %v3001 = vsel %vm2910, %v3000, %v2815
    %v3002 = vrot.slane %v2823, 6
    %v3003 = vsel %vm2913, %v3002, %v3001
    %v3004 = vrot.slane %v2827, 5
    %v3005 = vsel %vm2916, %v3004, %v3003
    %v3006 = vrot.slane %v2831, 4
    %v3007 = vsel %vm2919, %v3006, %v3005
    %v3008 = vrot.slane %v2835, 3
    %v3009 = vsel %vm2922, %v3008, %v3007
    %v3010 = vrot.slane %v2839, 2
    %v3011 = vsel %vm2925, %v3010, %v3009
    %v3012 = vrot.slane %v2843, 1
    %v3013 = vsel %vm2928, %v3012, %v3011
    %v3014 = vrot.slane %v2820, 7
    %v3015 = vsel %vm2910, %v3014, %v2816
    %v3016 = vrot.slane %v2824, 6
    %v3017 = vsel %vm2913, %v3016, %v3015
    %v3018 = vrot.slane %v2828, 5
    %v3019 = vsel %vm2916, %v3018, %v3017
    %v3020 = vrot.slane %v2832, 4
    %v3021 = vsel %vm2919, %v3020, %v3019
    %v3022 = vrot.slane %v2836, 3
    %v3023 = vsel %vm2922, %v3022, %v3021
    %v3024 = vrot.slane %v2840, 2
    %v3025 = vsel %vm2925, %v3024, %v3023
    %v3026 = vrot.slane %v2844, 1
    %v3027 = vsel %vm2928, %v3026, %v3025
    %v3028 = vrot.slane %v2849, 7
    %v3029 = vsel %vm2910, %v3028, %v2845
    %v3030 = vrot.slane %v2853, 6
    %v3031 = vsel %vm2913, %v3030, %v3029
    %v3032 = vrot.slane %v2857, 5
    %v3033 = vsel %vm2916, %v3032, %v3031
    %v3034 = vrot.slane %v2861, 4
    %v3035 = vsel %vm2919, %v3034, %v3033
    %v3036 = vrot.slane %v2865, 3
    %v3037 = vsel %vm2922, %v3036, %v3035
    %v3038 = vrot.slane %v2869, 2
    %v3039 = vsel %vm2925, %v3038, %v3037
    %v3040 = vrot.slane %v2873, 1
    %v3041 = vsel %vm2928, %v3040, %v3039
    %v3042 = vrot.slane %v2850, 7
    %v3043 = vsel %vm2910, %v3042, %v2846
    %v3044 = vrot.slane %v2854, 6
    %v3045 = vsel %vm2913, %v3044, %v3043
    %v3046 = vrot.slane %v2858, 5
    %v3047 = vsel %vm2916, %v3046, %v3045
    %v3048 = vrot.slane %v2862, 4
    %v3049 = vsel %vm2919, %v3048, %v3047
    %v3050 = vrot.slane %v2866, 3
    %v3051 = vsel %vm2922, %v3050, %v3049
    %v3052 = vrot.slane %v2870, 2
    %v3053 = vsel %vm2925, %v3052, %v3051
    %v3054 = vrot.slane %v2874, 1
    %v3055 = vsel %vm2928, %v3054, %v3053
    %v3056 = vrot.slane %v2851, 7
    %v3057 = vsel %vm2910, %v3056, %v2847
    %v3058 = vrot.slane %v2855, 6
    %v3059 = vsel %vm2913, %v3058, %v3057
    %v3060 = vrot.slane %v2859, 5
    %v3061 = vsel %vm2916, %v3060, %v3059
    %v3062 = vrot.slane %v2863, 4
    %v3063 = vsel %vm2919, %v3062, %v3061
    %v3064 = vrot.slane %v2867, 3
    %v3065 = vsel %vm2922, %v3064, %v3063
    %v3066 = vrot.slane %v2871, 2
    %v3067 = vsel %vm2925, %v3066, %v3065
    %v3068 = vrot.slane %v2875, 1
    %v3069 = vsel %vm2928, %v3068, %v3067
    %v3070 = vrot.slane %v2852, 7
    %v3071 = vsel %vm2910, %v3070, %v2848
    %v3072 = vrot.slane %v2856, 6
    %v3073 = vsel %vm2913, %v3072, %v3071
    %v3074 = vrot.slane %v2860, 5
    %v3075 = vsel %vm2916, %v3074, %v3073
    %v3076 = vrot.slane %v2864, 4
    %v3077 = vsel %vm2919, %v3076, %v3075
    %v3078 = vrot.slane %v2868, 3
    %v3079 = vsel %vm2922, %v3078, %v3077
    %v3080 = vrot.slane %v2872, 2
    %v3081 = vsel %vm2925, %v3080, %v3079
    %v3082 = vrot.slane %v2876, 1
    %v3083 = vsel %vm2928, %v3082, %v3081
    %v3084 = vrot.slane %v2881, 7
    %v3085 = vsel %vm2910, %v3084, %v2877
    %v3086 = vrot.slane %v2885, 6
    %v3087 = vsel %vm2913, %v3086, %v3085
    %v3088 = vrot.slane %v2889, 5
    %v3089 = vsel %vm2916, %v3088, %v3087
    %v3090 = vrot.slane %v2893, 4
    %v3091 = vsel %vm2919, %v3090, %v3089
    %v3092 = vrot.slane %v2897, 3
    %v3093 = vsel %vm2922, %v3092, %v3091
    %v3094 = vrot.slane %v2901, 2
    %v3095 = vsel %vm2925, %v3094, %v3093
    %v3096 = vrot.slane %v2905, 1
    %v3097 = vsel %vm2928, %v3096, %v3095
    %v3098 = vrot.slane %v2882, 7
    %v3099 = vsel %vm2910, %v3098, %v2878
    %v3100 = vrot.slane %v2886, 6
    %v3101 = vsel %vm2913, %v3100, %v3099
    %v3102 = vrot.slane %v2890, 5
    %v3103 = vsel %vm2916, %v3102, %v3101
    %v3104 = vrot.slane %v2894, 4
    %v3105 = vsel %vm2919, %v3104, %v3103
    %v3106 = vrot.slane %v2898, 3
    %v3107 = vsel %vm2922, %v3106, %v3105
    %v3108 = vrot.slane %v2902, 2
    %v3109 = vsel %vm2925, %v3108, %v3107
    %v3110 = vrot.slane %v2906, 1
    %v3111 = vsel %vm2928, %v3110, %v3109
    %v3112 = vrot.slane %v2883, 7
    %v3113 = vsel %vm2910, %v3112, %v2879
    %v3114 = vrot.slane %v2887, 6
    %v3115 = vsel %vm2913, %v3114, %v3113
    %v3116 = vrot.slane %v2891, 5
    %v3117 = vsel %vm2916, %v3116, %v3115
    %v3118 = vrot.slane %v2895, 4
    %v3119 = vsel %vm2919, %v3118, %v3117
    %v3120 = vrot.slane %v2899, 3
    %v3121 = vsel %vm2922, %v3120, %v3119
    %v3122 = vrot.slane %v2903, 2
    %v3123 = vsel %vm2925, %v3122, %v3121
    %v3124 = vrot.slane %v2907, 1
    %v3125 = vsel %vm2928, %v3124, %v3123
    %v3126 = vrot.slane %v2884, 7
    %v3127 = vsel %vm2910, %v3126, %v2880
    %v3128 = vrot.slane %v2888, 6
    %v3129 = vsel %vm2913, %v3128, %v3127
    %v3130 = vrot.slane %v2892, 5
    %v3131 = vsel %vm2916, %v3130, %v3129
    %v3132 = vrot.slane %v2896, 4
    %v3133 = vsel %vm2919, %v3132, %v3131
    %v3134 = vrot.slane %v2900, 3
    %v3135 = vsel %vm2922, %v3134, %v3133
    %v3136 = vrot.slane %v2904, 2
    %v3137 = vsel %vm2925, %v3136, %v3135
    %v3138 = vrot.slane %v2908, 1
    %v3139 = vsel %vm2928, %v3138, %v3137
    %v3140 = vpack.c.b16 %v2985, %v2929
    %v3141 = vpack.c.b16 %v2999, %v2943
    %v3142 = vpack.c.b16 %v3013, %v2957
    %v3143 = vpack.c.b16 %v3027, %v2971
    %v3144 = vpack.c.b16 %v3097, %v3041
    %v3145 = vpack.c.b16 %v3111, %v3055
    %v3146 = vpack.c.b16 %v3125, %v3069
    %v3147 = vpack.c.b16 %v3139, %v3083
    %v3284 = vunpack.c.l.b16 %v2525
    %v3285 = vunpack.c.h.b16 %v2525
    %v3286 = vunpack.c.l.b16 %v2526
    %v3287 = vunpack.c.l.b16 %v2527
    %v3288 = vunpack.c.h.b16 %v2527
    %v3289 = vunpack.c.l.b16 %v2528
    %v3290 = vunpack.c.l.b16 %v2529
    %v3291 = vunpack.c.h.b16 %v2529
    %v3292 = vunpack.c.l.b16 %v2530
    %v3293 = vunpack.c.l.b16 %v2531
    %v3294 = vunpack.c.h.b16 %v2531
    %v3295 = vunpack.c.l.b16 %v2532
    %v3296 = vunpack.c.l.b16 %v2533
    %v3297 = vunpack.c.h.b16 %v2533
    %v3298 = vunpack.c.l.b16 %v2534
    %v3299 = vunpack.c.l.b16 %v2535
    %v3300 = vunpack.c.h.b16 %v2535
    %v3301 = vunpack.c.l.b16 %v2536
    %v3302 = vunpack.c.l.b16 %v2537
    %v3303 = vunpack.c.h.b16 %v2537
    %v3304 = vunpack.c.l.b16 %v2538
    %v3305 = vunpack.c.l.b16 %v2539
    %v3306 = vunpack.c.h.b16 %v2539
    %v3307 = vunpack.c.l.b16 %v2540
    %v3308 = vunpack.c.l.b16 %v2541
    %v3309 = vunpack.c.h.b16 %v2541
    %v3310 = vunpack.c.l.b16 %v2542
    %v3311 = vunpack.c.l.b16 %v2543
    %v3312 = vunpack.c.h.b16 %v2543
    %v3313 = vunpack.c.l.b16 %v2544
    %v3314 = vunpack.c.l.b16 %v2545
    %v3315 = vunpack.c.h.b16 %v2545
    %v3316 = vunpack.c.l.b16 %v2546
    %v3317 = vunpack.c.l.b16 %v2547
    %v3318 = vunpack.c.h.b16 %v2547
    %v3319 = vunpack.c.l.b16 %v2548
    %v3320 = vunpack.c.l.b16 %v2549
    %v3321 = vunpack.c.h.b16 %v2549
    %v3322 = vunpack.c.l.b16 %v2550
    %v3323 = vunpack.c.l.b16 %v2551
    %v3324 = vunpack.c.h.b16 %v2551
    %v3325 = vunpack.c.l.b16 %v2552
    %v3326 = vunpack.c.l.b16 %v2553
    %v3327 = vunpack.c.h.b16 %v2553
    %v3328 = vunpack.c.l.b16 %v2554
    %v3329 = vunpack.c.l.b16 %v2555
    %v3330 = vunpack.c.h.b16 %v2555
    %v3331 = vunpack.c.l.b16 %v2556
    %v3332 = vunpack.c.l.b16 %v2557
    %v3333 = vunpack.c.h.b16 %v2557
    %v3334 = vunpack.c.l.b16 %v2558
    %v3335 = vunpack.c.l.b16 %v2559
    %v3336 = vunpack.c.h.b16 %v2559
    %v3337 = vunpack.c.l.b16 %v2560
    %v3338 = vunpack.c.l.b16 %v2561
    %v3339 = vunpack.c.h.b16 %v2561
    %v3340 = vunpack.c.l.b16 %v2562
    %v3341 = vunpack.c.l.b16 %v2563
    %v3342 = vunpack.c.h.b16 %v2563
    %v3343 = vunpack.c.l.b16 %v2564
    %v3344 = vunpack.c.l.b16 %v2565
    %v3345 = vunpack.c.h.b16 %v2565
    %v3346 = vunpack.c.l.b16 %v2566
    %v3347 = vunpack.c.l.b16 %v2567
    %v3348 = vunpack.c.h.b16 %v2567
    %v3349 = vunpack.c.l.b16 %v2568
    %v3350 = vunpack.c.l.b16 %v2569
    %v3351 = vunpack.c.h.b16 %v2569
    %v3352 = vunpack.c.l.b16 %v2570
    %v3353 = vunpack.c.l.b16 %v2571
    %v3354 = vunpack.c.h.b16 %v2571
    %v3355 = vunpack.c.l.b16 %v2572
    %v3356 = vunpack.c.l.b16 %v2573
    %v3357 = vunpack.c.h.b16 %v2573
    %v3358 = vunpack.c.l.b16 %v2574
    %v3359 = vunpack.c.l.b16 %v2575
    %v3360 = vunpack.c.h.b16 %v2575
    %v3361 = vunpack.c.l.b16 %v2576
    %v3362 = vunpack.c.l.b16 %v2577
    %v3363 = vunpack.c.h.b16 %v2577
    %v3364 = vunpack.c.l.b16 %v2578
    %v3365 = vunpack.c.l.b16 %v2579
    %v3366 = vunpack.c.h.b16 %v2579
    %v3367 = vunpack.c.l.b16 %v2580
    %v3368 = vunpack.c.l.b16 %v2581
    %v3369 = vunpack.c.h.b16 %v2581
    %v3370 = vunpack.c.l.b16 %v2582
    %v3371 = vunpack.c.l.b16 %v2583
    %v3372 = vunpack.c.h.b16 %v2583
    %v3373 = vunpack.c.l.b16 %v2584
    %v3374 = vunpack.c.l.b16 %v2585
    %v3375 = vunpack.c.h.b16 %v2585
    %v3376 = vunpack.c.l.b16 %v2586
    %v3377 = vunpack.c.l.b16 %v2587
    %v3378 = vunpack.c.h.b16 %v2587
    %v3379 = vunpack.c.l.b16 %v2588
    %v3380 = vunpack.c.l.b16 %v2589
    %v3381 = vunpack.c.h.b16 %v2589
    %v3382 = vunpack.c.l.b16 %v2590
    %v3383 = vunpack.c.l.b16 %v2591
    %v3384 = vunpack.c.h.b16 %v2591
    %v3385 = vunpack.c.l.b16 %v2592
    %v3386 = vunpack.c.l.b16 %v2593
    %v3387 = vunpack.c.h.b16 %v2593
    %v3388 = vunpack.c.l.b16 %v2594
    %v3389 = vunpack.c.l.b16 %v2595
    %v3390 = vunpack.c.h.b16 %v2595
    %v3391 = vunpack.c.l.b16 %v2596
    %v3392 = vunpack.c.l.b16 %v2597
    %v3393 = vunpack.c.h.b16 %v2597
    %v3394 = vunpack.c.l.b16 %v2598
    %v3395 = vunpack.c.l.b16 %v2599
    %v3396 = vunpack.c.h.b16 %v2599
    %v3397 = vunpack.c.l.b16 %v2600
    %v3398 = vunpack.c.l.b16 %v2601
    %v3399 = vunpack.c.h.b16 %v2601
    %v3400 = vunpack.c.l.b16 %v2602
    %v3401 = vunpack.c.l.b16 %v2603
    %v3402 = vunpack.c.h.b16 %v2603
    %v3403 = vunpack.c.l.b16 %v2604
    %v3404 = vunpack.c.l.b16 %v2605
    %v3405 = vunpack.c.h.b16 %v2605
    %v3406 = vunpack.c.l.b16 %v2606
    %v3407 = vunpack.c.l.b16 %v2607
    %v3408 = vunpack.c.h.b16 %v2607
    %v3409 = vunpack.c.l.b16 %v2608
    %v3410 = vunpack.c.l.b16 %v2609
    %v3411 = vunpack.c.h.b16 %v2609
    %v3412 = vunpack.c.l.b16 %v2610
    %v3413 = vunpack.c.l.b16 %v2611
    %v3414 = vunpack.c.h.b16 %v2611
    %v3415 = vunpack.c.l.b16 %v2612
    %v3416 = vunpack.c.l.b16 %v2613
    %v3417 = vunpack.c.h.b16 %v2613
    %v3418 = vunpack.c.l.b16 %v2614
    %v3419 = vunpack.c.l.b16 %v2615
    %v3420 = vunpack.c.h.b16 %v2615
    %v3421 = vunpack.c.l.b16 %v2616
    %v3422 = vunpack.c.l.b16 %v2617
    %v3423 = vunpack.c.h.b16 %v2617
    %v3424 = vunpack.c.l.b16 %v2618
    %v3425 = vunpack.c.l.b16 %v2619
    %v3426 = vunpack.c.h.b16 %v2619
    %v3427 = vunpack.c.l.b16 %v2620
    %v3428 = vunpack.c.l.b16 %v2621
    %v3429 = vunpack.c.h.b16 %v2621
    %v3430 = vunpack.c.l.b16 %v2622
    %v3431 = vunpack.c.l.b16 %v2623
    %v3432 = vunpack.c.h.b16 %v2623
    %v3433 = vunpack.c.l.b16 %v2624
    %v3434 = vunpack.c.l.b16 %v2625
    %v3435 = vunpack.c.h.b16 %v2625
    %v3436 = vunpack.c.l.b16 %v2626
    %v3437 = vunpack.c.l.b16 %v2627
    %v3438 = vunpack.c.h.b16 %v2627
    %v3439 = vunpack.c.l.b16 %v2628
    %v3440 = vunpack.c.l.b16 %v2629
    %v3441 = vunpack.c.h.b16 %v2629
    %v3442 = vunpack.c.l.b16 %v2630
    %v3443 = vunpack.c.l.b16 %v2631
    %v3444 = vunpack.c.h.b16 %v2631
    %v3445 = vunpack.c.l.b16 %v2632
    %v3446 = vunpack.c.l.b16 %v2633
    %v3447 = vunpack.c.h.b16 %v2633
    %v3448 = vunpack.c.l.b16 %v2634
    %v3449 = vunpack.c.l.b16 %v2635
    %v3450 = vunpack.c.h.b16 %v2635
    %v3451 = vunpack.c.l.b16 %v2636
    %v3452 = vunpack.c.l.b16 %v2637
    %v3453 = vunpack.c.h.b16 %v2637
    %v3454 = vunpack.c.l.b16 %v2638
    %v3455 = vunpack.c.l.b16 %v2639
    %v3456 = vunpack.c.h.b16 %v2639
    %v3457 = vunpack.c.l.b16 %v2640
    %v3458 = vunpack.c.l.b16 %v2641
    %v3459 = vunpack.c.h.b16 %v2641
    %v3460 = vunpack.c.l.b16 %v2642
    %v3461 = vunpack.c.l.b16 %v2643
    %v3462 = vunpack.c.h.b16 %v2643
    %v3463 = vunpack.c.l.b16 %v2644
    %v3464 = vunpack.c.l.b16 %v2645
    %v3465 = vunpack.c.h.b16 %v2645
    %v3466 = vunpack.c.l.b16 %v2646
    %v3467 = vunpack.c.l.b16 %v2647
    %v3468 = vunpack.c.h.b16 %v2647
    %v3469 = vunpack.c.l.b16 %v2648
    %v3470 = vunpack.c.l.b16 %v2649
    %v3471 = vunpack.c.h.b16 %v2649
    %v3472 = vunpack.c.l.b16 %v2650
    %v3473 = vunpack.c.l.b16 %v2651
    %v3474 = vunpack.c.h.b16 %v2651
    %v3475 = vunpack.c.l.b16 %v2652
    %v3476 = vpack.c.b16 %v3287, %v3284
    %v3477 = vpack.c.b16 %v3288, %v3285
    %v3478 = vpack.c.b16 %v3289, %v3286
    %v3479 = vpack.c.b16 %v3293, %v3290
    %v3480 = vpack.c.b16 %v3294, %v3291
    %v3481 = vpack.c.b16 %v3295, %v3292
    %v3482 = vpack.c.b16 %v3299, %v3296
    %v3483 = vpack.c.b16 %v3300, %v3297
    %v3484 = vpack.c.b16 %v3301, %v3298
    %v3485 = vpack.c.b16 %v3305, %v3302
    %v3486 = vpack.c.b16 %v3306, %v3303
    %v3487 = vpack.c.b16 %v3307, %v3304
    %v3488 = vpack.c.b16 %v3311, %v3308
    %v3489 = vpack.c.b16 %v3312, %v3309
    %v3490 = vpack.c.b16 %v3313, %v3310
    %v3491 = vpack.c.b16 %v3317, %v3314
    %v3492 = vpack.c.b16 %v3318, %v3315
    %v3493 = vpack.c.b16 %v3319, %v3316
    %v3494 = vpack.c.b16 %v3323, %v3320
    %v3495 = vpack.c.b16 %v3324, %v3321
    %v3496 = vpack.c.b16 %v3325, %v3322
    %v3497 = vpack.c.b16 %v3329, %v3326
    %v3498 = vpack.c.b16 %v3330, %v3327
    %v3499 = vpack.c.b16 %v3331, %v3328
    %v3500 = vpack.c.b16 %v3335, %v3332
    %v3501 = vpack.c.b16 %v3336, %v3333
    %v3502 = vpack.c.b16 %v3337, %v3334
    %v3503 = vpack.c.b16 %v3341, %v3338
    %v3504 = vpack.c.b16 %v3342, %v3339
    %v3505 = vpack.c.b16 %v3343, %v3340
    %v3506 = vpack.c.b16 %v3347, %v3344
    %v3507 = vpack.c.b16 %v3348, %v3345
    %v3508 = vpack.c.b16 %v3349, %v3346
    %v3509 = vpack.c.b16 %v3353, %v3350
    %v3510 = vpack.c.b16 %v3354, %v3351
    %v3511 = vpack.c.b16 %v3355, %v3352
    %v3512 = vpack.c.b16 %v3359, %v3356
    %v3513 = vpack.c.b16 %v3360, %v3357
    %v3514 = vpack.c.b16 %v3361, %v3358
    %v3515 = vpack.c.b16 %v3365, %v3362
    %v3516 = vpack.c.b16 %v3366, %v3363
    %v3517 = vpack.c.b16 %v3367, %v3364
    %v3518 = vpack.c.b16 %v3371, %v3368
    %v3519 = vpack.c.b16 %v3372, %v3369
    %v3520 = vpack.c.b16 %v3373, %v3370
    %v3521 = vpack.c.b16 %v3377, %v3374
    %v3522 = vpack.c.b16 %v3378, %v3375
    %v3523 = vpack.c.b16 %v3379, %v3376
    %v3524 = vpack.c.b16 %v3383, %v3380
    %v3525 = vpack.c.b16 %v3384, %v3381
    %v3526 = vpack.c.b16 %v3385, %v3382
    %v3527 = vpack.c.b16 %v3389, %v3386
    %v3528 = vpack.c.b16 %v3390, %v3387
    %v3529 = vpack.c.b16 %v3391, %v3388
    %v3530 = vpack.c.b16 %v3395, %v3392
    %v3531 = vpack.c.b16 %v3396, %v3393
    %v3532 = vpack.c.b16 %v3397, %v3394
    %v3533 = vpack.c.b16 %v3401, %v3398
    %v3534 = vpack.c.b16 %v3402, %v3399
    %v3535 = vpack.c.b16 %v3403, %v3400
    %v3536 = vpack.c.b16 %v3407, %v3404
    %v3537 = vpack.c.b16 %v3408, %v3405
    %v3538 = vpack.c.b16 %v3409, %v3406
    %v3539 = vpack.c.b16 %v3413, %v3410
    %v3540 = vpack.c.b16 %v3414, %v3411
    %v3541 = vpack.c.b16 %v3415, %v3412
    %v3542 = vpack.c.b16 %v3419, %v3416
    %v3543 = vpack.c.b16 %v3420, %v3417
    %v3544 = vpack.c.b16 %v3421, %v3418
    %v3545 = vpack.c.b16 %v3425, %v3422
    %v3546 = vpack.c.b16 %v3426, %v3423
    %v3547 = vpack.c.b16 %v3427, %v3424
    %v3548 = vpack.c.b16 %v3431, %v3428
    %v3549 = vpack.c.b16 %v3432, %v3429
    %v3550 = vpack.c.b16 %v3433, %v3430
    %v3551 = vpack.c.b16 %v3437, %v3434
    %v3552 = vpack.c.b16 %v3438, %v3435
    %v3553 = vpack.c.b16 %v3439, %v3436
    %v3554 = vpack.c.b16 %v3443, %v3440
    %v3555 = vpack.c.b16 %v3444, %v3441
    %v3556 = vpack.c.b16 %v3445, %v3442
    %v3557 = vpack.c.b16 %v3449, %v3446
    %v3558 = vpack.c.b16 %v3450, %v3447
    %v3559 = vpack.c.b16 %v3451, %v3448
    %v3560 = vpack.c.b16 %v3455, %v3452
    %v3561 = vpack.c.b16 %v3456, %v3453
    %v3562 = vpack.c.b16 %v3457, %v3454
    %v3563 = vpack.c.b16 %v3461, %v3458
    %v3564 = vpack.c.b16 %v3462, %v3459
    %v3565 = vpack.c.b16 %v3463, %v3460
    %v3566 = vpack.c.b16 %v3467, %v3464
    %v3567 = vpack.c.b16 %v3468, %v3465
    %v3568 = vpack.c.b16 %v3469, %v3466
    %v3569 = vpack.c.b16 %v3473, %v3470
    %v3570 = vpack.c.b16 %v3474, %v3471
    %v3571 = vpack.c.b16 %v3475, %v3472
    %3668 = vmatprep.subr.bf16.mxu0 %v3477
    %3669 = vmatpush1.bf16.msra.mxu0 %v3476
    %3670 = vmatprep.subr.bf16.mxu0 %v3480
    %3671 = vmatpush1.bf16.msra.mxu0 %v3479
    %3672 = vmatprep.subr.bf16.mxu0 %v3483
    %3673 = vmatpush1.bf16.msra.mxu0 %v3482
    %3674 = vmatprep.subr.bf16.mxu0 %v3486
    %3675 = vmatpush1.bf16.msra.mxu0 %v3485
    %3676 = vmatprep.subr.bf16.mxu0 %v3489
    %3677 = vmatpush1.bf16.msra.mxu0 %v3488
    %3678 = vmatprep.subr.bf16.mxu0 %v3492
    %3679 = vmatpush1.bf16.msra.mxu0 %v3491
    %3680 = vmatprep.subr.bf16.mxu0 %v3495
    %3681 = vmatpush1.bf16.msra.mxu0 %v3494
    %3682 = vmatprep.subr.bf16.mxu0 %v3498
    %3683 = vmatpush1.bf16.msra.mxu0 %v3497
    %3684 = vmatprep.subr.bf16.mxu0 %v3501
    %3685 = vmatpush1.bf16.msra.mxu0 %v3500
    %3686 = vmatprep.subr.bf16.mxu0 %v3504
    %3687 = vmatpush1.bf16.msra.mxu0 %v3503
    %3688 = vmatprep.subr.bf16.mxu0 %v3507
    %3689 = vmatpush1.bf16.msra.mxu0 %v3506
    %3690 = vmatprep.subr.bf16.mxu0 %v3510
    %3691 = vmatpush1.bf16.msra.mxu0 %v3509
    %3692 = vmatprep.subr.bf16.mxu0 %v3513
    %3693 = vmatpush1.bf16.msra.mxu0 %v3512
    %3694 = vmatprep.subr.bf16.mxu0 %v3516
    %3695 = vmatpush1.bf16.msra.mxu0 %v3515
    %3696 = vmatprep.subr.bf16.mxu0 %v3519
    %3697 = vmatpush1.bf16.msra.mxu0 %v3518
    %3698 = vmatprep.subr.bf16.mxu0 %v3522
    %3699 = vmatpush1.bf16.msra.mxu0 %v3521
    %3700 = vmatprep.mubr.bf16.mxu0 %v3141
    %3701 = vmatmul.mubr.bf16.gmra.mrb[0].mxu0 %v3140
    %v3702 = vpop.f32.mrb[0].mxu0
    %v3703 = vadd.f32 0.0, %v3702
    %v3704 = vpop.f32.mrb[0].mxu0
    %v3705 = vadd.f32 0.0, %v3704
    %v3706 = vpop.f32.mrb[0].mxu0
    %v3707 = vadd.f32 0.0, %v3706
    %v3708 = vpop.f32.mrb[0].mxu0
    %v3709 = vadd.f32 0.0, %v3708
    %3710 = vmatprep.mubr.bf16.mxu0 %v3145
    %3711 = vmatmul.mubr.bf16.gmra.mrb[0].mxu0 %v3144
    %v3712 = vpop.f32.mrb[0].mxu0
    %v3713 = vadd.f32 0.0, %v3712
    %v3714 = vpop.f32.mrb[0].mxu0
    %v3715 = vadd.f32 0.0, %v3714
    %v3716 = vpop.f32.mrb[0].mxu0
    %v3717 = vadd.f32 0.0, %v3716
    %v3718 = vpop.f32.mrb[0].mxu0
    %v3719 = vadd.f32 0.0, %v3718
    %3720 = vdwg.mxu0
    %3721 = vmatprep.subr.bf16.mxu0 %v3525
    %3722 = vmatpush1.bf16.msra.mxu0 %v3524
    %3723 = vmatprep.subr.bf16.mxu0 %v3528
    %3724 = vmatpush1.bf16.msra.mxu0 %v3527
    %3725 = vmatprep.subr.bf16.mxu0 %v3531
    %3726 = vmatpush1.bf16.msra.mxu0 %v3530
    %3727 = vmatprep.subr.bf16.mxu0 %v3534
    %3728 = vmatpush1.bf16.msra.mxu0 %v3533
    %3729 = vmatprep.subr.bf16.mxu0 %v3537
    %3730 = vmatpush1.bf16.msra.mxu0 %v3536
    %3731 = vmatprep.subr.bf16.mxu0 %v3540
    %3732 = vmatpush1.bf16.msra.mxu0 %v3539
    %3733 = vmatprep.subr.bf16.mxu0 %v3543
    %3734 = vmatpush1.bf16.msra.mxu0 %v3542
    %3735 = vmatprep.subr.bf16.mxu0 %v3546
    %3736 = vmatpush1.bf16.msra.mxu0 %v3545
    %3737 = vmatprep.subr.bf16.mxu0 %v3549
    %3738 = vmatpush1.bf16.msra.mxu0 %v3548
    %3739 = vmatprep.subr.bf16.mxu0 %v3552
    %3740 = vmatpush1.bf16.msra.mxu0 %v3551
    %3741 = vmatprep.subr.bf16.mxu0 %v3555
    %3742 = vmatpush1.bf16.msra.mxu0 %v3554
    %3743 = vmatprep.subr.bf16.mxu0 %v3558
    %3744 = vmatpush1.bf16.msra.mxu0 %v3557
    %3745 = vmatprep.subr.bf16.mxu0 %v3561
    %3746 = vmatpush1.bf16.msra.mxu0 %v3560
    %3747 = vmatprep.subr.bf16.mxu0 %v3564
    %3748 = vmatpush1.bf16.msra.mxu0 %v3563
    %3749 = vmatprep.subr.bf16.mxu0 %v3567
    %3750 = vmatpush1.bf16.msra.mxu0 %v3566
    %3751 = vmatprep.subr.bf16.mxu0 %v3570
    %3752 = vmatpush1.bf16.msra.mxu0 %v3569
    %3753 = vmatprep.mubr.bf16.mxu0 %v3143
    %3754 = vmatmul.mubr.bf16.gmra.mrb[0].mxu0 %v3142
    %v3755 = vpop.f32.mrb[0].mxu0
    %v3756 = vadd.f32 %v3703, %v3755
    %v3757 = vpop.f32.mrb[0].mxu0
    %v3758 = vadd.f32 %v3705, %v3757
    %v3759 = vpop.f32.mrb[0].mxu0
    %v3760 = vadd.f32 %v3707, %v3759
    %v3761 = vpop.f32.mrb[0].mxu0
    %v3762 = vadd.f32 %v3709, %v3761
    %3763 = vmatprep.mubr.bf16.mxu0 %v3147
    %3764 = vmatmul.mubr.bf16.gmra.mrb[0].mxu0 %v3146
    %v3765 = vpop.f32.mrb[0].mxu0
    %v3766 = vadd.f32 %v3713, %v3765
    %v3767 = vpop.f32.mrb[0].mxu0
    %v3768 = vadd.f32 %v3715, %v3767
    %v3769 = vpop.f32.mrb[0].mxu0
    %v3770 = vadd.f32 %v3717, %v3769
    %v3771 = vpop.f32.mrb[0].mxu0
    %v3772 = vadd.f32 %v3719, %v3771
    %3773 = vdwg.mxu0
    %3774 = vmatprep.subr.bf16.mxu0 0
    %3775 = vmatpush1.bf16.msra.mxu0 %v3478
    %3776 = vmatprep.subr.bf16.mxu0 0
    %3777 = vmatpush1.bf16.msra.mxu0 %v3481
    %3778 = vmatprep.subr.bf16.mxu0 0
    %3779 = vmatpush1.bf16.msra.mxu0 %v3484
    %3780 = vmatprep.subr.bf16.mxu0 0
    %3781 = vmatpush1.bf16.msra.mxu0 %v3487
    %3782 = vmatprep.subr.bf16.mxu0 0
    %3783 = vmatpush1.bf16.msra.mxu0 %v3490
    %3784 = vmatprep.subr.bf16.mxu0 0
    %3785 = vmatpush1.bf16.msra.mxu0 %v3493
    %3786 = vmatprep.subr.bf16.mxu0 0
    %3787 = vmatpush1.bf16.msra.mxu0 %v3496
    %3788 = vmatprep.subr.bf16.mxu0 0
    %3789 = vmatpush1.bf16.msra.mxu0 %v3499
    %3790 = vmatprep.subr.bf16.mxu0 0
    %3791 = vmatpush1.bf16.msra.mxu0 %v3502
    %3792 = vmatprep.subr.bf16.mxu0 0
    %3793 = vmatpush1.bf16.msra.mxu0 %v3505
    %3794 = vmatprep.subr.bf16.mxu0 0
    %3795 = vmatpush1.bf16.msra.mxu0 %v3508
    %3796 = vmatprep.subr.bf16.mxu0 0
    %3797 = vmatpush1.bf16.msra.mxu0 %v3511
    %3798 = vmatprep.subr.bf16.mxu0 0
    %3799 = vmatpush1.bf16.msra.mxu0 %v3514
    %3800 = vmatprep.subr.bf16.mxu0 0
    %3801 = vmatpush1.bf16.msra.mxu0 %v3517
    %3802 = vmatprep.subr.bf16.mxu0 0
    %3803 = vmatpush1.bf16.msra.mxu0 %v3520
    %3804 = vmatprep.subr.bf16.mxu0 0
    %3805 = vmatpush1.bf16.msra.mxu0 %v3523
    %3806 = vmatprep.mubr.bf16.mxu0 %v3141
    %3807 = vmatmul.mubr.bf16.gmra.mrb[0].mxu0 %v3140
    %v3808 = vpop.f32.mrb[0].mxu0
    %v3809 = vadd.f32 0.0, %v3808
    %v3810 = vpop.f32.mrb[0].mxu0
    %v3811 = vpop.f32.mrb[0].mxu0
    %v3812 = vadd.f32 0.0, %v3811
    %v3813 = vpop.f32.mrb[0].mxu0
    %3814 = vmatprep.mubr.bf16.mxu0 %v3145
    %3815 = vmatmul.mubr.bf16.gmra.mrb[0].mxu0 %v3144
    %v3816 = vpop.f32.mrb[0].mxu0
    %v3817 = vadd.f32 0.0, %v3816
    %v3818 = vpop.f32.mrb[0].mxu0
    %v3819 = vpop.f32.mrb[0].mxu0
    %v3820 = vadd.f32 0.0, %v3819
    %v3821 = vpop.f32.mrb[0].mxu0
    %3822 = vdwg.mxu0
    %3823 = vmatprep.subr.bf16.mxu0 0
    %3824 = vmatpush1.bf16.msra.mxu0 %v3526
    %3825 = vmatprep.subr.bf16.mxu0 0
    %3826 = vmatpush1.bf16.msra.mxu0 %v3529
    %3827 = vmatprep.subr.bf16.mxu0 0
    %3828 = vmatpush1.bf16.msra.mxu0 %v3532
    %3829 = vmatprep.subr.bf16.mxu0 0
    %3830 = vmatpush1.bf16.msra.mxu0 %v3535
    %3831 = vmatprep.subr.bf16.mxu0 0
    %3832 = vmatpush1.bf16.msra.mxu0 %v3538
    %3833 = vmatprep.subr.bf16.mxu0 0
    %3834 = vmatpush1.bf16.msra.mxu0 %v3541
    %3835 = vmatprep.subr.bf16.mxu0 0
    %3836 = vmatpush1.bf16.msra.mxu0 %v3544
    %3837 = vmatprep.subr.bf16.mxu0 0
    %3838 = vmatpush1.bf16.msra.mxu0 %v3547
    %3839 = vmatprep.subr.bf16.mxu0 0
    %3840 = vmatpush1.bf16.msra.mxu0 %v3550
    %3841 = vmatprep.subr.bf16.mxu0 0
    %3842 = vmatpush1.bf16.msra.mxu0 %v3553
    %3843 = vmatprep.subr.bf16.mxu0 0
    %3844 = vmatpush1.bf16.msra.mxu0 %v3556
    %3845 = vmatprep.subr.bf16.mxu0 0
    %3846 = vmatpush1.bf16.msra.mxu0 %v3559
    %3847 = vmatprep.subr.bf16.mxu0 0
    %3848 = vmatpush1.bf16.msra.mxu0 %v3562
    %3849 = vmatprep.subr.bf16.mxu0 0
    %3850 = vmatpush1.bf16.msra.mxu0 %v3565
    %3851 = vmatprep.subr.bf16.mxu0 0
    %3852 = vmatpush1.bf16.msra.mxu0 %v3568
    %3853 = vmatprep.subr.bf16.mxu0 0
    %3854 = vmatpush1.bf16.msra.mxu0 %v3571
    %3855 = vmatprep.mubr.bf16.mxu0 %v3143
    %3856 = vmatmul.mubr.bf16.gmra.mrb[0].mxu0 %v3142
    %v3857 = vpop.f32.mrb[0].mxu0
    %v3858 = vadd.f32 %v3809, %v3857
    %v3859 = vpop.f32.mrb[0].mxu0
    %v3860 = vpop.f32.mrb[0].mxu0
    %v3861 = vadd.f32 %v3812, %v3860
    %v3862 = vpop.f32.mrb[0].mxu0
    %3863 = vmatprep.mubr.bf16.mxu0 %v3147
    %3864 = vmatmul.mubr.bf16.gmra.mrb[0].mxu0 %v3146
    %v3865 = vpop.f32.mrb[0].mxu0
    %v3866 = vadd.f32 %v3817, %v3865
    %v3867 = vpop.f32.mrb[0].mxu0
    %v3868 = vpop.f32.mrb[0].mxu0
    %v3869 = vadd.f32 %v3820, %v3868
    %v3870 = vpop.f32.mrb[0].mxu0
    %3871 = vdwg.mxu0
    %vm3872 = vcmask 1040384
    %vm3873 = vsmask.f32 256
    %vm3874 = vmand %vm3872, %vm3873
    %vm3875 = vcmask 1044484
    %vm3876 = vsmask.f32 4352
    %vm3877 = vmand %vm3875, %vm3876
    %vm3878 = vmor %vm3877, %vm3874
    %v3879 = vld [vmem:[#allocation2] sm:$0x11]
    %v3880 = vsel %vm3878, 0, %v3879
    %3881 = vst [vmem:[#allocation2] sm:$0x11] %v3880
    %v3882 = vld [vmem:[#allocation2 + $0x8] sm:$0x1]
    %v3883 = vsel %vm3874, 0, %v3882
    %3884 = vst [vmem:[#allocation2 + $0x8] sm:$0x1] %v3883
    %v3885 = vld [vmem:[#allocation2 + $0x24] sm:$0x11]
    %v3886 = vsel %vm3878, 0, %v3885
    %3887 = vst [vmem:[#allocation2 + $0x24] sm:$0x11] %v3886
    %v3888 = vld [vmem:[#allocation2 + $0x2c] sm:$0x1]
    %v3889 = vsel %vm3874, 0, %v3888
    %3890 = vst [vmem:[#allocation2 + $0x2c] sm:$0x1] %v3889
    %vm3891 = vsmask.f32 7938
    %vm3892 = vmand %vm3872, %vm3891
    %vm3893 = vsmask.f32 7954
    %vm3894 = vmand %vm3875, %vm3893
    %vm3895 = vmor %vm3894, %vm3892
    %v3896 = vld [vmem:[#allocation2 + $0x18] sm:$0x11]
    %v3897 = vsel %vm3895, 0, %v3896
    %3898 = vst [vmem:[#allocation2 + $0x18] sm:$0x11] %v3897
    %v3899 = vld [vmem:[#allocation2 + $0x20] sm:$0x1]
    %v3900 = vsel %vm3892, 0, %v3899
    %3901 = vst [vmem:[#allocation2 + $0x20] sm:$0x1] %v3900
    %v3902 = vld [vmem:[#allocation2 + $0x3c] sm:$0x11]
    %v3903 = vsel %vm3895, 0, %v3902
    %3904 = vst [vmem:[#allocation2 + $0x3c] sm:$0x11] %v3903
    %v3905 = vld [vmem:[#allocation2 + $0x44] sm:$0x1]
    %v3906 = vsel %vm3892, 0, %v3905
    %3907 = vst [vmem:[#allocation2 + $0x44] sm:$0x1] %v3906
    %v3908 = vpack.c.bf16 %v3760, %v3756
    %v3909 = vpack.c.bf16 %v3762, %v3758
    %v3910 = vpack.c.bf16 %v3861, %v3858
    %v3911 = vpack.c.bf16 %v3770, %v3766
    %v3912 = vpack.c.bf16 %v3772, %v3768
    %v3913 = vpack.c.bf16 %v3869, %v3866
    %v3920 = vunpack.c.l.b16 %v3908
    %v3921 = vunpack.c.l.b16 %v3909
    %v3922 = vunpack.c.l.b16 %v3910
    %v3923 = vunpack.c.h.b16 %v3908
    %v3924 = vunpack.c.h.b16 %v3909
    %v3925 = vunpack.c.h.b16 %v3910
    %v3926 = vunpack.c.l.b16 %v3911
    %v3927 = vunpack.c.l.b16 %v3912
    %v3928 = vunpack.c.l.b16 %v3913
    %v3929 = vunpack.c.h.b16 %v3911
    %v3930 = vunpack.c.h.b16 %v3912
    %v3931 = vunpack.c.h.b16 %v3913
    %v3932 = vpack.c.b16 %v3921, %v3920
    %v3933 = vpack.c.b16 %v3922, %v3922
    %v3934 = vpack.c.b16 %v3924, %v3923
    %v3935 = vpack.c.b16 %v3925, %v3925
    %v3936 = vpack.c.b16 %v3927, %v3926
    %v3937 = vpack.c.b16 %v3928, %v3928
    %v3938 = vpack.c.b16 %v3930, %v3929
    %v3939 = vpack.c.b16 %v3931, %v3931
    %vm3940 = vsmask.f32 4368
    %vm3941 = vmor %vm3873, %vm3940
    %v3943 = vshrl.u32 %v3932, 16
    %v3945 = vrot.slane %v3943, 7
    %v3946 = vshll.u32 %v3932, 16
    %v3948 = vor.u32 %v3945, %v3946
    %v3950 = vshrl.u32 %v3933, 16
    %v3952 = vrot.slane %v3950, 7
    %v3953 = vshll.u32 %v3933, 16
    %v3955 = vor.u32 %v3952, %v3953
    %v3956 = vrot.slane %v3945, 4
    %v3958 = vshrl.u32 %v3934, 16
    %v3960 = vrot.slane %v3958, 7
    %v3961 = vshll.u32 %v3934, 16
    %v3963 = vor.u32 %v3960, %v3961
    %v3964 = vsel %vm3941, %v3956, %v3963
    %v3965 = vrot.slane %v3952, 4
    %v3967 = vshrl.u32 %v3935, 16
    %v3969 = vrot.slane %v3967, 7
    %v3970 = vshll.u32 %v3935, 16
    %v3972 = vor.u32 %v3969, %v3970
    %v3973 = vsel %vm3941, %v3965, %v3972
    %v3974 = vrot.slane %v3960, 4
    %v3975 = vrot.slane %v3969, 4
    %v3977 = vshrl.u32 %v3936, 16
    %v3979 = vrot.slane %v3977, 7
    %v3980 = vshll.u32 %v3936, 16
    %v3982 = vor.u32 %v3979, %v3980
    %v3984 = vshrl.u32 %v3937, 16
    %v3986 = vrot.slane %v3984, 7
    %v3987 = vshll.u32 %v3937, 16
    %v3989 = vor.u32 %v3986, %v3987
    %v3990 = vrot.slane %v3979, 4
    %v3992 = vshrl.u32 %v3938, 16
    %v3994 = vrot.slane %v3992, 7
    %v3995 = vshll.u32 %v3938, 16
    %v3997 = vor.u32 %v3994, %v3995
    %v3998 = vsel %vm3941, %v3990, %v3997
    %v3999 = vrot.slane %v3986, 4
    %v4001 = vshrl.u32 %v3939, 16
    %v4003 = vrot.slane %v4001, 7
    %v4004 = vshll.u32 %v3939, 16
    %v4006 = vor.u32 %v4003, %v4004
    %v4007 = vsel %vm3941, %v3999, %v4006
    %v4008 = vrot.slane %v3994, 4
    %v4009 = vrot.slane %v4003, 4
    %vm4022 = vcmask 1043456
    %vm4023 = vmand %vm4022, %vm3891
    %vm4024 = vcmask 1047556
    %vm4025 = vmand %vm4024, %vm3893
    %vm4026 = vmor %vm4025, %vm4023
    %v4027 = vld [vmem:[#allocation2] sm:$0xff]
    %v4028 = vsel %vm4026, %v3948, %v4027
    %4029 = vst [vmem:[#allocation2] sm:$0xff] %v4028
    %v4030 = vld [vmem:[#allocation2 + $0x8] sm:$0xf]
    %v4031 = vsel %vm4023, %v3955, %v4030
    %4032 = vst [vmem:[#allocation2 + $0x8] sm:$0xf] %v4031
    %4033 = vst [vmem:[#allocation2 + $0xc] sm:$0xff] %v3964
    %4034 = vst [vmem:[#allocation2 + $0x14] sm:$0xf] %v3973
    %v4035 = vld [vmem:[#allocation2 + $0x18] sm:$0x11]
    %v4036 = vsel %vm3878, %v3974, %v4035
    %4037 = vst [vmem:[#allocation2 + $0x18] sm:$0x11] %v4036
    %v4038 = vld [vmem:[#allocation2 + $0x20] sm:$0x1]
    %v4039 = vsel %vm3874, %v3975, %v4038
    %4040 = vst [vmem:[#allocation2 + $0x20] sm:$0x1] %v4039
    %v4041 = vld [vmem:[#allocation2 + $0x24] sm:$0xff]
    %v4042 = vsel %vm4026, %v3982, %v4041
    %4043 = vst [vmem:[#allocation2 + $0x24] sm:$0xff] %v4042
    %v4044 = vld [vmem:[#allocation2 + $0x2c] sm:$0xf]
    %v4045 = vsel %vm4023, %v3989, %v4044
    %4046 = vst [vmem:[#allocation2 + $0x2c] sm:$0xf] %v4045
    %4047 = vst [vmem:[#allocation2 + $0x30] sm:$0xff] %v3998
    %4048 = vst [vmem:[#allocation2 + $0x38] sm:$0xf] %v4007
    %v4049 = vld [vmem:[#allocation2 + $0x3c] sm:$0x11]
    %v4050 = vsel %vm3878, %v4008, %v4049
    %4051 = vst [vmem:[#allocation2 + $0x3c] sm:$0x11] %v4050
    %v4052 = vld [vmem:[#allocation2 + $0x44] sm:$0x1]
    %v4053 = vsel %vm3874, %v4009, %v4052
    %4054 = vst [vmem:[#allocation2 + $0x44] sm:$0x1] %v4053
    %v4055 = vld [vmem:[#allocation2] sm:$0xff]
    %v4056 = vld [vmem:[#allocation2 + $0x8] sm:$0xf]
    %v4057 = vld [vmem:[#allocation2 + $0xc] sm:$0xff]
    %v4058 = vld [vmem:[#allocation2 + $0x14] sm:$0xf]
    %v4059 = vld [vmem:[#allocation2 + $0x24] sm:$0xff]
    %v4060 = vld [vmem:[#allocation2 + $0x2c] sm:$0xf]
    %v4061 = vld [vmem:[#allocation2 + $0x30] sm:$0xff]
    %v4062 = vld [vmem:[#allocation2 + $0x38] sm:$0xf]
    %v4063 = vld [vmem:[#allocation2 + $0x18] sm:$0x11]
    %v4064 = vld [vmem:[#allocation2 + $0x20] sm:$0x1]
    %v4065 = vld [vmem:[#allocation2 + $0x3c] sm:$0x11]
    %v4066 = vld [vmem:[#allocation2 + $0x44] sm:$0x1]
    %v4067 = vld [vmem:[#allocation2] sm:$0xee]
    %v4068 = vld [vmem:[#allocation2 + $0x8] sm:$0xe]
    %v4069 = vld [vmem:[#allocation2 + $0x24] sm:$0xee]
    %v4070 = vld [vmem:[#allocation2 + $0x2c] sm:$0xe]
    %v4079 = vunpack.c.l.b16 %v4055
    %v4080 = vunpack.c.h.b16 %v4055
    %v4081 = vunpack.c.l.b16 %v4056
    %v4082 = vunpack.c.l.b16 %v4057
    %v4083 = vunpack.c.h.b16 %v4057
    %v4084 = vunpack.c.l.b16 %v4058
    %v4085 = vunpack.c.l.b16 %v4059
    %v4086 = vunpack.c.h.b16 %v4059
    %v4087 = vunpack.c.l.b16 %v4060
    %v4088 = vunpack.c.l.b16 %v4061
    %v4089 = vunpack.c.h.b16 %v4061
    %v4090 = vunpack.c.l.b16 %v4062
    %v4091 = vpack.c.b16 %v4082, %v4079
    %v4092 = vpack.c.b16 %v4083, %v4080
    %v4093 = vpack.c.b16 %v4084, %v4081
    %v4094 = vpack.c.b16 %v4088, %v4085
    %v4095 = vpack.c.b16 %v4089, %v4086
    %v4096 = vpack.c.b16 %v4090, %v4087
    %v4107 = vunpack.c.l.b16 %v4063
    %v4108 = vunpack.c.h.b16 %v4063
    %v4109 = vunpack.c.l.b16 %v4064
    %v4110 = vunpack.c.l.b16 %v4065
    %v4111 = vunpack.c.h.b16 %v4065
    %v4112 = vunpack.c.l.b16 %v4066
    %v4113 = vpack.c.b16 %v4107, %v4107
    %v4114 = vpack.c.b16 %v4108, %v4108
    %v4115 = vpack.c.b16 %v4109, %v4109
    %v4116 = vpack.c.b16 %v4110, %v4110
    %v4117 = vpack.c.b16 %v4111, %v4111
    %v4118 = vpack.c.b16 %v4112, %v4112
    %v4120 = vshrl.u32 %v4091, 16
    %v4122 = vshll.u32 %v4091, 16
    %v4124 = vrot.slane %v4122, 1
    %v4125 = vor.u32 %v4120, %v4124
    %v4127 = vshll.u32 %v4113, 16
    %v4129 = vrot.slane %v4127, 1
    %v4130 = vsel %vm257, %v4125, %v4129
    %v4132 = vshrl.u32 %v4092, 16
    %v4134 = vshll.u32 %v4092, 16
    %v4136 = vrot.slane %v4134, 1
    %v4137 = vor.u32 %v4132, %v4136
    %v4139 = vshll.u32 %v4114, 16
    %v4141 = vrot.slane %v4139, 1
    %v4142 = vsel %vm257, %v4137, %v4141
    %v4144 = vshrl.u32 %v4093, 16
    %v4146 = vshll.u32 %v4093, 16
    %v4148 = vrot.slane %v4146, 1
    %v4149 = vor.u32 %v4144, %v4148
    %v4151 = vshll.u32 %v4115, 16
    %v4153 = vrot.slane %v4151, 1
    %v4154 = vsel %vm257, %v4149, %v4153
    %v4156 = vshrl.u32 %v4094, 16
    %v4158 = vshll.u32 %v4094, 16
    %v4160 = vrot.slane %v4158, 1
    %v4161 = vor.u32 %v4156, %v4160
    %v4163 = vshll.u32 %v4116, 16
    %v4165 = vrot.slane %v4163, 1
    %v4166 = vsel %vm257, %v4161, %v4165
    %v4168 = vshrl.u32 %v4095, 16
    %v4170 = vshll.u32 %v4095, 16
    %v4172 = vrot.slane %v4170, 1
    %v4173 = vor.u32 %v4168, %v4172
    %v4175 = vshll.u32 %v4117, 16
    %v4177 = vrot.slane %v4175, 1
    %v4178 = vsel %vm257, %v4173, %v4177
    %v4180 = vshrl.u32 %v4096, 16
    %v4182 = vshll.u32 %v4096, 16
    %v4184 = vrot.slane %v4182, 1
    %v4185 = vor.u32 %v4180, %v4184
    %v4187 = vshll.u32 %v4118, 16
    %v4189 = vrot.slane %v4187, 1
    %v4190 = vsel %vm257, %v4185, %v4189
    %v4201 = vunpack.c.l.b16 %v4067
    %v4202 = vunpack.c.h.b16 %v4067
    %v4203 = vunpack.c.l.b16 %v4068
    %v4204 = vunpack.c.l.b16 %v4069
    %v4205 = vunpack.c.h.b16 %v4069
    %v4206 = vunpack.c.l.b16 %v4070
    %v4207 = vpack.c.b16 %v4082, %v4201
    %v4208 = vpack.c.b16 %v4083, %v4202
    %v4209 = vpack.c.b16 %v4084, %v4203
    %v4210 = vpack.c.b16 %v4088, %v4204
    %v4211 = vpack.c.b16 %v4089, %v4205
    %v4212 = vpack.c.b16 %v4090, %v4206
    %v4213 = vrot.slane %v4207, 1
    %v4214 = vrot.slane %v4113, 1
    %v4215 = vsel %vm308, %v4213, %v4214
    %v4216 = vrot.slane %v4208, 1
    %v4217 = vrot.slane %v4114, 1
    %v4218 = vsel %vm308, %v4216, %v4217
    %v4219 = vrot.slane %v4209, 1
    %v4220 = vrot.slane %v4115, 1
    %v4221 = vsel %vm308, %v4219, %v4220
    %v4222 = vrot.slane %v4210, 1
    %v4223 = vrot.slane %v4116, 1
    %v4224 = vsel %vm308, %v4222, %v4223
    %v4225 = vrot.slane %v4211, 1
    %v4226 = vrot.slane %v4117, 1
    %v4227 = vsel %vm308, %v4225, %v4226
    %v4228 = vrot.slane %v4212, 1
    %v4229 = vrot.slane %v4118, 1
    %v4230 = vsel %vm308, %v4228, %v4229
    %v4237 = vld [vmem:[#allocation10] sm:$0xff]
    %v4238 = vld [vmem:[#allocation10 + $0x8] sm:$0xff]
    %v4239 = vld [vmem:[#allocation10 + $0x10] sm:$0xff]
    %v4240 = vld [vmem:[#allocation10 + $0x18] sm:$0xff]
    %v4241 = vld [vmem:[#allocation10 + $0x20] sm:$0xff]
    %v4242 = vld [vmem:[#allocation10 + $0x28] sm:$0xff]
    %v4243 = vld [vmem:[#allocation10 + $0x30] sm:$0xff]
    %v4244 = vld [vmem:[#allocation10 + $0x38] sm:$0xff]
    %v4245 = vld [vmem:[#allocation10 + $0x40] sm:$0xff]
    %v4246 = vld [vmem:[#allocation10 + $0x48] sm:$0xff]
    %v4247 = vld [vmem:[#allocation10 + $0x50] sm:$0xff]
    %v4248 = vld [vmem:[#allocation10 + $0x58] sm:$0xff]
    %v4249 = vld [vmem:[#allocation10 + $0x60] sm:$0xff]
    %v4250 = vld [vmem:[#allocation10 + $0x68] sm:$0xff]
    %v4251 = vld [vmem:[#allocation10 + $0x70] sm:$0xff]
    %v4252 = vld [vmem:[#allocation10 + $0x78] sm:$0xff]
    %v4253 = vld [vmem:[#allocation10 + $0x80] sm:$0xff]
    %v4254 = vld [vmem:[#allocation10 + $0x88] sm:$0xff]
    %v4255 = vld [vmem:[#allocation10 + $0x90] sm:$0xff]
    %v4256 = vld [vmem:[#allocation10 + $0x98] sm:$0xff]
    %v4257 = vld [vmem:[#allocation10 + $0xa0] sm:$0xff]
    %v4258 = vld [vmem:[#allocation10 + $0xa8] sm:$0xff]
    %v4259 = vld [vmem:[#allocation10 + $0xb0] sm:$0xff]
    %v4260 = vld [vmem:[#allocation10 + $0xb8] sm:$0xff]
    %v4261 = vld [vmem:[#allocation10 + $0xc0] sm:$0xff]
    %v4262 = vld [vmem:[#allocation10 + $0xc8] sm:$0xff]
    %v4263 = vld [vmem:[#allocation10 + $0xd0] sm:$0xff]
    %v4264 = vld [vmem:[#allocation10 + $0xd8] sm:$0xff]
    %v4265 = vld [vmem:[#allocation10 + $0xe0] sm:$0xff]
    %v4266 = vld [vmem:[#allocation10 + $0xe8] sm:$0xff]
    %v4267 = vld [vmem:[#allocation10 + $0xf0] sm:$0xff]
    %v4268 = vld [vmem:[#allocation10 + $0xf8] sm:$0xff]
    %v4269 = vld [vmem:[#allocation10 + $0x100] sm:$0xff]
    %v4270 = vld [vmem:[#allocation10 + $0x108] sm:$0xff]
    %v4271 = vld [vmem:[#allocation10 + $0x110] sm:$0xff]
    %v4272 = vld [vmem:[#allocation10 + $0x118] sm:$0xff]
    %v4273 = vld [vmem:[#allocation10 + $0x120] sm:$0xff]
    %v4274 = vld [vmem:[#allocation10 + $0x128] sm:$0xff]
    %v4275 = vld [vmem:[#allocation10 + $0x130] sm:$0xff]
    %v4276 = vld [vmem:[#allocation10 + $0x138] sm:$0xff]
    %v4277 = vld [vmem:[#allocation10 + $0x140] sm:$0xff]
    %v4278 = vld [vmem:[#allocation10 + $0x148] sm:$0xff]
    %v4279 = vld [vmem:[#allocation10 + $0x150] sm:$0xff]
    %v4280 = vld [vmem:[#allocation10 + $0x158] sm:$0xff]
    %v4281 = vld [vmem:[#allocation10 + $0x160] sm:$0xff]
    %v4282 = vld [vmem:[#allocation10 + $0x168] sm:$0xff]
    %v4283 = vld [vmem:[#allocation10 + $0x170] sm:$0xff]
    %v4284 = vld [vmem:[#allocation10 + $0x178] sm:$0xff]
    %v4285 = vld [vmem:[#allocation10 + $0x180] sm:$0xff]
    %v4286 = vld [vmem:[#allocation10 + $0x188] sm:$0xff]
    %v4287 = vld [vmem:[#allocation10 + $0x190] sm:$0xff]
    %v4288 = vld [vmem:[#allocation10 + $0x198] sm:$0xff]
    %v4289 = vld [vmem:[#allocation10 + $0x1a0] sm:$0xff]
    %v4290 = vld [vmem:[#allocation10 + $0x1a8] sm:$0xff]
    %v4291 = vld [vmem:[#allocation10 + $0x1b0] sm:$0xff]
    %v4292 = vld [vmem:[#allocation10 + $0x1b8] sm:$0xff]
    %v4293 = vld [vmem:[#allocation10 + $0x1c0] sm:$0xff]
    %v4294 = vld [vmem:[#allocation10 + $0x1c8] sm:$0xff]
    %v4295 = vld [vmem:[#allocation10 + $0x1d0] sm:$0xff]
    %v4296 = vld [vmem:[#allocation10 + $0x1d8] sm:$0xff]
    %v4297 = vld [vmem:[#allocation10 + $0x1e0] sm:$0xff]
    %v4298 = vld [vmem:[#allocation10 + $0x1e8] sm:$0xff]
    %v4299 = vld [vmem:[#allocation10 + $0x1f0] sm:$0xff]
    %v4300 = vld [vmem:[#allocation10 + $0x1f8] sm:$0xff]
    %v4301 = vld [vmem:[#allocation10 + $0x200] sm:$0xff]
    %v4302 = vld [vmem:[#allocation10 + $0x208] sm:$0xff]
    %v4303 = vld [vmem:[#allocation10 + $0x210] sm:$0xff]
    %v4304 = vld [vmem:[#allocation10 + $0x218] sm:$0xff]
    %v4305 = vld [vmem:[#allocation10 + $0x220] sm:$0xff]
    %v4306 = vld [vmem:[#allocation10 + $0x228] sm:$0xff]
    %v4307 = vld [vmem:[#allocation10 + $0x230] sm:$0xff]
    %v4308 = vld [vmem:[#allocation10 + $0x238] sm:$0xff]
    %v4309 = vld [vmem:[#allocation10 + $0x240] sm:$0xff]
    %v4310 = vld [vmem:[#allocation10 + $0x248] sm:$0xff]
    %v4311 = vld [vmem:[#allocation10 + $0x250] sm:$0xff]
    %v4312 = vld [vmem:[#allocation10 + $0x258] sm:$0xff]
    %v4313 = vld [vmem:[#allocation10 + $0x260] sm:$0xff]
    %v4314 = vld [vmem:[#allocation10 + $0x268] sm:$0xff]
    %v4315 = vld [vmem:[#allocation10 + $0x270] sm:$0xff]
    %v4316 = vld [vmem:[#allocation10 + $0x278] sm:$0xff]
    %v4317 = vld [vmem:[#allocation10 + $0x280] sm:$0xff]
    %v4318 = vld [vmem:[#allocation10 + $0x288] sm:$0xff]
    %v4319 = vld [vmem:[#allocation10 + $0x290] sm:$0xff]
    %v4320 = vld [vmem:[#allocation10 + $0x298] sm:$0xff]
    %v4321 = vld [vmem:[#allocation10 + $0x2a0] sm:$0xff]
    %v4322 = vld [vmem:[#allocation10 + $0x2a8] sm:$0xff]
    %v4323 = vld [vmem:[#allocation10 + $0x2b0] sm:$0xff]
    %v4324 = vld [vmem:[#allocation10 + $0x2b8] sm:$0xff]
    %v4325 = vld [vmem:[#allocation10 + $0x2c0] sm:$0xff]
    %v4326 = vld [vmem:[#allocation10 + $0x2c8] sm:$0xff]
    %v4327 = vld [vmem:[#allocation10 + $0x2d0] sm:$0xff]
    %v4328 = vld [vmem:[#allocation10 + $0x2d8] sm:$0xff]
    %v4329 = vld [vmem:[#allocation10 + $0x2e0] sm:$0xff]
    %v4330 = vld [vmem:[#allocation10 + $0x2e8] sm:$0xff]
    %v4331 = vld [vmem:[#allocation10 + $0x2f0] sm:$0xff]
    %v4332 = vld [vmem:[#allocation10 + $0x2f8] sm:$0xff]
    %v4333 = vld [vmem:[#allocation10 + $0x300] sm:$0xff]
    %v4334 = vld [vmem:[#allocation10 + $0x308] sm:$0xff]
    %v4335 = vld [vmem:[#allocation10 + $0x310] sm:$0xff]
    %v4336 = vld [vmem:[#allocation10 + $0x318] sm:$0xff]
    %v4337 = vld [vmem:[#allocation10 + $0x320] sm:$0xff]
    %v4338 = vld [vmem:[#allocation10 + $0x328] sm:$0xff]
    %v4339 = vld [vmem:[#allocation10 + $0x330] sm:$0xff]
    %v4340 = vld [vmem:[#allocation10 + $0x338] sm:$0xff]
    %v4341 = vld [vmem:[#allocation10 + $0x340] sm:$0xff]
    %v4342 = vld [vmem:[#allocation10 + $0x348] sm:$0xff]
    %v4343 = vld [vmem:[#allocation10 + $0x350] sm:$0xff]
    %v4344 = vld [vmem:[#allocation10 + $0x358] sm:$0xff]
    %v4345 = vld [vmem:[#allocation10 + $0x360] sm:$0xff]
    %v4346 = vld [vmem:[#allocation10 + $0x368] sm:$0xff]
    %v4347 = vld [vmem:[#allocation10 + $0x370] sm:$0xff]
    %v4348 = vld [vmem:[#allocation10 + $0x378] sm:$0xff]
    %v4349 = vld [vmem:[#allocation10 + $0x380] sm:$0xff]
    %v4350 = vld [vmem:[#allocation10 + $0x388] sm:$0xff]
    %v4351 = vld [vmem:[#allocation10 + $0x390] sm:$0xff]
    %v4352 = vld [vmem:[#allocation10 + $0x398] sm:$0xff]
    %v4353 = vld [vmem:[#allocation10 + $0x3a0] sm:$0xff]
    %v4354 = vld [vmem:[#allocation10 + $0x3a8] sm:$0xff]
    %v4355 = vld [vmem:[#allocation10 + $0x3b0] sm:$0xff]
    %v4356 = vld [vmem:[#allocation10 + $0x3b8] sm:$0xff]
    %v4357 = vld [vmem:[#allocation10 + $0x3c0] sm:$0xff]
    %v4358 = vld [vmem:[#allocation10 + $0x3c8] sm:$0xff]
    %v4359 = vld [vmem:[#allocation10 + $0x3d0] sm:$0xff]
    %v4360 = vld [vmem:[#allocation10 + $0x3d8] sm:$0xff]
    %v4361 = vld [vmem:[#allocation10 + $0x3e0] sm:$0xff]
    %v4362 = vld [vmem:[#allocation10 + $0x3e8] sm:$0xff]
    %v4363 = vld [vmem:[#allocation10 + $0x3f0] sm:$0xff]
    %v4364 = vld [vmem:[#allocation10 + $0x3f8] sm:$0xff]
    %v4365 = vld [vmem:[#allocation10 + $0x400] sm:$0xff]
    %v4366 = vld [vmem:[#allocation10 + $0x408] sm:$0xff]
    %v4367 = vld [vmem:[#allocation10 + $0x410] sm:$0xff]
    %v4368 = vld [vmem:[#allocation10 + $0x418] sm:$0xff]
    %v4369 = vld [vmem:[#allocation10 + $0x420] sm:$0xff]
    %v4370 = vld [vmem:[#allocation10 + $0x428] sm:$0xff]
    %v4371 = vld [vmem:[#allocation10 + $0x430] sm:$0xff]
    %v4372 = vld [vmem:[#allocation10 + $0x438] sm:$0xff]
    %v4373 = vld [vmem:[#allocation10 + $0x440] sm:$0xff]
    %v4374 = vld [vmem:[#allocation10 + $0x448] sm:$0xff]
    %v4375 = vld [vmem:[#allocation10 + $0x450] sm:$0xff]
    %v4376 = vld [vmem:[#allocation10 + $0x458] sm:$0xff]
    %v4377 = vld [vmem:[#allocation10 + $0x460] sm:$0xff]
    %v4378 = vld [vmem:[#allocation10 + $0x468] sm:$0xff]
    %v4379 = vld [vmem:[#allocation10 + $0x470] sm:$0xff]
    %v4380 = vld [vmem:[#allocation10 + $0x478] sm:$0xff]
    %v4381 = vld [vmem:[#allocation10 + $0x480] sm:$0xff]
    %v4382 = vld [vmem:[#allocation10 + $0x488] sm:$0xff]
    %v4383 = vld [vmem:[#allocation10 + $0x490] sm:$0xff]
    %v4384 = vld [vmem:[#allocation10 + $0x498] sm:$0xff]
    %v4385 = vld [vmem:[#allocation10 + $0x4a0] sm:$0xff]
    %v4386 = vld [vmem:[#allocation10 + $0x4a8] sm:$0xff]
    %v4387 = vld [vmem:[#allocation10 + $0x4b0] sm:$0xff]
    %v4388 = vld [vmem:[#allocation10 + $0x4b8] sm:$0xff]
    %v4389 = vld [vmem:[#allocation10 + $0x4c0] sm:$0xff]
    %v4390 = vld [vmem:[#allocation10 + $0x4c8] sm:$0xff]
    %v4391 = vld [vmem:[#allocation10 + $0x4d0] sm:$0xff]
    %v4392 = vld [vmem:[#allocation10 + $0x4d8] sm:$0xff]
    %v4393 = vld [vmem:[#allocation10 + $0x4e0] sm:$0xff]
    %v4394 = vld [vmem:[#allocation10 + $0x4e8] sm:$0xff]
    %v4395 = vld [vmem:[#allocation10 + $0x4f0] sm:$0xff]
    %v4396 = vld [vmem:[#allocation10 + $0x4f8] sm:$0xff]
    %v4397 = vld [vmem:[#allocation10 + $0x500] sm:$0xff]
    %v4398 = vld [vmem:[#allocation10 + $0x508] sm:$0xff]
    %v4399 = vld [vmem:[#allocation10 + $0x510] sm:$0xff]
    %v4400 = vld [vmem:[#allocation10 + $0x518] sm:$0xff]
    %v4401 = vld [vmem:[#allocation10 + $0x520] sm:$0xff]
    %v4402 = vld [vmem:[#allocation10 + $0x528] sm:$0xff]
    %v4403 = vld [vmem:[#allocation10 + $0x530] sm:$0xff]
    %v4404 = vld [vmem:[#allocation10 + $0x538] sm:$0xff]
    %v4405 = vld [vmem:[#allocation10 + $0x540] sm:$0xff]
    %v4406 = vld [vmem:[#allocation10 + $0x548] sm:$0xff]
    %v4407 = vld [vmem:[#allocation10 + $0x550] sm:$0xff]
    %v4408 = vld [vmem:[#allocation10 + $0x558] sm:$0xff]
    %v4409 = vld [vmem:[#allocation10 + $0x560] sm:$0xff]
    %v4410 = vld [vmem:[#allocation10 + $0x568] sm:$0xff]
    %v4411 = vld [vmem:[#allocation10 + $0x570] sm:$0xff]
    %v4412 = vld [vmem:[#allocation10 + $0x578] sm:$0xff]
    %v4413 = vld [vmem:[#allocation10 + $0x580] sm:$0xff]
    %v4414 = vld [vmem:[#allocation10 + $0x588] sm:$0xff]
    %v4415 = vld [vmem:[#allocation10 + $0x590] sm:$0xff]
    %v4416 = vld [vmem:[#allocation10 + $0x598] sm:$0xff]
    %v4417 = vld [vmem:[#allocation10 + $0x5a0] sm:$0xff]
    %v4418 = vld [vmem:[#allocation10 + $0x5a8] sm:$0xff]
    %v4419 = vld [vmem:[#allocation10 + $0x5b0] sm:$0xff]
    %v4420 = vld [vmem:[#allocation10 + $0x5b8] sm:$0xff]
    %v4421 = vld [vmem:[#allocation10 + $0x5c0] sm:$0xff]
    %v4422 = vld [vmem:[#allocation10 + $0x5c8] sm:$0xff]
    %v4423 = vld [vmem:[#allocation10 + $0x5d0] sm:$0xff]
    %v4424 = vld [vmem:[#allocation10 + $0x5d8] sm:$0xff]
    %v4425 = vld [vmem:[#allocation10 + $0x5e0] sm:$0xff]
    %v4426 = vld [vmem:[#allocation10 + $0x5e8] sm:$0xff]
    %v4427 = vld [vmem:[#allocation10 + $0x5f0] sm:$0xff]
    %v4428 = vld [vmem:[#allocation10 + $0x5f8] sm:$0xff]
    %v4429 = vld [vmem:[#allocation10 + $0x600] sm:$0xff]
    %v4430 = vld [vmem:[#allocation10 + $0x608] sm:$0xff]
    %v4431 = vld [vmem:[#allocation10 + $0x610] sm:$0xff]
    %v4432 = vld [vmem:[#allocation10 + $0x618] sm:$0xff]
    %v4433 = vld [vmem:[#allocation10 + $0x620] sm:$0xff]
    %v4434 = vld [vmem:[#allocation10 + $0x628] sm:$0xff]
    %v4435 = vld [vmem:[#allocation10 + $0x630] sm:$0xff]
    %v4436 = vld [vmem:[#allocation10 + $0x638] sm:$0xff]
    %v4437 = vld [vmem:[#allocation10 + $0x640] sm:$0xff]
    %v4438 = vld [vmem:[#allocation10 + $0x648] sm:$0xff]
    %v4439 = vld [vmem:[#allocation10 + $0x650] sm:$0xff]
    %v4440 = vld [vmem:[#allocation10 + $0x658] sm:$0xff]
    %v4441 = vld [vmem:[#allocation10 + $0x660] sm:$0xff]
    %v4442 = vld [vmem:[#allocation10 + $0x668] sm:$0xff]
    %v4443 = vld [vmem:[#allocation10 + $0x670] sm:$0xff]
    %v4444 = vld [vmem:[#allocation10 + $0x678] sm:$0xff]
    %v4445 = vld [vmem:[#allocation10 + $0x680] sm:$0xff]
    %v4446 = vld [vmem:[#allocation10 + $0x688] sm:$0xff]
    %v4447 = vld [vmem:[#allocation10 + $0x690] sm:$0xff]
    %v4448 = vld [vmem:[#allocation10 + $0x698] sm:$0xff]
    %v4449 = vld [vmem:[#allocation10 + $0x6a0] sm:$0xff]
    %v4450 = vld [vmem:[#allocation10 + $0x6a8] sm:$0xff]
    %v4451 = vld [vmem:[#allocation10 + $0x6b0] sm:$0xff]
    %v4452 = vld [vmem:[#allocation10 + $0x6b8] sm:$0xff]
    %v4453 = vld [vmem:[#allocation10 + $0x6c0] sm:$0xff]
    %v4454 = vld [vmem:[#allocation10 + $0x6c8] sm:$0xff]
    %v4455 = vld [vmem:[#allocation10 + $0x6d0] sm:$0xff]
    %v4456 = vld [vmem:[#allocation10 + $0x6d8] sm:$0xff]
    %v4457 = vld [vmem:[#allocation10 + $0x6e0] sm:$0xff]
    %v4458 = vld [vmem:[#allocation10 + $0x6e8] sm:$0xff]
    %v4459 = vld [vmem:[#allocation10 + $0x6f0] sm:$0xff]
    %v4460 = vld [vmem:[#allocation10 + $0x6f8] sm:$0xff]
    %v4461 = vld [vmem:[#allocation10 + $0x700] sm:$0xff]
    %v4462 = vld [vmem:[#allocation10 + $0x708] sm:$0xff]
    %v4463 = vld [vmem:[#allocation10 + $0x710] sm:$0xff]
    %v4464 = vld [vmem:[#allocation10 + $0x718] sm:$0xff]
    %v4465 = vld [vmem:[#allocation10 + $0x720] sm:$0xff]
    %v4466 = vld [vmem:[#allocation10 + $0x728] sm:$0xff]
    %v4467 = vld [vmem:[#allocation10 + $0x730] sm:$0xff]
    %v4468 = vld [vmem:[#allocation10 + $0x738] sm:$0xff]
    %v4469 = vld [vmem:[#allocation10 + $0x740] sm:$0xff]
    %v4470 = vld [vmem:[#allocation10 + $0x748] sm:$0xff]
    %v4471 = vld [vmem:[#allocation10 + $0x750] sm:$0xff]
    %v4472 = vld [vmem:[#allocation10 + $0x758] sm:$0xff]
    %v4473 = vld [vmem:[#allocation10 + $0x760] sm:$0xff]
    %v4474 = vld [vmem:[#allocation10 + $0x768] sm:$0xff]
    %v4475 = vld [vmem:[#allocation10 + $0x770] sm:$0xff]
    %v4476 = vld [vmem:[#allocation10 + $0x778] sm:$0xff]
    %v4477 = vld [vmem:[#allocation10 + $0x780] sm:$0xff]
    %v4478 = vld [vmem:[#allocation10 + $0x788] sm:$0xff]
    %v4479 = vld [vmem:[#allocation10 + $0x790] sm:$0xff]
    %v4480 = vld [vmem:[#allocation10 + $0x798] sm:$0xff]
    %v4481 = vld [vmem:[#allocation10 + $0x7a0] sm:$0xff]
    %v4482 = vld [vmem:[#allocation10 + $0x7a8] sm:$0xff]
    %v4483 = vld [vmem:[#allocation10 + $0x7b0] sm:$0xff]
    %v4484 = vld [vmem:[#allocation10 + $0x7b8] sm:$0xff]
    %v4485 = vld [vmem:[#allocation10 + $0x7c0] sm:$0xff]
    %v4486 = vld [vmem:[#allocation10 + $0x7c8] sm:$0xff]
    %v4487 = vld [vmem:[#allocation10 + $0x7d0] sm:$0xff]
    %v4488 = vld [vmem:[#allocation10 + $0x7d8] sm:$0xff]
    %v4489 = vld [vmem:[#allocation10 + $0x7e0] sm:$0xff]
    %v4490 = vld [vmem:[#allocation10 + $0x7e8] sm:$0xff]
    %v4491 = vld [vmem:[#allocation10 + $0x7f0] sm:$0xff]
    %v4492 = vld [vmem:[#allocation10 + $0x7f8] sm:$0xff]
    %v4493 = vld [vmem:[#allocation10 + $0x800] sm:$0xff]
    %v4494 = vld [vmem:[#allocation10 + $0x808] sm:$0xff]
    %v4495 = vld [vmem:[#allocation10 + $0x810] sm:$0xff]
    %v4496 = vld [vmem:[#allocation10 + $0x818] sm:$0xff]
    %v4497 = vld [vmem:[#allocation10 + $0x820] sm:$0xff]
    %v4498 = vld [vmem:[#allocation10 + $0x828] sm:$0xff]
    %v4499 = vld [vmem:[#allocation10 + $0x830] sm:$0xff]
    %v4500 = vld [vmem:[#allocation10 + $0x838] sm:$0xff]
    %v4501 = vld [vmem:[#allocation10 + $0x840] sm:$0xff]
    %v4502 = vld [vmem:[#allocation10 + $0x848] sm:$0xff]
    %v4503 = vld [vmem:[#allocation10 + $0x850] sm:$0xff]
    %v4504 = vld [vmem:[#allocation10 + $0x858] sm:$0xff]
    %v4505 = vld [vmem:[#allocation10 + $0x860] sm:$0xff]
    %v4506 = vld [vmem:[#allocation10 + $0x868] sm:$0xff]
    %v4507 = vld [vmem:[#allocation10 + $0x870] sm:$0xff]
    %v4508 = vld [vmem:[#allocation10 + $0x878] sm:$0xff]
    %v4509 = vld [vmem:[#allocation10 + $0x880] sm:$0xff]
    %v4510 = vld [vmem:[#allocation10 + $0x888] sm:$0xff]
    %v4511 = vld [vmem:[#allocation10 + $0x890] sm:$0xff]
    %v4512 = vld [vmem:[#allocation10 + $0x898] sm:$0xff]
    %v4513 = vld [vmem:[#allocation10 + $0x8a0] sm:$0xff]
    %v4514 = vld [vmem:[#allocation10 + $0x8a8] sm:$0xff]
    %v4515 = vld [vmem:[#allocation10 + $0x8b0] sm:$0xff]
    %v4516 = vld [vmem:[#allocation10 + $0x8b8] sm:$0xff]
    %v4517 = vld [vmem:[#allocation10 + $0x8c0] sm:$0xff]
    %v4518 = vld [vmem:[#allocation10 + $0x8c8] sm:$0xff]
    %v4519 = vld [vmem:[#allocation10 + $0x8d0] sm:$0xff]
    %v4520 = vld [vmem:[#allocation10 + $0x8d8] sm:$0xff]
    %v4521 = vld [vmem:[#allocation10 + $0x8e0] sm:$0xff]
    %v4522 = vld [vmem:[#allocation10 + $0x8e8] sm:$0xff]
    %v4523 = vld [vmem:[#allocation10 + $0x8f0] sm:$0xff]
    %v4524 = vld [vmem:[#allocation10 + $0x8f8] sm:$0xff]
    %v4525 = vld [vmem:[#allocation12] sm:$0xf]
    %v4527 = vlaneseq
    %v4528 = vshrl.u32 %v4527, 7
    %v4529 = vsub.s32 0, %v4528
    %v4530 = vrot.slane %v4525, %v4529
    %v4531 = vlaneseq
    %v4532 = vshrl.u32 %v4531, 7
    %v4533 = vsub.s32 1, %v4532
    %v4534 = vrot.slane %v4525, %v4533
    %v4535 = vlaneseq
    %v4536 = vshrl.u32 %v4535, 7
    %v4537 = vsub.s32 2, %v4536
    %v4538 = vrot.slane %v4525, %v4537
    %v4539 = vlaneseq
    %v4540 = vshrl.u32 %v4539, 7
    %v4541 = vsub.s32 3, %v4540
    %v4542 = vrot.slane %v4525, %v4541
    %v4835 = vunpack.c.l.b16 %v4237
    %v4836 = vunpack.c.h.b16 %v4237
    %v4837 = vunpack.c.l.b16 %v4238
    %v4838 = vunpack.c.h.b16 %v4238
    %v4839 = vunpack.c.l.b16 %v4239
    %v4840 = vunpack.c.h.b16 %v4239
    %v4841 = vunpack.c.l.b16 %v4240
    %v4842 = vunpack.c.h.b16 %v4240
    %v4843 = vunpack.c.l.b16 %v4241
    %v4844 = vunpack.c.h.b16 %v4241
    %v4845 = vunpack.c.l.b16 %v4242
    %v4846 = vunpack.c.h.b16 %v4242
    %v4847 = vunpack.c.l.b16 %v4243
    %v4848 = vunpack.c.h.b16 %v4243
    %v4849 = vunpack.c.l.b16 %v4244
    %v4850 = vunpack.c.h.b16 %v4244
    %v4851 = vunpack.c.l.b16 %v4245
    %v4852 = vunpack.c.h.b16 %v4245
    %v4853 = vunpack.c.l.b16 %v4246
    %v4854 = vunpack.c.h.b16 %v4246
    %v4855 = vunpack.c.l.b16 %v4247
    %v4856 = vunpack.c.h.b16 %v4247
    %v4857 = vunpack.c.l.b16 %v4248
    %v4858 = vunpack.c.h.b16 %v4248
    %v4859 = vunpack.c.l.b16 %v4249
    %v4860 = vunpack.c.h.b16 %v4249
    %v4861 = vunpack.c.l.b16 %v4250
    %v4862 = vunpack.c.h.b16 %v4250
    %v4863 = vunpack.c.l.b16 %v4251
    %v4864 = vunpack.c.h.b16 %v4251
    %v4865 = vunpack.c.l.b16 %v4252
    %v4866 = vunpack.c.h.b16 %v4252
    %v4867 = vunpack.c.l.b16 %v4253
    %v4868 = vunpack.c.h.b16 %v4253
    %v4869 = vunpack.c.l.b16 %v4254
    %v4870 = vunpack.c.h.b16 %v4254
    %v4871 = vunpack.c.l.b16 %v4255
    %v4872 = vunpack.c.h.b16 %v4255
    %v4873 = vunpack.c.l.b16 %v4256
    %v4874 = vunpack.c.h.b16 %v4256
    %v4875 = vunpack.c.l.b16 %v4257
    %v4876 = vunpack.c.h.b16 %v4257
    %v4877 = vunpack.c.l.b16 %v4258
    %v4878 = vunpack.c.h.b16 %v4258
    %v4879 = vunpack.c.l.b16 %v4259
    %v4880 = vunpack.c.h.b16 %v4259
    %v4881 = vunpack.c.l.b16 %v4260
    %v4882 = vunpack.c.h.b16 %v4260
    %v4883 = vunpack.c.l.b16 %v4261
    %v4884 = vunpack.c.h.b16 %v4261
    %v4885 = vunpack.c.l.b16 %v4262
    %v4886 = vunpack.c.h.b16 %v4262
    %v4887 = vunpack.c.l.b16 %v4263
    %v4888 = vunpack.c.h.b16 %v4263
    %v4889 = vunpack.c.l.b16 %v4264
    %v4890 = vunpack.c.h.b16 %v4264
    %v4891 = vunpack.c.l.b16 %v4265
    %v4892 = vunpack.c.h.b16 %v4265
    %v4893 = vunpack.c.l.b16 %v4266
    %v4894 = vunpack.c.h.b16 %v4266
    %v4895 = vunpack.c.l.b16 %v4267
    %v4896 = vunpack.c.h.b16 %v4267
    %v4897 = vunpack.c.l.b16 %v4268
    %v4898 = vunpack.c.h.b16 %v4268
    %v4899 = vunpack.c.l.b16 %v4269
    %v4900 = vunpack.c.h.b16 %v4269
    %v4901 = vunpack.c.l.b16 %v4270
    %v4902 = vunpack.c.h.b16 %v4270
    %v4903 = vunpack.c.l.b16 %v4271
    %v4904 = vunpack.c.h.b16 %v4271
    %v4905 = vunpack.c.l.b16 %v4272
    %v4906 = vunpack.c.h.b16 %v4272
    %v4907 = vunpack.c.l.b16 %v4273
    %v4908 = vunpack.c.h.b16 %v4273
    %v4909 = vunpack.c.l.b16 %v4274
    %v4910 = vunpack.c.h.b16 %v4274
    %v4911 = vunpack.c.l.b16 %v4275
    %v4912 = vunpack.c.h.b16 %v4275
    %v4913 = vunpack.c.l.b16 %v4276
    %v4914 = vunpack.c.h.b16 %v4276
    %v4915 = vunpack.c.l.b16 %v4277
    %v4916 = vunpack.c.h.b16 %v4277
    %v4917 = vunpack.c.l.b16 %v4278
    %v4918 = vunpack.c.h.b16 %v4278
    %v4919 = vunpack.c.l.b16 %v4279
    %v4920 = vunpack.c.h.b16 %v4279
    %v4921 = vunpack.c.l.b16 %v4280
    %v4922 = vunpack.c.h.b16 %v4280
    %v4923 = vunpack.c.l.b16 %v4281
    %v4924 = vunpack.c.h.b16 %v4281
    %v4925 = vunpack.c.l.b16 %v4282
    %v4926 = vunpack.c.h.b16 %v4282
    %v4927 = vunpack.c.l.b16 %v4283
    %v4928 = vunpack.c.h.b16 %v4283
    %v4929 = vunpack.c.l.b16 %v4284
    %v4930 = vunpack.c.h.b16 %v4284
    %v4931 = vunpack.c.l.b16 %v4285
    %v4932 = vunpack.c.h.b16 %v4285
    %v4933 = vunpack.c.l.b16 %v4286
    %v4934 = vunpack.c.h.b16 %v4286
    %v4935 = vunpack.c.l.b16 %v4287
    %v4936 = vunpack.c.h.b16 %v4287
    %v4937 = vunpack.c.l.b16 %v4288
    %v4938 = vunpack.c.h.b16 %v4288
    %v4939 = vunpack.c.l.b16 %v4289
    %v4940 = vunpack.c.h.b16 %v4289
    %v4941 = vunpack.c.l.b16 %v4290
    %v4942 = vunpack.c.h.b16 %v4290
    %v4943 = vunpack.c.l.b16 %v4291
    %v4944 = vunpack.c.h.b16 %v4291
    %v4945 = vunpack.c.l.b16 %v4292
    %v4946 = vunpack.c.h.b16 %v4292
    %v4947 = vunpack.c.l.b16 %v4293
    %v4948 = vunpack.c.h.b16 %v4293
    %v4949 = vunpack.c.l.b16 %v4294
    %v4950 = vunpack.c.h.b16 %v4294
    %v4951 = vunpack.c.l.b16 %v4295
    %v4952 = vunpack.c.h.b16 %v4295
    %v4953 = vunpack.c.l.b16 %v4296
    %v4954 = vunpack.c.h.b16 %v4296
    %v4955 = vunpack.c.l.b16 %v4297
    %v4956 = vunpack.c.h.b16 %v4297
    %v4957 = vunpack.c.l.b16 %v4298
    %v4958 = vunpack.c.h.b16 %v4298
    %v4959 = vunpack.c.l.b16 %v4299
    %v4960 = vunpack.c.h.b16 %v4299
    %v4961 = vunpack.c.l.b16 %v4300
    %v4962 = vunpack.c.h.b16 %v4300
    %v4963 = vunpack.c.l.b16 %v4301
    %v4964 = vunpack.c.h.b16 %v4301
    %v4965 = vunpack.c.l.b16 %v4302
    %v4966 = vunpack.c.h.b16 %v4302
    %v4967 = vunpack.c.l.b16 %v4303
    %v4968 = vunpack.c.h.b16 %v4303
    %v4969 = vunpack.c.l.b16 %v4304
    %v4970 = vunpack.c.h.b16 %v4304
    %v4971 = vunpack.c.l.b16 %v4305
    %v4972 = vunpack.c.h.b16 %v4305
    %v4973 = vunpack.c.l.b16 %v4306
    %v4974 = vunpack.c.h.b16 %v4306
    %v4975 = vunpack.c.l.b16 %v4307
    %v4976 = vunpack.c.h.b16 %v4307
    %v4977 = vunpack.c.l.b16 %v4308
    %v4978 = vunpack.c.h.b16 %v4308
    %v4979 = vunpack.c.l.b16 %v4309
    %v4980 = vunpack.c.h.b16 %v4309
    %v4981 = vunpack.c.l.b16 %v4310
    %v4982 = vunpack.c.h.b16 %v4310
    %v4983 = vunpack.c.l.b16 %v4311
    %v4984 = vunpack.c.h.b16 %v4311
    %v4985 = vunpack.c.l.b16 %v4312
    %v4986 = vunpack.c.h.b16 %v4312
    %v4987 = vunpack.c.l.b16 %v4313
    %v4988 = vunpack.c.h.b16 %v4313
    %v4989 = vunpack.c.l.b16 %v4314
    %v4990 = vunpack.c.h.b16 %v4314
    %v4991 = vunpack.c.l.b16 %v4315
    %v4992 = vunpack.c.h.b16 %v4315
    %v4993 = vunpack.c.l.b16 %v4316
    %v4994 = vunpack.c.h.b16 %v4316
    %v4995 = vunpack.c.l.b16 %v4317
    %v4996 = vunpack.c.h.b16 %v4317
    %v4997 = vunpack.c.l.b16 %v4318
    %v4998 = vunpack.c.h.b16 %v4318
    %v4999 = vunpack.c.l.b16 %v4319
    %v5000 = vunpack.c.h.b16 %v4319
    %v5001 = vunpack.c.l.b16 %v4320
    %v5002 = vunpack.c.h.b16 %v4320
    %v5003 = vunpack.c.l.b16 %v4321
    %v5004 = vunpack.c.h.b16 %v4321
    %v5005 = vunpack.c.l.b16 %v4322
    %v5006 = vunpack.c.h.b16 %v4322
    %v5007 = vunpack.c.l.b16 %v4323
    %v5008 = vunpack.c.h.b16 %v4323
    %v5009 = vunpack.c.l.b16 %v4324
    %v5010 = vunpack.c.h.b16 %v4324
    %v5011 = vunpack.c.l.b16 %v4325
    %v5012 = vunpack.c.h.b16 %v4325
    %v5013 = vunpack.c.l.b16 %v4326
    %v5014 = vunpack.c.h.b16 %v4326
    %v5015 = vunpack.c.l.b16 %v4327
    %v5016 = vunpack.c.h.b16 %v4327
    %v5017 = vunpack.c.l.b16 %v4328
    %v5018 = vunpack.c.h.b16 %v4328
    %v5019 = vunpack.c.l.b16 %v4329
    %v5020 = vunpack.c.h.b16 %v4329
    %v5021 = vunpack.c.l.b16 %v4330
    %v5022 = vunpack.c.h.b16 %v4330
    %v5023 = vunpack.c.l.b16 %v4331
    %v5024 = vunpack.c.h.b16 %v4331
    %v5025 = vunpack.c.l.b16 %v4332
    %v5026 = vunpack.c.h.b16 %v4332
    %v5027 = vunpack.c.l.b16 %v4333
    %v5028 = vunpack.c.h.b16 %v4333
    %v5029 = vunpack.c.l.b16 %v4334
    %v5030 = vunpack.c.h.b16 %v4334
    %v5031 = vunpack.c.l.b16 %v4335
    %v5032 = vunpack.c.h.b16 %v4335
    %v5033 = vunpack.c.l.b16 %v4336
    %v5034 = vunpack.c.h.b16 %v4336
    %v5035 = vunpack.c.l.b16 %v4337
    %v5036 = vunpack.c.h.b16 %v4337
    %v5037 = vunpack.c.l.b16 %v4338
    %v5038 = vunpack.c.h.b16 %v4338
    %v5039 = vunpack.c.l.b16 %v4339
    %v5040 = vunpack.c.h.b16 %v4339
    %v5041 = vunpack.c.l.b16 %v4340
    %v5042 = vunpack.c.h.b16 %v4340
    %v5043 = vunpack.c.l.b16 %v4341
    %v5044 = vunpack.c.h.b16 %v4341
    %v5045 = vunpack.c.l.b16 %v4342
    %v5046 = vunpack.c.h.b16 %v4342
    %v5047 = vunpack.c.l.b16 %v4343
    %v5048 = vunpack.c.h.b16 %v4343
    %v5049 = vunpack.c.l.b16 %v4344
    %v5050 = vunpack.c.h.b16 %v4344
    %v5051 = vunpack.c.l.b16 %v4345
    %v5052 = vunpack.c.h.b16 %v4345
    %v5053 = vunpack.c.l.b16 %v4346
    %v5054 = vunpack.c.h.b16 %v4346
    %v5055 = vunpack.c.l.b16 %v4347
    %v5056 = vunpack.c.h.b16 %v4347
    %v5057 = vunpack.c.l.b16 %v4348
    %v5058 = vunpack.c.h.b16 %v4348
    %v5059 = vunpack.c.l.b16 %v4349
    %v5060 = vunpack.c.h.b16 %v4349
    %v5061 = vunpack.c.l.b16 %v4350
    %v5062 = vunpack.c.h.b16 %v4350
    %v5063 = vunpack.c.l.b16 %v4351
    %v5064 = vunpack.c.h.b16 %v4351
    %v5065 = vunpack.c.l.b16 %v4352
    %v5066 = vunpack.c.h.b16 %v4352
    %v5067 = vunpack.c.l.b16 %v4353
    %v5068 = vunpack.c.h.b16 %v4353
    %v5069 = vunpack.c.l.b16 %v4354
    %v5070 = vunpack.c.h.b16 %v4354
    %v5071 = vunpack.c.l.b16 %v4355
    %v5072 = vunpack.c.h.b16 %v4355
    %v5073 = vunpack.c.l.b16 %v4356
    %v5074 = vunpack.c.h.b16 %v4356
    %v5075 = vunpack.c.l.b16 %v4357
    %v5076 = vunpack.c.h.b16 %v4357
    %v5077 = vunpack.c.l.b16 %v4358
    %v5078 = vunpack.c.h.b16 %v4358
    %v5079 = vunpack.c.l.b16 %v4359
    %v5080 = vunpack.c.h.b16 %v4359
    %v5081 = vunpack.c.l.b16 %v4360
    %v5082 = vunpack.c.h.b16 %v4360
    %v5083 = vunpack.c.l.b16 %v4361
    %v5084 = vunpack.c.h.b16 %v4361
    %v5085 = vunpack.c.l.b16 %v4362
    %v5086 = vunpack.c.h.b16 %v4362
    %v5087 = vunpack.c.l.b16 %v4363
    %v5088 = vunpack.c.h.b16 %v4363
    %v5089 = vunpack.c.l.b16 %v4364
    %v5090 = vunpack.c.h.b16 %v4364
    %v5091 = vunpack.c.l.b16 %v4365
    %v5092 = vunpack.c.h.b16 %v4365
    %v5093 = vunpack.c.l.b16 %v4366
    %v5094 = vunpack.c.h.b16 %v4366
    %v5095 = vunpack.c.l.b16 %v4367
    %v5096 = vunpack.c.h.b16 %v4367
    %v5097 = vunpack.c.l.b16 %v4368
    %v5098 = vunpack.c.h.b16 %v4368
    %v5099 = vunpack.c.l.b16 %v4369
    %v5100 = vunpack.c.h.b16 %v4369
    %v5101 = vunpack.c.l.b16 %v4370
    %v5102 = vunpack.c.h.b16 %v4370
    %v5103 = vunpack.c.l.b16 %v4371
    %v5104 = vunpack.c.h.b16 %v4371
    %v5105 = vunpack.c.l.b16 %v4372
    %v5106 = vunpack.c.h.b16 %v4372
    %v5107 = vunpack.c.l.b16 %v4373
    %v5108 = vunpack.c.h.b16 %v4373
    %v5109 = vunpack.c.l.b16 %v4374
    %v5110 = vunpack.c.h.b16 %v4374
    %v5111 = vunpack.c.l.b16 %v4375
    %v5112 = vunpack.c.h.b16 %v4375
    %v5113 = vunpack.c.l.b16 %v4376
    %v5114 = vunpack.c.h.b16 %v4376
    %v5115 = vunpack.c.l.b16 %v4377
    %v5116 = vunpack.c.h.b16 %v4377
    %v5117 = vunpack.c.l.b16 %v4378
    %v5118 = vunpack.c.h.b16 %v4378
    %v5119 = vunpack.c.l.b16 %v4379
    %v5120 = vunpack.c.h.b16 %v4379
    %v5121 = vunpack.c.l.b16 %v4380
    %v5122 = vunpack.c.h.b16 %v4380
    %v5123 = vunpack.c.l.b16 %v4381
    %v5124 = vunpack.c.h.b16 %v4381
    %v5125 = vunpack.c.l.b16 %v4382
    %v5126 = vunpack.c.h.b16 %v4382
    %v5127 = vunpack.c.l.b16 %v4383
    %v5128 = vunpack.c.h.b16 %v4383
    %v5129 = vunpack.c.l.b16 %v4384
    %v5130 = vunpack.c.h.b16 %v4384
    %v5131 = vunpack.c.l.b16 %v4385
    %v5132 = vunpack.c.h.b16 %v4385
    %v5133 = vunpack.c.l.b16 %v4386
    %v5134 = vunpack.c.h.b16 %v4386
    %v5135 = vunpack.c.l.b16 %v4387
    %v5136 = vunpack.c.h.b16 %v4387
    %v5137 = vunpack.c.l.b16 %v4388
    %v5138 = vunpack.c.h.b16 %v4388
    %v5139 = vunpack.c.l.b16 %v4389
    %v5140 = vunpack.c.h.b16 %v4389
    %v5141 = vunpack.c.l.b16 %v4390
    %v5142 = vunpack.c.h.b16 %v4390
    %v5143 = vunpack.c.l.b16 %v4391
    %v5144 = vunpack.c.h.b16 %v4391
    %v5145 = vunpack.c.l.b16 %v4392
    %v5146 = vunpack.c.h.b16 %v4392
    %v5147 = vunpack.c.l.b16 %v4393
    %v5148 = vunpack.c.h.b16 %v4393
    %v5149 = vunpack.c.l.b16 %v4394
    %v5150 = vunpack.c.h.b16 %v4394
    %v5151 = vunpack.c.l.b16 %v4395
    %v5152 = vunpack.c.h.b16 %v4395
    %v5153 = vunpack.c.l.b16 %v4396
    %v5154 = vunpack.c.h.b16 %v4396
    %v5155 = vunpack.c.l.b16 %v4397
    %v5156 = vunpack.c.h.b16 %v4397
    %v5157 = vunpack.c.l.b16 %v4398
    %v5158 = vunpack.c.h.b16 %v4398
    %v5159 = vunpack.c.l.b16 %v4399
    %v5160 = vunpack.c.h.b16 %v4399
    %v5161 = vunpack.c.l.b16 %v4400
    %v5162 = vunpack.c.h.b16 %v4400
    %v5163 = vunpack.c.l.b16 %v4401
    %v5164 = vunpack.c.h.b16 %v4401
    %v5165 = vunpack.c.l.b16 %v4402
    %v5166 = vunpack.c.h.b16 %v4402
    %v5167 = vunpack.c.l.b16 %v4403
    %v5168 = vunpack.c.h.b16 %v4403
    %v5169 = vunpack.c.l.b16 %v4404
    %v5170 = vunpack.c.h.b16 %v4404
    %v5171 = vunpack.c.l.b16 %v4405
    %v5172 = vunpack.c.h.b16 %v4405
    %v5173 = vunpack.c.l.b16 %v4406
    %v5174 = vunpack.c.h.b16 %v4406
    %v5175 = vunpack.c.l.b16 %v4407
    %v5176 = vunpack.c.h.b16 %v4407
    %v5177 = vunpack.c.l.b16 %v4408
    %v5178 = vunpack.c.h.b16 %v4408
    %v5179 = vunpack.c.l.b16 %v4409
    %v5180 = vunpack.c.h.b16 %v4409
    %v5181 = vunpack.c.l.b16 %v4410
    %v5182 = vunpack.c.h.b16 %v4410
    %v5183 = vunpack.c.l.b16 %v4411
    %v5184 = vunpack.c.h.b16 %v4411
    %v5185 = vunpack.c.l.b16 %v4412
    %v5186 = vunpack.c.h.b16 %v4412
    %v5187 = vunpack.c.l.b16 %v4413
    %v5188 = vunpack.c.h.b16 %v4413
    %v5189 = vunpack.c.l.b16 %v4414
    %v5190 = vunpack.c.h.b16 %v4414
    %v5191 = vunpack.c.l.b16 %v4415
    %v5192 = vunpack.c.h.b16 %v4415
    %v5193 = vunpack.c.l.b16 %v4416
    %v5194 = vunpack.c.h.b16 %v4416
    %v5195 = vunpack.c.l.b16 %v4417
    %v5196 = vunpack.c.h.b16 %v4417
    %v5197 = vunpack.c.l.b16 %v4418
    %v5198 = vunpack.c.h.b16 %v4418
    %v5199 = vunpack.c.l.b16 %v4419
    %v5200 = vunpack.c.h.b16 %v4419
    %v5201 = vunpack.c.l.b16 %v4420
    %v5202 = vunpack.c.h.b16 %v4420
    %v5203 = vunpack.c.l.b16 %v4421
    %v5204 = vunpack.c.h.b16 %v4421
    %v5205 = vunpack.c.l.b16 %v4422
    %v5206 = vunpack.c.h.b16 %v4422
    %v5207 = vunpack.c.l.b16 %v4423
    %v5208 = vunpack.c.h.b16 %v4423
    %v5209 = vunpack.c.l.b16 %v4424
    %v5210 = vunpack.c.h.b16 %v4424
    %v5211 = vunpack.c.l.b16 %v4425
    %v5212 = vunpack.c.h.b16 %v4425
    %v5213 = vunpack.c.l.b16 %v4426
    %v5214 = vunpack.c.h.b16 %v4426
    %v5215 = vunpack.c.l.b16 %v4427
    %v5216 = vunpack.c.h.b16 %v4427
    %v5217 = vunpack.c.l.b16 %v4428
    %v5218 = vunpack.c.h.b16 %v4428
    %v5219 = vunpack.c.l.b16 %v4429
    %v5220 = vunpack.c.h.b16 %v4429
    %v5221 = vunpack.c.l.b16 %v4430
    %v5222 = vunpack.c.h.b16 %v4430
    %v5223 = vunpack.c.l.b16 %v4431
    %v5224 = vunpack.c.h.b16 %v4431
    %v5225 = vunpack.c.l.b16 %v4432
    %v5226 = vunpack.c.h.b16 %v4432
    %v5227 = vunpack.c.l.b16 %v4433
    %v5228 = vunpack.c.h.b16 %v4433
    %v5229 = vunpack.c.l.b16 %v4434
    %v5230 = vunpack.c.h.b16 %v4434
    %v5231 = vunpack.c.l.b16 %v4435
    %v5232 = vunpack.c.h.b16 %v4435
    %v5233 = vunpack.c.l.b16 %v4436
    %v5234 = vunpack.c.h.b16 %v4436
    %v5235 = vunpack.c.l.b16 %v4437
    %v5236 = vunpack.c.h.b16 %v4437
    %v5237 = vunpack.c.l.b16 %v4438
    %v5238 = vunpack.c.h.b16 %v4438
    %v5239 = vunpack.c.l.b16 %v4439
    %v5240 = vunpack.c.h.b16 %v4439
    %v5241 = vunpack.c.l.b16 %v4440
    %v5242 = vunpack.c.h.b16 %v4440
    %v5243 = vunpack.c.l.b16 %v4441
    %v5244 = vunpack.c.h.b16 %v4441
    %v5245 = vunpack.c.l.b16 %v4442
    %v5246 = vunpack.c.h.b16 %v4442
    %v5247 = vunpack.c.l.b16 %v4443
    %v5248 = vunpack.c.h.b16 %v4443
    %v5249 = vunpack.c.l.b16 %v4444
    %v5250 = vunpack.c.h.b16 %v4444
    %v5251 = vunpack.c.l.b16 %v4445
    %v5252 = vunpack.c.h.b16 %v4445
    %v5253 = vunpack.c.l.b16 %v4446
    %v5254 = vunpack.c.h.b16 %v4446
    %v5255 = vunpack.c.l.b16 %v4447
    %v5256 = vunpack.c.h.b16 %v4447
    %v5257 = vunpack.c.l.b16 %v4448
    %v5258 = vunpack.c.h.b16 %v4448
    %v5259 = vunpack.c.l.b16 %v4449
    %v5260 = vunpack.c.h.b16 %v4449
    %v5261 = vunpack.c.l.b16 %v4450
    %v5262 = vunpack.c.h.b16 %v4450
    %v5263 = vunpack.c.l.b16 %v4451
    %v5264 = vunpack.c.h.b16 %v4451
    %v5265 = vunpack.c.l.b16 %v4452
    %v5266 = vunpack.c.h.b16 %v4452
    %v5267 = vunpack.c.l.b16 %v4453
    %v5268 = vunpack.c.h.b16 %v4453
    %v5269 = vunpack.c.l.b16 %v4454
    %v5270 = vunpack.c.h.b16 %v4454
    %v5271 = vunpack.c.l.b16 %v4455
    %v5272 = vunpack.c.h.b16 %v4455
    %v5273 = vunpack.c.l.b16 %v4456
    %v5274 = vunpack.c.h.b16 %v4456
    %v5275 = vunpack.c.l.b16 %v4457
    %v5276 = vunpack.c.h.b16 %v4457
    %v5277 = vunpack.c.l.b16 %v4458
    %v5278 = vunpack.c.h.b16 %v4458
    %v5279 = vunpack.c.l.b16 %v4459
    %v5280 = vunpack.c.h.b16 %v4459
    %v5281 = vunpack.c.l.b16 %v4460
    %v5282 = vunpack.c.h.b16 %v4460
    %v5283 = vunpack.c.l.b16 %v4461
    %v5284 = vunpack.c.h.b16 %v4461
    %v5285 = vunpack.c.l.b16 %v4462
    %v5286 = vunpack.c.h.b16 %v4462
    %v5287 = vunpack.c.l.b16 %v4463
    %v5288 = vunpack.c.h.b16 %v4463
    %v5289 = vunpack.c.l.b16 %v4464
    %v5290 = vunpack.c.h.b16 %v4464
    %v5291 = vunpack.c.l.b16 %v4465
    %v5292 = vunpack.c.h.b16 %v4465
    %v5293 = vunpack.c.l.b16 %v4466
    %v5294 = vunpack.c.h.b16 %v4466
    %v5295 = vunpack.c.l.b16 %v4467
    %v5296 = vunpack.c.h.b16 %v4467
    %v5297 = vunpack.c.l.b16 %v4468
    %v5298 = vunpack.c.h.b16 %v4468
    %v5299 = vunpack.c.l.b16 %v4469
    %v5300 = vunpack.c.h.b16 %v4469
    %v5301 = vunpack.c.l.b16 %v4470
    %v5302 = vunpack.c.h.b16 %v4470
    %v5303 = vunpack.c.l.b16 %v4471
    %v5304 = vunpack.c.h.b16 %v4471
    %v5305 = vunpack.c.l.b16 %v4472
    %v5306 = vunpack.c.h.b16 %v4472
    %v5307 = vunpack.c.l.b16 %v4473
    %v5308 = vunpack.c.h.b16 %v4473
    %v5309 = vunpack.c.l.b16 %v4474
    %v5310 = vunpack.c.h.b16 %v4474
    %v5311 = vunpack.c.l.b16 %v4475
    %v5312 = vunpack.c.h.b16 %v4475
    %v5313 = vunpack.c.l.b16 %v4476
    %v5314 = vunpack.c.h.b16 %v4476
    %v5315 = vunpack.c.l.b16 %v4477
    %v5316 = vunpack.c.h.b16 %v4477
    %v5317 = vunpack.c.l.b16 %v4478
    %v5318 = vunpack.c.h.b16 %v4478
    %v5319 = vunpack.c.l.b16 %v4479
    %v5320 = vunpack.c.h.b16 %v4479
    %v5321 = vunpack.c.l.b16 %v4480
    %v5322 = vunpack.c.h.b16 %v4480
    %v5323 = vunpack.c.l.b16 %v4481
    %v5324 = vunpack.c.h.b16 %v4481
    %v5325 = vunpack.c.l.b16 %v4482
    %v5326 = vunpack.c.h.b16 %v4482
    %v5327 = vunpack.c.l.b16 %v4483
    %v5328 = vunpack.c.h.b16 %v4483
    %v5329 = vunpack.c.l.b16 %v4484
    %v5330 = vunpack.c.h.b16 %v4484
    %v5331 = vunpack.c.l.b16 %v4485
    %v5332 = vunpack.c.h.b16 %v4485
    %v5333 = vunpack.c.l.b16 %v4486
    %v5334 = vunpack.c.h.b16 %v4486
    %v5335 = vunpack.c.l.b16 %v4487
    %v5336 = vunpack.c.h.b16 %v4487
    %v5337 = vunpack.c.l.b16 %v4488
    %v5338 = vunpack.c.h.b16 %v4488
    %v5339 = vunpack.c.l.b16 %v4489
    %v5340 = vunpack.c.h.b16 %v4489
    %v5341 = vunpack.c.l.b16 %v4490
    %v5342 = vunpack.c.h.b16 %v4490
    %v5343 = vunpack.c.l.b16 %v4491
    %v5344 = vunpack.c.h.b16 %v4491
    %v5345 = vunpack.c.l.b16 %v4492
    %v5346 = vunpack.c.h.b16 %v4492
    %v5347 = vunpack.c.l.b16 %v4493
    %v5348 = vunpack.c.h.b16 %v4493
    %v5349 = vunpack.c.l.b16 %v4494
    %v5350 = vunpack.c.h.b16 %v4494
    %v5351 = vunpack.c.l.b16 %v4495
    %v5352 = vunpack.c.h.b16 %v4495
    %v5353 = vunpack.c.l.b16 %v4496
    %v5354 = vunpack.c.h.b16 %v4496
    %v5355 = vunpack.c.l.b16 %v4497
    %v5356 = vunpack.c.h.b16 %v4497
    %v5357 = vunpack.c.l.b16 %v4498
    %v5358 = vunpack.c.h.b16 %v4498
    %v5359 = vunpack.c.l.b16 %v4499
    %v5360 = vunpack.c.h.b16 %v4499
    %v5361 = vunpack.c.l.b16 %v4500
    %v5362 = vunpack.c.h.b16 %v4500
    %v5363 = vunpack.c.l.b16 %v4501
    %v5364 = vunpack.c.h.b16 %v4501
    %v5365 = vunpack.c.l.b16 %v4502
    %v5366 = vunpack.c.h.b16 %v4502
    %v5367 = vunpack.c.l.b16 %v4503
    %v5368 = vunpack.c.h.b16 %v4503
    %v5369 = vunpack.c.l.b16 %v4504
    %v5370 = vunpack.c.h.b16 %v4504
    %v5371 = vunpack.c.l.b16 %v4505
    %v5372 = vunpack.c.h.b16 %v4505
    %v5373 = vunpack.c.l.b16 %v4506
    %v5374 = vunpack.c.h.b16 %v4506
    %v5375 = vunpack.c.l.b16 %v4507
    %v5376 = vunpack.c.h.b16 %v4507
    %v5377 = vunpack.c.l.b16 %v4508
    %v5378 = vunpack.c.h.b16 %v4508
    %v5379 = vunpack.c.l.b16 %v4509
    %v5380 = vunpack.c.h.b16 %v4509
    %v5381 = vunpack.c.l.b16 %v4510
    %v5382 = vunpack.c.h.b16 %v4510
    %v5383 = vunpack.c.l.b16 %v4511
    %v5384 = vunpack.c.h.b16 %v4511
    %v5385 = vunpack.c.l.b16 %v4512
    %v5386 = vunpack.c.h.b16 %v4512
    %v5387 = vunpack.c.l.b16 %v4513
    %v5388 = vunpack.c.h.b16 %v4513
    %v5389 = vunpack.c.l.b16 %v4514
    %v5390 = vunpack.c.h.b16 %v4514
    %v5391 = vunpack.c.l.b16 %v4515
    %v5392 = vunpack.c.h.b16 %v4515
    %v5393 = vunpack.c.l.b16 %v4516
    %v5394 = vunpack.c.h.b16 %v4516
    %v5395 = vunpack.c.l.b16 %v4517
    %v5396 = vunpack.c.h.b16 %v4517
    %v5397 = vunpack.c.l.b16 %v4518
    %v5398 = vunpack.c.h.b16 %v4518
    %v5399 = vunpack.c.l.b16 %v4519
    %v5400 = vunpack.c.h.b16 %v4519
    %v5401 = vunpack.c.l.b16 %v4520
    %v5402 = vunpack.c.h.b16 %v4520
    %v5403 = vunpack.c.l.b16 %v4521
    %v5404 = vunpack.c.h.b16 %v4521
    %v5405 = vunpack.c.l.b16 %v4522
    %v5406 = vunpack.c.h.b16 %v4522
    %v5407 = vunpack.c.l.b16 %v4523
    %v5408 = vunpack.c.h.b16 %v4523
    %v5409 = vunpack.c.l.b16 %v4524
    %v5410 = vunpack.c.h.b16 %v4524
    %v5411 = vpack.c.b16 %v4839, %v4835
    %v5412 = vpack.c.b16 %v4840, %v4836
    %v5413 = vpack.c.b16 %v4841, %v4837
    %v5414 = vpack.c.b16 %v4842, %v4838
    %v5415 = vpack.c.b16 %v4847, %v4843
    %v5416 = vpack.c.b16 %v4848, %v4844
    %v5417 = vpack.c.b16 %v4849, %v4845
    %v5418 = vpack.c.b16 %v4850, %v4846
    %v5419 = vpack.c.b16 %v4855, %v4851
    %v5420 = vpack.c.b16 %v4856, %v4852
    %v5421 = vpack.c.b16 %v4857, %v4853
    %v5422 = vpack.c.b16 %v4858, %v4854
    %v5423 = vpack.c.b16 %v4863, %v4859
    %v5424 = vpack.c.b16 %v4864, %v4860
    %v5425 = vpack.c.b16 %v4865, %v4861
    %v5426 = vpack.c.b16 %v4866, %v4862
    %v5427 = vpack.c.b16 %v4871, %v4867
    %v5428 = vpack.c.b16 %v4872, %v4868
    %v5429 = vpack.c.b16 %v4873, %v4869
    %v5430 = vpack.c.b16 %v4874, %v4870
    %v5431 = vpack.c.b16 %v4879, %v4875
    %v5432 = vpack.c.b16 %v4880, %v4876
    %v5433 = vpack.c.b16 %v4881, %v4877
    %v5434 = vpack.c.b16 %v4882, %v4878
    %v5435 = vpack.c.b16 %v4887, %v4883
    %v5436 = vpack.c.b16 %v4888, %v4884
    %v5437 = vpack.c.b16 %v4889, %v4885
    %v5438 = vpack.c.b16 %v4890, %v4886
    %v5439 = vpack.c.b16 %v4895, %v4891
    %v5440 = vpack.c.b16 %v4896, %v4892
    %v5441 = vpack.c.b16 %v4897, %v4893
    %v5442 = vpack.c.b16 %v4898, %v4894
    %v5443 = vpack.c.b16 %v4903, %v4899
    %v5444 = vpack.c.b16 %v4904, %v4900
    %v5445 = vpack.c.b16 %v4905, %v4901
    %v5446 = vpack.c.b16 %v4906, %v4902
    %v5447 = vpack.c.b16 %v4911, %v4907
    %v5448 = vpack.c.b16 %v4912, %v4908
    %v5449 = vpack.c.b16 %v4913, %v4909
    %v5450 = vpack.c.b16 %v4914, %v4910
    %v5451 = vpack.c.b16 %v4919, %v4915
    %v5452 = vpack.c.b16 %v4920, %v4916
    %v5453 = vpack.c.b16 %v4921, %v4917
    %v5454 = vpack.c.b16 %v4922, %v4918
    %v5455 = vpack.c.b16 %v4927, %v4923
    %v5456 = vpack.c.b16 %v4928, %v4924
    %v5457 = vpack.c.b16 %v4929, %v4925
    %v5458 = vpack.c.b16 %v4930, %v4926
    %v5459 = vpack.c.b16 %v4935, %v4931
    %v5460 = vpack.c.b16 %v4936, %v4932
    %v5461 = vpack.c.b16 %v4937, %v4933
    %v5462 = vpack.c.b16 %v4938, %v4934
    %v5463 = vpack.c.b16 %v4943, %v4939
    %v5464 = vpack.c.b16 %v4944, %v4940
    %v5465 = vpack.c.b16 %v4945, %v4941
    %v5466 = vpack.c.b16 %v4946, %v4942
    %v5467 = vpack.c.b16 %v4951, %v4947
    %v5468 = vpack.c.b16 %v4952, %v4948
    %v5469 = vpack.c.b16 %v4953, %v4949
    %v5470 = vpack.c.b16 %v4954, %v4950
    %v5471 = vpack.c.b16 %v4959, %v4955
    %v5472 = vpack.c.b16 %v4960, %v4956
    %v5473 = vpack.c.b16 %v4961, %v4957
    %v5474 = vpack.c.b16 %v4962, %v4958
    %v5475 = vpack.c.b16 %v4967, %v4963
    %v5476 = vpack.c.b16 %v4968, %v4964
    %v5477 = vpack.c.b16 %v4969, %v4965
    %v5478 = vpack.c.b16 %v4970, %v4966
    %v5479 = vpack.c.b16 %v4975, %v4971
    %v5480 = vpack.c.b16 %v4976, %v4972
    %v5481 = vpack.c.b16 %v4977, %v4973
    %v5482 = vpack.c.b16 %v4978, %v4974
    %v5483 = vpack.c.b16 %v4983, %v4979
    %v5484 = vpack.c.b16 %v4984, %v4980
    %v5485 = vpack.c.b16 %v4985, %v4981
    %v5486 = vpack.c.b16 %v4986, %v4982
    %v5487 = vpack.c.b16 %v4991, %v4987
    %v5488 = vpack.c.b16 %v4992, %v4988
    %v5489 = vpack.c.b16 %v4993, %v4989
    %v5490 = vpack.c.b16 %v4994, %v4990
    %v5491 = vpack.c.b16 %v4999, %v4995
    %v5492 = vpack.c.b16 %v5000, %v4996
    %v5493 = vpack.c.b16 %v5001, %v4997
    %v5494 = vpack.c.b16 %v5002, %v4998
    %v5495 = vpack.c.b16 %v5007, %v5003
    %v5496 = vpack.c.b16 %v5008, %v5004
    %v5497 = vpack.c.b16 %v5009, %v5005
    %v5498 = vpack.c.b16 %v5010, %v5006
    %v5499 = vpack.c.b16 %v5015, %v5011
    %v5500 = vpack.c.b16 %v5016, %v5012
    %v5501 = vpack.c.b16 %v5017, %v5013
    %v5502 = vpack.c.b16 %v5018, %v5014
    %v5503 = vpack.c.b16 %v5023, %v5019
    %v5504 = vpack.c.b16 %v5024, %v5020
    %v5505 = vpack.c.b16 %v5025, %v5021
    %v5506 = vpack.c.b16 %v5026, %v5022
    %v5507 = vpack.c.b16 %v5031, %v5027
    %v5508 = vpack.c.b16 %v5032, %v5028
    %v5509 = vpack.c.b16 %v5033, %v5029
    %v5510 = vpack.c.b16 %v5034, %v5030
    %v5511 = vpack.c.b16 %v5039, %v5035
    %v5512 = vpack.c.b16 %v5040, %v5036
    %v5513 = vpack.c.b16 %v5041, %v5037
    %v5514 = vpack.c.b16 %v5042, %v5038
    %v5515 = vpack.c.b16 %v5047, %v5043
    %v5516 = vpack.c.b16 %v5048, %v5044
    %v5517 = vpack.c.b16 %v5049, %v5045
    %v5518 = vpack.c.b16 %v5050, %v5046
    %v5519 = vpack.c.b16 %v5055, %v5051
    %v5520 = vpack.c.b16 %v5056, %v5052
    %v5521 = vpack.c.b16 %v5057, %v5053
    %v5522 = vpack.c.b16 %v5058, %v5054
    %v5523 = vpack.c.b16 %v5063, %v5059
    %v5524 = vpack.c.b16 %v5064, %v5060
    %v5525 = vpack.c.b16 %v5065, %v5061
    %v5526 = vpack.c.b16 %v5066, %v5062
    %v5527 = vpack.c.b16 %v5071, %v5067
    %v5528 = vpack.c.b16 %v5072, %v5068
    %v5529 = vpack.c.b16 %v5073, %v5069
    %v5530 = vpack.c.b16 %v5074, %v5070
    %v5531 = vpack.c.b16 %v5079, %v5075
    %v5532 = vpack.c.b16 %v5080, %v5076
    %v5533 = vpack.c.b16 %v5081, %v5077
    %v5534 = vpack.c.b16 %v5082, %v5078
    %v5535 = vpack.c.b16 %v5087, %v5083
    %v5536 = vpack.c.b16 %v5088, %v5084
    %v5537 = vpack.c.b16 %v5089, %v5085
    %v5538 = vpack.c.b16 %v5090, %v5086
    %v5539 = vpack.c.b16 %v5095, %v5091
    %v5540 = vpack.c.b16 %v5096, %v5092
    %v5541 = vpack.c.b16 %v5097, %v5093
    %v5542 = vpack.c.b16 %v5098, %v5094
    %v5543 = vpack.c.b16 %v5103, %v5099
    %v5544 = vpack.c.b16 %v5104, %v5100
    %v5545 = vpack.c.b16 %v5105, %v5101
    %v5546 = vpack.c.b16 %v5106, %v5102
    %v5547 = vpack.c.b16 %v5111, %v5107
    %v5548 = vpack.c.b16 %v5112, %v5108
    %v5549 = vpack.c.b16 %v5113, %v5109
    %v5550 = vpack.c.b16 %v5114, %v5110
    %v5551 = vpack.c.b16 %v5119, %v5115
    %v5552 = vpack.c.b16 %v5120, %v5116
    %v5553 = vpack.c.b16 %v5121, %v5117
    %v5554 = vpack.c.b16 %v5122, %v5118
    %v5555 = vpack.c.b16 %v5127, %v5123
    %v5556 = vpack.c.b16 %v5128, %v5124
    %v5557 = vpack.c.b16 %v5129, %v5125
    %v5558 = vpack.c.b16 %v5130, %v5126
    %v5559 = vpack.c.b16 %v5135, %v5131
    %v5560 = vpack.c.b16 %v5136, %v5132
    %v5561 = vpack.c.b16 %v5137, %v5133
    %v5562 = vpack.c.b16 %v5138, %v5134
    %v5563 = vpack.c.b16 %v5143, %v5139
    %v5564 = vpack.c.b16 %v5144, %v5140
    %v5565 = vpack.c.b16 %v5145, %v5141
    %v5566 = vpack.c.b16 %v5146, %v5142
    %v5567 = vpack.c.b16 %v5151, %v5147
    %v5568 = vpack.c.b16 %v5152, %v5148
    %v5569 = vpack.c.b16 %v5153, %v5149
    %v5570 = vpack.c.b16 %v5154, %v5150
    %v5571 = vpack.c.b16 %v5159, %v5155
    %v5572 = vpack.c.b16 %v5160, %v5156
    %v5573 = vpack.c.b16 %v5161, %v5157
    %v5574 = vpack.c.b16 %v5162, %v5158
    %v5575 = vpack.c.b16 %v5167, %v5163
    %v5576 = vpack.c.b16 %v5168, %v5164
    %v5577 = vpack.c.b16 %v5169, %v5165
    %v5578 = vpack.c.b16 %v5170, %v5166
    %v5579 = vpack.c.b16 %v5175, %v5171
    %v5580 = vpack.c.b16 %v5176, %v5172
    %v5581 = vpack.c.b16 %v5177, %v5173
    %v5582 = vpack.c.b16 %v5178, %v5174
    %v5583 = vpack.c.b16 %v5183, %v5179
    %v5584 = vpack.c.b16 %v5184, %v5180
    %v5585 = vpack.c.b16 %v5185, %v5181
    %v5586 = vpack.c.b16 %v5186, %v5182
    %v5587 = vpack.c.b16 %v5191, %v5187
    %v5588 = vpack.c.b16 %v5192, %v5188
    %v5589 = vpack.c.b16 %v5193, %v5189
    %v5590 = vpack.c.b16 %v5194, %v5190
    %v5591 = vpack.c.b16 %v5199, %v5195
    %v5592 = vpack.c.b16 %v5200, %v5196
    %v5593 = vpack.c.b16 %v5201, %v5197
    %v5594 = vpack.c.b16 %v5202, %v5198
    %v5595 = vpack.c.b16 %v5207, %v5203
    %v5596 = vpack.c.b16 %v5208, %v5204
    %v5597 = vpack.c.b16 %v5209, %v5205
    %v5598 = vpack.c.b16 %v5210, %v5206
    %v5599 = vpack.c.b16 %v5215, %v5211
    %v5600 = vpack.c.b16 %v5216, %v5212
    %v5601 = vpack.c.b16 %v5217, %v5213
    %v5602 = vpack.c.b16 %v5218, %v5214
    %v5603 = vpack.c.b16 %v5223, %v5219
    %v5604 = vpack.c.b16 %v5224, %v5220
    %v5605 = vpack.c.b16 %v5225, %v5221
    %v5606 = vpack.c.b16 %v5226, %v5222
    %v5607 = vpack.c.b16 %v5231, %v5227
    %v5608 = vpack.c.b16 %v5232, %v5228
    %v5609 = vpack.c.b16 %v5233, %v5229
    %v5610 = vpack.c.b16 %v5234, %v5230
    %v5611 = vpack.c.b16 %v5239, %v5235
    %v5612 = vpack.c.b16 %v5240, %v5236
    %v5613 = vpack.c.b16 %v5241, %v5237
    %v5614 = vpack.c.b16 %v5242, %v5238
    %v5615 = vpack.c.b16 %v5247, %v5243
    %v5616 = vpack.c.b16 %v5248, %v5244
    %v5617 = vpack.c.b16 %v5249, %v5245
    %v5618 = vpack.c.b16 %v5250, %v5246
    %v5619 = vpack.c.b16 %v5255, %v5251
    %v5620 = vpack.c.b16 %v5256, %v5252
    %v5621 = vpack.c.b16 %v5257, %v5253
    %v5622 = vpack.c.b16 %v5258, %v5254
    %v5623 = vpack.c.b16 %v5263, %v5259
    %v5624 = vpack.c.b16 %v5264, %v5260
    %v5625 = vpack.c.b16 %v5265, %v5261
    %v5626 = vpack.c.b16 %v5266, %v5262
    %v5627 = vpack.c.b16 %v5271, %v5267
    %v5628 = vpack.c.b16 %v5272, %v5268
    %v5629 = vpack.c.b16 %v5273, %v5269
    %v5630 = vpack.c.b16 %v5274, %v5270
    %v5631 = vpack.c.b16 %v5279, %v5275
    %v5632 = vpack.c.b16 %v5280, %v5276
    %v5633 = vpack.c.b16 %v5281, %v5277
    %v5634 = vpack.c.b16 %v5282, %v5278
    %v5635 = vpack.c.b16 %v5287, %v5283
    %v5636 = vpack.c.b16 %v5288, %v5284
    %v5637 = vpack.c.b16 %v5289, %v5285
    %v5638 = vpack.c.b16 %v5290, %v5286
    %v5639 = vpack.c.b16 %v5295, %v5291
    %v5640 = vpack.c.b16 %v5296, %v5292
    %v5641 = vpack.c.b16 %v5297, %v5293
    %v5642 = vpack.c.b16 %v5298, %v5294
    %v5643 = vpack.c.b16 %v5303, %v5299
    %v5644 = vpack.c.b16 %v5304, %v5300
    %v5645 = vpack.c.b16 %v5305, %v5301
    %v5646 = vpack.c.b16 %v5306, %v5302
    %v5647 = vpack.c.b16 %v5311, %v5307
    %v5648 = vpack.c.b16 %v5312, %v5308
    %v5649 = vpack.c.b16 %v5313, %v5309
    %v5650 = vpack.c.b16 %v5314, %v5310
    %v5651 = vpack.c.b16 %v5319, %v5315
    %v5652 = vpack.c.b16 %v5320, %v5316
    %v5653 = vpack.c.b16 %v5321, %v5317
    %v5654 = vpack.c.b16 %v5322, %v5318
    %v5655 = vpack.c.b16 %v5327, %v5323
    %v5656 = vpack.c.b16 %v5328, %v5324
    %v5657 = vpack.c.b16 %v5329, %v5325
    %v5658 = vpack.c.b16 %v5330, %v5326
    %v5659 = vpack.c.b16 %v5335, %v5331
    %v5660 = vpack.c.b16 %v5336, %v5332
    %v5661 = vpack.c.b16 %v5337, %v5333
    %v5662 = vpack.c.b16 %v5338, %v5334
    %v5663 = vpack.c.b16 %v5343, %v5339
    %v5664 = vpack.c.b16 %v5344, %v5340
    %v5665 = vpack.c.b16 %v5345, %v5341
    %v5666 = vpack.c.b16 %v5346, %v5342
    %v5667 = vpack.c.b16 %v5351, %v5347
    %v5668 = vpack.c.b16 %v5352, %v5348
    %v5669 = vpack.c.b16 %v5353, %v5349
    %v5670 = vpack.c.b16 %v5354, %v5350
    %v5671 = vpack.c.b16 %v5359, %v5355
    %v5672 = vpack.c.b16 %v5360, %v5356
    %v5673 = vpack.c.b16 %v5361, %v5357
    %v5674 = vpack.c.b16 %v5362, %v5358
    %v5675 = vpack.c.b16 %v5367, %v5363
    %v5676 = vpack.c.b16 %v5368, %v5364
    %v5677 = vpack.c.b16 %v5369, %v5365
    %v5678 = vpack.c.b16 %v5370, %v5366
    %v5679 = vpack.c.b16 %v5375, %v5371
    %v5680 = vpack.c.b16 %v5376, %v5372
    %v5681 = vpack.c.b16 %v5377, %v5373
    %v5682 = vpack.c.b16 %v5378, %v5374
    %v5683 = vpack.c.b16 %v5383, %v5379
    %v5684 = vpack.c.b16 %v5384, %v5380
    %v5685 = vpack.c.b16 %v5385, %v5381
    %v5686 = vpack.c.b16 %v5386, %v5382
    %v5687 = vpack.c.b16 %v5391, %v5387
    %v5688 = vpack.c.b16 %v5392, %v5388
    %v5689 = vpack.c.b16 %v5393, %v5389
    %v5690 = vpack.c.b16 %v5394, %v5390
    %v5691 = vpack.c.b16 %v5399, %v5395
    %v5692 = vpack.c.b16 %v5400, %v5396
    %v5693 = vpack.c.b16 %v5401, %v5397
    %v5694 = vpack.c.b16 %v5402, %v5398
    %v5695 = vpack.c.b16 %v5407, %v5403
    %v5696 = vpack.c.b16 %v5408, %v5404
    %v5697 = vpack.c.b16 %v5409, %v5405
    %v5698 = vpack.c.b16 %v5410, %v5406
    %5987 = vmatprep.subr.bf16.mxu0 %v5412
    %5988 = vmatpush1.bf16.msra.mxu0 %v5411
    %5989 = vmatprep.subr.bf16.mxu0 %v5416
    %5990 = vmatpush1.bf16.msra.mxu0 %v5415
    %5991 = vmatprep.subr.bf16.mxu0 %v5420
    %5992 = vmatpush1.bf16.msra.mxu0 %v5419
    %5993 = vmatprep.subr.bf16.mxu0 %v5424
    %5994 = vmatpush1.bf16.msra.mxu0 %v5423
    %5995 = vmatprep.subr.bf16.mxu0 %v5428
    %5996 = vmatpush1.bf16.msra.mxu0 %v5427
    %5997 = vmatprep.subr.bf16.mxu0 %v5432
    %5998 = vmatpush1.bf16.msra.mxu0 %v5431
    %5999 = vmatprep.subr.bf16.mxu0 %v5436
    %6000 = vmatpush1.bf16.msra.mxu0 %v5435
    %6001 = vmatprep.subr.bf16.mxu0 %v5440
    %6002 = vmatpush1.bf16.msra.mxu0 %v5439
    %6003 = vmatprep.subr.bf16.mxu0 %v5444
    %6004 = vmatpush1.bf16.msra.mxu0 %v5443
    %6005 = vmatprep.subr.bf16.mxu0 %v5448
    %6006 = vmatpush1.bf16.msra.mxu0 %v5447
    %6007 = vmatprep.subr.bf16.mxu0 %v5452
    %6008 = vmatpush1.bf16.msra.mxu0 %v5451
    %6009 = vmatprep.subr.bf16.mxu0 %v5456
    %6010 = vmatpush1.bf16.msra.mxu0 %v5455
    %6011 = vmatprep.subr.bf16.mxu0 %v5460
    %6012 = vmatpush1.bf16.msra.mxu0 %v5459
    %6013 = vmatprep.subr.bf16.mxu0 %v5464
    %6014 = vmatpush1.bf16.msra.mxu0 %v5463
    %6015 = vmatprep.subr.bf16.mxu0 %v5468
    %6016 = vmatpush1.bf16.msra.mxu0 %v5467
    %6017 = vmatprep.subr.bf16.mxu0 %v5472
    %6018 = vmatpush1.bf16.msra.mxu0 %v5471
    %6019 = vmatprep.mubr.bf16.mxu0 %v4092
    %6020 = vmatmul.mubr.bf16.gmra.mrb[0].mxu0 %v4091
    %v6021 = vpop.f32.mrb[0].mxu0
    %v6022 = vadd.f32 %v4530, %v6021
    %v6023 = vpop.f32.mrb[0].mxu0
    %v6024 = vadd.f32 %v4534, %v6023
    %v6025 = vpop.f32.mrb[0].mxu0
    %v6026 = vadd.f32 %v4530, %v6025
    %v6027 = vpop.f32.mrb[0].mxu0
    %v6028 = vadd.f32 %v4534, %v6027
    %6029 = vmatprep.mubr.bf16.mxu0 %v4095
    %6030 = vmatmul.mubr.bf16.gmra.mrb[0].mxu0 %v4094
    %v6031 = vpop.f32.mrb[0].mxu0
    %v6032 = vadd.f32 %v4530, %v6031
    %v6033 = vpop.f32.mrb[0].mxu0
    %v6034 = vadd.f32 %v4534, %v6033
    %v6035 = vpop.f32.mrb[0].mxu0
    %v6036 = vadd.f32 %v4530, %v6035
    %v6037 = vpop.f32.mrb[0].mxu0
    %v6038 = vadd.f32 %v4534, %v6037
    %6039 = vdwg.mxu0
    %6040 = vmatprep.subr.bf16.mxu0 %v5476
    %6041 = vmatpush1.bf16.msra.mxu0 %v5475
    %6042 = vmatprep.subr.bf16.mxu0 %v5480
    %6043 = vmatpush1.bf16.msra.mxu0 %v5479
    %6044 = vmatprep.subr.bf16.mxu0 %v5484
    %6045 = vmatpush1.bf16.msra.mxu0 %v5483
    %6046 = vmatprep.subr.bf16.mxu0 %v5488
    %6047 = vmatpush1.bf16.msra.mxu0 %v5487
    %6048 = vmatprep.subr.bf16.mxu0 %v5492
    %6049 = vmatpush1.bf16.msra.mxu0 %v5491
    %6050 = vmatprep.subr.bf16.mxu0 %v5496
    %6051 = vmatpush1.bf16.msra.mxu0 %v5495
    %6052 = vmatprep.subr.bf16.mxu0 %v5500
    %6053 = vmatpush1.bf16.msra.mxu0 %v5499
    %6054 = vmatprep.subr.bf16.mxu0 %v5504
    %6055 = vmatpush1.bf16.msra.mxu0 %v5503
    %6056 = vmatprep.subr.bf16.mxu0 %v5508
    %6057 = vmatpush1.bf16.msra.mxu0 %v5507
    %6058 = vmatprep.subr.bf16.mxu0 %v5512
    %6059 = vmatpush1.bf16.msra.mxu0 %v5511
    %6060 = vmatprep.subr.bf16.mxu0 %v5516
    %6061 = vmatpush1.bf16.msra.mxu0 %v5515
    %6062 = vmatprep.subr.bf16.mxu0 %v5520
    %6063 = vmatpush1.bf16.msra.mxu0 %v5519
    %6064 = vmatprep.subr.bf16.mxu0 %v5524
    %6065 = vmatpush1.bf16.msra.mxu0 %v5523
    %6066 = vmatprep.subr.bf16.mxu0 %v5528
    %6067 = vmatpush1.bf16.msra.mxu0 %v5527
    %6068 = vmatprep.subr.bf16.mxu0 %v5532
    %6069 = vmatpush1.bf16.msra.mxu0 %v5531
    %6070 = vmatprep.subr.bf16.mxu0 %v5536
    %6071 = vmatpush1.bf16.msra.mxu0 %v5535
    %6072 = vmatprep.mubr.bf16.mxu0 %v4130
    %6073 = vmatmul.mubr.bf16.gmra.mrb[0].mxu0 %v4093
    %v6074 = vpop.f32.mrb[0].mxu0
    %v6075 = vadd.f32 %v6022, %v6074
    %v6076 = vpop.f32.mrb[0].mxu0
    %v6077 = vadd.f32 %v6024, %v6076
    %v6078 = vpop.f32.mrb[0].mxu0
    %v6079 = vadd.f32 %v6026, %v6078
    %v6080 = vpop.f32.mrb[0].mxu0
    %v6081 = vadd.f32 %v6028, %v6080
    %6082 = vmatprep.mubr.bf16.mxu0 %v4166
    %6083 = vmatmul.mubr.bf16.gmra.mrb[0].mxu0 %v4096
    %v6084 = vpop.f32.mrb[0].mxu0
    %v6085 = vadd.f32 %v6032, %v6084
    %v6086 = vpop.f32.mrb[0].mxu0
    %v6087 = vadd.f32 %v6034, %v6086
    %v6088 = vpop.f32.mrb[0].mxu0
    %v6089 = vadd.f32 %v6036, %v6088
    %v6090 = vpop.f32.mrb[0].mxu0
    %v6091 = vadd.f32 %v6038, %v6090
    %6092 = vdwg.mxu0
    %6093 = vmatprep.subr.bf16.mxu0 %v5540
    %6094 = vmatpush1.bf16.msra.mxu0 %v5539
    %6095 = vmatprep.subr.bf16.mxu0 %v5544
    %6096 = vmatpush1.bf16.msra.mxu0 %v5543
    %6097 = vmatprep.subr.bf16.mxu0 %v5548
    %6098 = vmatpush1.bf16.msra.mxu0 %v5547
    %6099 = vmatprep.subr.bf16.mxu0 %v5552
    %6100 = vmatpush1.bf16.msra.mxu0 %v5551
    %6101 = vmatprep.subr.bf16.mxu0 %v5556
    %6102 = vmatpush1.bf16.msra.mxu0 %v5555
    %6103 = vmatprep.subr.bf16.mxu0 %v5560
    %6104 = vmatpush1.bf16.msra.mxu0 %v5559
    %6105 = vmatprep.subr.bf16.mxu0 %v5564
    %6106 = vmatpush1.bf16.msra.mxu0 %v5563
    %6107 = vmatprep.subr.bf16.mxu0 %v5568
    %6108 = vmatpush1.bf16.msra.mxu0 %v5567
    %6109 = vmatprep.subr.bf16.mxu0 %v5572
    %6110 = vmatpush1.bf16.msra.mxu0 %v5571
    %6111 = vmatprep.subr.bf16.mxu0 %v5576
    %6112 = vmatpush1.bf16.msra.mxu0 %v5575
    %6113 = vmatprep.subr.bf16.mxu0 %v5580
    %6114 = vmatpush1.bf16.msra.mxu0 %v5579
    %6115 = vmatprep.subr.bf16.mxu0 %v5584
    %6116 = vmatpush1.bf16.msra.mxu0 %v5583
    %6117 = vmatprep.subr.bf16.mxu0 %v5588
    %6118 = vmatpush1.bf16.msra.mxu0 %v5587
    %6119 = vmatprep.subr.bf16.mxu0 %v5592
    %6120 = vmatpush1.bf16.msra.mxu0 %v5591
    %6121 = vmatprep.subr.bf16.mxu0 %v5596
    %6122 = vmatpush1.bf16.msra.mxu0 %v5595
    %6123 = vmatprep.subr.bf16.mxu0 %v5600
    %6124 = vmatpush1.bf16.msra.mxu0 %v5599
    %6125 = vmatprep.mubr.bf16.mxu0 %v4154
    %6126 = vmatmul.mubr.bf16.gmra.mrb[0].mxu0 %v4142
    %v6127 = vpop.f32.mrb[0].mxu0
    %v6128 = vadd.f32 %v6075, %v6127
    %v6129 = vpop.f32.mrb[0].mxu0
    %v6130 = vadd.f32 %v6077, %v6129
    %v6131 = vpop.f32.mrb[0].mxu0
    %v6132 = vadd.f32 %v6079, %v6131
    %v6133 = vpop.f32.mrb[0].mxu0
    %v6134 = vadd.f32 %v6081, %v6133
    %6135 = vmatprep.mubr.bf16.mxu0 %v4190
    %6136 = vmatmul.mubr.bf16.gmra.mrb[0].mxu0 %v4178
    %v6137 = vpop.f32.mrb[0].mxu0
    %v6138 = vadd.f32 %v6085, %v6137
    %v6139 = vpop.f32.mrb[0].mxu0
    %v6140 = vadd.f32 %v6087, %v6139
    %v6141 = vpop.f32.mrb[0].mxu0
    %v6142 = vadd.f32 %v6089, %v6141
    %v6143 = vpop.f32.mrb[0].mxu0
    %v6144 = vadd.f32 %v6091, %v6143
    %6145 = vdwg.mxu0
    %6146 = vmatprep.subr.bf16.mxu0 %v5604
    %6147 = vmatpush1.bf16.msra.mxu0 %v5603
    %6148 = vmatprep.subr.bf16.mxu0 %v5608
    %6149 = vmatpush1.bf16.msra.mxu0 %v5607
    %6150 = vmatprep.subr.bf16.mxu0 %v5612
    %6151 = vmatpush1.bf16.msra.mxu0 %v5611
    %6152 = vmatprep.subr.bf16.mxu0 %v5616
    %6153 = vmatpush1.bf16.msra.mxu0 %v5615
    %6154 = vmatprep.subr.bf16.mxu0 %v5620
    %6155 = vmatpush1.bf16.msra.mxu0 %v5619
    %6156 = vmatprep.subr.bf16.mxu0 %v5624
    %6157 = vmatpush1.bf16.msra.mxu0 %v5623
    %6158 = vmatprep.subr.bf16.mxu0 %v5628
    %6159 = vmatpush1.bf16.msra.mxu0 %v5627
    %6160 = vmatprep.subr.bf16.mxu0 %v5632
    %6161 = vmatpush1.bf16.msra.mxu0 %v5631
    %6162 = vmatprep.subr.bf16.mxu0 %v5636
    %6163 = vmatpush1.bf16.msra.mxu0 %v5635
    %6164 = vmatprep.subr.bf16.mxu0 %v5640
    %6165 = vmatpush1.bf16.msra.mxu0 %v5639
    %6166 = vmatprep.subr.bf16.mxu0 %v5644
    %6167 = vmatpush1.bf16.msra.mxu0 %v5643
    %6168 = vmatprep.subr.bf16.mxu0 %v5648
    %6169 = vmatpush1.bf16.msra.mxu0 %v5647
    %6170 = vmatprep.subr.bf16.mxu0 %v5652
    %6171 = vmatpush1.bf16.msra.mxu0 %v5651
    %6172 = vmatprep.subr.bf16.mxu0 %v5656
    %6173 = vmatpush1.bf16.msra.mxu0 %v5655
    %6174 = vmatprep.subr.bf16.mxu0 %v5660
    %6175 = vmatpush1.bf16.msra.mxu0 %v5659
    %6176 = vmatprep.subr.bf16.mxu0 %v5664
    %6177 = vmatpush1.bf16.msra.mxu0 %v5663
    %6178 = vmatprep.mubr.bf16.mxu0 %v4218
    %6179 = vmatmul.mubr.bf16.gmra.mrb[0].mxu0 %v4215
    %v6180 = vpop.f32.mrb[0].mxu0
    %v6181 = vadd.f32 %v6128, %v6180
    %v6182 = vpop.f32.mrb[0].mxu0
    %v6183 = vadd.f32 %v6130, %v6182
    %v6184 = vpop.f32.mrb[0].mxu0
    %v6185 = vadd.f32 %v6132, %v6184
    %v6186 = vpop.f32.mrb[0].mxu0
    %v6187 = vadd.f32 %v6134, %v6186
    %6188 = vmatprep.mubr.bf16.mxu0 %v4227
    %6189 = vmatmul.mubr.bf16.gmra.mrb[0].mxu0 %v4224
    %v6190 = vpop.f32.mrb[0].mxu0
    %v6191 = vadd.f32 %v6138, %v6190
    %v6192 = vpop.f32.mrb[0].mxu0
    %v6193 = vadd.f32 %v6140, %v6192
    %v6194 = vpop.f32.mrb[0].mxu0
    %v6195 = vadd.f32 %v6142, %v6194
    %v6196 = vpop.f32.mrb[0].mxu0
    %v6197 = vadd.f32 %v6144, %v6196
    %6198 = vdwg.mxu0
    %6199 = vmatprep.subr.bf16.mxu0 %v5668
    %6200 = vmatpush1.bf16.msra.mxu0 %v5667
    %6201 = vmatprep.subr.bf16.mxu0 %v5672
    %6202 = vmatpush1.bf16.msra.mxu0 %v5671
    %6203 = vmatprep.subr.bf16.mxu0 %v5676
    %6204 = vmatpush1.bf16.msra.mxu0 %v5675
    %6205 = vmatprep.subr.bf16.mxu0 %v5680
    %6206 = vmatpush1.bf16.msra.mxu0 %v5679
    %6207 = vmatprep.subr.bf16.mxu0 %v5684
    %6208 = vmatpush1.bf16.msra.mxu0 %v5683
    %6209 = vmatprep.subr.bf16.mxu0 %v5688
    %6210 = vmatpush1.bf16.msra.mxu0 %v5687
    %6211 = vmatprep.subr.bf16.mxu0 %v5692
    %6212 = vmatpush1.bf16.msra.mxu0 %v5691
    %6213 = vmatprep.subr.bf16.mxu0 %v5696
    %6214 = vmatpush1.bf16.msra.mxu0 %v5695
    %6215 = vmatprep.subr.bf16.mxu0 0
    %6216 = vmatpush1.bf16.msra.mxu0 0
    %6217 = vmatprep.subr.bf16.mxu0 0
    %6218 = vmatpush1.bf16.msra.mxu0 0
    %6219 = vmatprep.subr.bf16.mxu0 0
    %6220 = vmatpush1.bf16.msra.mxu0 0
    %6221 = vmatprep.subr.bf16.mxu0 0
    %6222 = vmatpush1.bf16.msra.mxu0 0
    %6223 = vmatprep.subr.bf16.mxu0 0
    %6224 = vmatpush1.bf16.msra.mxu0 0
    %6225 = vmatprep.subr.bf16.mxu0 0
    %6226 = vmatpush1.bf16.msra.mxu0 0
    %6227 = vmatprep.subr.bf16.mxu0 0
    %6228 = vmatpush1.bf16.msra.mxu0 0
    %6229 = vmatprep.subr.bf16.mxu0 0
    %6230 = vmatpush1.bf16.msra.mxu0 0
    %6231 = vmatprep.mubr.bf16.mxu0 0
    %6232 = vmatmul.mubr.bf16.gmra.mrb[0].mxu0 %v4221
    %v6233 = vpop.f32.mrb[0].mxu0
    %v6234 = vadd.f32 %v6181, %v6233
    %v6235 = vpop.f32.mrb[0].mxu0
    %v6236 = vadd.f32 %v6183, %v6235
    %v6237 = vpop.f32.mrb[0].mxu0
    %v6238 = vadd.f32 %v6185, %v6237
    %v6239 = vpop.f32.mrb[0].mxu0
    %v6240 = vadd.f32 %v6187, %v6239
    %6241 = vmatprep.mubr.bf16.mxu0 0
    %6242 = vmatmul.mubr.bf16.gmra.mrb[0].mxu0 %v4230
    %v6243 = vpop.f32.mrb[0].mxu0
    %v6244 = vadd.f32 %v6191, %v6243
    %v6245 = vpop.f32.mrb[0].mxu0
    %v6246 = vadd.f32 %v6193, %v6245
    %v6247 = vpop.f32.mrb[0].mxu0
    %v6248 = vadd.f32 %v6195, %v6247
    %v6249 = vpop.f32.mrb[0].mxu0
    %v6250 = vadd.f32 %v6197, %v6249
    %6251 = vdwg.mxu0
    %6252 = vmatprep.subr.bf16.mxu0 %v5414
    %6253 = vmatpush1.bf16.msra.mxu0 %v5413
    %6254 = vmatprep.subr.bf16.mxu0 %v5418
    %6255 = vmatpush1.bf16.msra.mxu0 %v5417
    %6256 = vmatprep.subr.bf16.mxu0 %v5422
    %6257 = vmatpush1.bf16.msra.mxu0 %v5421
    %6258 = vmatprep.subr.bf16.mxu0 %v5426
    %6259 = vmatpush1.bf16.msra.mxu0 %v5425
    %6260 = vmatprep.subr.bf16.mxu0 %v5430
    %6261 = vmatpush1.bf16.msra.mxu0 %v5429
    %6262 = vmatprep.subr.bf16.mxu0 %v5434
    %6263 = vmatpush1.bf16.msra.mxu0 %v5433
    %6264 = vmatprep.subr.bf16.mxu0 %v5438
    %6265 = vmatpush1.bf16.msra.mxu0 %v5437
    %6266 = vmatprep.subr.bf16.mxu0 %v5442
    %6267 = vmatpush1.bf16.msra.mxu0 %v5441
    %6268 = vmatprep.subr.bf16.mxu0 %v5446
    %6269 = vmatpush1.bf16.msra.mxu0 %v5445
    %6270 = vmatprep.subr.bf16.mxu0 %v5450
    %6271 = vmatpush1.bf16.msra.mxu0 %v5449
    %6272 = vmatprep.subr.bf16.mxu0 %v5454
    %6273 = vmatpush1.bf16.msra.mxu0 %v5453
    %6274 = vmatprep.subr.bf16.mxu0 %v5458
    %6275 = vmatpush1.bf16.msra.mxu0 %v5457
    %6276 = vmatprep.subr.bf16.mxu0 %v5462
    %6277 = vmatpush1.bf16.msra.mxu0 %v5461
    %6278 = vmatprep.subr.bf16.mxu0 %v5466
    %6279 = vmatpush1.bf16.msra.mxu0 %v5465
    %6280 = vmatprep.subr.bf16.mxu0 %v5470
    %6281 = vmatpush1.bf16.msra.mxu0 %v5469
    %6282 = vmatprep.subr.bf16.mxu0 %v5474
    %6283 = vmatpush1.bf16.msra.mxu0 %v5473
    %6284 = vmatprep.mubr.bf16.mxu0 %v4092
    %6285 = vmatmul.mubr.bf16.gmra.mrb[0].mxu0 %v4091
    %v6286 = vpop.f32.mrb[0].mxu0
    %v6287 = vadd.f32 %v4538, %v6286
    %v6288 = vpop.f32.mrb[0].mxu0
    %v6289 = vadd.f32 %v4542, %v6288
    %v6290 = vpop.f32.mrb[0].mxu0
    %v6291 = vadd.f32 %v4538, %v6290
    %v6292 = vpop.f32.mrb[0].mxu0
    %v6293 = vadd.f32 %v4542, %v6292
    %6294 = vmatprep.mubr.bf16.mxu0 %v4095
    %6295 = vmatmul.mubr.bf16.gmra.mrb[0].mxu0 %v4094
    %v6296 = vpop.f32.mrb[0].mxu0
    %v6297 = vadd.f32 %v4538, %v6296
    %v6298 = vpop.f32.mrb[0].mxu0
    %v6299 = vadd.f32 %v4542, %v6298
    %v6300 = vpop.f32.mrb[0].mxu0
    %v6301 = vadd.f32 %v4538, %v6300
    %v6302 = vpop.f32.mrb[0].mxu0
    %v6303 = vadd.f32 %v4542, %v6302
    %6304 = vdwg.mxu0
    %6305 = vmatprep.subr.bf16.mxu0 %v5478
    %6306 = vmatpush1.bf16.msra.mxu0 %v5477
    %6307 = vmatprep.subr.bf16.mxu0 %v5482
    %6308 = vmatpush1.bf16.msra.mxu0 %v5481
    %6309 = vmatprep.subr.bf16.mxu0 %v5486
    %6310 = vmatpush1.bf16.msra.mxu0 %v5485
    %6311 = vmatprep.subr.bf16.mxu0 %v5490
    %6312 = vmatpush1.bf16.msra.mxu0 %v5489
    %6313 = vmatprep.subr.bf16.mxu0 %v5494
    %6314 = vmatpush1.bf16.msra.mxu0 %v5493
    %6315 = vmatprep.subr.bf16.mxu0 %v5498
    %6316 = vmatpush1.bf16.msra.mxu0 %v5497
    %6317 = vmatprep.subr.bf16.mxu0 %v5502
    %6318 = vmatpush1.bf16.msra.mxu0 %v5501
    %6319 = vmatprep.subr.bf16.mxu0 %v5506
    %6320 = vmatpush1.bf16.msra.mxu0 %v5505
    %6321 = vmatprep.subr.bf16.mxu0 %v5510
    %6322 = vmatpush1.bf16.msra.mxu0 %v5509
    %6323 = vmatprep.subr.bf16.mxu0 %v5514
    %6324 = vmatpush1.bf16.msra.mxu0 %v5513
    %6325 = vmatprep.subr.bf16.mxu0 %v5518
    %6326 = vmatpush1.bf16.msra.mxu0 %v5517
    %6327 = vmatprep.subr.bf16.mxu0 %v5522
    %6328 = vmatpush1.bf16.msra.mxu0 %v5521
    %6329 = vmatprep.subr.bf16.mxu0 %v5526
    %6330 = vmatpush1.bf16.msra.mxu0 %v5525
    %6331 = vmatprep.subr.bf16.mxu0 %v5530
    %6332 = vmatpush1.bf16.msra.mxu0 %v5529
    %6333 = vmatprep.subr.bf16.mxu0 %v5534
    %6334 = vmatpush1.bf16.msra.mxu0 %v5533
    %6335 = vmatprep.subr.bf16.mxu0 %v5538
    %6336 = vmatpush1.bf16.msra.mxu0 %v5537
    %6337 = vmatprep.mubr.bf16.mxu0 %v4130
    %6338 = vmatmul.mubr.bf16.gmra.mrb[0].mxu0 %v4093
    %v6339 = vpop.f32.mrb[0].mxu0
    %v6340 = vadd.f32 %v6287, %v6339
    %v6341 = vpop.f32.mrb[0].mxu0
    %v6342 = vadd.f32 %v6289, %v6341
    %v6343 = vpop.f32.mrb[0].mxu0
    %v6344 = vadd.f32 %v6291, %v6343
    %v6345 = vpop.f32.mrb[0].mxu0
    %v6346 = vadd.f32 %v6293, %v6345
    %6347 = vmatprep.mubr.bf16.mxu0 %v4166
    %6348 = vmatmul.mubr.bf16.gmra.mrb[0].mxu0 %v4096
    %v6349 = vpop.f32.mrb[0].mxu0
    %v6350 = vadd.f32 %v6297, %v6349
    %v6351 = vpop.f32.mrb[0].mxu0
    %v6352 = vadd.f32 %v6299, %v6351
    %v6353 = vpop.f32.mrb[0].mxu0
    %v6354 = vadd.f32 %v6301, %v6353
    %v6355 = vpop.f32.mrb[0].mxu0
    %v6356 = vadd.f32 %v6303, %v6355
    %6357 = vdwg.mxu0
    %6358 = vmatprep.subr.bf16.mxu0 %v5542
    %6359 = vmatpush1.bf16.msra.mxu0 %v5541
    %6360 = vmatprep.subr.bf16.mxu0 %v5546
    %6361 = vmatpush1.bf16.msra.mxu0 %v5545
    %6362 = vmatprep.subr.bf16.mxu0 %v5550
    %6363 = vmatpush1.bf16.msra.mxu0 %v5549
    %6364 = vmatprep.subr.bf16.mxu0 %v5554
    %6365 = vmatpush1.bf16.msra.mxu0 %v5553
    %6366 = vmatprep.subr.bf16.mxu0 %v5558
    %6367 = vmatpush1.bf16.msra.mxu0 %v5557
    %6368 = vmatprep.subr.bf16.mxu0 %v5562
    %6369 = vmatpush1.bf16.msra.mxu0 %v5561
    %6370 = vmatprep.subr.bf16.mxu0 %v5566
    %6371 = vmatpush1.bf16.msra.mxu0 %v5565
    %6372 = vmatprep.subr.bf16.mxu0 %v5570
    %6373 = vmatpush1.bf16.msra.mxu0 %v5569
    %6374 = vmatprep.subr.bf16.mxu0 %v5574
    %6375 = vmatpush1.bf16.msra.mxu0 %v5573
    %6376 = vmatprep.subr.bf16.mxu0 %v5578
    %6377 = vmatpush1.bf16.msra.mxu0 %v5577
    %6378 = vmatprep.subr.bf16.mxu0 %v5582
    %6379 = vmatpush1.bf16.msra.mxu0 %v5581
    %6380 = vmatprep.subr.bf16.mxu0 %v5586
    %6381 = vmatpush1.bf16.msra.mxu0 %v5585
    %6382 = vmatprep.subr.bf16.mxu0 %v5590
    %6383 = vmatpush1.bf16.msra.mxu0 %v5589
    %6384 = vmatprep.subr.bf16.mxu0 %v5594
    %6385 = vmatpush1.bf16.msra.mxu0 %v5593
    %6386 = vmatprep.subr.bf16.mxu0 %v5598
    %6387 = vmatpush1.bf16.msra.mxu0 %v5597
    %6388 = vmatprep.subr.bf16.mxu0 %v5602
    %6389 = vmatpush1.bf16.msra.mxu0 %v5601
    %6390 = vmatprep.mubr.bf16.mxu0 %v4154
    %6391 = vmatmul.mubr.bf16.gmra.mrb[0].mxu0 %v4142
    %v6392 = vpop.f32.mrb[0].mxu0
    %v6393 = vadd.f32 %v6340, %v6392
    %v6394 = vpop.f32.mrb[0].mxu0
    %v6395 = vadd.f32 %v6342, %v6394
    %v6396 = vpop.f32.mrb[0].mxu0
    %v6397 = vadd.f32 %v6344, %v6396
    %v6398 = vpop.f32.mrb[0].mxu0
    %v6399 = vadd.f32 %v6346, %v6398
    %6400 = vmatprep.mubr.bf16.mxu0 %v4190
    %6401 = vmatmul.mubr.bf16.gmra.mrb[0].mxu0 %v4178
    %v6402 = vpop.f32.mrb[0].mxu0
    %v6403 = vadd.f32 %v6350, %v6402
    %v6404 = vpop.f32.mrb[0].mxu0
    %v6405 = vadd.f32 %v6352, %v6404
    %v6406 = vpop.f32.mrb[0].mxu0
    %v6407 = vadd.f32 %v6354, %v6406
    %v6408 = vpop.f32.mrb[0].mxu0
    %v6409 = vadd.f32 %v6356, %v6408
    %6410 = vdwg.mxu0
    %6411 = vmatprep.subr.bf16.mxu0 %v5606
    %6412 = vmatpush1.bf16.msra.mxu0 %v5605
    %6413 = vmatprep.subr.bf16.mxu0 %v5610
    %6414 = vmatpush1.bf16.msra.mxu0 %v5609
    %6415 = vmatprep.subr.bf16.mxu0 %v5614
    %6416 = vmatpush1.bf16.msra.mxu0 %v5613
    %6417 = vmatprep.subr.bf16.mxu0 %v5618
    %6418 = vmatpush1.bf16.msra.mxu0 %v5617
    %6419 = vmatprep.subr.bf16.mxu0 %v5622
    %6420 = vmatpush1.bf16.msra.mxu0 %v5621
    %6421 = vmatprep.subr.bf16.mxu0 %v5626
    %6422 = vmatpush1.bf16.msra.mxu0 %v5625
    %6423 = vmatprep.subr.bf16.mxu0 %v5630
    %6424 = vmatpush1.bf16.msra.mxu0 %v5629
    %6425 = vmatprep.subr.bf16.mxu0 %v5634
    %6426 = vmatpush1.bf16.msra.mxu0 %v5633
    %6427 = vmatprep.subr.bf16.mxu0 %v5638
    %6428 = vmatpush1.bf16.msra.mxu0 %v5637
    %6429 = vmatprep.subr.bf16.mxu0 %v5642
    %6430 = vmatpush1.bf16.msra.mxu0 %v5641
    %6431 = vmatprep.subr.bf16.mxu0 %v5646
    %6432 = vmatpush1.bf16.msra.mxu0 %v5645
    %6433 = vmatprep.subr.bf16.mxu0 %v5650
    %6434 = vmatpush1.bf16.msra.mxu0 %v5649
    %6435 = vmatprep.subr.bf16.mxu0 %v5654
    %6436 = vmatpush1.bf16.msra.mxu0 %v5653
    %6437 = vmatprep.subr.bf16.mxu0 %v5658
    %6438 = vmatpush1.bf16.msra.mxu0 %v5657
    %6439 = vmatprep.subr.bf16.mxu0 %v5662
    %6440 = vmatpush1.bf16.msra.mxu0 %v5661
    %6441 = vmatprep.subr.bf16.mxu0 %v5666
    %6442 = vmatpush1.bf16.msra.mxu0 %v5665
    %6443 = vmatprep.mubr.bf16.mxu0 %v4218
    %6444 = vmatmul.mubr.bf16.gmra.mrb[0].mxu0 %v4215
    %v6445 = vpop.f32.mrb[0].mxu0
    %v6446 = vadd.f32 %v6393, %v6445
    %v6447 = vpop.f32.mrb[0].mxu0
    %v6448 = vadd.f32 %v6395, %v6447
    %v6449 = vpop.f32.mrb[0].mxu0
    %v6450 = vadd.f32 %v6397, %v6449
    %v6451 = vpop.f32.mrb[0].mxu0
    %v6452 = vadd.f32 %v6399, %v6451
    %6453 = vmatprep.mubr.bf16.mxu0 %v4227
    %6454 = vmatmul.mubr.bf16.gmra.mrb[0].mxu0 %v4224
    %v6455 = vpop.f32.mrb[0].mxu0
    %v6456 = vadd.f32 %v6403, %v6455
    %v6457 = vpop.f32.mrb[0].mxu0
    %v6458 = vadd.f32 %v6405, %v6457
    %v6459 = vpop.f32.mrb[0].mxu0
    %v6460 = vadd.f32 %v6407, %v6459
    %v6461 = vpop.f32.mrb[0].mxu0
    %v6462 = vadd.f32 %v6409, %v6461
    %6463 = vdwg.mxu0
    %6464 = vmatprep.subr.bf16.mxu0 %v5670
    %6465 = vmatpush1.bf16.msra.mxu0 %v5669
    %6466 = vmatprep.subr.bf16.mxu0 %v5674
    %6467 = vmatpush1.bf16.msra.mxu0 %v5673
    %6468 = vmatprep.subr.bf16.mxu0 %v5678
    %6469 = vmatpush1.bf16.msra.mxu0 %v5677
    %6470 = vmatprep.subr.bf16.mxu0 %v5682
    %6471 = vmatpush1.bf16.msra.mxu0 %v5681
    %6472 = vmatprep.subr.bf16.mxu0 %v5686
    %6473 = vmatpush1.bf16.msra.mxu0 %v5685
    %6474 = vmatprep.subr.bf16.mxu0 %v5690
    %6475 = vmatpush1.bf16.msra.mxu0 %v5689
    %6476 = vmatprep.subr.bf16.mxu0 %v5694
    %6477 = vmatpush1.bf16.msra.mxu0 %v5693
    %6478 = vmatprep.subr.bf16.mxu0 %v5698
    %6479 = vmatpush1.bf16.msra.mxu0 %v5697
    %6480 = vmatprep.subr.bf16.mxu0 0
    %6481 = vmatpush1.bf16.msra.mxu0 0
    %6482 = vmatprep.subr.bf16.mxu0 0
    %6483 = vmatpush1.bf16.msra.mxu0 0
    %6484 = vmatprep.subr.bf16.mxu0 0
    %6485 = vmatpush1.bf16.msra.mxu0 0
    %6486 = vmatprep.subr.bf16.mxu0 0
    %6487 = vmatpush1.bf16.msra.mxu0 0
    %6488 = vmatprep.subr.bf16.mxu0 0
    %6489 = vmatpush1.bf16.msra.mxu0 0
    %6490 = vmatprep.subr.bf16.mxu0 0
    %6491 = vmatpush1.bf16.msra.mxu0 0
    %6492 = vmatprep.subr.bf16.mxu0 0
    %6493 = vmatpush1.bf16.msra.mxu0 0
    %6494 = vmatprep.subr.bf16.mxu0 0
    %6495 = vmatpush1.bf16.msra.mxu0 0
    %6496 = vmatprep.mubr.bf16.mxu0 0
    %6497 = vmatmul.mubr.bf16.gmra.mrb[0].mxu0 %v4221
    %v6498 = vpop.f32.mrb[0].mxu0
    %v6499 = vadd.f32 %v6446, %v6498
    %v6500 = vpop.f32.mrb[0].mxu0
    %v6501 = vadd.f32 %v6448, %v6500
    %v6502 = vpop.f32.mrb[0].mxu0
    %v6503 = vadd.f32 %v6450, %v6502
    %v6504 = vpop.f32.mrb[0].mxu0
    %v6505 = vadd.f32 %v6452, %v6504
    %6506 = vmatprep.mubr.bf16.mxu0 0
    %6507 = vmatmul.mubr.bf16.gmra.mrb[0].mxu0 %v4230
    %v6508 = vpop.f32.mrb[0].mxu0
    %v6509 = vadd.f32 %v6456, %v6508
    %v6510 = vpop.f32.mrb[0].mxu0
    %v6511 = vadd.f32 %v6458, %v6510
    %v6512 = vpop.f32.mrb[0].mxu0
    %v6513 = vadd.f32 %v6460, %v6512
    %v6514 = vpop.f32.mrb[0].mxu0
    %v6515 = vadd.f32 %v6462, %v6514
    %6516 = vdwg.mxu0
    %v6517 = vmax.f32 %v6234, 0.0
    %v6518 = vmax.f32 %v6236, 0.0
    %v6519 = vmax.f32 %v6499, 0.0
    %v6520 = vmax.f32 %v6501, 0.0
    %v6521 = vmax.f32 %v6238, 0.0
    %v6522 = vmax.f32 %v6240, 0.0
    %v6523 = vmax.f32 %v6503, 0.0
    %v6524 = vmax.f32 %v6505, 0.0
    %v6525 = vmax.f32 %v6244, 0.0
    %v6526 = vmax.f32 %v6246, 0.0
    %v6527 = vmax.f32 %v6509, 0.0
    %v6528 = vmax.f32 %v6511, 0.0
    %v6529 = vmax.f32 %v6248, 0.0
    %v6530 = vmax.f32 %v6250, 0.0
    %v6531 = vmax.f32 %v6513, 0.0
    %v6532 = vmax.f32 %v6515, 0.0
    %v6549 = vcombine.low %v6517, %v6518
    %v6550 = vcombine.high %v6517, %v6518
    %v6551 = vcombine.low %v6519, %v6520
    %v6552 = vcombine.high %v6519, %v6520
    %v6554 = vunpack.c.l.s4 1983009808
    %v6555 = vunpack.c.0.s8 %v6554
    %v6556 = vlaneseq
    %v6557 = vshrl.u32 %v6556, 7
    %v6558 = vsub.s32 %v6555, %v6557
    %v6559 = vrot.slane %v6549, %v6558
    %v6561 = vunpack.c.l.s4 1983009808
    %v6562 = vunpack.c.0.s8 %v6561
    %v6563 = vlaneseq
    %v6564 = vshrl.u32 %v6563, 7
    %v6565 = vsub.s32 %v6562, %v6564
    %v6566 = vrot.slane %v6550, %v6565
    %v6568 = vunpack.c.l.s4 1983009808
    %v6569 = vunpack.c.0.s8 %v6568
    %v6570 = vlaneseq
    %v6571 = vshrl.u32 %v6570, 7
    %v6572 = vsub.s32 %v6569, %v6571
    %v6573 = vrot.slane %v6551, %v6572
    %v6575 = vunpack.c.l.s4 1983009808
    %v6576 = vunpack.c.0.s8 %v6575
    %v6577 = vlaneseq
    %v6578 = vshrl.u32 %v6577, 7
    %v6579 = vsub.s32 %v6576, %v6578
    %v6580 = vrot.slane %v6552, %v6579
    %v6581 = vcombine.low %v6559, %v6573
    %v6582 = vcombine.high %v6559, %v6573
    %v6583 = vcombine.low %v6566, %v6580
    %v6584 = vcombine.high %v6566, %v6580
    %v6585 = vcombine.low %v6521, %v6522
    %v6586 = vcombine.high %v6521, %v6522
    %v6587 = vcombine.low %v6523, %v6524
    %v6588 = vcombine.high %v6523, %v6524
    %v6590 = vunpack.c.l.s4 1983009808
    %v6591 = vunpack.c.0.s8 %v6590
    %v6592 = vlaneseq
    %v6593 = vshrl.u32 %v6592, 7
    %v6594 = vsub.s32 %v6591, %v6593
    %v6595 = vrot.slane %v6585, %v6594
    %v6597 = vunpack.c.l.s4 1983009808
    %v6598 = vunpack.c.0.s8 %v6597
    %v6599 = vlaneseq
    %v6600 = vshrl.u32 %v6599, 7
    %v6601 = vsub.s32 %v6598, %v6600
    %v6602 = vrot.slane %v6586, %v6601
    %v6604 = vunpack.c.l.s4 1983009808
    %v6605 = vunpack.c.0.s8 %v6604
    %v6606 = vlaneseq
    %v6607 = vshrl.u32 %v6606, 7
    %v6608 = vsub.s32 %v6605, %v6607
    %v6609 = vrot.slane %v6587, %v6608
    %v6611 = vunpack.c.l.s4 1983009808
    %v6612 = vunpack.c.0.s8 %v6611
    %v6613 = vlaneseq
    %v6614 = vshrl.u32 %v6613, 7
    %v6615 = vsub.s32 %v6612, %v6614
    %v6616 = vrot.slane %v6588, %v6615
    %v6617 = vcombine.low %v6595, %v6609
    %v6618 = vcombine.high %v6595, %v6609
    %v6619 = vcombine.low %v6602, %v6616
    %v6620 = vcombine.high %v6602, %v6616
    %v6621 = vcombine.low %v6525, %v6526
    %v6622 = vcombine.high %v6525, %v6526
    %v6623 = vcombine.low %v6527, %v6528
    %v6624 = vcombine.high %v6527, %v6528
    %v6626 = vunpack.c.l.s4 1983009808
    %v6627 = vunpack.c.0.s8 %v6626
    %v6628 = vlaneseq
    %v6629 = vshrl.u32 %v6628, 7
    %v6630 = vsub.s32 %v6627, %v6629
    %v6631 = vrot.slane %v6621, %v6630
    %v6633 = vunpack.c.l.s4 1983009808
    %v6634 = vunpack.c.0.s8 %v6633
    %v6635 = vlaneseq
    %v6636 = vshrl.u32 %v6635, 7
    %v6637 = vsub.s32 %v6634, %v6636
    %v6638 = vrot.slane %v6622, %v6637
    %v6640 = vunpack.c.l.s4 1983009808
    %v6641 = vunpack.c.0.s8 %v6640
    %v6642 = vlaneseq
    %v6643 = vshrl.u32 %v6642, 7
    %v6644 = vsub.s32 %v6641, %v6643
    %v6645 = vrot.slane %v6623, %v6644
    %v6647 = vunpack.c.l.s4 1983009808
    %v6648 = vunpack.c.0.s8 %v6647
    %v6649 = vlaneseq
    %v6650 = vshrl.u32 %v6649, 7
    %v6651 = vsub.s32 %v6648, %v6650
    %v6652 = vrot.slane %v6624, %v6651
    %v6653 = vcombine.low %v6631, %v6645
    %v6654 = vcombine.high %v6631, %v6645
    %v6655 = vcombine.low %v6638, %v6652
    %v6656 = vcombine.high %v6638, %v6652
    %v6657 = vcombine.low %v6529, %v6530
    %v6658 = vcombine.high %v6529, %v6530
    %v6659 = vcombine.low %v6531, %v6532
    %v6660 = vcombine.high %v6531, %v6532
    %v6662 = vunpack.c.l.s4 1983009808
    %v6663 = vunpack.c.0.s8 %v6662
    %v6664 = vlaneseq
    %v6665 = vshrl.u32 %v6664, 7
    %v6666 = vsub.s32 %v6663, %v6665
    %v6667 = vrot.slane %v6657, %v6666
    %v6669 = vunpack.c.l.s4 1983009808
    %v6670 = vunpack.c.0.s8 %v6669
    %v6671 = vlaneseq
    %v6672 = vshrl.u32 %v6671, 7
    %v6673 = vsub.s32 %v6670, %v6672
    %v6674 = vrot.slane %v6658, %v6673
    %v6676 = vunpack.c.l.s4 1983009808
    %v6677 = vunpack.c.0.s8 %v6676
    %v6678 = vlaneseq
    %v6679 = vshrl.u32 %v6678, 7
    %v6680 = vsub.s32 %v6677, %v6679
    %v6681 = vrot.slane %v6659, %v6680
    %v6683 = vunpack.c.l.s4 1983009808
    %v6684 = vunpack.c.0.s8 %v6683
    %v6685 = vlaneseq
    %v6686 = vshrl.u32 %v6685, 7
    %v6687 = vsub.s32 %v6684, %v6686
    %v6688 = vrot.slane %v6660, %v6687
    %v6689 = vcombine.low %v6667, %v6681
    %v6690 = vcombine.high %v6667, %v6681
    %v6691 = vcombine.low %v6674, %v6688
    %v6692 = vcombine.high %v6674, %v6688
    %v6709 = vrot.slane %v6581, 7
    %v6710 = vrot.slane %v6709, 2
    %v6711 = vrot.slane %v6582, 7
    %v6712 = vrot.slane %v6711, 2
    %v6713 = vrot.slane %v6583, 7
    %v6714 = vrot.slane %v6713, 2
    %v6715 = vrot.slane %v6584, 7
    %v6716 = vrot.slane %v6715, 2
    %v6717 = vrot.slane %v6617, 7
    %v6718 = vrot.slane %v6717, 2
    %v6719 = vrot.slane %v6618, 7
    %v6720 = vrot.slane %v6719, 2
    %v6721 = vrot.slane %v6619, 7
    %v6722 = vrot.slane %v6721, 2
    %v6723 = vrot.slane %v6620, 7
    %v6724 = vrot.slane %v6723, 2
    %v6725 = vrot.slane %v6653, 7
    %v6726 = vrot.slane %v6725, 2
    %v6727 = vrot.slane %v6654, 7
    %v6728 = vrot.slane %v6727, 2
    %v6729 = vrot.slane %v6655, 7
    %v6730 = vrot.slane %v6729, 2
    %v6731 = vrot.slane %v6656, 7
    %v6732 = vrot.slane %v6731, 2
    %v6733 = vrot.slane %v6689, 7
    %v6734 = vrot.slane %v6733, 2
    %v6735 = vrot.slane %v6690, 7
    %v6736 = vrot.slane %v6735, 2
    %v6737 = vrot.slane %v6691, 7
    %v6738 = vrot.slane %v6737, 2
    %v6739 = vrot.slane %v6692, 7
    %v6740 = vrot.slane %v6739, 2
    %v6757 = vadd.f32 %v6581, %v6710
    %v6758 = vadd.f32 %v6582, %v6712
    %v6759 = vadd.f32 %v6583, %v6714
    %v6760 = vadd.f32 %v6584, %v6716
    %v6761 = vadd.f32 %v6617, %v6718
    %v6762 = vadd.f32 %v6618, %v6720
    %v6763 = vadd.f32 %v6619, %v6722
    %v6764 = vadd.f32 %v6620, %v6724
    %v6765 = vadd.f32 %v6653, %v6726
    %v6766 = vadd.f32 %v6654, %v6728
    %v6767 = vadd.f32 %v6655, %v6730
    %v6768 = vadd.f32 %v6656, %v6732
    %v6769 = vadd.f32 %v6689, %v6734
    %v6770 = vadd.f32 %v6690, %v6736
    %v6771 = vadd.f32 %v6691, %v6738
    %v6772 = vadd.f32 %v6692, %v6740
    %v6789 = vlaneseq
    %v6790 = vshrl.u32 %v6789, 7
    %v6791 = vsub.s32 0, %v6790
    %v6792 = vrot.slane %v6757, %v6791
    %v6793 = vlaneseq
    %v6794 = vshrl.u32 %v6793, 7
    %v6795 = vsub.s32 2, %v6794
    %v6796 = vrot.slane %v6757, %v6795
    %v6797 = vlaneseq
    %v6798 = vshrl.u32 %v6797, 7
    %v6799 = vsub.s32 4, %v6798
    %v6800 = vrot.slane %v6757, %v6799
    %v6801 = vlaneseq
    %v6802 = vshrl.u32 %v6801, 7
    %v6803 = vsub.s32 6, %v6802
    %v6804 = vrot.slane %v6757, %v6803
    %v6805 = vlaneseq
    %v6806 = vshrl.u32 %v6805, 7
    %v6807 = vsub.s32 0, %v6806
    %v6808 = vrot.slane %v6758, %v6807
    %v6809 = vlaneseq
    %v6810 = vshrl.u32 %v6809, 7
    %v6811 = vsub.s32 2, %v6810
    %v6812 = vrot.slane %v6758, %v6811
    %v6813 = vlaneseq
    %v6814 = vshrl.u32 %v6813, 7
    %v6815 = vsub.s32 4, %v6814
    %v6816 = vrot.slane %v6758, %v6815
    %v6817 = vlaneseq
    %v6818 = vshrl.u32 %v6817, 7
    %v6819 = vsub.s32 6, %v6818
    %v6820 = vrot.slane %v6758, %v6819
    %v6821 = vlaneseq
    %v6822 = vshrl.u32 %v6821, 7
    %v6823 = vsub.s32 0, %v6822
    %v6824 = vrot.slane %v6759, %v6823
    %v6825 = vlaneseq
    %v6826 = vshrl.u32 %v6825, 7
    %v6827 = vsub.s32 2, %v6826
    %v6828 = vrot.slane %v6759, %v6827
    %v6829 = vlaneseq
    %v6830 = vshrl.u32 %v6829, 7
    %v6831 = vsub.s32 4, %v6830
    %v6832 = vrot.slane %v6759, %v6831
    %v6833 = vlaneseq
    %v6834 = vshrl.u32 %v6833, 7
    %v6835 = vsub.s32 6, %v6834
    %v6836 = vrot.slane %v6759, %v6835
    %v6837 = vlaneseq
    %v6838 = vshrl.u32 %v6837, 7
    %v6839 = vsub.s32 0, %v6838
    %v6840 = vrot.slane %v6760, %v6839
    %v6841 = vlaneseq
    %v6842 = vshrl.u32 %v6841, 7
    %v6843 = vsub.s32 2, %v6842
    %v6844 = vrot.slane %v6760, %v6843
    %v6845 = vlaneseq
    %v6846 = vshrl.u32 %v6845, 7
    %v6847 = vsub.s32 4, %v6846
    %v6848 = vrot.slane %v6760, %v6847
    %v6849 = vlaneseq
    %v6850 = vshrl.u32 %v6849, 7
    %v6851 = vsub.s32 6, %v6850
    %v6852 = vrot.slane %v6760, %v6851
    %v6853 = vlaneseq
    %v6854 = vshrl.u32 %v6853, 7
    %v6855 = vsub.s32 0, %v6854
    %v6856 = vrot.slane %v6761, %v6855
    %v6857 = vlaneseq
    %v6858 = vshrl.u32 %v6857, 7
    %v6859 = vsub.s32 2, %v6858
    %v6860 = vrot.slane %v6761, %v6859
    %v6861 = vlaneseq
    %v6862 = vshrl.u32 %v6861, 7
    %v6863 = vsub.s32 4, %v6862
    %v6864 = vrot.slane %v6761, %v6863
    %v6865 = vlaneseq
    %v6866 = vshrl.u32 %v6865, 7
    %v6867 = vsub.s32 6, %v6866
    %v6868 = vrot.slane %v6761, %v6867
    %v6869 = vlaneseq
    %v6870 = vshrl.u32 %v6869, 7
    %v6871 = vsub.s32 0, %v6870
    %v6872 = vrot.slane %v6762, %v6871
    %v6873 = vlaneseq
    %v6874 = vshrl.u32 %v6873, 7
    %v6875 = vsub.s32 2, %v6874
    %v6876 = vrot.slane %v6762, %v6875
    %v6877 = vlaneseq
    %v6878 = vshrl.u32 %v6877, 7
    %v6879 = vsub.s32 4, %v6878
    %v6880 = vrot.slane %v6762, %v6879
    %v6881 = vlaneseq
    %v6882 = vshrl.u32 %v6881, 7
    %v6883 = vsub.s32 6, %v6882
    %v6884 = vrot.slane %v6762, %v6883
    %v6885 = vlaneseq
    %v6886 = vshrl.u32 %v6885, 7
    %v6887 = vsub.s32 0, %v6886
    %v6888 = vrot.slane %v6763, %v6887
    %v6889 = vlaneseq
    %v6890 = vshrl.u32 %v6889, 7
    %v6891 = vsub.s32 2, %v6890
    %v6892 = vrot.slane %v6763, %v6891
    %v6893 = vlaneseq
    %v6894 = vshrl.u32 %v6893, 7
    %v6895 = vsub.s32 4, %v6894
    %v6896 = vrot.slane %v6763, %v6895
    %v6897 = vlaneseq
    %v6898 = vshrl.u32 %v6897, 7
    %v6899 = vsub.s32 6, %v6898
    %v6900 = vrot.slane %v6763, %v6899
    %v6901 = vlaneseq
    %v6902 = vshrl.u32 %v6901, 7
    %v6903 = vsub.s32 0, %v6902
    %v6904 = vrot.slane %v6764, %v6903
    %v6905 = vlaneseq
    %v6906 = vshrl.u32 %v6905, 7
    %v6907 = vsub.s32 2, %v6906
    %v6908 = vrot.slane %v6764, %v6907
    %v6909 = vlaneseq
    %v6910 = vshrl.u32 %v6909, 7
    %v6911 = vsub.s32 4, %v6910
    %v6912 = vrot.slane %v6764, %v6911
    %v6913 = vlaneseq
    %v6914 = vshrl.u32 %v6913, 7
    %v6915 = vsub.s32 6, %v6914
    %v6916 = vrot.slane %v6764, %v6915
    %v6917 = vlaneseq
    %v6918 = vshrl.u32 %v6917, 7
    %v6919 = vsub.s32 0, %v6918
    %v6920 = vrot.slane %v6765, %v6919
    %v6921 = vlaneseq
    %v6922 = vshrl.u32 %v6921, 7
    %v6923 = vsub.s32 2, %v6922
    %v6924 = vrot.slane %v6765, %v6923
    %v6925 = vlaneseq
    %v6926 = vshrl.u32 %v6925, 7
    %v6927 = vsub.s32 4, %v6926
    %v6928 = vrot.slane %v6765, %v6927
    %v6929 = vlaneseq
    %v6930 = vshrl.u32 %v6929, 7
    %v6931 = vsub.s32 6, %v6930
    %v6932 = vrot.slane %v6765, %v6931
    %v6933 = vlaneseq
    %v6934 = vshrl.u32 %v6933, 7
    %v6935 = vsub.s32 0, %v6934
    %v6936 = vrot.slane %v6766, %v6935
    %v6937 = vlaneseq
    %v6938 = vshrl.u32 %v6937, 7
    %v6939 = vsub.s32 2, %v6938
    %v6940 = vrot.slane %v6766, %v6939
    %v6941 = vlaneseq
    %v6942 = vshrl.u32 %v6941, 7
    %v6943 = vsub.s32 4, %v6942
    %v6944 = vrot.slane %v6766, %v6943
    %v6945 = vlaneseq
    %v6946 = vshrl.u32 %v6945, 7
    %v6947 = vsub.s32 6, %v6946
    %v6948 = vrot.slane %v6766, %v6947
    %v6949 = vlaneseq
    %v6950 = vshrl.u32 %v6949, 7
    %v6951 = vsub.s32 0, %v6950
    %v6952 = vrot.slane %v6767, %v6951
    %v6953 = vlaneseq
    %v6954 = vshrl.u32 %v6953, 7
    %v6955 = vsub.s32 2, %v6954
    %v6956 = vrot.slane %v6767, %v6955
    %v6957 = vlaneseq
    %v6958 = vshrl.u32 %v6957, 7
    %v6959 = vsub.s32 4, %v6958
    %v6960 = vrot.slane %v6767, %v6959
    %v6961 = vlaneseq
    %v6962 = vshrl.u32 %v6961, 7
    %v6963 = vsub.s32 6, %v6962
    %v6964 = vrot.slane %v6767, %v6963
    %v6965 = vlaneseq
    %v6966 = vshrl.u32 %v6965, 7
    %v6967 = vsub.s32 0, %v6966
    %v6968 = vrot.slane %v6768, %v6967
    %v6969 = vlaneseq
    %v6970 = vshrl.u32 %v6969, 7
    %v6971 = vsub.s32 2, %v6970
    %v6972 = vrot.slane %v6768, %v6971
    %v6973 = vlaneseq
    %v6974 = vshrl.u32 %v6973, 7
    %v6975 = vsub.s32 4, %v6974
    %v6976 = vrot.slane %v6768, %v6975
    %v6977 = vlaneseq
    %v6978 = vshrl.u32 %v6977, 7
    %v6979 = vsub.s32 6, %v6978
    %v6980 = vrot.slane %v6768, %v6979
    %v6981 = vlaneseq
    %v6982 = vshrl.u32 %v6981, 7
    %v6983 = vsub.s32 0, %v6982
    %v6984 = vrot.slane %v6769, %v6983
    %v6985 = vlaneseq
    %v6986 = vshrl.u32 %v6985, 7
    %v6987 = vsub.s32 2, %v6986
    %v6988 = vrot.slane %v6769, %v6987
    %v6989 = vlaneseq
    %v6990 = vshrl.u32 %v6989, 7
    %v6991 = vsub.s32 4, %v6990
    %v6992 = vrot.slane %v6769, %v6991
    %v6993 = vlaneseq
    %v6994 = vshrl.u32 %v6993, 7
    %v6995 = vsub.s32 6, %v6994
    %v6996 = vrot.slane %v6769, %v6995
    %v6997 = vlaneseq
    %v6998 = vshrl.u32 %v6997, 7
    %v6999 = vsub.s32 0, %v6998
    %v7000 = vrot.slane %v6770, %v6999
    %v7001 = vlaneseq
    %v7002 = vshrl.u32 %v7001, 7
    %v7003 = vsub.s32 2, %v7002
    %v7004 = vrot.slane %v6770, %v7003
    %v7005 = vlaneseq
    %v7006 = vshrl.u32 %v7005, 7
    %v7007 = vsub.s32 4, %v7006
    %v7008 = vrot.slane %v6770, %v7007
    %v7009 = vlaneseq
    %v7010 = vshrl.u32 %v7009, 7
    %v7011 = vsub.s32 6, %v7010
    %v7012 = vrot.slane %v6770, %v7011
    %v7013 = vlaneseq
    %v7014 = vshrl.u32 %v7013, 7
    %v7015 = vsub.s32 0, %v7014
    %v7016 = vrot.slane %v6771, %v7015
    %v7017 = vlaneseq
    %v7018 = vshrl.u32 %v7017, 7
    %v7019 = vsub.s32 2, %v7018
    %v7020 = vrot.slane %v6771, %v7019
    %v7021 = vlaneseq
    %v7022 = vshrl.u32 %v7021, 7
    %v7023 = vsub.s32 4, %v7022
    %v7024 = vrot.slane %v6771, %v7023
    %v7025 = vlaneseq
    %v7026 = vshrl.u32 %v7025, 7
    %v7027 = vsub.s32 6, %v7026
    %v7028 = vrot.slane %v6771, %v7027
    %v7029 = vlaneseq
    %v7030 = vshrl.u32 %v7029, 7
    %v7031 = vsub.s32 0, %v7030
    %v7032 = vrot.slane %v6772, %v7031
    %v7033 = vlaneseq
    %v7034 = vshrl.u32 %v7033, 7
    %v7035 = vsub.s32 2, %v7034
    %v7036 = vrot.slane %v6772, %v7035
    %v7037 = vlaneseq
    %v7038 = vshrl.u32 %v7037, 7
    %v7039 = vsub.s32 4, %v7038
    %v7040 = vrot.slane %v6772, %v7039
    %v7041 = vlaneseq
    %v7042 = vshrl.u32 %v7041, 7
    %v7043 = vsub.s32 6, %v7042
    %v7044 = vrot.slane %v6772, %v7043
    %v7109 = vpack.c.bf16 %v6792, %v6792
    %v7110 = vpack.c.bf16 %v6796, %v6796
    %v7111 = vpack.c.bf16 %v6800, %v6800
    %v7112 = vpack.c.bf16 %v6804, %v6804
    %v7113 = vpack.c.bf16 %v6808, %v6808
    %v7114 = vpack.c.bf16 %v6812, %v6812
    %v7115 = vpack.c.bf16 %v6816, %v6816
    %v7116 = vpack.c.bf16 %v6820, %v6820
    %v7117 = vpack.c.bf16 %v6824, %v6824
    %v7118 = vpack.c.bf16 %v6828, %v6828
    %v7119 = vpack.c.bf16 %v6832, %v6832
    %v7120 = vpack.c.bf16 %v6836, %v6836
    %v7121 = vpack.c.bf16 %v6840, %v6840
    %v7122 = vpack.c.bf16 %v6844, %v6844
    %v7123 = vpack.c.bf16 %v6848, %v6848
    %v7124 = vpack.c.bf16 %v6852, %v6852
    %v7125 = vpack.c.bf16 %v6856, %v6856
    %v7126 = vpack.c.bf16 %v6860, %v6860
    %v7127 = vpack.c.bf16 %v6864, %v6864
    %v7128 = vpack.c.bf16 %v6868, %v6868
    %v7129 = vpack.c.bf16 %v6872, %v6872
    %v7130 = vpack.c.bf16 %v6876, %v6876
    %v7131 = vpack.c.bf16 %v6880, %v6880
    %v7132 = vpack.c.bf16 %v6884, %v6884
    %v7133 = vpack.c.bf16 %v6888, %v6888
    %v7134 = vpack.c.bf16 %v6892, %v6892
    %v7135 = vpack.c.bf16 %v6896, %v6896
    %v7136 = vpack.c.bf16 %v6900, %v6900
    %v7137 = vpack.c.bf16 %v6904, %v6904
    %v7138 = vpack.c.bf16 %v6908, %v6908
    %v7139 = vpack.c.bf16 %v6912, %v6912
    %v7140 = vpack.c.bf16 %v6916, %v6916
    %v7141 = vpack.c.bf16 %v6920, %v6920
    %v7142 = vpack.c.bf16 %v6924, %v6924
    %v7143 = vpack.c.bf16 %v6928, %v6928
    %v7144 = vpack.c.bf16 %v6932, %v6932
    %v7145 = vpack.c.bf16 %v6936, %v6936
    %v7146 = vpack.c.bf16 %v6940, %v6940
    %v7147 = vpack.c.bf16 %v6944, %v6944
    %v7148 = vpack.c.bf16 %v6948, %v6948
    %v7149 = vpack.c.bf16 %v6952, %v6952
    %v7150 = vpack.c.bf16 %v6956, %v6956
    %v7151 = vpack.c.bf16 %v6960, %v6960
    %v7152 = vpack.c.bf16 %v6964, %v6964
    %v7153 = vpack.c.bf16 %v6968, %v6968
    %v7154 = vpack.c.bf16 %v6972, %v6972
    %v7155 = vpack.c.bf16 %v6976, %v6976
    %v7156 = vpack.c.bf16 %v6980, %v6980
    %v7157 = vpack.c.bf16 %v6984, %v6984
    %v7158 = vpack.c.bf16 %v6988, %v6988
    %v7159 = vpack.c.bf16 %v6992, %v6992
    %v7160 = vpack.c.bf16 %v6996, %v6996
    %v7161 = vpack.c.bf16 %v7000, %v7000
    %v7162 = vpack.c.bf16 %v7004, %v7004
    %v7163 = vpack.c.bf16 %v7008, %v7008
    %v7164 = vpack.c.bf16 %v7012, %v7012
    %v7165 = vpack.c.bf16 %v7016, %v7016
    %v7166 = vpack.c.bf16 %v7020, %v7020
    %v7167 = vpack.c.bf16 %v7024, %v7024
    %v7168 = vpack.c.bf16 %v7028, %v7028
    %v7169 = vpack.c.bf16 %v7032, %v7032
    %v7170 = vpack.c.bf16 %v7036, %v7036
    %v7171 = vpack.c.bf16 %v7040, %v7040
    %v7172 = vpack.c.bf16 %v7044, %v7044
    %v7173 = vld [vmem:[#allocation13] sm:$0xff]
    %v7174 = vld [vmem:[#allocation13 + $0x8] sm:$0xf]
    %v7175 = vld [vmem:[#allocation13 + $0xc] sm:$0xff]
    %v7176 = vld [vmem:[#allocation13 + $0x14] sm:$0xf]
    %v7177 = vld [vmem:[#allocation13 + $0x18] sm:$0xff]
    %v7178 = vld [vmem:[#allocation13 + $0x20] sm:$0xf]
    %v7179 = vld [vmem:[#allocation13 + $0x24] sm:$0xff]
    %v7180 = vld [vmem:[#allocation13 + $0x2c] sm:$0xf]
    %v7181 = vld [vmem:[#allocation13 + $0x30] sm:$0xff]
    %v7182 = vld [vmem:[#allocation13 + $0x38] sm:$0xf]
    %v7183 = vld [vmem:[#allocation13 + $0x3c] sm:$0xff]
    %v7184 = vld [vmem:[#allocation13 + $0x44] sm:$0xf]
    %v7185 = vld [vmem:[#allocation13 + $0x48] sm:$0xff]
    %v7186 = vld [vmem:[#allocation13 + $0x50] sm:$0xf]
    %v7187 = vld [vmem:[#allocation13 + $0x54] sm:$0xff]
    %v7188 = vld [vmem:[#allocation13 + $0x5c] sm:$0xf]
    %v7189 = vld [vmem:[#allocation13 + $0x60] sm:$0xff]
    %v7190 = vld [vmem:[#allocation13 + $0x68] sm:$0xf]
    %v7191 = vld [vmem:[#allocation13 + $0x6c] sm:$0xff]
    %v7192 = vld [vmem:[#allocation13 + $0x74] sm:$0xf]
    %v7193 = vld [vmem:[#allocation13 + $0x78] sm:$0xff]
    %v7194 = vld [vmem:[#allocation13 + $0x80] sm:$0xf]
    %v7195 = vld [vmem:[#allocation13 + $0x84] sm:$0xff]
    %v7196 = vld [vmem:[#allocation13 + $0x8c] sm:$0xf]
    %v7197 = vld [vmem:[#allocation13 + $0x90] sm:$0xff]
    %v7198 = vld [vmem:[#allocation13 + $0x98] sm:$0xf]
    %v7199 = vld [vmem:[#allocation13 + $0x9c] sm:$0xff]
    %v7200 = vld [vmem:[#allocation13 + $0xa4] sm:$0xf]
    %v7201 = vld [vmem:[#allocation13 + $0xa8] sm:$0xff]
    %v7202 = vld [vmem:[#allocation13 + $0xb0] sm:$0xf]
    %v7203 = vld [vmem:[#allocation13 + $0xb4] sm:$0xff]
    %v7204 = vld [vmem:[#allocation13 + $0xbc] sm:$0xf]
    %v7205 = vld [vmem:[#allocation13 + $0xc0] sm:$0xff]
    %v7206 = vld [vmem:[#allocation13 + $0xc8] sm:$0xf]
    %v7207 = vld [vmem:[#allocation13 + $0xcc] sm:$0xff]
    %v7208 = vld [vmem:[#allocation13 + $0xd4] sm:$0xf]
    %v7209 = vld [vmem:[#allocation13 + $0xd8] sm:$0xff]
    %v7210 = vld [vmem:[#allocation13 + $0xe0] sm:$0xf]
    %v7211 = vld [vmem:[#allocation13 + $0xe4] sm:$0xff]
    %v7212 = vld [vmem:[#allocation13 + $0xec] sm:$0xf]
    %v7213 = vld [vmem:[#allocation13 + $0xf0] sm:$0xff]
    %v7214 = vld [vmem:[#allocation13 + $0xf8] sm:$0xf]
    %v7215 = vld [vmem:[#allocation13 + $0xfc] sm:$0xff]
    %v7216 = vld [vmem:[#allocation13 + $0x104] sm:$0xf]
    %v7217 = vld [vmem:[#allocation13 + $0x108] sm:$0xff]
    %v7218 = vld [vmem:[#allocation13 + $0x110] sm:$0xf]
    %v7219 = vld [vmem:[#allocation13 + $0x114] sm:$0xff]
    %v7220 = vld [vmem:[#allocation13 + $0x11c] sm:$0xf]
    %v7221 = vld [vmem:[#allocation13 + $0x120] sm:$0xff]
    %v7222 = vld [vmem:[#allocation13 + $0x128] sm:$0xf]
    %v7223 = vld [vmem:[#allocation13 + $0x12c] sm:$0xff]
    %v7224 = vld [vmem:[#allocation13 + $0x134] sm:$0xf]
    %v7225 = vld [vmem:[#allocation13 + $0x138] sm:$0xff]
    %v7226 = vld [vmem:[#allocation13 + $0x140] sm:$0xf]
    %v7227 = vld [vmem:[#allocation13 + $0x144] sm:$0xff]
    %v7228 = vld [vmem:[#allocation13 + $0x14c] sm:$0xf]
    %v7229 = vld [vmem:[#allocation13 + $0x150] sm:$0xff]
    %v7230 = vld [vmem:[#allocation13 + $0x158] sm:$0xf]
    %v7231 = vld [vmem:[#allocation13 + $0x15c] sm:$0xff]
    %v7232 = vld [vmem:[#allocation13 + $0x164] sm:$0xf]
    %v7233 = vld [vmem:[#allocation13 + $0x168] sm:$0xff]
    %v7234 = vld [vmem:[#allocation13 + $0x170] sm:$0xf]
    %v7235 = vld [vmem:[#allocation13 + $0x174] sm:$0xff]
    %v7236 = vld [vmem:[#allocation13 + $0x17c] sm:$0xf]
    %v7237 = vld [vmem:[#allocation13 + $0x180] sm:$0xff]
    %v7238 = vld [vmem:[#allocation13 + $0x188] sm:$0xf]
    %v7239 = vld [vmem:[#allocation13 + $0x18c] sm:$0xff]
    %v7240 = vld [vmem:[#allocation13 + $0x194] sm:$0xf]
    %v7241 = vld [vmem:[#allocation13 + $0x198] sm:$0xff]
    %v7242 = vld [vmem:[#allocation13 + $0x1a0] sm:$0xf]
    %v7243 = vld [vmem:[#allocation13 + $0x1a4] sm:$0xff]
    %v7244 = vld [vmem:[#allocation13 + $0x1ac] sm:$0xf]
    %v7245 = vld [vmem:[#allocation13 + $0x1b0] sm:$0xff]
    %v7246 = vld [vmem:[#allocation13 + $0x1b8] sm:$0xf]
    %v7247 = vld [vmem:[#allocation13 + $0x1bc] sm:$0xff]
    %v7248 = vld [vmem:[#allocation13 + $0x1c4] sm:$0xf]
    %v7249 = vld [vmem:[#allocation13 + $0x1c8] sm:$0xff]
    %v7250 = vld [vmem:[#allocation13 + $0x1d0] sm:$0xf]
    %v7251 = vld [vmem:[#allocation13 + $0x1d4] sm:$0xff]
    %v7252 = vld [vmem:[#allocation13 + $0x1dc] sm:$0xf]
    %v7253 = vld [vmem:[#allocation13 + $0x1e0] sm:$0xff]
    %v7254 = vld [vmem:[#allocation13 + $0x1e8] sm:$0xf]
    %v7255 = vld [vmem:[#allocation13 + $0x1ec] sm:$0xff]
    %v7256 = vld [vmem:[#allocation13 + $0x1f4] sm:$0xf]
    %v7257 = vld [vmem:[#allocation13 + $0x1f8] sm:$0xff]
    %v7258 = vld [vmem:[#allocation13 + $0x200] sm:$0xf]
    %v7259 = vld [vmem:[#allocation13 + $0x204] sm:$0xff]
    %v7260 = vld [vmem:[#allocation13 + $0x20c] sm:$0xf]
    %v7261 = vld [vmem:[#allocation13 + $0x210] sm:$0xff]
    %v7262 = vld [vmem:[#allocation13 + $0x218] sm:$0xf]
    %v7263 = vld [vmem:[#allocation13 + $0x21c] sm:$0xff]
    %v7264 = vld [vmem:[#allocation13 + $0x224] sm:$0xf]
    %v7265 = vld [vmem:[#allocation13 + $0x228] sm:$0xff]
    %v7266 = vld [vmem:[#allocation13 + $0x230] sm:$0xf]
    %v7267 = vld [vmem:[#allocation13 + $0x234] sm:$0xff]
    %v7268 = vld [vmem:[#allocation13 + $0x23c] sm:$0xf]
    %v7269 = vld [vmem:[#allocation13 + $0x240] sm:$0xff]
    %v7270 = vld [vmem:[#allocation13 + $0x248] sm:$0xf]
    %v7271 = vld [vmem:[#allocation13 + $0x24c] sm:$0xff]
    %v7272 = vld [vmem:[#allocation13 + $0x254] sm:$0xf]
    %v7273 = vld [vmem:[#allocation13 + $0x258] sm:$0xff]
    %v7274 = vld [vmem:[#allocation13 + $0x260] sm:$0xf]
    %v7275 = vld [vmem:[#allocation13 + $0x264] sm:$0xff]
    %v7276 = vld [vmem:[#allocation13 + $0x26c] sm:$0xf]
    %v7277 = vld [vmem:[#allocation13 + $0x270] sm:$0xff]
    %v7278 = vld [vmem:[#allocation13 + $0x278] sm:$0xf]
    %v7279 = vld [vmem:[#allocation13 + $0x27c] sm:$0xff]
    %v7280 = vld [vmem:[#allocation13 + $0x284] sm:$0xf]
    %v7281 = vld [vmem:[#allocation13 + $0x288] sm:$0xff]
    %v7282 = vld [vmem:[#allocation13 + $0x290] sm:$0xf]
    %v7283 = vld [vmem:[#allocation13 + $0x294] sm:$0xff]
    %v7284 = vld [vmem:[#allocation13 + $0x29c] sm:$0xf]
    %v7285 = vld [vmem:[#allocation13 + $0x2a0] sm:$0xff]
    %v7286 = vld [vmem:[#allocation13 + $0x2a8] sm:$0xf]
    %v7287 = vld [vmem:[#allocation13 + $0x2ac] sm:$0xff]
    %v7288 = vld [vmem:[#allocation13 + $0x2b4] sm:$0xf]
    %v7289 = vld [vmem:[#allocation13 + $0x2b8] sm:$0xff]
    %v7290 = vld [vmem:[#allocation13 + $0x2c0] sm:$0xf]
    %v7291 = vld [vmem:[#allocation13 + $0x2c4] sm:$0xff]
    %v7292 = vld [vmem:[#allocation13 + $0x2cc] sm:$0xf]
    %v7293 = vld [vmem:[#allocation13 + $0x2d0] sm:$0xff]
    %v7294 = vld [vmem:[#allocation13 + $0x2d8] sm:$0xf]
    %v7295 = vld [vmem:[#allocation13 + $0x2dc] sm:$0xff]
    %v7296 = vld [vmem:[#allocation13 + $0x2e4] sm:$0xf]
    %v7297 = vld [vmem:[#allocation13 + $0x2e8] sm:$0xff]
    %v7298 = vld [vmem:[#allocation13 + $0x2f0] sm:$0xf]
    %v7299 = vld [vmem:[#allocation13 + $0x2f4] sm:$0xff]
    %v7300 = vld [vmem:[#allocation13 + $0x2fc] sm:$0xf]
    %v7365 = vunpack.c.l.b16 %v7109
    %v7366 = vunpack.c.l.b16 %v7110
    %v7367 = vunpack.c.l.b16 %v7111
    %v7368 = vunpack.c.l.b16 %v7112
    %v7369 = vunpack.c.l.b16 %v7113
    %v7370 = vunpack.c.l.b16 %v7114
    %v7371 = vunpack.c.l.b16 %v7115
    %v7372 = vunpack.c.l.b16 %v7116
    %v7373 = vunpack.c.l.b16 %v7117
    %v7374 = vunpack.c.l.b16 %v7118
    %v7375 = vunpack.c.l.b16 %v7119
    %v7376 = vunpack.c.l.b16 %v7120
    %v7377 = vunpack.c.l.b16 %v7121
    %v7378 = vunpack.c.l.b16 %v7122
    %v7379 = vunpack.c.l.b16 %v7123
    %v7380 = vunpack.c.l.b16 %v7124
    %v7381 = vunpack.c.l.b16 %v7125
    %v7382 = vunpack.c.l.b16 %v7126
    %v7383 = vunpack.c.l.b16 %v7127
    %v7384 = vunpack.c.l.b16 %v7128
    %v7385 = vunpack.c.l.b16 %v7129
    %v7386 = vunpack.c.l.b16 %v7130
    %v7387 = vunpack.c.l.b16 %v7131
    %v7388 = vunpack.c.l.b16 %v7132
    %v7389 = vunpack.c.l.b16 %v7133
    %v7390 = vunpack.c.l.b16 %v7134
    %v7391 = vunpack.c.l.b16 %v7135
    %v7392 = vunpack.c.l.b16 %v7136
    %v7393 = vunpack.c.l.b16 %v7137
    %v7394 = vunpack.c.l.b16 %v7138
    %v7395 = vunpack.c.l.b16 %v7139
    %v7396 = vunpack.c.l.b16 %v7140
    %v7397 = vunpack.c.l.b16 %v7141
    %v7398 = vunpack.c.l.b16 %v7142
    %v7399 = vunpack.c.l.b16 %v7143
    %v7400 = vunpack.c.l.b16 %v7144
    %v7401 = vunpack.c.l.b16 %v7145
    %v7402 = vunpack.c.l.b16 %v7146
    %v7403 = vunpack.c.l.b16 %v7147
    %v7404 = vunpack.c.l.b16 %v7148
    %v7405 = vunpack.c.l.b16 %v7149
    %v7406 = vunpack.c.l.b16 %v7150
    %v7407 = vunpack.c.l.b16 %v7151
    %v7408 = vunpack.c.l.b16 %v7152
    %v7409 = vunpack.c.l.b16 %v7153
    %v7410 = vunpack.c.l.b16 %v7154
    %v7411 = vunpack.c.l.b16 %v7155
    %v7412 = vunpack.c.l.b16 %v7156
    %v7413 = vunpack.c.l.b16 %v7157
    %v7414 = vunpack.c.l.b16 %v7158
    %v7415 = vunpack.c.l.b16 %v7159
    %v7416 = vunpack.c.l.b16 %v7160
    %v7417 = vunpack.c.l.b16 %v7161
    %v7418 = vunpack.c.l.b16 %v7162
    %v7419 = vunpack.c.l.b16 %v7163
    %v7420 = vunpack.c.l.b16 %v7164
    %v7421 = vunpack.c.l.b16 %v7165
    %v7422 = vunpack.c.l.b16 %v7166
    %v7423 = vunpack.c.l.b16 %v7167
    %v7424 = vunpack.c.l.b16 %v7168
    %v7425 = vunpack.c.l.b16 %v7169
    %v7426 = vunpack.c.l.b16 %v7170
    %v7427 = vunpack.c.l.b16 %v7171
    %v7428 = vunpack.c.l.b16 %v7172
    %v7429 = vrot.slane %v7369, 7
    %v7430 = vsel %vm2910, %v7429, %v7365
    %v7431 = vrot.slane %v7373, 6
    %v7432 = vsel %vm2913, %v7431, %v7430
    %v7433 = vrot.slane %v7377, 5
    %v7434 = vsel %vm2916, %v7433, %v7432
    %v7435 = vrot.slane %v7381, 4
    %v7436 = vsel %vm2919, %v7435, %v7434
    %v7437 = vrot.slane %v7385, 3
    %v7438 = vsel %vm2922, %v7437, %v7436
    %v7439 = vrot.slane %v7389, 2
    %v7440 = vsel %vm2925, %v7439, %v7438
    %v7441 = vrot.slane %v7393, 1
    %v7442 = vsel %vm2928, %v7441, %v7440
    %v7443 = vrot.slane %v7370, 7
    %v7444 = vsel %vm2910, %v7443, %v7366
    %v7445 = vrot.slane %v7374, 6
    %v7446 = vsel %vm2913, %v7445, %v7444
    %v7447 = vrot.slane %v7378, 5
    %v7448 = vsel %vm2916, %v7447, %v7446
    %v7449 = vrot.slane %v7382, 4
    %v7450 = vsel %vm2919, %v7449, %v7448
    %v7451 = vrot.slane %v7386, 3
    %v7452 = vsel %vm2922, %v7451, %v7450
    %v7453 = vrot.slane %v7390, 2
    %v7454 = vsel %vm2925, %v7453, %v7452
    %v7455 = vrot.slane %v7394, 1
    %v7456 = vsel %vm2928, %v7455, %v7454
    %v7457 = vrot.slane %v7371, 7
    %v7458 = vsel %vm2910, %v7457, %v7367
    %v7459 = vrot.slane %v7375, 6
    %v7460 = vsel %vm2913, %v7459, %v7458
    %v7461 = vrot.slane %v7379, 5
    %v7462 = vsel %vm2916, %v7461, %v7460
    %v7463 = vrot.slane %v7383, 4
    %v7464 = vsel %vm2919, %v7463, %v7462
    %v7465 = vrot.slane %v7387, 3
    %v7466 = vsel %vm2922, %v7465, %v7464
    %v7467 = vrot.slane %v7391, 2
    %v7468 = vsel %vm2925, %v7467, %v7466
    %v7469 = vrot.slane %v7395, 1
    %v7470 = vsel %vm2928, %v7469, %v7468
    %v7471 = vrot.slane %v7372, 7
    %v7472 = vsel %vm2910, %v7471, %v7368
    %v7473 = vrot.slane %v7376, 6
    %v7474 = vsel %vm2913, %v7473, %v7472
    %v7475 = vrot.slane %v7380, 5
    %v7476 = vsel %vm2916, %v7475, %v7474
    %v7477 = vrot.slane %v7384, 4
    %v7478 = vsel %vm2919, %v7477, %v7476
    %v7479 = vrot.slane %v7388, 3
    %v7480 = vsel %vm2922, %v7479, %v7478
    %v7481 = vrot.slane %v7392, 2
    %v7482 = vsel %vm2925, %v7481, %v7480
    %v7483 = vrot.slane %v7396, 1
    %v7484 = vsel %vm2928, %v7483, %v7482
    %v7485 = vrot.slane %v7401, 7
    %v7486 = vsel %vm2910, %v7485, %v7397
    %v7487 = vrot.slane %v7405, 6
    %v7488 = vsel %vm2913, %v7487, %v7486
    %v7489 = vrot.slane %v7409, 5
    %v7490 = vsel %vm2916, %v7489, %v7488
    %v7491 = vrot.slane %v7413, 4
    %v7492 = vsel %vm2919, %v7491, %v7490
    %v7493 = vrot.slane %v7417, 3
    %v7494 = vsel %vm2922, %v7493, %v7492
    %v7495 = vrot.slane %v7421, 2
    %v7496 = vsel %vm2925, %v7495, %v7494
    %v7497 = vrot.slane %v7425, 1
    %v7498 = vsel %vm2928, %v7497, %v7496
    %v7499 = vrot.slane %v7402, 7
    %v7500 = vsel %vm2910, %v7499, %v7398
    %v7501 = vrot.slane %v7406, 6
    %v7502 = vsel %vm2913, %v7501, %v7500
    %v7503 = vrot.slane %v7410, 5
    %v7504 = vsel %vm2916, %v7503, %v7502
    %v7505 = vrot.slane %v7414, 4
    %v7506 = vsel %vm2919, %v7505, %v7504
    %v7507 = vrot.slane %v7418, 3
    %v7508 = vsel %vm2922, %v7507, %v7506
    %v7509 = vrot.slane %v7422, 2
    %v7510 = vsel %vm2925, %v7509, %v7508
    %v7511 = vrot.slane %v7426, 1
    %v7512 = vsel %vm2928, %v7511, %v7510
    %v7513 = vrot.slane %v7403, 7
    %v7514 = vsel %vm2910, %v7513, %v7399
    %v7515 = vrot.slane %v7407, 6
    %v7516 = vsel %vm2913, %v7515, %v7514
    %v7517 = vrot.slane %v7411, 5
    %v7518 = vsel %vm2916, %v7517, %v7516
    %v7519 = vrot.slane %v7415, 4
    %v7520 = vsel %vm2919, %v7519, %v7518
    %v7521 = vrot.slane %v7419, 3
    %v7522 = vsel %vm2922, %v7521, %v7520
    %v7523 = vrot.slane %v7423, 2
    %v7524 = vsel %vm2925, %v7523, %v7522
    %v7525 = vrot.slane %v7427, 1
    %v7526 = vsel %vm2928, %v7525, %v7524
    %v7527 = vrot.slane %v7404, 7
    %v7528 = vsel %vm2910, %v7527, %v7400
    %v7529 = vrot.slane %v7408, 6
    %v7530 = vsel %vm2913, %v7529, %v7528
    %v7531 = vrot.slane %v7412, 5
    %v7532 = vsel %vm2916, %v7531, %v7530
    %v7533 = vrot.slane %v7416, 4
    %v7534 = vsel %vm2919, %v7533, %v7532
    %v7535 = vrot.slane %v7420, 3
    %v7536 = vsel %vm2922, %v7535, %v7534
    %v7537 = vrot.slane %v7424, 2
    %v7538 = vsel %vm2925, %v7537, %v7536
    %v7539 = vrot.slane %v7428, 1
    %v7540 = vsel %vm2928, %v7539, %v7538
    %v7541 = vpack.c.b16 %v7498, %v7442
    %v7542 = vpack.c.b16 %v7512, %v7456
    %v7543 = vpack.c.b16 %v7526, %v7470
    %v7544 = vpack.c.b16 %v7540, %v7484
    %v7677 = vunpack.c.l.b16 %v7173
    %v7678 = vunpack.c.h.b16 %v7173
    %v7679 = vunpack.c.l.b16 %v7174
    %v7680 = vunpack.c.l.b16 %v7175
    %v7681 = vunpack.c.h.b16 %v7175
    %v7682 = vunpack.c.l.b16 %v7176
    %v7683 = vunpack.c.l.b16 %v7177
    %v7684 = vunpack.c.h.b16 %v7177
    %v7685 = vunpack.c.l.b16 %v7178
    %v7686 = vunpack.c.l.b16 %v7179
    %v7687 = vunpack.c.h.b16 %v7179
    %v7688 = vunpack.c.l.b16 %v7180
    %v7689 = vunpack.c.l.b16 %v7181
    %v7690 = vunpack.c.h.b16 %v7181
    %v7691 = vunpack.c.l.b16 %v7182
    %v7692 = vunpack.c.l.b16 %v7183
    %v7693 = vunpack.c.h.b16 %v7183
    %v7694 = vunpack.c.l.b16 %v7184
    %v7695 = vunpack.c.l.b16 %v7185
    %v7696 = vunpack.c.h.b16 %v7185
    %v7697 = vunpack.c.l.b16 %v7186
    %v7698 = vunpack.c.l.b16 %v7187
    %v7699 = vunpack.c.h.b16 %v7187
    %v7700 = vunpack.c.l.b16 %v7188
    %v7701 = vunpack.c.l.b16 %v7189
    %v7702 = vunpack.c.h.b16 %v7189
    %v7703 = vunpack.c.l.b16 %v7190
    %v7704 = vunpack.c.l.b16 %v7191
    %v7705 = vunpack.c.h.b16 %v7191
    %v7706 = vunpack.c.l.b16 %v7192
    %v7707 = vunpack.c.l.b16 %v7193
    %v7708 = vunpack.c.h.b16 %v7193
    %v7709 = vunpack.c.l.b16 %v7194
    %v7710 = vunpack.c.l.b16 %v7195
    %v7711 = vunpack.c.h.b16 %v7195
    %v7712 = vunpack.c.l.b16 %v7196
    %v7713 = vunpack.c.l.b16 %v7197
    %v7714 = vunpack.c.h.b16 %v7197
    %v7715 = vunpack.c.l.b16 %v7198
    %v7716 = vunpack.c.l.b16 %v7199
    %v7717 = vunpack.c.h.b16 %v7199
    %v7718 = vunpack.c.l.b16 %v7200
    %v7719 = vunpack.c.l.b16 %v7201
    %v7720 = vunpack.c.h.b16 %v7201
    %v7721 = vunpack.c.l.b16 %v7202
    %v7722 = vunpack.c.l.b16 %v7203
    %v7723 = vunpack.c.h.b16 %v7203
    %v7724 = vunpack.c.l.b16 %v7204
    %v7725 = vunpack.c.l.b16 %v7205
    %v7726 = vunpack.c.h.b16 %v7205
    %v7727 = vunpack.c.l.b16 %v7206
    %v7728 = vunpack.c.l.b16 %v7207
    %v7729 = vunpack.c.h.b16 %v7207
    %v7730 = vunpack.c.l.b16 %v7208
    %v7731 = vunpack.c.l.b16 %v7209
    %v7732 = vunpack.c.h.b16 %v7209
    %v7733 = vunpack.c.l.b16 %v7210
    %v7734 = vunpack.c.l.b16 %v7211
    %v7735 = vunpack.c.h.b16 %v7211
    %v7736 = vunpack.c.l.b16 %v7212
    %v7737 = vunpack.c.l.b16 %v7213
    %v7738 = vunpack.c.h.b16 %v7213
    %v7739 = vunpack.c.l.b16 %v7214
    %v7740 = vunpack.c.l.b16 %v7215
    %v7741 = vunpack.c.h.b16 %v7215
    %v7742 = vunpack.c.l.b16 %v7216
    %v7743 = vunpack.c.l.b16 %v7217
    %v7744 = vunpack.c.h.b16 %v7217
    %v7745 = vunpack.c.l.b16 %v7218
    %v7746 = vunpack.c.l.b16 %v7219
    %v7747 = vunpack.c.h.b16 %v7219
    %v7748 = vunpack.c.l.b16 %v7220
    %v7749 = vunpack.c.l.b16 %v7221
    %v7750 = vunpack.c.h.b16 %v7221
    %v7751 = vunpack.c.l.b16 %v7222
    %v7752 = vunpack.c.l.b16 %v7223
    %v7753 = vunpack.c.h.b16 %v7223
    %v7754 = vunpack.c.l.b16 %v7224
    %v7755 = vunpack.c.l.b16 %v7225
    %v7756 = vunpack.c.h.b16 %v7225
    %v7757 = vunpack.c.l.b16 %v7226
    %v7758 = vunpack.c.l.b16 %v7227
    %v7759 = vunpack.c.h.b16 %v7227
    %v7760 = vunpack.c.l.b16 %v7228
    %v7761 = vunpack.c.l.b16 %v7229
    %v7762 = vunpack.c.h.b16 %v7229
    %v7763 = vunpack.c.l.b16 %v7230
    %v7764 = vunpack.c.l.b16 %v7231
    %v7765 = vunpack.c.h.b16 %v7231
    %v7766 = vunpack.c.l.b16 %v7232
    %v7767 = vunpack.c.l.b16 %v7233
    %v7768 = vunpack.c.h.b16 %v7233
    %v7769 = vunpack.c.l.b16 %v7234
    %v7770 = vunpack.c.l.b16 %v7235
    %v7771 = vunpack.c.h.b16 %v7235
    %v7772 = vunpack.c.l.b16 %v7236
    %v7773 = vunpack.c.l.b16 %v7237
    %v7774 = vunpack.c.h.b16 %v7237
    %v7775 = vunpack.c.l.b16 %v7238
    %v7776 = vunpack.c.l.b16 %v7239
    %v7777 = vunpack.c.h.b16 %v7239
    %v7778 = vunpack.c.l.b16 %v7240
    %v7779 = vunpack.c.l.b16 %v7241
    %v7780 = vunpack.c.h.b16 %v7241
    %v7781 = vunpack.c.l.b16 %v7242
    %v7782 = vunpack.c.l.b16 %v7243
    %v7783 = vunpack.c.h.b16 %v7243
    %v7784 = vunpack.c.l.b16 %v7244
    %v7785 = vunpack.c.l.b16 %v7245
    %v7786 = vunpack.c.h.b16 %v7245
    %v7787 = vunpack.c.l.b16 %v7246
    %v7788 = vunpack.c.l.b16 %v7247
    %v7789 = vunpack.c.h.b16 %v7247
    %v7790 = vunpack.c.l.b16 %v7248
    %v7791 = vunpack.c.l.b16 %v7249
    %v7792 = vunpack.c.h.b16 %v7249
    %v7793 = vunpack.c.l.b16 %v7250
    %v7794 = vunpack.c.l.b16 %v7251
    %v7795 = vunpack.c.h.b16 %v7251
    %v7796 = vunpack.c.l.b16 %v7252
    %v7797 = vunpack.c.l.b16 %v7253
    %v7798 = vunpack.c.h.b16 %v7253
    %v7799 = vunpack.c.l.b16 %v7254
    %v7800 = vunpack.c.l.b16 %v7255
    %v7801 = vunpack.c.h.b16 %v7255
    %v7802 = vunpack.c.l.b16 %v7256
    %v7803 = vunpack.c.l.b16 %v7257
    %v7804 = vunpack.c.h.b16 %v7257
    %v7805 = vunpack.c.l.b16 %v7258
    %v7806 = vunpack.c.l.b16 %v7259
    %v7807 = vunpack.c.h.b16 %v7259
    %v7808 = vunpack.c.l.b16 %v7260
    %v7809 = vunpack.c.l.b16 %v7261
    %v7810 = vunpack.c.h.b16 %v7261
    %v7811 = vunpack.c.l.b16 %v7262
    %v7812 = vunpack.c.l.b16 %v7263
    %v7813 = vunpack.c.h.b16 %v7263
    %v7814 = vunpack.c.l.b16 %v7264
    %v7815 = vunpack.c.l.b16 %v7265
    %v7816 = vunpack.c.h.b16 %v7265
    %v7817 = vunpack.c.l.b16 %v7266
    %v7818 = vunpack.c.l.b16 %v7267
    %v7819 = vunpack.c.h.b16 %v7267
    %v7820 = vunpack.c.l.b16 %v7268
    %v7821 = vunpack.c.l.b16 %v7269
    %v7822 = vunpack.c.h.b16 %v7269
    %v7823 = vunpack.c.l.b16 %v7270
    %v7824 = vunpack.c.l.b16 %v7271
    %v7825 = vunpack.c.h.b16 %v7271
    %v7826 = vunpack.c.l.b16 %v7272
    %v7827 = vunpack.c.l.b16 %v7273
    %v7828 = vunpack.c.h.b16 %v7273
    %v7829 = vunpack.c.l.b16 %v7274
    %v7830 = vunpack.c.l.b16 %v7275
    %v7831 = vunpack.c.h.b16 %v7275
    %v7832 = vunpack.c.l.b16 %v7276
    %v7833 = vunpack.c.l.b16 %v7277
    %v7834 = vunpack.c.h.b16 %v7277
    %v7835 = vunpack.c.l.b16 %v7278
    %v7836 = vunpack.c.l.b16 %v7279
    %v7837 = vunpack.c.h.b16 %v7279
    %v7838 = vunpack.c.l.b16 %v7280
    %v7839 = vunpack.c.l.b16 %v7281
    %v7840 = vunpack.c.h.b16 %v7281
    %v7841 = vunpack.c.l.b16 %v7282
    %v7842 = vunpack.c.l.b16 %v7283
    %v7843 = vunpack.c.h.b16 %v7283
    %v7844 = vunpack.c.l.b16 %v7284
    %v7845 = vunpack.c.l.b16 %v7285
    %v7846 = vunpack.c.h.b16 %v7285
    %v7847 = vunpack.c.l.b16 %v7286
    %v7848 = vunpack.c.l.b16 %v7287
    %v7849 = vunpack.c.h.b16 %v7287
    %v7850 = vunpack.c.l.b16 %v7288
    %v7851 = vunpack.c.l.b16 %v7289
    %v7852 = vunpack.c.h.b16 %v7289
    %v7853 = vunpack.c.l.b16 %v7290
    %v7854 = vunpack.c.l.b16 %v7291
    %v7855 = vunpack.c.h.b16 %v7291
    %v7856 = vunpack.c.l.b16 %v7292
    %v7857 = vunpack.c.l.b16 %v7293
    %v7858 = vunpack.c.h.b16 %v7293
    %v7859 = vunpack.c.l.b16 %v7294
    %v7860 = vunpack.c.l.b16 %v7295
    %v7861 = vunpack.c.h.b16 %v7295
    %v7862 = vunpack.c.l.b16 %v7296
    %v7863 = vunpack.c.l.b16 %v7297
    %v7864 = vunpack.c.h.b16 %v7297
    %v7865 = vunpack.c.l.b16 %v7298
    %v7866 = vunpack.c.l.b16 %v7299
    %v7867 = vunpack.c.h.b16 %v7299
    %v7868 = vunpack.c.l.b16 %v7300
    %v7869 = vpack.c.b16 %v7680, %v7677
    %v7870 = vpack.c.b16 %v7681, %v7678
    %v7871 = vpack.c.b16 %v7682, %v7679
    %v7872 = vpack.c.b16 %v7686, %v7683
    %v7873 = vpack.c.b16 %v7687, %v7684
    %v7874 = vpack.c.b16 %v7688, %v7685
    %v7875 = vpack.c.b16 %v7692, %v7689
    %v7876 = vpack.c.b16 %v7693, %v7690
    %v7877 = vpack.c.b16 %v7694, %v7691
    %v7878 = vpack.c.b16 %v7698, %v7695
    %v7879 = vpack.c.b16 %v7699, %v7696
    %v7880 = vpack.c.b16 %v7700, %v7697
    %v7881 = vpack.c.b16 %v7704, %v7701
    %v7882 = vpack.c.b16 %v7705, %v7702
    %v7883 = vpack.c.b16 %v7706, %v7703
    %v7884 = vpack.c.b16 %v7710, %v7707
    %v7885 = vpack.c.b16 %v7711, %v7708
    %v7886 = vpack.c.b16 %v7712, %v7709
    %v7887 = vpack.c.b16 %v7716, %v7713
    %v7888 = vpack.c.b16 %v7717, %v7714
    %v7889 = vpack.c.b16 %v7718, %v7715
    %v7890 = vpack.c.b16 %v7722, %v7719
    %v7891 = vpack.c.b16 %v7723, %v7720
    %v7892 = vpack.c.b16 %v7724, %v7721
    %v7893 = vpack.c.b16 %v7728, %v7725
    %v7894 = vpack.c.b16 %v7729, %v7726
    %v7895 = vpack.c.b16 %v7730, %v7727
    %v7896 = vpack.c.b16 %v7734, %v7731
    %v7897 = vpack.c.b16 %v7735, %v7732
    %v7898 = vpack.c.b16 %v7736, %v7733
    %v7899 = vpack.c.b16 %v7740, %v7737
    %v7900 = vpack.c.b16 %v7741, %v7738
    %v7901 = vpack.c.b16 %v7742, %v7739
    %v7902 = vpack.c.b16 %v7746, %v7743
    %v7903 = vpack.c.b16 %v7747, %v7744
    %v7904 = vpack.c.b16 %v7748, %v7745
    %v7905 = vpack.c.b16 %v7752, %v7749
    %v7906 = vpack.c.b16 %v7753, %v7750
    %v7907 = vpack.c.b16 %v7754, %v7751
    %v7908 = vpack.c.b16 %v7758, %v7755
    %v7909 = vpack.c.b16 %v7759, %v7756
    %v7910 = vpack.c.b16 %v7760, %v7757
    %v7911 = vpack.c.b16 %v7764, %v7761
    %v7912 = vpack.c.b16 %v7765, %v7762
    %v7913 = vpack.c.b16 %v7766, %v7763
    %v7914 = vpack.c.b16 %v7770, %v7767
    %v7915 = vpack.c.b16 %v7771, %v7768
    %v7916 = vpack.c.b16 %v7772, %v7769
    %v7917 = vpack.c.b16 %v7776, %v7773
    %v7918 = vpack.c.b16 %v7777, %v7774
    %v7919 = vpack.c.b16 %v7778, %v7775
    %v7920 = vpack.c.b16 %v7782, %v7779
    %v7921 = vpack.c.b16 %v7783, %v7780
    %v7922 = vpack.c.b16 %v7784, %v7781
    %v7923 = vpack.c.b16 %v7788, %v7785
    %v7924 = vpack.c.b16 %v7789, %v7786
    %v7925 = vpack.c.b16 %v7790, %v7787
    %v7926 = vpack.c.b16 %v7794, %v7791
    %v7927 = vpack.c.b16 %v7795, %v7792
    %v7928 = vpack.c.b16 %v7796, %v7793
    %v7929 = vpack.c.b16 %v7800, %v7797
    %v7930 = vpack.c.b16 %v7801, %v7798
    %v7931 = vpack.c.b16 %v7802, %v7799
    %v7932 = vpack.c.b16 %v7806, %v7803
    %v7933 = vpack.c.b16 %v7807, %v7804
    %v7934 = vpack.c.b16 %v7808, %v7805
    %v7935 = vpack.c.b16 %v7812, %v7809
    %v7936 = vpack.c.b16 %v7813, %v7810
    %v7937 = vpack.c.b16 %v7814, %v7811
    %v7938 = vpack.c.b16 %v7818, %v7815
    %v7939 = vpack.c.b16 %v7819, %v7816
    %v7940 = vpack.c.b16 %v7820, %v7817
    %v7941 = vpack.c.b16 %v7824, %v7821
    %v7942 = vpack.c.b16 %v7825, %v7822
    %v7943 = vpack.c.b16 %v7826, %v7823
    %v7944 = vpack.c.b16 %v7830, %v7827
    %v7945 = vpack.c.b16 %v7831, %v7828
    %v7946 = vpack.c.b16 %v7832, %v7829
    %v7947 = vpack.c.b16 %v7836, %v7833
    %v7948 = vpack.c.b16 %v7837, %v7834
    %v7949 = vpack.c.b16 %v7838, %v7835
    %v7950 = vpack.c.b16 %v7842, %v7839
    %v7951 = vpack.c.b16 %v7843, %v7840
    %v7952 = vpack.c.b16 %v7844, %v7841
    %v7953 = vpack.c.b16 %v7848, %v7845
    %v7954 = vpack.c.b16 %v7849, %v7846
    %v7955 = vpack.c.b16 %v7850, %v7847
    %v7956 = vpack.c.b16 %v7854, %v7851
    %v7957 = vpack.c.b16 %v7855, %v7852
    %v7958 = vpack.c.b16 %v7856, %v7853
    %v7959 = vpack.c.b16 %v7860, %v7857
    %v7960 = vpack.c.b16 %v7861, %v7858
    %v7961 = vpack.c.b16 %v7862, %v7859
    %v7962 = vpack.c.b16 %v7866, %v7863
    %v7963 = vpack.c.b16 %v7867, %v7864
    %v7964 = vpack.c.b16 %v7868, %v7865
    %8061 = vmatprep.subr.bf16.mxu0 %v7870
    %8062 = vmatpush1.bf16.msra.mxu0 %v7869
    %8063 = vmatprep.subr.bf16.mxu0 %v7873
    %8064 = vmatpush1.bf16.msra.mxu0 %v7872
    %8065 = vmatprep.subr.bf16.mxu0 %v7876
    %8066 = vmatpush1.bf16.msra.mxu0 %v7875
    %8067 = vmatprep.subr.bf16.mxu0 %v7879
    %8068 = vmatpush1.bf16.msra.mxu0 %v7878
    %8069 = vmatprep.subr.bf16.mxu0 %v7882
    %8070 = vmatpush1.bf16.msra.mxu0 %v7881
    %8071 = vmatprep.subr.bf16.mxu0 %v7885
    %8072 = vmatpush1.bf16.msra.mxu0 %v7884
    %8073 = vmatprep.subr.bf16.mxu0 %v7888
    %8074 = vmatpush1.bf16.msra.mxu0 %v7887
    %8075 = vmatprep.subr.bf16.mxu0 %v7891
    %8076 = vmatpush1.bf16.msra.mxu0 %v7890
    %8077 = vmatprep.subr.bf16.mxu0 %v7894
    %8078 = vmatpush1.bf16.msra.mxu0 %v7893
    %8079 = vmatprep.subr.bf16.mxu0 %v7897
    %8080 = vmatpush1.bf16.msra.mxu0 %v7896
    %8081 = vmatprep.subr.bf16.mxu0 %v7900
    %8082 = vmatpush1.bf16.msra.mxu0 %v7899
    %8083 = vmatprep.subr.bf16.mxu0 %v7903
    %8084 = vmatpush1.bf16.msra.mxu0 %v7902
    %8085 = vmatprep.subr.bf16.mxu0 %v7906
    %8086 = vmatpush1.bf16.msra.mxu0 %v7905
    %8087 = vmatprep.subr.bf16.mxu0 %v7909
    %8088 = vmatpush1.bf16.msra.mxu0 %v7908
    %8089 = vmatprep.subr.bf16.mxu0 %v7912
    %8090 = vmatpush1.bf16.msra.mxu0 %v7911
    %8091 = vmatprep.subr.bf16.mxu0 %v7915
    %8092 = vmatpush1.bf16.msra.mxu0 %v7914
    %8093 = vmatprep.mubr.bf16.mxu0 %v7542
    %8094 = vmatmul.mubr.bf16.gmra.mrb[0].mxu0 %v7541
    %v8095 = vpop.f32.mrb[0].mxu0
    %v8096 = vadd.f32 0.0, %v8095
    %v8097 = vpop.f32.mrb[0].mxu0
    %v8098 = vadd.f32 0.0, %v8097
    %v8099 = vpop.f32.mrb[0].mxu0
    %v8100 = vadd.f32 0.0, %v8099
    %v8101 = vpop.f32.mrb[0].mxu0
    %v8102 = vadd.f32 0.0, %v8101
    %8103 = vdwg.mxu0
    %8104 = vmatprep.subr.bf16.mxu0 %v7918
    %8105 = vmatpush1.bf16.msra.mxu0 %v7917
    %8106 = vmatprep.subr.bf16.mxu0 %v7921
    %8107 = vmatpush1.bf16.msra.mxu0 %v7920
    %8108 = vmatprep.subr.bf16.mxu0 %v7924
    %8109 = vmatpush1.bf16.msra.mxu0 %v7923
    %8110 = vmatprep.subr.bf16.mxu0 %v7927
    %8111 = vmatpush1.bf16.msra.mxu0 %v7926
    %8112 = vmatprep.subr.bf16.mxu0 %v7930
    %8113 = vmatpush1.bf16.msra.mxu0 %v7929
    %8114 = vmatprep.subr.bf16.mxu0 %v7933
    %8115 = vmatpush1.bf16.msra.mxu0 %v7932
    %8116 = vmatprep.subr.bf16.mxu0 %v7936
    %8117 = vmatpush1.bf16.msra.mxu0 %v7935
    %8118 = vmatprep.subr.bf16.mxu0 %v7939
    %8119 = vmatpush1.bf16.msra.mxu0 %v7938
    %8120 = vmatprep.subr.bf16.mxu0 %v7942
    %8121 = vmatpush1.bf16.msra.mxu0 %v7941
    %8122 = vmatprep.subr.bf16.mxu0 %v7945
    %8123 = vmatpush1.bf16.msra.mxu0 %v7944
    %8124 = vmatprep.subr.bf16.mxu0 %v7948
    %8125 = vmatpush1.bf16.msra.mxu0 %v7947
    %8126 = vmatprep.subr.bf16.mxu0 %v7951
    %8127 = vmatpush1.bf16.msra.mxu0 %v7950
    %8128 = vmatprep.subr.bf16.mxu0 %v7954
    %8129 = vmatpush1.bf16.msra.mxu0 %v7953
    %8130 = vmatprep.subr.bf16.mxu0 %v7957
    %8131 = vmatpush1.bf16.msra.mxu0 %v7956
    %8132 = vmatprep.subr.bf16.mxu0 %v7960
    %8133 = vmatpush1.bf16.msra.mxu0 %v7959
    %8134 = vmatprep.subr.bf16.mxu0 %v7963
    %8135 = vmatpush1.bf16.msra.mxu0 %v7962
    %8136 = vmatprep.mubr.bf16.mxu0 %v7544
    %8137 = vmatmul.mubr.bf16.gmra.mrb[0].mxu0 %v7543
    %v8138 = vpop.f32.mrb[0].mxu0
    %v8139 = vadd.f32 %v8096, %v8138
    %v8140 = vpop.f32.mrb[0].mxu0
    %v8141 = vadd.f32 %v8098, %v8140
    %v8142 = vpop.f32.mrb[0].mxu0
    %v8143 = vadd.f32 %v8100, %v8142
    %v8144 = vpop.f32.mrb[0].mxu0
    %v8145 = vadd.f32 %v8102, %v8144
    %8146 = vdwg.mxu0
    %8147 = vmatprep.subr.bf16.mxu0 0
    %8148 = vmatpush1.bf16.msra.mxu0 %v7871
    %8149 = vmatprep.subr.bf16.mxu0 0
    %8150 = vmatpush1.bf16.msra.mxu0 %v7874
    %8151 = vmatprep.subr.bf16.mxu0 0
    %8152 = vmatpush1.bf16.msra.mxu0 %v7877
    %8153 = vmatprep.subr.bf16.mxu0 0
    %8154 = vmatpush1.bf16.msra.mxu0 %v7880
    %8155 = vmatprep.subr.bf16.mxu0 0
    %8156 = vmatpush1.bf16.msra.mxu0 %v7883
    %8157 = vmatprep.subr.bf16.mxu0 0
    %8158 = vmatpush1.bf16.msra.mxu0 %v7886
    %8159 = vmatprep.subr.bf16.mxu0 0
    %8160 = vmatpush1.bf16.msra.mxu0 %v7889
    %8161 = vmatprep.subr.bf16.mxu0 0
    %8162 = vmatpush1.bf16.msra.mxu0 %v7892
    %8163 = vmatprep.subr.bf16.mxu0 0
    %8164 = vmatpush1.bf16.msra.mxu0 %v7895
    %8165 = vmatprep.subr.bf16.mxu0 0
    %8166 = vmatpush1.bf16.msra.mxu0 %v7898
    %8167 = vmatprep.subr.bf16.mxu0 0
    %8168 = vmatpush1.bf16.msra.mxu0 %v7901
    %8169 = vmatprep.subr.bf16.mxu0 0
    %8170 = vmatpush1.bf16.msra.mxu0 %v7904
    %8171 = vmatprep.subr.bf16.mxu0 0
    %8172 = vmatpush1.bf16.msra.mxu0 %v7907
    %8173 = vmatprep.subr.bf16.mxu0 0
    %8174 = vmatpush1.bf16.msra.mxu0 %v7910
    %8175 = vmatprep.subr.bf16.mxu0 0
    %8176 = vmatpush1.bf16.msra.mxu0 %v7913
    %8177 = vmatprep.subr.bf16.mxu0 0
    %8178 = vmatpush1.bf16.msra.mxu0 %v7916
    %8179 = vmatprep.mubr.bf16.mxu0 %v7542
    %8180 = vmatmul.mubr.bf16.gmra.mrb[0].mxu0 %v7541
    %v8181 = vpop.f32.mrb[0].mxu0
    %v8182 = vadd.f32 0.0, %v8181
    %v8183 = vpop.f32.mrb[0].mxu0
    %v8184 = vpop.f32.mrb[0].mxu0
    %v8185 = vadd.f32 0.0, %v8184
    %v8186 = vpop.f32.mrb[0].mxu0
    %8187 = vdwg.mxu0
    %8188 = vmatprep.subr.bf16.mxu0 0
    %8189 = vmatpush1.bf16.msra.mxu0 %v7919
    %8190 = vmatprep.subr.bf16.mxu0 0
    %8191 = vmatpush1.bf16.msra.mxu0 %v7922
    %8192 = vmatprep.subr.bf16.mxu0 0
    %8193 = vmatpush1.bf16.msra.mxu0 %v7925
    %8194 = vmatprep.subr.bf16.mxu0 0
    %8195 = vmatpush1.bf16.msra.mxu0 %v7928
    %8196 = vmatprep.subr.bf16.mxu0 0
    %8197 = vmatpush1.bf16.msra.mxu0 %v7931
    %8198 = vmatprep.subr.bf16.mxu0 0
    %8199 = vmatpush1.bf16.msra.mxu0 %v7934
    %8200 = vmatprep.subr.bf16.mxu0 0
    %8201 = vmatpush1.bf16.msra.mxu0 %v7937
    %8202 = vmatprep.subr.bf16.mxu0 0
    %8203 = vmatpush1.bf16.msra.mxu0 %v7940
    %8204 = vmatprep.subr.bf16.mxu0 0
    %8205 = vmatpush1.bf16.msra.mxu0 %v7943
    %8206 = vmatprep.subr.bf16.mxu0 0
    %8207 = vmatpush1.bf16.msra.mxu0 %v7946
    %8208 = vmatprep.subr.bf16.mxu0 0
    %8209 = vmatpush1.bf16.msra.mxu0 %v7949
    %8210 = vmatprep.subr.bf16.mxu0 0
    %8211 = vmatpush1.bf16.msra.mxu0 %v7952
    %8212 = vmatprep.subr.bf16.mxu0 0
    %8213 = vmatpush1.bf16.msra.mxu0 %v7955
    %8214 = vmatprep.subr.bf16.mxu0 0
    %8215 = vmatpush1.bf16.msra.mxu0 %v7958
    %8216 = vmatprep.subr.bf16.mxu0 0
    %8217 = vmatpush1.bf16.msra.mxu0 %v7961
    %8218 = vmatprep.subr.bf16.mxu0 0
    %8219 = vmatpush1.bf16.msra.mxu0 %v7964
    %8220 = vmatprep.mubr.bf16.mxu0 %v7544
    %8221 = vmatmul.mubr.bf16.gmra.mrb[0].mxu0 %v7543
    %v8222 = vpop.f32.mrb[0].mxu0
    %v8223 = vadd.f32 %v8182, %v8222
    %v8224 = vpop.f32.mrb[0].mxu0
    %v8225 = vpop.f32.mrb[0].mxu0
    %v8226 = vadd.f32 %v8185, %v8225
    %v8227 = vpop.f32.mrb[0].mxu0
    %8228 = vdwg.mxu0
    %v8229 = vld [vmem:[#allocation3] sm:$0x11]
    %v8230 = vsel %vm3878, 0, %v8229
    %8231 = vst [vmem:[#allocation3] sm:$0x11] %v8230
    %v8232 = vld [vmem:[#allocation3 + $0x8] sm:$0x1]
    %v8233 = vsel %vm3874, 0, %v8232
    %8234 = vst [vmem:[#allocation3 + $0x8] sm:$0x1] %v8233
    %v8235 = vld [vmem:[#allocation3 + $0x18] sm:$0x11]
    %v8236 = vsel %vm3878, 0, %v8235
    %8237 = vst [vmem:[#allocation3 + $0x18] sm:$0x11] %v8236
    %v8238 = vld [vmem:[#allocation3 + $0x20] sm:$0x1]
    %v8239 = vsel %vm3874, 0, %v8238
    %8240 = vst [vmem:[#allocation3 + $0x20] sm:$0x1] %v8239
    %v8241 = vld [vmem:[#allocation3 + $0xc] sm:$0x11]
    %v8242 = vsel %vm3895, 0, %v8241
    %8243 = vst [vmem:[#allocation3 + $0xc] sm:$0x11] %v8242
    %v8244 = vld [vmem:[#allocation3 + $0x14] sm:$0x1]
    %v8245 = vsel %vm3892, 0, %v8244
    %8246 = vst [vmem:[#allocation3 + $0x14] sm:$0x1] %v8245
    %v8247 = vld [vmem:[#allocation3 + $0x24] sm:$0x11]
    %v8248 = vsel %vm3895, 0, %v8247
    %8249 = vst [vmem:[#allocation3 + $0x24] sm:$0x11] %v8248
    %v8250 = vld [vmem:[#allocation3 + $0x2c] sm:$0x1]
    %v8251 = vsel %vm3892, 0, %v8250
    %8252 = vst [vmem:[#allocation3 + $0x2c] sm:$0x1] %v8251
    %v8253 = vpack.c.bf16 %v8139, %v8139
    %v8254 = vpack.c.bf16 %v8141, %v8141
    %v8255 = vpack.c.bf16 %v8223, %v8223
    %v8256 = vpack.c.bf16 %v8143, %v8143
    %v8257 = vpack.c.bf16 %v8145, %v8145
    %v8258 = vpack.c.bf16 %v8226, %v8226
    %v8265 = vunpack.c.l.b16 %v8253
    %v8266 = vunpack.c.l.b16 %v8254
    %v8267 = vunpack.c.l.b16 %v8255
    %v8268 = vunpack.c.l.b16 %v8256
    %v8269 = vunpack.c.l.b16 %v8257
    %v8270 = vunpack.c.l.b16 %v8258
    %v8271 = vpack.c.b16 %v8266, %v8265
    %v8272 = vpack.c.b16 %v8267, %v8267
    %v8273 = vpack.c.b16 %v8269, %v8268
    %v8274 = vpack.c.b16 %v8270, %v8270
    %v8276 = vshrl.u32 %v8271, 16
    %v8278 = vrot.slane %v8276, 7
    %v8279 = vshll.u32 %v8271, 16
    %v8281 = vor.u32 %v8278, %v8279
    %v8283 = vshrl.u32 %v8272, 16
    %v8285 = vrot.slane %v8283, 7
    %v8286 = vshll.u32 %v8272, 16
    %v8288 = vor.u32 %v8285, %v8286
    %v8289 = vrot.slane %v8278, 4
    %v8290 = vrot.slane %v8285, 4
    %v8292 = vshrl.u32 %v8273, 16
    %v8294 = vrot.slane %v8292, 7
    %v8295 = vshll.u32 %v8273, 16
    %v8297 = vor.u32 %v8294, %v8295
    %v8299 = vshrl.u32 %v8274, 16
    %v8301 = vrot.slane %v8299, 7
    %v8302 = vshll.u32 %v8274, 16
    %v8304 = vor.u32 %v8301, %v8302
    %v8305 = vrot.slane %v8294, 4
    %v8306 = vrot.slane %v8301, 4
    %v8315 = vld [vmem:[#allocation3] sm:$0xff]
    %v8316 = vsel %vm4026, %v8281, %v8315
    %8317 = vst [vmem:[#allocation3] sm:$0xff] %v8316
    %v8318 = vld [vmem:[#allocation3 + $0x8] sm:$0xf]
    %v8319 = vsel %vm4023, %v8288, %v8318
    %8320 = vst [vmem:[#allocation3 + $0x8] sm:$0xf] %v8319
    %v8321 = vld [vmem:[#allocation3 + $0xc] sm:$0x11]
    %v8322 = vsel %vm3878, %v8289, %v8321
    %8323 = vst [vmem:[#allocation3 + $0xc] sm:$0x11] %v8322
    %v8324 = vld [vmem:[#allocation3 + $0x14] sm:$0x1]
    %v8325 = vsel %vm3874, %v8290, %v8324
    %8326 = vst [vmem:[#allocation3 + $0x14] sm:$0x1] %v8325
    %v8327 = vld [vmem:[#allocation3 + $0x18] sm:$0xff]
    %v8328 = vsel %vm4026, %v8297, %v8327
    %8329 = vst [vmem:[#allocation3 + $0x18] sm:$0xff] %v8328
    %v8330 = vld [vmem:[#allocation3 + $0x20] sm:$0xf]
    %v8331 = vsel %vm4023, %v8304, %v8330
    %8332 = vst [vmem:[#allocation3 + $0x20] sm:$0xf] %v8331
    %v8333 = vld [vmem:[#allocation3 + $0x24] sm:$0x11]
    %v8334 = vsel %vm3878, %v8305, %v8333
    %8335 = vst [vmem:[#allocation3 + $0x24] sm:$0x11] %v8334
    %v8336 = vld [vmem:[#allocation3 + $0x2c] sm:$0x1]
    %v8337 = vsel %vm3874, %v8306, %v8336
    %8338 = vst [vmem:[#allocation3 + $0x2c] sm:$0x1] %v8337
    %v8339 = vld [vmem:[#allocation3] sm:$0xff]
    %v8340 = vld [vmem:[#allocation3 + $0x8] sm:$0xf]
    %v8341 = vld [vmem:[#allocation3 + $0x18] sm:$0xff]
    %v8342 = vld [vmem:[#allocation3 + $0x20] sm:$0xf]
    %v8343 = vld [vmem:[#allocation3 + $0xc] sm:$0x11]
    %v8344 = vld [vmem:[#allocation3 + $0x14] sm:$0x1]
    %v8345 = vld [vmem:[#allocation3 + $0x24] sm:$0x11]
    %v8346 = vld [vmem:[#allocation3 + $0x2c] sm:$0x1]
    %v8347 = vld [vmem:[#allocation3] sm:$0xee]
    %v8348 = vld [vmem:[#allocation3 + $0x8] sm:$0xe]
    %v8349 = vld [vmem:[#allocation3 + $0x18] sm:$0xee]
    %v8350 = vld [vmem:[#allocation3 + $0x20] sm:$0xe]
    %v8355 = vunpack.c.l.b16 %v8339
    %v8356 = vunpack.c.h.b16 %v8339
    %v8357 = vunpack.c.l.b16 %v8340
    %v8358 = vunpack.c.l.b16 %v8341
    %v8359 = vunpack.c.h.b16 %v8341
    %v8360 = vunpack.c.l.b16 %v8342
    %v8365 = vunpack.c.l.b16 %v8343
    %v8366 = vunpack.c.h.b16 %v8343
    %v8367 = vunpack.c.l.b16 %v8344
    %v8368 = vunpack.c.l.b16 %v8345
    %v8369 = vunpack.c.h.b16 %v8345
    %v8370 = vunpack.c.l.b16 %v8346
    %v8371 = vpack.c.b16 %v8365, %v8355
    %v8372 = vpack.c.b16 %v8366, %v8356
    %v8373 = vpack.c.b16 %v8367, %v8357
    %v8374 = vpack.c.b16 %v8368, %v8358
    %v8375 = vpack.c.b16 %v8369, %v8359
    %v8376 = vpack.c.b16 %v8370, %v8360
    %v8378 = vshrl.u32 %v8371, 16
    %v8380 = vshll.u32 %v8371, 16
    %v8382 = vrot.slane %v8380, 1
    %v8383 = vor.u32 %v8378, %v8382
    %v8385 = vshrl.u32 %v8372, 16
    %v8387 = vshll.u32 %v8372, 16
    %v8389 = vrot.slane %v8387, 1
    %v8390 = vor.u32 %v8385, %v8389
    %v8392 = vshrl.u32 %v8373, 16
    %v8394 = vshll.u32 %v8373, 16
    %v8396 = vrot.slane %v8394, 1
    %v8397 = vor.u32 %v8392, %v8396
    %v8399 = vshrl.u32 %v8374, 16
    %v8401 = vshll.u32 %v8374, 16
    %v8403 = vrot.slane %v8401, 1
    %v8404 = vor.u32 %v8399, %v8403
    %v8406 = vshrl.u32 %v8375, 16
    %v8408 = vshll.u32 %v8375, 16
    %v8410 = vrot.slane %v8408, 1
    %v8411 = vor.u32 %v8406, %v8410
    %v8413 = vshrl.u32 %v8376, 16
    %v8415 = vshll.u32 %v8376, 16
    %v8417 = vrot.slane %v8415, 1
    %v8418 = vor.u32 %v8413, %v8417
    %v8423 = vunpack.c.l.b16 %v8347
    %v8424 = vunpack.c.h.b16 %v8347
    %v8425 = vunpack.c.l.b16 %v8348
    %v8426 = vunpack.c.l.b16 %v8349
    %v8427 = vunpack.c.h.b16 %v8349
    %v8428 = vunpack.c.l.b16 %v8350
    %v8429 = vpack.c.b16 %v8365, %v8423
    %v8430 = vpack.c.b16 %v8366, %v8424
    %v8431 = vpack.c.b16 %v8367, %v8425
    %v8432 = vpack.c.b16 %v8368, %v8426
    %v8433 = vpack.c.b16 %v8369, %v8427
    %v8434 = vpack.c.b16 %v8370, %v8428
    %v8435 = vrot.slane %v8429, 1
    %v8436 = vrot.slane %v8430, 1
    %v8437 = vrot.slane %v8431, 1
    %v8438 = vrot.slane %v8432, 1
    %v8439 = vrot.slane %v8433, 1
    %v8440 = vrot.slane %v8434, 1
    %v8441 = vunpack.c.l.b16 %v8383
    %v8442 = vunpack.c.l.b16 %v8390
    %v8443 = vunpack.c.l.b16 %v8397
    %v8444 = vunpack.c.l.b16 %v8435
    %v8445 = vunpack.c.l.b16 %v8436
    %v8446 = vunpack.c.l.b16 %v8437
    %v8447 = vunpack.c.l.b16 %v8404
    %v8448 = vunpack.c.l.b16 %v8411
    %v8449 = vunpack.c.l.b16 %v8418
    %v8450 = vunpack.c.l.b16 %v8438
    %v8451 = vunpack.c.l.b16 %v8439
    %v8452 = vunpack.c.l.b16 %v8440
    %v8453 = vld [vmem:[#allocation15] sm:$0xff]
    %v8454 = vld [vmem:[#allocation15 + $0x8] sm:$0xff]
    %v8455 = vld [vmem:[#allocation15 + $0x10] sm:$0xff]
    %v8456 = vld [vmem:[#allocation15 + $0x18] sm:$0xff]
    %v8457 = vld [vmem:[#allocation15 + $0x20] sm:$0xff]
    %v8458 = vld [vmem:[#allocation15 + $0x28] sm:$0xff]
    %v8459 = vld [vmem:[#allocation15 + $0x30] sm:$0xff]
    %v8460 = vld [vmem:[#allocation15 + $0x38] sm:$0xff]
    %v8461 = vld [vmem:[#allocation15 + $0x40] sm:$0xff]
    %v8462 = vld [vmem:[#allocation15 + $0x48] sm:$0xff]
    %v8463 = vld [vmem:[#allocation15 + $0x50] sm:$0xff]
    %v8464 = vld [vmem:[#allocation15 + $0x58] sm:$0xff]
    %v8465 = vld [vmem:[#allocation15 + $0x60] sm:$0xff]
    %v8466 = vld [vmem:[#allocation15 + $0x68] sm:$0xff]
    %v8467 = vld [vmem:[#allocation15 + $0x70] sm:$0xff]
    %v8468 = vld [vmem:[#allocation15 + $0x78] sm:$0xff]
    %v8469 = vld [vmem:[#allocation15 + $0x80] sm:$0xff]
    %v8470 = vld [vmem:[#allocation15 + $0x88] sm:$0xff]
    %v8471 = vld [vmem:[#allocation15 + $0x90] sm:$0xff]
    %v8472 = vld [vmem:[#allocation15 + $0x98] sm:$0xff]
    %v8473 = vld [vmem:[#allocation15 + $0xa0] sm:$0xff]
    %v8474 = vld [vmem:[#allocation15 + $0xa8] sm:$0xff]
    %v8475 = vld [vmem:[#allocation15 + $0xb0] sm:$0xff]
    %v8476 = vld [vmem:[#allocation15 + $0xb8] sm:$0xff]
    %v8477 = vld [vmem:[#allocation15 + $0xc0] sm:$0xff]
    %v8478 = vld [vmem:[#allocation15 + $0xc8] sm:$0xff]
    %v8479 = vld [vmem:[#allocation15 + $0xd0] sm:$0xff]
    %v8480 = vld [vmem:[#allocation15 + $0xd8] sm:$0xff]
    %v8481 = vld [vmem:[#allocation15 + $0xe0] sm:$0xff]
    %v8482 = vld [vmem:[#allocation15 + $0xe8] sm:$0xff]
    %v8483 = vld [vmem:[#allocation15 + $0xf0] sm:$0xff]
    %v8484 = vld [vmem:[#allocation15 + $0xf8] sm:$0xff]
    %v8485 = vld [vmem:[#allocation15 + $0x100] sm:$0xff]
    %v8486 = vld [vmem:[#allocation15 + $0x108] sm:$0xff]
    %v8487 = vld [vmem:[#allocation15 + $0x110] sm:$0xff]
    %v8488 = vld [vmem:[#allocation15 + $0x118] sm:$0xff]
    %v8489 = vld [vmem:[#allocation15 + $0x120] sm:$0xff]
    %v8490 = vld [vmem:[#allocation15 + $0x128] sm:$0xff]
    %v8491 = vld [vmem:[#allocation15 + $0x130] sm:$0xff]
    %v8492 = vld [vmem:[#allocation15 + $0x138] sm:$0xff]
    %v8493 = vld [vmem:[#allocation15 + $0x140] sm:$0xff]
    %v8494 = vld [vmem:[#allocation15 + $0x148] sm:$0xff]
    %v8495 = vld [vmem:[#allocation15 + $0x150] sm:$0xff]
    %v8496 = vld [vmem:[#allocation15 + $0x158] sm:$0xff]
    %v8497 = vld [vmem:[#allocation15 + $0x160] sm:$0xff]
    %v8498 = vld [vmem:[#allocation15 + $0x168] sm:$0xff]
    %v8499 = vld [vmem:[#allocation15 + $0x170] sm:$0xff]
    %v8500 = vld [vmem:[#allocation15 + $0x178] sm:$0xff]
    %v8501 = vld [vmem:[#allocation15 + $0x180] sm:$0xff]
    %v8502 = vld [vmem:[#allocation15 + $0x188] sm:$0xff]
    %v8503 = vld [vmem:[#allocation15 + $0x190] sm:$0xff]
    %v8504 = vld [vmem:[#allocation15 + $0x198] sm:$0xff]
    %v8505 = vld [vmem:[#allocation15 + $0x1a0] sm:$0xff]
    %v8506 = vld [vmem:[#allocation15 + $0x1a8] sm:$0xff]
    %v8507 = vld [vmem:[#allocation15 + $0x1b0] sm:$0xff]
    %v8508 = vld [vmem:[#allocation15 + $0x1b8] sm:$0xff]
    %v8509 = vld [vmem:[#allocation15 + $0x1c0] sm:$0xff]
    %v8510 = vld [vmem:[#allocation15 + $0x1c8] sm:$0xff]
    %v8511 = vld [vmem:[#allocation15 + $0x1d0] sm:$0xff]
    %v8512 = vld [vmem:[#allocation15 + $0x1d8] sm:$0xff]
    %v8513 = vld [vmem:[#allocation15 + $0x1e0] sm:$0xff]
    %v8514 = vld [vmem:[#allocation15 + $0x1e8] sm:$0xff]
    %v8515 = vld [vmem:[#allocation15 + $0x1f0] sm:$0xff]
    %v8516 = vld [vmem:[#allocation15 + $0x1f8] sm:$0xff]
    %v8517 = vld [vmem:[#allocation15 + $0x200] sm:$0xff]
    %v8518 = vld [vmem:[#allocation15 + $0x208] sm:$0xff]
    %v8519 = vld [vmem:[#allocation15 + $0x210] sm:$0xff]
    %v8520 = vld [vmem:[#allocation15 + $0x218] sm:$0xff]
    %v8521 = vld [vmem:[#allocation15 + $0x220] sm:$0xff]
    %v8522 = vld [vmem:[#allocation15 + $0x228] sm:$0xff]
    %v8523 = vld [vmem:[#allocation15 + $0x230] sm:$0xff]
    %v8524 = vld [vmem:[#allocation15 + $0x238] sm:$0xff]
    %v8525 = vld [vmem:[#allocation15 + $0x240] sm:$0xff]
    %v8526 = vld [vmem:[#allocation15 + $0x248] sm:$0xff]
    %v8527 = vld [vmem:[#allocation15 + $0x250] sm:$0xff]
    %v8528 = vld [vmem:[#allocation15 + $0x258] sm:$0xff]
    %v8529 = vld [vmem:[#allocation15 + $0x260] sm:$0xff]
    %v8530 = vld [vmem:[#allocation15 + $0x268] sm:$0xff]
    %v8531 = vld [vmem:[#allocation15 + $0x270] sm:$0xff]
    %v8532 = vld [vmem:[#allocation15 + $0x278] sm:$0xff]
    %v8533 = vld [vmem:[#allocation15 + $0x280] sm:$0xff]
    %v8534 = vld [vmem:[#allocation15 + $0x288] sm:$0xff]
    %v8535 = vld [vmem:[#allocation15 + $0x290] sm:$0xff]
    %v8536 = vld [vmem:[#allocation15 + $0x298] sm:$0xff]
    %v8537 = vld [vmem:[#allocation15 + $0x2a0] sm:$0xff]
    %v8538 = vld [vmem:[#allocation15 + $0x2a8] sm:$0xff]
    %v8539 = vld [vmem:[#allocation15 + $0x2b0] sm:$0xff]
    %v8540 = vld [vmem:[#allocation15 + $0x2b8] sm:$0xff]
    %v8541 = vld [vmem:[#allocation15 + $0x2c0] sm:$0xff]
    %v8542 = vld [vmem:[#allocation15 + $0x2c8] sm:$0xff]
    %v8543 = vld [vmem:[#allocation15 + $0x2d0] sm:$0xff]
    %v8544 = vld [vmem:[#allocation15 + $0x2d8] sm:$0xff]
    %v8545 = vld [vmem:[#allocation15 + $0x2e0] sm:$0xff]
    %v8546 = vld [vmem:[#allocation15 + $0x2e8] sm:$0xff]
    %v8547 = vld [vmem:[#allocation15 + $0x2f0] sm:$0xff]
    %v8548 = vld [vmem:[#allocation15 + $0x2f8] sm:$0xff]
    %v8549 = vld [vmem:[#allocation15 + $0x300] sm:$0xff]
    %v8550 = vld [vmem:[#allocation15 + $0x308] sm:$0xff]
    %v8551 = vld [vmem:[#allocation15 + $0x310] sm:$0xff]
    %v8552 = vld [vmem:[#allocation15 + $0x318] sm:$0xff]
    %v8553 = vld [vmem:[#allocation15 + $0x320] sm:$0xff]
    %v8554 = vld [vmem:[#allocation15 + $0x328] sm:$0xff]
    %v8555 = vld [vmem:[#allocation15 + $0x330] sm:$0xff]
    %v8556 = vld [vmem:[#allocation15 + $0x338] sm:$0xff]
    %v8557 = vld [vmem:[#allocation15 + $0x340] sm:$0xff]
    %v8558 = vld [vmem:[#allocation15 + $0x348] sm:$0xff]
    %v8559 = vld [vmem:[#allocation15 + $0x350] sm:$0xff]
    %v8560 = vld [vmem:[#allocation15 + $0x358] sm:$0xff]
    %v8561 = vld [vmem:[#allocation15 + $0x360] sm:$0xff]
    %v8562 = vld [vmem:[#allocation15 + $0x368] sm:$0xff]
    %v8563 = vld [vmem:[#allocation15 + $0x370] sm:$0xff]
    %v8564 = vld [vmem:[#allocation15 + $0x378] sm:$0xff]
    %v8565 = vld [vmem:[#allocation15 + $0x380] sm:$0xff]
    %v8566 = vld [vmem:[#allocation15 + $0x388] sm:$0xff]
    %v8567 = vld [vmem:[#allocation15 + $0x390] sm:$0xff]
    %v8568 = vld [vmem:[#allocation15 + $0x398] sm:$0xff]
    %v8569 = vld [vmem:[#allocation15 + $0x3a0] sm:$0xff]
    %v8570 = vld [vmem:[#allocation15 + $0x3a8] sm:$0xff]
    %v8571 = vld [vmem:[#allocation15 + $0x3b0] sm:$0xff]
    %v8572 = vld [vmem:[#allocation15 + $0x3b8] sm:$0xff]
    %v8573 = vld [vmem:[#allocation15 + $0x3c0] sm:$0xff]
    %v8574 = vld [vmem:[#allocation15 + $0x3c8] sm:$0xff]
    %v8575 = vld [vmem:[#allocation15 + $0x3d0] sm:$0xff]
    %v8576 = vld [vmem:[#allocation15 + $0x3d8] sm:$0xff]
    %v8577 = vld [vmem:[#allocation15 + $0x3e0] sm:$0xff]
    %v8578 = vld [vmem:[#allocation15 + $0x3e8] sm:$0xff]
    %v8579 = vld [vmem:[#allocation15 + $0x3f0] sm:$0xff]
    %v8580 = vld [vmem:[#allocation15 + $0x3f8] sm:$0xff]
    %v8581 = vld [vmem:[#allocation15 + $0x400] sm:$0xff]
    %v8582 = vld [vmem:[#allocation15 + $0x408] sm:$0xff]
    %v8583 = vld [vmem:[#allocation15 + $0x410] sm:$0xff]
    %v8584 = vld [vmem:[#allocation15 + $0x418] sm:$0xff]
    %v8585 = vld [vmem:[#allocation15 + $0x420] sm:$0xff]
    %v8586 = vld [vmem:[#allocation15 + $0x428] sm:$0xff]
    %v8587 = vld [vmem:[#allocation15 + $0x430] sm:$0xff]
    %v8588 = vld [vmem:[#allocation15 + $0x438] sm:$0xff]
    %v8589 = vld [vmem:[#allocation15 + $0x440] sm:$0xff]
    %v8590 = vld [vmem:[#allocation15 + $0x448] sm:$0xff]
    %v8591 = vld [vmem:[#allocation15 + $0x450] sm:$0xff]
    %v8592 = vld [vmem:[#allocation15 + $0x458] sm:$0xff]
    %v8593 = vld [vmem:[#allocation15 + $0x460] sm:$0xff]
    %v8594 = vld [vmem:[#allocation15 + $0x468] sm:$0xff]
    %v8595 = vld [vmem:[#allocation15 + $0x470] sm:$0xff]
    %v8596 = vld [vmem:[#allocation15 + $0x478] sm:$0xff]
    %v8597 = vld [vmem:[#allocation15 + $0x480] sm:$0xff]
    %v8598 = vld [vmem:[#allocation15 + $0x488] sm:$0xff]
    %v8599 = vld [vmem:[#allocation15 + $0x490] sm:$0xff]
    %v8600 = vld [vmem:[#allocation15 + $0x498] sm:$0xff]
    %v8601 = vld [vmem:[#allocation15 + $0x4a0] sm:$0xff]
    %v8602 = vld [vmem:[#allocation15 + $0x4a8] sm:$0xff]
    %v8603 = vld [vmem:[#allocation15 + $0x4b0] sm:$0xff]
    %v8604 = vld [vmem:[#allocation15 + $0x4b8] sm:$0xff]
    %v8605 = vld [vmem:[#allocation15 + $0x4c0] sm:$0xff]
    %v8606 = vld [vmem:[#allocation15 + $0x4c8] sm:$0xff]
    %v8607 = vld [vmem:[#allocation15 + $0x4d0] sm:$0xff]
    %v8608 = vld [vmem:[#allocation15 + $0x4d8] sm:$0xff]
    %v8609 = vld [vmem:[#allocation15 + $0x4e0] sm:$0xff]
    %v8610 = vld [vmem:[#allocation15 + $0x4e8] sm:$0xff]
    %v8611 = vld [vmem:[#allocation15 + $0x4f0] sm:$0xff]
    %v8612 = vld [vmem:[#allocation15 + $0x4f8] sm:$0xff]
    %v8613 = vld [vmem:[#allocation15 + $0x500] sm:$0xff]
    %v8614 = vld [vmem:[#allocation15 + $0x508] sm:$0xff]
    %v8615 = vld [vmem:[#allocation15 + $0x510] sm:$0xff]
    %v8616 = vld [vmem:[#allocation15 + $0x518] sm:$0xff]
    %v8617 = vld [vmem:[#allocation15 + $0x520] sm:$0xff]
    %v8618 = vld [vmem:[#allocation15 + $0x528] sm:$0xff]
    %v8619 = vld [vmem:[#allocation15 + $0x530] sm:$0xff]
    %v8620 = vld [vmem:[#allocation15 + $0x538] sm:$0xff]
    %v8621 = vld [vmem:[#allocation15 + $0x540] sm:$0xff]
    %v8622 = vld [vmem:[#allocation15 + $0x548] sm:$0xff]
    %v8623 = vld [vmem:[#allocation15 + $0x550] sm:$0xff]
    %v8624 = vld [vmem:[#allocation15 + $0x558] sm:$0xff]
    %v8625 = vld [vmem:[#allocation15 + $0x560] sm:$0xff]
    %v8626 = vld [vmem:[#allocation15 + $0x568] sm:$0xff]
    %v8627 = vld [vmem:[#allocation15 + $0x570] sm:$0xff]
    %v8628 = vld [vmem:[#allocation15 + $0x578] sm:$0xff]
    %v8629 = vld [vmem:[#allocation15 + $0x580] sm:$0xff]
    %v8630 = vld [vmem:[#allocation15 + $0x588] sm:$0xff]
    %v8631 = vld [vmem:[#allocation15 + $0x590] sm:$0xff]
    %v8632 = vld [vmem:[#allocation15 + $0x598] sm:$0xff]
    %v8633 = vld [vmem:[#allocation15 + $0x5a0] sm:$0xff]
    %v8634 = vld [vmem:[#allocation15 + $0x5a8] sm:$0xff]
    %v8635 = vld [vmem:[#allocation15 + $0x5b0] sm:$0xff]
    %v8636 = vld [vmem:[#allocation15 + $0x5b8] sm:$0xff]
    %v8637 = vld [vmem:[#allocation15 + $0x5c0] sm:$0xff]
    %v8638 = vld [vmem:[#allocation15 + $0x5c8] sm:$0xff]
    %v8639 = vld [vmem:[#allocation15 + $0x5d0] sm:$0xff]
    %v8640 = vld [vmem:[#allocation15 + $0x5d8] sm:$0xff]
    %v8641 = vld [vmem:[#allocation15 + $0x5e0] sm:$0xff]
    %v8642 = vld [vmem:[#allocation15 + $0x5e8] sm:$0xff]
    %v8643 = vld [vmem:[#allocation15 + $0x5f0] sm:$0xff]
    %v8644 = vld [vmem:[#allocation15 + $0x5f8] sm:$0xff]
    %v8645 = vld [vmem:[#allocation15 + $0x600] sm:$0xff]
    %v8646 = vld [vmem:[#allocation15 + $0x608] sm:$0xff]
    %v8647 = vld [vmem:[#allocation15 + $0x610] sm:$0xff]
    %v8648 = vld [vmem:[#allocation15 + $0x618] sm:$0xff]
    %v8649 = vld [vmem:[#allocation15 + $0x620] sm:$0xff]
    %v8650 = vld [vmem:[#allocation15 + $0x628] sm:$0xff]
    %v8651 = vld [vmem:[#allocation15 + $0x630] sm:$0xff]
    %v8652 = vld [vmem:[#allocation15 + $0x638] sm:$0xff]
    %v8653 = vld [vmem:[#allocation15 + $0x640] sm:$0xff]
    %v8654 = vld [vmem:[#allocation15 + $0x648] sm:$0xff]
    %v8655 = vld [vmem:[#allocation15 + $0x650] sm:$0xff]
    %v8656 = vld [vmem:[#allocation15 + $0x658] sm:$0xff]
    %v8657 = vld [vmem:[#allocation15 + $0x660] sm:$0xff]
    %v8658 = vld [vmem:[#allocation15 + $0x668] sm:$0xff]
    %v8659 = vld [vmem:[#allocation15 + $0x670] sm:$0xff]
    %v8660 = vld [vmem:[#allocation15 + $0x678] sm:$0xff]
    %v8661 = vld [vmem:[#allocation15 + $0x680] sm:$0xff]
    %v8662 = vld [vmem:[#allocation15 + $0x688] sm:$0xff]
    %v8663 = vld [vmem:[#allocation15 + $0x690] sm:$0xff]
    %v8664 = vld [vmem:[#allocation15 + $0x698] sm:$0xff]
    %v8665 = vld [vmem:[#allocation15 + $0x6a0] sm:$0xff]
    %v8666 = vld [vmem:[#allocation15 + $0x6a8] sm:$0xff]
    %v8667 = vld [vmem:[#allocation15 + $0x6b0] sm:$0xff]
    %v8668 = vld [vmem:[#allocation15 + $0x6b8] sm:$0xff]
    %v8669 = vld [vmem:[#allocation15 + $0x6c0] sm:$0xff]
    %v8670 = vld [vmem:[#allocation15 + $0x6c8] sm:$0xff]
    %v8671 = vld [vmem:[#allocation15 + $0x6d0] sm:$0xff]
    %v8672 = vld [vmem:[#allocation15 + $0x6d8] sm:$0xff]
    %v8673 = vld [vmem:[#allocation15 + $0x6e0] sm:$0xff]
    %v8674 = vld [vmem:[#allocation15 + $0x6e8] sm:$0xff]
    %v8675 = vld [vmem:[#allocation15 + $0x6f0] sm:$0xff]
    %v8676 = vld [vmem:[#allocation15 + $0x6f8] sm:$0xff]
    %v8677 = vld [vmem:[#allocation15 + $0x700] sm:$0xff]
    %v8678 = vld [vmem:[#allocation15 + $0x708] sm:$0xff]
    %v8679 = vld [vmem:[#allocation15 + $0x710] sm:$0xff]
    %v8680 = vld [vmem:[#allocation15 + $0x718] sm:$0xff]
    %v8681 = vld [vmem:[#allocation15 + $0x720] sm:$0xff]
    %v8682 = vld [vmem:[#allocation15 + $0x728] sm:$0xff]
    %v8683 = vld [vmem:[#allocation15 + $0x730] sm:$0xff]
    %v8684 = vld [vmem:[#allocation15 + $0x738] sm:$0xff]
    %v8685 = vld [vmem:[#allocation15 + $0x740] sm:$0xff]
    %v8686 = vld [vmem:[#allocation15 + $0x748] sm:$0xff]
    %v8687 = vld [vmem:[#allocation15 + $0x750] sm:$0xff]
    %v8688 = vld [vmem:[#allocation15 + $0x758] sm:$0xff]
    %v8689 = vld [vmem:[#allocation15 + $0x760] sm:$0xff]
    %v8690 = vld [vmem:[#allocation15 + $0x768] sm:$0xff]
    %v8691 = vld [vmem:[#allocation15 + $0x770] sm:$0xff]
    %v8692 = vld [vmem:[#allocation15 + $0x778] sm:$0xff]
    %v8693 = vld [vmem:[#allocation15 + $0x780] sm:$0xff]
    %v8694 = vld [vmem:[#allocation15 + $0x788] sm:$0xff]
    %v8695 = vld [vmem:[#allocation15 + $0x790] sm:$0xff]
    %v8696 = vld [vmem:[#allocation15 + $0x798] sm:$0xff]
    %v8697 = vld [vmem:[#allocation15 + $0x7a0] sm:$0xff]
    %v8698 = vld [vmem:[#allocation15 + $0x7a8] sm:$0xff]
    %v8699 = vld [vmem:[#allocation15 + $0x7b0] sm:$0xff]
    %v8700 = vld [vmem:[#allocation15 + $0x7b8] sm:$0xff]
    %v8701 = vld [vmem:[#allocation15 + $0x7c0] sm:$0xff]
    %v8702 = vld [vmem:[#allocation15 + $0x7c8] sm:$0xff]
    %v8703 = vld [vmem:[#allocation15 + $0x7d0] sm:$0xff]
    %v8704 = vld [vmem:[#allocation15 + $0x7d8] sm:$0xff]
    %v8705 = vld [vmem:[#allocation15 + $0x7e0] sm:$0xff]
    %v8706 = vld [vmem:[#allocation15 + $0x7e8] sm:$0xff]
    %v8707 = vld [vmem:[#allocation15 + $0x7f0] sm:$0xff]
    %v8708 = vld [vmem:[#allocation15 + $0x7f8] sm:$0xff]
    %v8709 = vld [vmem:[#allocation15 + $0x800] sm:$0xff]
    %v8710 = vld [vmem:[#allocation15 + $0x808] sm:$0xff]
    %v8711 = vld [vmem:[#allocation15 + $0x810] sm:$0xff]
    %v8712 = vld [vmem:[#allocation15 + $0x818] sm:$0xff]
    %v8713 = vld [vmem:[#allocation15 + $0x820] sm:$0xff]
    %v8714 = vld [vmem:[#allocation15 + $0x828] sm:$0xff]
    %v8715 = vld [vmem:[#allocation15 + $0x830] sm:$0xff]
    %v8716 = vld [vmem:[#allocation15 + $0x838] sm:$0xff]
    %v8717 = vld [vmem:[#allocation15 + $0x840] sm:$0xff]
    %v8718 = vld [vmem:[#allocation15 + $0x848] sm:$0xff]
    %v8719 = vld [vmem:[#allocation15 + $0x850] sm:$0xff]
    %v8720 = vld [vmem:[#allocation15 + $0x858] sm:$0xff]
    %v8721 = vld [vmem:[#allocation15 + $0x860] sm:$0xff]
    %v8722 = vld [vmem:[#allocation15 + $0x868] sm:$0xff]
    %v8723 = vld [vmem:[#allocation15 + $0x870] sm:$0xff]
    %v8724 = vld [vmem:[#allocation15 + $0x878] sm:$0xff]
    %v8725 = vld [vmem:[#allocation15 + $0x880] sm:$0xff]
    %v8726 = vld [vmem:[#allocation15 + $0x888] sm:$0xff]
    %v8727 = vld [vmem:[#allocation15 + $0x890] sm:$0xff]
    %v8728 = vld [vmem:[#allocation15 + $0x898] sm:$0xff]
    %v8729 = vld [vmem:[#allocation15 + $0x8a0] sm:$0xff]
    %v8730 = vld [vmem:[#allocation15 + $0x8a8] sm:$0xff]
    %v8731 = vld [vmem:[#allocation15 + $0x8b0] sm:$0xff]
    %v8732 = vld [vmem:[#allocation15 + $0x8b8] sm:$0xff]
    %v8733 = vld [vmem:[#allocation15 + $0x8c0] sm:$0xff]
    %v8734 = vld [vmem:[#allocation15 + $0x8c8] sm:$0xff]
    %v8735 = vld [vmem:[#allocation15 + $0x8d0] sm:$0xff]
    %v8736 = vld [vmem:[#allocation15 + $0x8d8] sm:$0xff]
    %v8737 = vld [vmem:[#allocation15 + $0x8e0] sm:$0xff]
    %v8738 = vld [vmem:[#allocation15 + $0x8e8] sm:$0xff]
    %v8739 = vld [vmem:[#allocation15 + $0x8f0] sm:$0xff]
    %v8740 = vld [vmem:[#allocation15 + $0x8f8] sm:$0xff]
    %v8741 = vld [vmem:[#allocation16] sm:$0xf]
    %v8743 = vlaneseq
    %v8744 = vshrl.u32 %v8743, 7
    %v8745 = vsub.s32 0, %v8744
    %v8746 = vrot.slane %v8741, %v8745
    %v8747 = vlaneseq
    %v8748 = vshrl.u32 %v8747, 7
    %v8749 = vsub.s32 1, %v8748
    %v8750 = vrot.slane %v8741, %v8749
    %v8751 = vlaneseq
    %v8752 = vshrl.u32 %v8751, 7
    %v8753 = vsub.s32 2, %v8752
    %v8754 = vrot.slane %v8741, %v8753
    %v8755 = vlaneseq
    %v8756 = vshrl.u32 %v8755, 7
    %v8757 = vsub.s32 3, %v8756
    %v8758 = vrot.slane %v8741, %v8757
    %v8763 = vpack.c.b16 %v8358, %v8355
    %v8764 = vpack.c.b16 %v8359, %v8356
    %v8765 = vpack.c.b16 %v8360, %v8357
    %v8766 = vpack.c.b16 %v8447, %v8441
    %v8767 = vpack.c.b16 %v8448, %v8442
    %v8768 = vpack.c.b16 %v8449, %v8443
    %v8769 = vpack.c.b16 %v8450, %v8444
    %v8770 = vpack.c.b16 %v8451, %v8445
    %v8771 = vpack.c.b16 %v8452, %v8446
    %v9069 = vunpack.c.l.b16 %v8453
    %v9070 = vunpack.c.h.b16 %v8453
    %v9071 = vunpack.c.l.b16 %v8454
    %v9072 = vunpack.c.h.b16 %v8454
    %v9073 = vunpack.c.l.b16 %v8455
    %v9074 = vunpack.c.h.b16 %v8455
    %v9075 = vunpack.c.l.b16 %v8456
    %v9076 = vunpack.c.h.b16 %v8456
    %v9077 = vunpack.c.l.b16 %v8457
    %v9078 = vunpack.c.h.b16 %v8457
    %v9079 = vunpack.c.l.b16 %v8458
    %v9080 = vunpack.c.h.b16 %v8458
    %v9081 = vunpack.c.l.b16 %v8459
    %v9082 = vunpack.c.h.b16 %v8459
    %v9083 = vunpack.c.l.b16 %v8460
    %v9084 = vunpack.c.h.b16 %v8460
    %v9085 = vunpack.c.l.b16 %v8461
    %v9086 = vunpack.c.h.b16 %v8461
    %v9087 = vunpack.c.l.b16 %v8462
    %v9088 = vunpack.c.h.b16 %v8462
    %v9089 = vunpack.c.l.b16 %v8463
    %v9090 = vunpack.c.h.b16 %v8463
    %v9091 = vunpack.c.l.b16 %v8464
    %v9092 = vunpack.c.h.b16 %v8464
    %v9093 = vunpack.c.l.b16 %v8465
    %v9094 = vunpack.c.h.b16 %v8465
    %v9095 = vunpack.c.l.b16 %v8466
    %v9096 = vunpack.c.h.b16 %v8466
    %v9097 = vunpack.c.l.b16 %v8467
    %v9098 = vunpack.c.h.b16 %v8467
    %v9099 = vunpack.c.l.b16 %v8468
    %v9100 = vunpack.c.h.b16 %v8468
    %v9101 = vunpack.c.l.b16 %v8469
    %v9102 = vunpack.c.h.b16 %v8469
    %v9103 = vunpack.c.l.b16 %v8470
    %v9104 = vunpack.c.h.b16 %v8470
    %v9105 = vunpack.c.l.b16 %v8471
    %v9106 = vunpack.c.h.b16 %v8471
    %v9107 = vunpack.c.l.b16 %v8472
    %v9108 = vunpack.c.h.b16 %v8472
    %v9109 = vunpack.c.l.b16 %v8473
    %v9110 = vunpack.c.h.b16 %v8473
    %v9111 = vunpack.c.l.b16 %v8474
    %v9112 = vunpack.c.h.b16 %v8474
    %v9113 = vunpack.c.l.b16 %v8475
    %v9114 = vunpack.c.h.b16 %v8475
    %v9115 = vunpack.c.l.b16 %v8476
    %v9116 = vunpack.c.h.b16 %v8476
    %v9117 = vunpack.c.l.b16 %v8477
    %v9118 = vunpack.c.h.b16 %v8477
    %v9119 = vunpack.c.l.b16 %v8478
    %v9120 = vunpack.c.h.b16 %v8478
    %v9121 = vunpack.c.l.b16 %v8479
    %v9122 = vunpack.c.h.b16 %v8479
    %v9123 = vunpack.c.l.b16 %v8480
    %v9124 = vunpack.c.h.b16 %v8480
    %v9125 = vunpack.c.l.b16 %v8481
    %v9126 = vunpack.c.h.b16 %v8481
    %v9127 = vunpack.c.l.b16 %v8482
    %v9128 = vunpack.c.h.b16 %v8482
    %v9129 = vunpack.c.l.b16 %v8483
    %v9130 = vunpack.c.h.b16 %v8483
    %v9131 = vunpack.c.l.b16 %v8484
    %v9132 = vunpack.c.h.b16 %v8484
    %v9133 = vunpack.c.l.b16 %v8485
    %v9134 = vunpack.c.h.b16 %v8485
    %v9135 = vunpack.c.l.b16 %v8486
    %v9136 = vunpack.c.h.b16 %v8486
    %v9137 = vunpack.c.l.b16 %v8487
    %v9138 = vunpack.c.h.b16 %v8487
    %v9139 = vunpack.c.l.b16 %v8488
    %v9140 = vunpack.c.h.b16 %v8488
    %v9141 = vunpack.c.l.b16 %v8489
    %v9142 = vunpack.c.h.b16 %v8489
    %v9143 = vunpack.c.l.b16 %v8490
    %v9144 = vunpack.c.h.b16 %v8490
    %v9145 = vunpack.c.l.b16 %v8491
    %v9146 = vunpack.c.h.b16 %v8491
    %v9147 = vunpack.c.l.b16 %v8492
    %v9148 = vunpack.c.h.b16 %v8492
    %v9149 = vunpack.c.l.b16 %v8493
    %v9150 = vunpack.c.h.b16 %v8493
    %v9151 = vunpack.c.l.b16 %v8494
    %v9152 = vunpack.c.h.b16 %v8494
    %v9153 = vunpack.c.l.b16 %v8495
    %v9154 = vunpack.c.h.b16 %v8495
    %v9155 = vunpack.c.l.b16 %v8496
    %v9156 = vunpack.c.h.b16 %v8496
    %v9157 = vunpack.c.l.b16 %v8497
    %v9158 = vunpack.c.h.b16 %v8497
    %v9159 = vunpack.c.l.b16 %v8498
    %v9160 = vunpack.c.h.b16 %v8498
    %v9161 = vunpack.c.l.b16 %v8499
    %v9162 = vunpack.c.h.b16 %v8499
    %v9163 = vunpack.c.l.b16 %v8500
    %v9164 = vunpack.c.h.b16 %v8500
    %v9165 = vunpack.c.l.b16 %v8501
    %v9166 = vunpack.c.h.b16 %v8501
    %v9167 = vunpack.c.l.b16 %v8502
    %v9168 = vunpack.c.h.b16 %v8502
    %v9169 = vunpack.c.l.b16 %v8503
    %v9170 = vunpack.c.h.b16 %v8503
    %v9171 = vunpack.c.l.b16 %v8504
    %v9172 = vunpack.c.h.b16 %v8504
    %v9173 = vunpack.c.l.b16 %v8505
    %v9174 = vunpack.c.h.b16 %v8505
    %v9175 = vunpack.c.l.b16 %v8506
    %v9176 = vunpack.c.h.b16 %v8506
    %v9177 = vunpack.c.l.b16 %v8507
    %v9178 = vunpack.c.h.b16 %v8507
    %v9179 = vunpack.c.l.b16 %v8508
    %v9180 = vunpack.c.h.b16 %v8508
    %v9181 = vunpack.c.l.b16 %v8509
    %v9182 = vunpack.c.h.b16 %v8509
    %v9183 = vunpack.c.l.b16 %v8510
    %v9184 = vunpack.c.h.b16 %v8510
    %v9185 = vunpack.c.l.b16 %v8511
    %v9186 = vunpack.c.h.b16 %v8511
    %v9187 = vunpack.c.l.b16 %v8512
    %v9188 = vunpack.c.h.b16 %v8512
    %v9189 = vunpack.c.l.b16 %v8513
    %v9190 = vunpack.c.h.b16 %v8513
    %v9191 = vunpack.c.l.b16 %v8514
    %v9192 = vunpack.c.h.b16 %v8514
    %v9193 = vunpack.c.l.b16 %v8515
    %v9194 = vunpack.c.h.b16 %v8515
    %v9195 = vunpack.c.l.b16 %v8516
    %v9196 = vunpack.c.h.b16 %v8516
    %v9197 = vunpack.c.l.b16 %v8517
    %v9198 = vunpack.c.h.b16 %v8517
    %v9199 = vunpack.c.l.b16 %v8518
    %v9200 = vunpack.c.h.b16 %v8518
    %v9201 = vunpack.c.l.b16 %v8519
    %v9202 = vunpack.c.h.b16 %v8519
    %v9203 = vunpack.c.l.b16 %v8520
    %v9204 = vunpack.c.h.b16 %v8520
    %v9205 = vunpack.c.l.b16 %v8521
    %v9206 = vunpack.c.h.b16 %v8521
    %v9207 = vunpack.c.l.b16 %v8522
    %v9208 = vunpack.c.h.b16 %v8522
    %v9209 = vunpack.c.l.b16 %v8523
    %v9210 = vunpack.c.h.b16 %v8523
    %v9211 = vunpack.c.l.b16 %v8524
    %v9212 = vunpack.c.h.b16 %v8524
    %v9213 = vunpack.c.l.b16 %v8525
    %v9214 = vunpack.c.h.b16 %v8525
    %v9215 = vunpack.c.l.b16 %v8526
    %v9216 = vunpack.c.h.b16 %v8526
    %v9217 = vunpack.c.l.b16 %v8527
    %v9218 = vunpack.c.h.b16 %v8527
    %v9219 = vunpack.c.l.b16 %v8528
    %v9220 = vunpack.c.h.b16 %v8528
    %v9221 = vunpack.c.l.b16 %v8529
    %v9222 = vunpack.c.h.b16 %v8529
    %v9223 = vunpack.c.l.b16 %v8530
    %v9224 = vunpack.c.h.b16 %v8530
    %v9225 = vunpack.c.l.b16 %v8531
    %v9226 = vunpack.c.h.b16 %v8531
    %v9227 = vunpack.c.l.b16 %v8532
    %v9228 = vunpack.c.h.b16 %v8532
    %v9229 = vunpack.c.l.b16 %v8533
    %v9230 = vunpack.c.h.b16 %v8533
    %v9231 = vunpack.c.l.b16 %v8534
    %v9232 = vunpack.c.h.b16 %v8534
    %v9233 = vunpack.c.l.b16 %v8535
    %v9234 = vunpack.c.h.b16 %v8535
    %v9235 = vunpack.c.l.b16 %v8536
    %v9236 = vunpack.c.h.b16 %v8536
    %v9237 = vunpack.c.l.b16 %v8537
    %v9238 = vunpack.c.h.b16 %v8537
    %v9239 = vunpack.c.l.b16 %v8538
    %v9240 = vunpack.c.h.b16 %v8538
    %v9241 = vunpack.c.l.b16 %v8539
    %v9242 = vunpack.c.h.b16 %v8539
    %v9243 = vunpack.c.l.b16 %v8540
    %v9244 = vunpack.c.h.b16 %v8540
    %v9245 = vunpack.c.l.b16 %v8541
    %v9246 = vunpack.c.h.b16 %v8541
    %v9247 = vunpack.c.l.b16 %v8542
    %v9248 = vunpack.c.h.b16 %v8542
    %v9249 = vunpack.c.l.b16 %v8543
    %v9250 = vunpack.c.h.b16 %v8543
    %v9251 = vunpack.c.l.b16 %v8544
    %v9252 = vunpack.c.h.b16 %v8544
    %v9253 = vunpack.c.l.b16 %v8545
    %v9254 = vunpack.c.h.b16 %v8545
    %v9255 = vunpack.c.l.b16 %v8546
    %v9256 = vunpack.c.h.b16 %v8546
    %v9257 = vunpack.c.l.b16 %v8547
    %v9258 = vunpack.c.h.b16 %v8547
    %v9259 = vunpack.c.l.b16 %v8548
    %v9260 = vunpack.c.h.b16 %v8548
    %v9261 = vunpack.c.l.b16 %v8549
    %v9262 = vunpack.c.h.b16 %v8549
    %v9263 = vunpack.c.l.b16 %v8550
    %v9264 = vunpack.c.h.b16 %v8550
    %v9265 = vunpack.c.l.b16 %v8551
    %v9266 = vunpack.c.h.b16 %v8551
    %v9267 = vunpack.c.l.b16 %v8552
    %v9268 = vunpack.c.h.b16 %v8552
    %v9269 = vunpack.c.l.b16 %v8553
    %v9270 = vunpack.c.h.b16 %v8553
    %v9271 = vunpack.c.l.b16 %v8554
    %v9272 = vunpack.c.h.b16 %v8554
    %v9273 = vunpack.c.l.b16 %v8555
    %v9274 = vunpack.c.h.b16 %v8555
    %v9275 = vunpack.c.l.b16 %v8556
    %v9276 = vunpack.c.h.b16 %v8556
    %v9277 = vunpack.c.l.b16 %v8557
    %v9278 = vunpack.c.h.b16 %v8557
    %v9279 = vunpack.c.l.b16 %v8558
    %v9280 = vunpack.c.h.b16 %v8558
    %v9281 = vunpack.c.l.b16 %v8559
    %v9282 = vunpack.c.h.b16 %v8559
    %v9283 = vunpack.c.l.b16 %v8560
    %v9284 = vunpack.c.h.b16 %v8560
    %v9285 = vunpack.c.l.b16 %v8561
    %v9286 = vunpack.c.h.b16 %v8561
    %v9287 = vunpack.c.l.b16 %v8562
    %v9288 = vunpack.c.h.b16 %v8562
    %v9289 = vunpack.c.l.b16 %v8563
    %v9290 = vunpack.c.h.b16 %v8563
    %v9291 = vunpack.c.l.b16 %v8564
    %v9292 = vunpack.c.h.b16 %v8564
    %v9293 = vunpack.c.l.b16 %v8565
    %v9294 = vunpack.c.h.b16 %v8565
    %v9295 = vunpack.c.l.b16 %v8566
    %v9296 = vunpack.c.h.b16 %v8566
    %v9297 = vunpack.c.l.b16 %v8567
    %v9298 = vunpack.c.h.b16 %v8567
    %v9299 = vunpack.c.l.b16 %v8568
    %v9300 = vunpack.c.h.b16 %v8568
    %v9301 = vunpack.c.l.b16 %v8569
    %v9302 = vunpack.c.h.b16 %v8569
    %v9303 = vunpack.c.l.b16 %v8570
    %v9304 = vunpack.c.h.b16 %v8570
    %v9305 = vunpack.c.l.b16 %v8571
    %v9306 = vunpack.c.h.b16 %v8571
    %v9307 = vunpack.c.l.b16 %v8572
    %v9308 = vunpack.c.h.b16 %v8572
    %v9309 = vunpack.c.l.b16 %v8573
    %v9310 = vunpack.c.h.b16 %v8573
    %v9311 = vunpack.c.l.b16 %v8574
    %v9312 = vunpack.c.h.b16 %v8574
    %v9313 = vunpack.c.l.b16 %v8575
    %v9314 = vunpack.c.h.b16 %v8575
    %v9315 = vunpack.c.l.b16 %v8576
    %v9316 = vunpack.c.h.b16 %v8576
    %v9317 = vunpack.c.l.b16 %v8577
    %v9318 = vunpack.c.h.b16 %v8577
    %v9319 = vunpack.c.l.b16 %v8578
    %v9320 = vunpack.c.h.b16 %v8578
    %v9321 = vunpack.c.l.b16 %v8579
    %v9322 = vunpack.c.h.b16 %v8579
    %v9323 = vunpack.c.l.b16 %v8580
    %v9324 = vunpack.c.h.b16 %v8580
    %v9325 = vunpack.c.l.b16 %v8581
    %v9326 = vunpack.c.h.b16 %v8581
    %v9327 = vunpack.c.l.b16 %v8582
    %v9328 = vunpack.c.h.b16 %v8582
    %v9329 = vunpack.c.l.b16 %v8583
    %v9330 = vunpack.c.h.b16 %v8583
    %v9331 = vunpack.c.l.b16 %v8584
    %v9332 = vunpack.c.h.b16 %v8584
    %v9333 = vunpack.c.l.b16 %v8585
    %v9334 = vunpack.c.h.b16 %v8585
    %v9335 = vunpack.c.l.b16 %v8586
    %v9336 = vunpack.c.h.b16 %v8586
    %v9337 = vunpack.c.l.b16 %v8587
    %v9338 = vunpack.c.h.b16 %v8587
    %v9339 = vunpack.c.l.b16 %v8588
    %v9340 = vunpack.c.h.b16 %v8588
    %v9341 = vunpack.c.l.b16 %v8589
    %v9342 = vunpack.c.h.b16 %v8589
    %v9343 = vunpack.c.l.b16 %v8590
    %v9344 = vunpack.c.h.b16 %v8590
    %v9345 = vunpack.c.l.b16 %v8591
    %v9346 = vunpack.c.h.b16 %v8591
    %v9347 = vunpack.c.l.b16 %v8592
    %v9348 = vunpack.c.h.b16 %v8592
    %v9349 = vunpack.c.l.b16 %v8593
    %v9350 = vunpack.c.h.b16 %v8593
    %v9351 = vunpack.c.l.b16 %v8594
    %v9352 = vunpack.c.h.b16 %v8594
    %v9353 = vunpack.c.l.b16 %v8595
    %v9354 = vunpack.c.h.b16 %v8595
    %v9355 = vunpack.c.l.b16 %v8596
    %v9356 = vunpack.c.h.b16 %v8596
    %v9357 = vunpack.c.l.b16 %v8597
    %v9358 = vunpack.c.h.b16 %v8597
    %v9359 = vunpack.c.l.b16 %v8598
    %v9360 = vunpack.c.h.b16 %v8598
    %v9361 = vunpack.c.l.b16 %v8599
    %v9362 = vunpack.c.h.b16 %v8599
    %v9363 = vunpack.c.l.b16 %v8600
    %v9364 = vunpack.c.h.b16 %v8600
    %v9365 = vunpack.c.l.b16 %v8601
    %v9366 = vunpack.c.h.b16 %v8601
    %v9367 = vunpack.c.l.b16 %v8602
    %v9368 = vunpack.c.h.b16 %v8602
    %v9369 = vunpack.c.l.b16 %v8603
    %v9370 = vunpack.c.h.b16 %v8603
    %v9371 = vunpack.c.l.b16 %v8604
    %v9372 = vunpack.c.h.b16 %v8604
    %v9373 = vunpack.c.l.b16 %v8605
    %v9374 = vunpack.c.h.b16 %v8605
    %v9375 = vunpack.c.l.b16 %v8606
    %v9376 = vunpack.c.h.b16 %v8606
    %v9377 = vunpack.c.l.b16 %v8607
    %v9378 = vunpack.c.h.b16 %v8607
    %v9379 = vunpack.c.l.b16 %v8608
    %v9380 = vunpack.c.h.b16 %v8608
    %v9381 = vunpack.c.l.b16 %v8609
    %v9382 = vunpack.c.h.b16 %v8609
    %v9383 = vunpack.c.l.b16 %v8610
    %v9384 = vunpack.c.h.b16 %v8610
    %v9385 = vunpack.c.l.b16 %v8611
    %v9386 = vunpack.c.h.b16 %v8611
    %v9387 = vunpack.c.l.b16 %v8612
    %v9388 = vunpack.c.h.b16 %v8612
    %v9389 = vunpack.c.l.b16 %v8613
    %v9390 = vunpack.c.h.b16 %v8613
    %v9391 = vunpack.c.l.b16 %v8614
    %v9392 = vunpack.c.h.b16 %v8614
    %v9393 = vunpack.c.l.b16 %v8615
    %v9394 = vunpack.c.h.b16 %v8615
    %v9395 = vunpack.c.l.b16 %v8616
    %v9396 = vunpack.c.h.b16 %v8616
    %v9397 = vunpack.c.l.b16 %v8617
    %v9398 = vunpack.c.h.b16 %v8617
    %v9399 = vunpack.c.l.b16 %v8618
    %v9400 = vunpack.c.h.b16 %v8618
    %v9401 = vunpack.c.l.b16 %v8619
    %v9402 = vunpack.c.h.b16 %v8619
    %v9403 = vunpack.c.l.b16 %v8620
    %v9404 = vunpack.c.h.b16 %v8620
    %v9405 = vunpack.c.l.b16 %v8621
    %v9406 = vunpack.c.h.b16 %v8621
    %v9407 = vunpack.c.l.b16 %v8622
    %v9408 = vunpack.c.h.b16 %v8622
    %v9409 = vunpack.c.l.b16 %v8623
    %v9410 = vunpack.c.h.b16 %v8623
    %v9411 = vunpack.c.l.b16 %v8624
    %v9412 = vunpack.c.h.b16 %v8624
    %v9413 = vunpack.c.l.b16 %v8625
    %v9414 = vunpack.c.h.b16 %v8625
    %v9415 = vunpack.c.l.b16 %v8626
    %v9416 = vunpack.c.h.b16 %v8626
    %v9417 = vunpack.c.l.b16 %v8627
    %v9418 = vunpack.c.h.b16 %v8627
    %v9419 = vunpack.c.l.b16 %v8628
    %v9420 = vunpack.c.h.b16 %v8628
    %v9421 = vunpack.c.l.b16 %v8629
    %v9422 = vunpack.c.h.b16 %v8629
    %v9423 = vunpack.c.l.b16 %v8630
    %v9424 = vunpack.c.h.b16 %v8630
    %v9425 = vunpack.c.l.b16 %v8631
    %v9426 = vunpack.c.h.b16 %v8631
    %v9427 = vunpack.c.l.b16 %v8632
    %v9428 = vunpack.c.h.b16 %v8632
    %v9429 = vunpack.c.l.b16 %v8633
    %v9430 = vunpack.c.h.b16 %v8633
    %v9431 = vunpack.c.l.b16 %v8634
    %v9432 = vunpack.c.h.b16 %v8634
    %v9433 = vunpack.c.l.b16 %v8635
    %v9434 = vunpack.c.h.b16 %v8635
    %v9435 = vunpack.c.l.b16 %v8636
    %v9436 = vunpack.c.h.b16 %v8636
    %v9437 = vunpack.c.l.b16 %v8637
    %v9438 = vunpack.c.h.b16 %v8637
    %v9439 = vunpack.c.l.b16 %v8638
    %v9440 = vunpack.c.h.b16 %v8638
    %v9441 = vunpack.c.l.b16 %v8639
    %v9442 = vunpack.c.h.b16 %v8639
    %v9443 = vunpack.c.l.b16 %v8640
    %v9444 = vunpack.c.h.b16 %v8640
    %v9445 = vunpack.c.l.b16 %v8641
    %v9446 = vunpack.c.h.b16 %v8641
    %v9447 = vunpack.c.l.b16 %v8642
    %v9448 = vunpack.c.h.b16 %v8642
    %v9449 = vunpack.c.l.b16 %v8643
    %v9450 = vunpack.c.h.b16 %v8643
    %v9451 = vunpack.c.l.b16 %v8644
    %v9452 = vunpack.c.h.b16 %v8644
    %v9453 = vunpack.c.l.b16 %v8645
    %v9454 = vunpack.c.h.b16 %v8645
    %v9455 = vunpack.c.l.b16 %v8646
    %v9456 = vunpack.c.h.b16 %v8646
    %v9457 = vunpack.c.l.b16 %v8647
    %v9458 = vunpack.c.h.b16 %v8647
    %v9459 = vunpack.c.l.b16 %v8648
    %v9460 = vunpack.c.h.b16 %v8648
    %v9461 = vunpack.c.l.b16 %v8649
    %v9462 = vunpack.c.h.b16 %v8649
    %v9463 = vunpack.c.l.b16 %v8650
    %v9464 = vunpack.c.h.b16 %v8650
    %v9465 = vunpack.c.l.b16 %v8651
    %v9466 = vunpack.c.h.b16 %v8651
    %v9467 = vunpack.c.l.b16 %v8652
    %v9468 = vunpack.c.h.b16 %v8652
    %v9469 = vunpack.c.l.b16 %v8653
    %v9470 = vunpack.c.h.b16 %v8653
    %v9471 = vunpack.c.l.b16 %v8654
    %v9472 = vunpack.c.h.b16 %v8654
    %v9473 = vunpack.c.l.b16 %v8655
    %v9474 = vunpack.c.h.b16 %v8655
    %v9475 = vunpack.c.l.b16 %v8656
    %v9476 = vunpack.c.h.b16 %v8656
    %v9477 = vunpack.c.l.b16 %v8657
    %v9478 = vunpack.c.h.b16 %v8657
    %v9479 = vunpack.c.l.b16 %v8658
    %v9480 = vunpack.c.h.b16 %v8658
    %v9481 = vunpack.c.l.b16 %v8659
    %v9482 = vunpack.c.h.b16 %v8659
    %v9483 = vunpack.c.l.b16 %v8660
    %v9484 = vunpack.c.h.b16 %v8660
    %v9485 = vunpack.c.l.b16 %v8661
    %v9486 = vunpack.c.h.b16 %v8661
    %v9487 = vunpack.c.l.b16 %v8662
    %v9488 = vunpack.c.h.b16 %v8662
    %v9489 = vunpack.c.l.b16 %v8663
    %v9490 = vunpack.c.h.b16 %v8663
    %v9491 = vunpack.c.l.b16 %v8664
    %v9492 = vunpack.c.h.b16 %v8664
    %v9493 = vunpack.c.l.b16 %v8665
    %v9494 = vunpack.c.h.b16 %v8665
    %v9495 = vunpack.c.l.b16 %v8666
    %v9496 = vunpack.c.h.b16 %v8666
    %v9497 = vunpack.c.l.b16 %v8667
    %v9498 = vunpack.c.h.b16 %v8667
    %v9499 = vunpack.c.l.b16 %v8668
    %v9500 = vunpack.c.h.b16 %v8668
    %v9501 = vunpack.c.l.b16 %v8669
    %v9502 = vunpack.c.h.b16 %v8669
    %v9503 = vunpack.c.l.b16 %v8670
    %v9504 = vunpack.c.h.b16 %v8670
    %v9505 = vunpack.c.l.b16 %v8671
    %v9506 = vunpack.c.h.b16 %v8671
    %v9507 = vunpack.c.l.b16 %v8672
    %v9508 = vunpack.c.h.b16 %v8672
    %v9509 = vunpack.c.l.b16 %v8673
    %v9510 = vunpack.c.h.b16 %v8673
    %v9511 = vunpack.c.l.b16 %v8674
    %v9512 = vunpack.c.h.b16 %v8674
    %v9513 = vunpack.c.l.b16 %v8675
    %v9514 = vunpack.c.h.b16 %v8675
    %v9515 = vunpack.c.l.b16 %v8676
    %v9516 = vunpack.c.h.b16 %v8676
    %v9517 = vunpack.c.l.b16 %v8677
    %v9518 = vunpack.c.h.b16 %v8677
    %v9519 = vunpack.c.l.b16 %v8678
    %v9520 = vunpack.c.h.b16 %v8678
    %v9521 = vunpack.c.l.b16 %v8679
    %v9522 = vunpack.c.h.b16 %v8679
    %v9523 = vunpack.c.l.b16 %v8680
    %v9524 = vunpack.c.h.b16 %v8680
    %v9525 = vunpack.c.l.b16 %v8681
    %v9526 = vunpack.c.h.b16 %v8681
    %v9527 = vunpack.c.l.b16 %v8682
    %v9528 = vunpack.c.h.b16 %v8682
    %v9529 = vunpack.c.l.b16 %v8683
    %v9530 = vunpack.c.h.b16 %v8683
    %v9531 = vunpack.c.l.b16 %v8684
    %v9532 = vunpack.c.h.b16 %v8684
    %v9533 = vunpack.c.l.b16 %v8685
    %v9534 = vunpack.c.h.b16 %v8685
    %v9535 = vunpack.c.l.b16 %v8686
    %v9536 = vunpack.c.h.b16 %v8686
    %v9537 = vunpack.c.l.b16 %v8687
    %v9538 = vunpack.c.h.b16 %v8687
    %v9539 = vunpack.c.l.b16 %v8688
    %v9540 = vunpack.c.h.b16 %v8688
    %v9541 = vunpack.c.l.b16 %v8689
    %v9542 = vunpack.c.h.b16 %v8689
    %v9543 = vunpack.c.l.b16 %v8690
    %v9544 = vunpack.c.h.b16 %v8690
    %v9545 = vunpack.c.l.b16 %v8691
    %v9546 = vunpack.c.h.b16 %v8691
    %v9547 = vunpack.c.l.b16 %v8692
    %v9548 = vunpack.c.h.b16 %v8692
    %v9549 = vunpack.c.l.b16 %v8693
    %v9550 = vunpack.c.h.b16 %v8693
    %v9551 = vunpack.c.l.b16 %v8694
    %v9552 = vunpack.c.h.b16 %v8694
    %v9553 = vunpack.c.l.b16 %v8695
    %v9554 = vunpack.c.h.b16 %v8695
    %v9555 = vunpack.c.l.b16 %v8696
    %v9556 = vunpack.c.h.b16 %v8696
    %v9557 = vunpack.c.l.b16 %v8697
    %v9558 = vunpack.c.h.b16 %v8697
    %v9559 = vunpack.c.l.b16 %v8698
    %v9560 = vunpack.c.h.b16 %v8698
    %v9561 = vunpack.c.l.b16 %v8699
    %v9562 = vunpack.c.h.b16 %v8699
    %v9563 = vunpack.c.l.b16 %v8700
    %v9564 = vunpack.c.h.b16 %v8700
    %v9565 = vunpack.c.l.b16 %v8701
    %v9566 = vunpack.c.h.b16 %v8701
    %v9567 = vunpack.c.l.b16 %v8702
    %v9568 = vunpack.c.h.b16 %v8702
    %v9569 = vunpack.c.l.b16 %v8703
    %v9570 = vunpack.c.h.b16 %v8703
    %v9571 = vunpack.c.l.b16 %v8704
    %v9572 = vunpack.c.h.b16 %v8704
    %v9573 = vunpack.c.l.b16 %v8705
    %v9574 = vunpack.c.h.b16 %v8705
    %v9575 = vunpack.c.l.b16 %v8706
    %v9576 = vunpack.c.h.b16 %v8706
    %v9577 = vunpack.c.l.b16 %v8707
    %v9578 = vunpack.c.h.b16 %v8707
    %v9579 = vunpack.c.l.b16 %v8708
    %v9580 = vunpack.c.h.b16 %v8708
    %v9581 = vunpack.c.l.b16 %v8709
    %v9582 = vunpack.c.h.b16 %v8709
    %v9583 = vunpack.c.l.b16 %v8710
    %v9584 = vunpack.c.h.b16 %v8710
    %v9585 = vunpack.c.l.b16 %v8711
    %v9586 = vunpack.c.h.b16 %v8711
    %v9587 = vunpack.c.l.b16 %v8712
    %v9588 = vunpack.c.h.b16 %v8712
    %v9589 = vunpack.c.l.b16 %v8713
    %v9590 = vunpack.c.h.b16 %v8713
    %v9591 = vunpack.c.l.b16 %v8714
    %v9592 = vunpack.c.h.b16 %v8714
    %v9593 = vunpack.c.l.b16 %v8715
    %v9594 = vunpack.c.h.b16 %v8715
    %v9595 = vunpack.c.l.b16 %v8716
    %v9596 = vunpack.c.h.b16 %v8716
    %v9597 = vunpack.c.l.b16 %v8717
    %v9598 = vunpack.c.h.b16 %v8717
    %v9599 = vunpack.c.l.b16 %v8718
    %v9600 = vunpack.c.h.b16 %v8718
    %v9601 = vunpack.c.l.b16 %v8719
    %v9602 = vunpack.c.h.b16 %v8719
    %v9603 = vunpack.c.l.b16 %v8720
    %v9604 = vunpack.c.h.b16 %v8720
    %v9605 = vunpack.c.l.b16 %v8721
    %v9606 = vunpack.c.h.b16 %v8721
    %v9607 = vunpack.c.l.b16 %v8722
    %v9608 = vunpack.c.h.b16 %v8722
    %v9609 = vunpack.c.l.b16 %v8723
    %v9610 = vunpack.c.h.b16 %v8723
    %v9611 = vunpack.c.l.b16 %v8724
    %v9612 = vunpack.c.h.b16 %v8724
    %v9613 = vunpack.c.l.b16 %v8725
    %v9614 = vunpack.c.h.b16 %v8725
    %v9615 = vunpack.c.l.b16 %v8726
    %v9616 = vunpack.c.h.b16 %v8726
    %v9617 = vunpack.c.l.b16 %v8727
    %v9618 = vunpack.c.h.b16 %v8727
    %v9619 = vunpack.c.l.b16 %v8728
    %v9620 = vunpack.c.h.b16 %v8728
    %v9621 = vunpack.c.l.b16 %v8729
    %v9622 = vunpack.c.h.b16 %v8729
    %v9623 = vunpack.c.l.b16 %v8730
    %v9624 = vunpack.c.h.b16 %v8730
    %v9625 = vunpack.c.l.b16 %v8731
    %v9626 = vunpack.c.h.b16 %v8731
    %v9627 = vunpack.c.l.b16 %v8732
    %v9628 = vunpack.c.h.b16 %v8732
    %v9629 = vunpack.c.l.b16 %v8733
    %v9630 = vunpack.c.h.b16 %v8733
    %v9631 = vunpack.c.l.b16 %v8734
    %v9632 = vunpack.c.h.b16 %v8734
    %v9633 = vunpack.c.l.b16 %v8735
    %v9634 = vunpack.c.h.b16 %v8735
    %v9635 = vunpack.c.l.b16 %v8736
    %v9636 = vunpack.c.h.b16 %v8736
    %v9637 = vunpack.c.l.b16 %v8737
    %v9638 = vunpack.c.h.b16 %v8737
    %v9639 = vunpack.c.l.b16 %v8738
    %v9640 = vunpack.c.h.b16 %v8738
    %v9641 = vunpack.c.l.b16 %v8739
    %v9642 = vunpack.c.h.b16 %v8739
    %v9643 = vunpack.c.l.b16 %v8740
    %v9644 = vunpack.c.h.b16 %v8740
    %v9645 = vpack.c.b16 %v9073, %v9069
    %v9646 = vpack.c.b16 %v9074, %v9070
    %v9647 = vpack.c.b16 %v9075, %v9071
    %v9648 = vpack.c.b16 %v9076, %v9072
    %v9649 = vpack.c.b16 %v9081, %v9077
    %v9650 = vpack.c.b16 %v9082, %v9078
    %v9651 = vpack.c.b16 %v9083, %v9079
    %v9652 = vpack.c.b16 %v9084, %v9080
    %v9653 = vpack.c.b16 %v9089, %v9085
    %v9654 = vpack.c.b16 %v9090, %v9086
    %v9655 = vpack.c.b16 %v9091, %v9087
    %v9656 = vpack.c.b16 %v9092, %v9088
    %v9657 = vpack.c.b16 %v9097, %v9093
    %v9658 = vpack.c.b16 %v9098, %v9094
    %v9659 = vpack.c.b16 %v9099, %v9095
    %v9660 = vpack.c.b16 %v9100, %v9096
    %v9661 = vpack.c.b16 %v9105, %v9101
    %v9662 = vpack.c.b16 %v9106, %v9102
    %v9663 = vpack.c.b16 %v9107, %v9103
    %v9664 = vpack.c.b16 %v9108, %v9104
    %v9665 = vpack.c.b16 %v9113, %v9109
    %v9666 = vpack.c.b16 %v9114, %v9110
    %v9667 = vpack.c.b16 %v9115, %v9111
    %v9668 = vpack.c.b16 %v9116, %v9112
    %v9669 = vpack.c.b16 %v9121, %v9117
    %v9670 = vpack.c.b16 %v9122, %v9118
    %v9671 = vpack.c.b16 %v9123, %v9119
    %v9672 = vpack.c.b16 %v9124, %v9120
    %v9673 = vpack.c.b16 %v9129, %v9125
    %v9674 = vpack.c.b16 %v9130, %v9126
    %v9675 = vpack.c.b16 %v9131, %v9127
    %v9676 = vpack.c.b16 %v9132, %v9128
    %v9677 = vpack.c.b16 %v9137, %v9133
    %v9678 = vpack.c.b16 %v9138, %v9134
    %v9679 = vpack.c.b16 %v9139, %v9135
    %v9680 = vpack.c.b16 %v9140, %v9136
    %v9681 = vpack.c.b16 %v9145, %v9141
    %v9682 = vpack.c.b16 %v9146, %v9142
    %v9683 = vpack.c.b16 %v9147, %v9143
    %v9684 = vpack.c.b16 %v9148, %v9144
    %v9685 = vpack.c.b16 %v9153, %v9149
    %v9686 = vpack.c.b16 %v9154, %v9150
    %v9687 = vpack.c.b16 %v9155, %v9151
    %v9688 = vpack.c.b16 %v9156, %v9152
    %v9689 = vpack.c.b16 %v9161, %v9157
    %v9690 = vpack.c.b16 %v9162, %v9158
    %v9691 = vpack.c.b16 %v9163, %v9159
    %v9692 = vpack.c.b16 %v9164, %v9160
    %v9693 = vpack.c.b16 %v9169, %v9165
    %v9694 = vpack.c.b16 %v9170, %v9166
    %v9695 = vpack.c.b16 %v9171, %v9167
    %v9696 = vpack.c.b16 %v9172, %v9168
    %v9697 = vpack.c.b16 %v9177, %v9173
    %v9698 = vpack.c.b16 %v9178, %v9174
    %v9699 = vpack.c.b16 %v9179, %v9175
    %v9700 = vpack.c.b16 %v9180, %v9176
    %v9701 = vpack.c.b16 %v9185, %v9181
    %v9702 = vpack.c.b16 %v9186, %v9182
    %v9703 = vpack.c.b16 %v9187, %v9183
    %v9704 = vpack.c.b16 %v9188, %v9184
    %v9705 = vpack.c.b16 %v9193, %v9189
    %v9706 = vpack.c.b16 %v9194, %v9190
    %v9707 = vpack.c.b16 %v9195, %v9191
    %v9708 = vpack.c.b16 %v9196, %v9192
    %v9709 = vpack.c.b16 %v9201, %v9197
    %v9710 = vpack.c.b16 %v9202, %v9198
    %v9711 = vpack.c.b16 %v9203, %v9199
    %v9712 = vpack.c.b16 %v9204, %v9200
    %v9713 = vpack.c.b16 %v9209, %v9205
    %v9714 = vpack.c.b16 %v9210, %v9206
    %v9715 = vpack.c.b16 %v9211, %v9207
    %v9716 = vpack.c.b16 %v9212, %v9208
    %v9717 = vpack.c.b16 %v9217, %v9213
    %v9718 = vpack.c.b16 %v9218, %v9214
    %v9719 = vpack.c.b16 %v9219, %v9215
    %v9720 = vpack.c.b16 %v9220, %v9216
    %v9721 = vpack.c.b16 %v9225, %v9221
    %v9722 = vpack.c.b16 %v9226, %v9222
    %v9723 = vpack.c.b16 %v9227, %v9223
    %v9724 = vpack.c.b16 %v9228, %v9224
    %v9725 = vpack.c.b16 %v9233, %v9229
    %v9726 = vpack.c.b16 %v9234, %v9230
    %v9727 = vpack.c.b16 %v9235, %v9231
    %v9728 = vpack.c.b16 %v9236, %v9232
    %v9729 = vpack.c.b16 %v9241, %v9237
    %v9730 = vpack.c.b16 %v9242, %v9238
    %v9731 = vpack.c.b16 %v9243, %v9239
    %v9732 = vpack.c.b16 %v9244, %v9240
    %v9733 = vpack.c.b16 %v9249, %v9245
    %v9734 = vpack.c.b16 %v9250, %v9246
    %v9735 = vpack.c.b16 %v9251, %v9247
    %v9736 = vpack.c.b16 %v9252, %v9248
    %v9737 = vpack.c.b16 %v9257, %v9253
    %v9738 = vpack.c.b16 %v9258, %v9254
    %v9739 = vpack.c.b16 %v9259, %v9255
    %v9740 = vpack.c.b16 %v9260, %v9256
    %v9741 = vpack.c.b16 %v9265, %v9261
    %v9742 = vpack.c.b16 %v9266, %v9262
    %v9743 = vpack.c.b16 %v9267, %v9263
    %v9744 = vpack.c.b16 %v9268, %v9264
    %v9745 = vpack.c.b16 %v9273, %v9269
    %v9746 = vpack.c.b16 %v9274, %v9270
    %v9747 = vpack.c.b16 %v9275, %v9271
    %v9748 = vpack.c.b16 %v9276, %v9272
    %v9749 = vpack.c.b16 %v9281, %v9277
    %v9750 = vpack.c.b16 %v9282, %v9278
    %v9751 = vpack.c.b16 %v9283, %v9279
    %v9752 = vpack.c.b16 %v9284, %v9280
    %v9753 = vpack.c.b16 %v9289, %v9285
    %v9754 = vpack.c.b16 %v9290, %v9286
    %v9755 = vpack.c.b16 %v9291, %v9287
    %v9756 = vpack.c.b16 %v9292, %v9288
    %v9757 = vpack.c.b16 %v9297, %v9293
    %v9758 = vpack.c.b16 %v9298, %v9294
    %v9759 = vpack.c.b16 %v9299, %v9295
    %v9760 = vpack.c.b16 %v9300, %v9296
    %v9761 = vpack.c.b16 %v9305, %v9301
    %v9762 = vpack.c.b16 %v9306, %v9302
    %v9763 = vpack.c.b16 %v9307, %v9303
    %v9764 = vpack.c.b16 %v9308, %v9304
    %v9765 = vpack.c.b16 %v9313, %v9309
    %v9766 = vpack.c.b16 %v9314, %v9310
    %v9767 = vpack.c.b16 %v9315, %v9311
    %v9768 = vpack.c.b16 %v9316, %v9312
    %v9769 = vpack.c.b16 %v9321, %v9317
    %v9770 = vpack.c.b16 %v9322, %v9318
    %v9771 = vpack.c.b16 %v9323, %v9319
    %v9772 = vpack.c.b16 %v9324, %v9320
    %v9773 = vpack.c.b16 %v9329, %v9325
    %v9774 = vpack.c.b16 %v9330, %v9326
    %v9775 = vpack.c.b16 %v9331, %v9327
    %v9776 = vpack.c.b16 %v9332, %v9328
    %v9777 = vpack.c.b16 %v9337, %v9333
    %v9778 = vpack.c.b16 %v9338, %v9334
    %v9779 = vpack.c.b16 %v9339, %v9335
    %v9780 = vpack.c.b16 %v9340, %v9336
    %v9781 = vpack.c.b16 %v9345, %v9341
    %v9782 = vpack.c.b16 %v9346, %v9342
    %v9783 = vpack.c.b16 %v9347, %v9343
    %v9784 = vpack.c.b16 %v9348, %v9344
    %v9785 = vpack.c.b16 %v9353, %v9349
    %v9786 = vpack.c.b16 %v9354, %v9350
    %v9787 = vpack.c.b16 %v9355, %v9351
    %v9788 = vpack.c.b16 %v9356, %v9352
    %v9789 = vpack.c.b16 %v9361, %v9357
    %v9790 = vpack.c.b16 %v9362, %v9358
    %v9791 = vpack.c.b16 %v9363, %v9359
    %v9792 = vpack.c.b16 %v9364, %v9360
    %v9793 = vpack.c.b16 %v9369, %v9365
    %v9794 = vpack.c.b16 %v9370, %v9366
    %v9795 = vpack.c.b16 %v9371, %v9367
    %v9796 = vpack.c.b16 %v9372, %v9368
    %v9797 = vpack.c.b16 %v9377, %v9373
    %v9798 = vpack.c.b16 %v9378, %v9374
    %v9799 = vpack.c.b16 %v9379, %v9375
    %v9800 = vpack.c.b16 %v9380, %v9376
    %v9801 = vpack.c.b16 %v9385, %v9381
    %v9802 = vpack.c.b16 %v9386, %v9382
    %v9803 = vpack.c.b16 %v9387, %v9383
    %v9804 = vpack.c.b16 %v9388, %v9384
    %v9805 = vpack.c.b16 %v9393, %v9389
    %v9806 = vpack.c.b16 %v9394, %v9390
    %v9807 = vpack.c.b16 %v9395, %v9391
    %v9808 = vpack.c.b16 %v9396, %v9392
    %v9809 = vpack.c.b16 %v9401, %v9397
    %v9810 = vpack.c.b16 %v9402, %v9398
    %v9811 = vpack.c.b16 %v9403, %v9399
    %v9812 = vpack.c.b16 %v9404, %v9400
    %v9813 = vpack.c.b16 %v9409, %v9405
    %v9814 = vpack.c.b16 %v9410, %v9406
    %v9815 = vpack.c.b16 %v9411, %v9407
    %v9816 = vpack.c.b16 %v9412, %v9408
    %v9817 = vpack.c.b16 %v9417, %v9413
    %v9818 = vpack.c.b16 %v9418, %v9414
    %v9819 = vpack.c.b16 %v9419, %v9415
    %v9820 = vpack.c.b16 %v9420, %v9416
    %v9821 = vpack.c.b16 %v9425, %v9421
    %v9822 = vpack.c.b16 %v9426, %v9422
    %v9823 = vpack.c.b16 %v9427, %v9423
    %v9824 = vpack.c.b16 %v9428, %v9424
    %v9825 = vpack.c.b16 %v9433, %v9429
    %v9826 = vpack.c.b16 %v9434, %v9430
    %v9827 = vpack.c.b16 %v9435, %v9431
    %v9828 = vpack.c.b16 %v9436, %v9432
    %v9829 = vpack.c.b16 %v9441, %v9437
    %v9830 = vpack.c.b16 %v9442, %v9438
    %v9831 = vpack.c.b16 %v9443, %v9439
    %v9832 = vpack.c.b16 %v9444, %v9440
    %v9833 = vpack.c.b16 %v9449, %v9445
    %v9834 = vpack.c.b16 %v9450, %v9446
    %v9835 = vpack.c.b16 %v9451, %v9447
    %v9836 = vpack.c.b16 %v9452, %v9448
    %v9837 = vpack.c.b16 %v9457, %v9453
    %v9838 = vpack.c.b16 %v9458, %v9454
    %v9839 = vpack.c.b16 %v9459, %v9455
    %v9840 = vpack.c.b16 %v9460, %v9456
    %v9841 = vpack.c.b16 %v9465, %v9461
    %v9842 = vpack.c.b16 %v9466, %v9462
    %v9843 = vpack.c.b16 %v9467, %v9463
    %v9844 = vpack.c.b16 %v9468, %v9464
    %v9845 = vpack.c.b16 %v9473, %v9469
    %v9846 = vpack.c.b16 %v9474, %v9470
    %v9847 = vpack.c.b16 %v9475, %v9471
    %v9848 = vpack.c.b16 %v9476, %v9472
    %v9849 = vpack.c.b16 %v9481, %v9477
    %v9850 = vpack.c.b16 %v9482, %v9478
    %v9851 = vpack.c.b16 %v9483, %v9479
    %v9852 = vpack.c.b16 %v9484, %v9480
    %v9853 = vpack.c.b16 %v9489, %v9485
    %v9854 = vpack.c.b16 %v9490, %v9486
    %v9855 = vpack.c.b16 %v9491, %v9487
    %v9856 = vpack.c.b16 %v9492, %v9488
    %v9857 = vpack.c.b16 %v9497, %v9493
    %v9858 = vpack.c.b16 %v9498, %v9494
    %v9859 = vpack.c.b16 %v9499, %v9495
    %v9860 = vpack.c.b16 %v9500, %v9496
    %v9861 = vpack.c.b16 %v9505, %v9501
    %v9862 = vpack.c.b16 %v9506, %v9502
    %v9863 = vpack.c.b16 %v9507, %v9503
    %v9864 = vpack.c.b16 %v9508, %v9504
    %v9865 = vpack.c.b16 %v9513, %v9509
    %v9866 = vpack.c.b16 %v9514, %v9510
    %v9867 = vpack.c.b16 %v9515, %v9511
    %v9868 = vpack.c.b16 %v9516, %v9512
    %v9869 = vpack.c.b16 %v9521, %v9517
    %v9870 = vpack.c.b16 %v9522, %v9518
    %v9871 = vpack.c.b16 %v9523, %v9519
    %v9872 = vpack.c.b16 %v9524, %v9520
    %v9873 = vpack.c.b16 %v9529, %v9525
    %v9874 = vpack.c.b16 %v9530, %v9526
    %v9875 = vpack.c.b16 %v9531, %v9527
    %v9876 = vpack.c.b16 %v9532, %v9528
    %v9877 = vpack.c.b16 %v9537, %v9533
    %v9878 = vpack.c.b16 %v9538, %v9534
    %v9879 = vpack.c.b16 %v9539, %v9535
    %v9880 = vpack.c.b16 %v9540, %v9536
    %v9881 = vpack.c.b16 %v9545, %v9541
    %v9882 = vpack.c.b16 %v9546, %v9542
    %v9883 = vpack.c.b16 %v9547, %v9543
    %v9884 = vpack.c.b16 %v9548, %v9544
    %v9885 = vpack.c.b16 %v9553, %v9549
    %v9886 = vpack.c.b16 %v9554, %v9550
    %v9887 = vpack.c.b16 %v9555, %v9551
    %v9888 = vpack.c.b16 %v9556, %v9552
    %v9889 = vpack.c.b16 %v9561, %v9557
    %v9890 = vpack.c.b16 %v9562, %v9558
    %v9891 = vpack.c.b16 %v9563, %v9559
    %v9892 = vpack.c.b16 %v9564, %v9560
    %v9893 = vpack.c.b16 %v9569, %v9565
    %v9894 = vpack.c.b16 %v9570, %v9566
    %v9895 = vpack.c.b16 %v9571, %v9567
    %v9896 = vpack.c.b16 %v9572, %v9568
    %v9897 = vpack.c.b16 %v9577, %v9573
    %v9898 = vpack.c.b16 %v9578, %v9574
    %v9899 = vpack.c.b16 %v9579, %v9575
    %v9900 = vpack.c.b16 %v9580, %v9576
    %v9901 = vpack.c.b16 %v9585, %v9581
    %v9902 = vpack.c.b16 %v9586, %v9582
    %v9903 = vpack.c.b16 %v9587, %v9583
    %v9904 = vpack.c.b16 %v9588, %v9584
    %v9905 = vpack.c.b16 %v9593, %v9589
    %v9906 = vpack.c.b16 %v9594, %v9590
    %v9907 = vpack.c.b16 %v9595, %v9591
    %v9908 = vpack.c.b16 %v9596, %v9592
    %v9909 = vpack.c.b16 %v9601, %v9597
    %v9910 = vpack.c.b16 %v9602, %v9598
    %v9911 = vpack.c.b16 %v9603, %v9599
    %v9912 = vpack.c.b16 %v9604, %v9600
    %v9913 = vpack.c.b16 %v9609, %v9605
    %v9914 = vpack.c.b16 %v9610, %v9606
    %v9915 = vpack.c.b16 %v9611, %v9607
    %v9916 = vpack.c.b16 %v9612, %v9608
    %v9917 = vpack.c.b16 %v9617, %v9613
    %v9918 = vpack.c.b16 %v9618, %v9614
    %v9919 = vpack.c.b16 %v9619, %v9615
    %v9920 = vpack.c.b16 %v9620, %v9616
    %v9921 = vpack.c.b16 %v9625, %v9621
    %v9922 = vpack.c.b16 %v9626, %v9622
    %v9923 = vpack.c.b16 %v9627, %v9623
    %v9924 = vpack.c.b16 %v9628, %v9624
    %v9925 = vpack.c.b16 %v9633, %v9629
    %v9926 = vpack.c.b16 %v9634, %v9630
    %v9927 = vpack.c.b16 %v9635, %v9631
    %v9928 = vpack.c.b16 %v9636, %v9632
    %v9929 = vpack.c.b16 %v9641, %v9637
    %v9930 = vpack.c.b16 %v9642, %v9638
    %v9931 = vpack.c.b16 %v9643, %v9639
    %v9932 = vpack.c.b16 %v9644, %v9640
    %10221 = vmatprep.subr.bf16.mxu0 %v9646
    %10222 = vmatpush1.bf16.msra.mxu0 %v9645
    %10223 = vmatprep.subr.bf16.mxu0 %v9650
    %10224 = vmatpush1.bf16.msra.mxu0 %v9649
    %10225 = vmatprep.subr.bf16.mxu0 %v9654
    %10226 = vmatpush1.bf16.msra.mxu0 %v9653
    %10227 = vmatprep.subr.bf16.mxu0 %v9658
    %10228 = vmatpush1.bf16.msra.mxu0 %v9657
    %10229 = vmatprep.subr.bf16.mxu0 %v9662
    %10230 = vmatpush1.bf16.msra.mxu0 %v9661
    %10231 = vmatprep.subr.bf16.mxu0 %v9666
    %10232 = vmatpush1.bf16.msra.mxu0 %v9665
    %10233 = vmatprep.subr.bf16.mxu0 %v9670
    %10234 = vmatpush1.bf16.msra.mxu0 %v9669
    %10235 = vmatprep.subr.bf16.mxu0 %v9674
    %10236 = vmatpush1.bf16.msra.mxu0 %v9673
    %10237 = vmatprep.subr.bf16.mxu0 %v9678
    %10238 = vmatpush1.bf16.msra.mxu0 %v9677
    %10239 = vmatprep.subr.bf16.mxu0 %v9682
    %10240 = vmatpush1.bf16.msra.mxu0 %v9681
    %10241 = vmatprep.subr.bf16.mxu0 %v9686
    %10242 = vmatpush1.bf16.msra.mxu0 %v9685
    %10243 = vmatprep.subr.bf16.mxu0 %v9690
    %10244 = vmatpush1.bf16.msra.mxu0 %v9689
    %10245 = vmatprep.subr.bf16.mxu0 %v9694
    %10246 = vmatpush1.bf16.msra.mxu0 %v9693
    %10247 = vmatprep.subr.bf16.mxu0 %v9698
    %10248 = vmatpush1.bf16.msra.mxu0 %v9697
    %10249 = vmatprep.subr.bf16.mxu0 %v9702
    %10250 = vmatpush1.bf16.msra.mxu0 %v9701
    %10251 = vmatprep.subr.bf16.mxu0 %v9706
    %10252 = vmatpush1.bf16.msra.mxu0 %v9705
    %10253 = vmatprep.mubr.bf16.mxu0 %v8764
    %10254 = vmatmul.mubr.bf16.gmra.mrb[0].mxu0 %v8763
    %v10255 = vpop.f32.mrb[0].mxu0
    %v10256 = vadd.f32 %v8746, %v10255
    %v10257 = vpop.f32.mrb[0].mxu0
    %v10258 = vadd.f32 %v8750, %v10257
    %v10259 = vpop.f32.mrb[0].mxu0
    %v10260 = vadd.f32 %v8746, %v10259
    %v10261 = vpop.f32.mrb[0].mxu0
    %v10262 = vadd.f32 %v8750, %v10261
    %10263 = vdwg.mxu0
    %10264 = vmatprep.subr.bf16.mxu0 %v9710
    %10265 = vmatpush1.bf16.msra.mxu0 %v9709
    %10266 = vmatprep.subr.bf16.mxu0 %v9714
    %10267 = vmatpush1.bf16.msra.mxu0 %v9713
    %10268 = vmatprep.subr.bf16.mxu0 %v9718
    %10269 = vmatpush1.bf16.msra.mxu0 %v9717
    %10270 = vmatprep.subr.bf16.mxu0 %v9722
    %10271 = vmatpush1.bf16.msra.mxu0 %v9721
    %10272 = vmatprep.subr.bf16.mxu0 %v9726
    %10273 = vmatpush1.bf16.msra.mxu0 %v9725
    %10274 = vmatprep.subr.bf16.mxu0 %v9730
    %10275 = vmatpush1.bf16.msra.mxu0 %v9729
    %10276 = vmatprep.subr.bf16.mxu0 %v9734
    %10277 = vmatpush1.bf16.msra.mxu0 %v9733
    %10278 = vmatprep.subr.bf16.mxu0 %v9738
    %10279 = vmatpush1.bf16.msra.mxu0 %v9737
    %10280 = vmatprep.subr.bf16.mxu0 %v9742
    %10281 = vmatpush1.bf16.msra.mxu0 %v9741
    %10282 = vmatprep.subr.bf16.mxu0 %v9746
    %10283 = vmatpush1.bf16.msra.mxu0 %v9745
    %10284 = vmatprep.subr.bf16.mxu0 %v9750
    %10285 = vmatpush1.bf16.msra.mxu0 %v9749
    %10286 = vmatprep.subr.bf16.mxu0 %v9754
    %10287 = vmatpush1.bf16.msra.mxu0 %v9753
    %10288 = vmatprep.subr.bf16.mxu0 %v9758
    %10289 = vmatpush1.bf16.msra.mxu0 %v9757
    %10290 = vmatprep.subr.bf16.mxu0 %v9762
    %10291 = vmatpush1.bf16.msra.mxu0 %v9761
    %10292 = vmatprep.subr.bf16.mxu0 %v9766
    %10293 = vmatpush1.bf16.msra.mxu0 %v9765
    %10294 = vmatprep.subr.bf16.mxu0 %v9770
    %10295 = vmatpush1.bf16.msra.mxu0 %v9769
    %10296 = vmatprep.mubr.bf16.mxu0 %v8766
    %10297 = vmatmul.mubr.bf16.gmra.mrb[0].mxu0 %v8765
    %v10298 = vpop.f32.mrb[0].mxu0
    %v10299 = vadd.f32 %v10256, %v10298
    %v10300 = vpop.f32.mrb[0].mxu0
    %v10301 = vadd.f32 %v10258, %v10300
    %v10302 = vpop.f32.mrb[0].mxu0
    %v10303 = vadd.f32 %v10260, %v10302
    %v10304 = vpop.f32.mrb[0].mxu0
    %v10305 = vadd.f32 %v10262, %v10304
    %10306 = vdwg.mxu0
    %10307 = vmatprep.subr.bf16.mxu0 %v9774
    %10308 = vmatpush1.bf16.msra.mxu0 %v9773
    %10309 = vmatprep.subr.bf16.mxu0 %v9778
    %10310 = vmatpush1.bf16.msra.mxu0 %v9777
    %10311 = vmatprep.subr.bf16.mxu0 %v9782
    %10312 = vmatpush1.bf16.msra.mxu0 %v9781
    %10313 = vmatprep.subr.bf16.mxu0 %v9786
    %10314 = vmatpush1.bf16.msra.mxu0 %v9785
    %10315 = vmatprep.subr.bf16.mxu0 %v9790
    %10316 = vmatpush1.bf16.msra.mxu0 %v9789
    %10317 = vmatprep.subr.bf16.mxu0 %v9794
    %10318 = vmatpush1.bf16.msra.mxu0 %v9793
    %10319 = vmatprep.subr.bf16.mxu0 %v9798
    %10320 = vmatpush1.bf16.msra.mxu0 %v9797
    %10321 = vmatprep.subr.bf16.mxu0 %v9802
    %10322 = vmatpush1.bf16.msra.mxu0 %v9801
    %10323 = vmatprep.subr.bf16.mxu0 %v9806
    %10324 = vmatpush1.bf16.msra.mxu0 %v9805
    %10325 = vmatprep.subr.bf16.mxu0 %v9810
    %10326 = vmatpush1.bf16.msra.mxu0 %v9809
    %10327 = vmatprep.subr.bf16.mxu0 %v9814
    %10328 = vmatpush1.bf16.msra.mxu0 %v9813
    %10329 = vmatprep.subr.bf16.mxu0 %v9818
    %10330 = vmatpush1.bf16.msra.mxu0 %v9817
    %10331 = vmatprep.subr.bf16.mxu0 %v9822
    %10332 = vmatpush1.bf16.msra.mxu0 %v9821
    %10333 = vmatprep.subr.bf16.mxu0 %v9826
    %10334 = vmatpush1.bf16.msra.mxu0 %v9825
    %10335 = vmatprep.subr.bf16.mxu0 %v9830
    %10336 = vmatpush1.bf16.msra.mxu0 %v9829
    %10337 = vmatprep.subr.bf16.mxu0 %v9834
    %10338 = vmatpush1.bf16.msra.mxu0 %v9833
    %10339 = vmatprep.mubr.bf16.mxu0 %v8768
    %10340 = vmatmul.mubr.bf16.gmra.mrb[0].mxu0 %v8767
    %v10341 = vpop.f32.mrb[0].mxu0
    %v10342 = vadd.f32 %v10299, %v10341
    %v10343 = vpop.f32.mrb[0].mxu0
    %v10344 = vadd.f32 %v10301, %v10343
    %v10345 = vpop.f32.mrb[0].mxu0
    %v10346 = vadd.f32 %v10303, %v10345
    %v10347 = vpop.f32.mrb[0].mxu0
    %v10348 = vadd.f32 %v10305, %v10347
    %10349 = vdwg.mxu0
    %10350 = vmatprep.subr.bf16.mxu0 %v9838
    %10351 = vmatpush1.bf16.msra.mxu0 %v9837
    %10352 = vmatprep.subr.bf16.mxu0 %v9842
    %10353 = vmatpush1.bf16.msra.mxu0 %v9841
    %10354 = vmatprep.subr.bf16.mxu0 %v9846
    %10355 = vmatpush1.bf16.msra.mxu0 %v9845
    %10356 = vmatprep.subr.bf16.mxu0 %v9850
    %10357 = vmatpush1.bf16.msra.mxu0 %v9849
    %10358 = vmatprep.subr.bf16.mxu0 %v9854
    %10359 = vmatpush1.bf16.msra.mxu0 %v9853
    %10360 = vmatprep.subr.bf16.mxu0 %v9858
    %10361 = vmatpush1.bf16.msra.mxu0 %v9857
    %10362 = vmatprep.subr.bf16.mxu0 %v9862
    %10363 = vmatpush1.bf16.msra.mxu0 %v9861
    %10364 = vmatprep.subr.bf16.mxu0 %v9866
    %10365 = vmatpush1.bf16.msra.mxu0 %v9865
    %10366 = vmatprep.subr.bf16.mxu0 %v9870
    %10367 = vmatpush1.bf16.msra.mxu0 %v9869
    %10368 = vmatprep.subr.bf16.mxu0 %v9874
    %10369 = vmatpush1.bf16.msra.mxu0 %v9873
    %10370 = vmatprep.subr.bf16.mxu0 %v9878
    %10371 = vmatpush1.bf16.msra.mxu0 %v9877
    %10372 = vmatprep.subr.bf16.mxu0 %v9882
    %10373 = vmatpush1.bf16.msra.mxu0 %v9881
    %10374 = vmatprep.subr.bf16.mxu0 %v9886
    %10375 = vmatpush1.bf16.msra.mxu0 %v9885
    %10376 = vmatprep.subr.bf16.mxu0 %v9890
    %10377 = vmatpush1.bf16.msra.mxu0 %v9889
    %10378 = vmatprep.subr.bf16.mxu0 %v9894
    %10379 = vmatpush1.bf16.msra.mxu0 %v9893
    %10380 = vmatprep.subr.bf16.mxu0 %v9898
    %10381 = vmatpush1.bf16.msra.mxu0 %v9897
    %10382 = vmatprep.mubr.bf16.mxu0 %v8770
    %10383 = vmatmul.mubr.bf16.gmra.mrb[0].mxu0 %v8769
    %v10384 = vpop.f32.mrb[0].mxu0
    %v10385 = vadd.f32 %v10342, %v10384
    %v10386 = vpop.f32.mrb[0].mxu0
    %v10387 = vadd.f32 %v10344, %v10386
    %v10388 = vpop.f32.mrb[0].mxu0
    %v10389 = vadd.f32 %v10346, %v10388
    %v10390 = vpop.f32.mrb[0].mxu0
    %v10391 = vadd.f32 %v10348, %v10390
    %10392 = vdwg.mxu0
    %10393 = vmatprep.subr.bf16.mxu0 %v9902
    %10394 = vmatpush1.bf16.msra.mxu0 %v9901
    %10395 = vmatprep.subr.bf16.mxu0 %v9906
    %10396 = vmatpush1.bf16.msra.mxu0 %v9905
    %10397 = vmatprep.subr.bf16.mxu0 %v9910
    %10398 = vmatpush1.bf16.msra.mxu0 %v9909
    %10399 = vmatprep.subr.bf16.mxu0 %v9914
    %10400 = vmatpush1.bf16.msra.mxu0 %v9913
    %10401 = vmatprep.subr.bf16.mxu0 %v9918
    %10402 = vmatpush1.bf16.msra.mxu0 %v9917
    %10403 = vmatprep.subr.bf16.mxu0 %v9922
    %10404 = vmatpush1.bf16.msra.mxu0 %v9921
    %10405 = vmatprep.subr.bf16.mxu0 %v9926
    %10406 = vmatpush1.bf16.msra.mxu0 %v9925
    %10407 = vmatprep.subr.bf16.mxu0 %v9930
    %10408 = vmatpush1.bf16.msra.mxu0 %v9929
    %10409 = vmatprep.subr.bf16.mxu0 0
    %10410 = vmatpush1.bf16.msra.mxu0 0
    %10411 = vmatprep.subr.bf16.mxu0 0
    %10412 = vmatpush1.bf16.msra.mxu0 0
    %10413 = vmatprep.subr.bf16.mxu0 0
    %10414 = vmatpush1.bf16.msra.mxu0 0
    %10415 = vmatprep.subr.bf16.mxu0 0
    %10416 = vmatpush1.bf16.msra.mxu0 0
    %10417 = vmatprep.subr.bf16.mxu0 0
    %10418 = vmatpush1.bf16.msra.mxu0 0
    %10419 = vmatprep.subr.bf16.mxu0 0
    %10420 = vmatpush1.bf16.msra.mxu0 0
    %10421 = vmatprep.subr.bf16.mxu0 0
    %10422 = vmatpush1.bf16.msra.mxu0 0
    %10423 = vmatprep.subr.bf16.mxu0 0
    %10424 = vmatpush1.bf16.msra.mxu0 0
    %10425 = vmatprep.mubr.bf16.mxu0 0
    %10426 = vmatmul.mubr.bf16.gmra.mrb[0].mxu0 %v8771
    %v10427 = vpop.f32.mrb[0].mxu0
    %v10428 = vadd.f32 %v10385, %v10427
    %v10429 = vpop.f32.mrb[0].mxu0
    %v10430 = vadd.f32 %v10387, %v10429
    %v10431 = vpop.f32.mrb[0].mxu0
    %v10432 = vadd.f32 %v10389, %v10431
    %v10433 = vpop.f32.mrb[0].mxu0
    %v10434 = vadd.f32 %v10391, %v10433
    %10435 = vdwg.mxu0
    %10436 = vmatprep.subr.bf16.mxu0 %v9648
    %10437 = vmatpush1.bf16.msra.mxu0 %v9647
    %10438 = vmatprep.subr.bf16.mxu0 %v9652
    %10439 = vmatpush1.bf16.msra.mxu0 %v9651
    %10440 = vmatprep.subr.bf16.mxu0 %v9656
    %10441 = vmatpush1.bf16.msra.mxu0 %v9655
    %10442 = vmatprep.subr.bf16.mxu0 %v9660
    %10443 = vmatpush1.bf16.msra.mxu0 %v9659
    %10444 = vmatprep.subr.bf16.mxu0 %v9664
    %10445 = vmatpush1.bf16.msra.mxu0 %v9663
    %10446 = vmatprep.subr.bf16.mxu0 %v9668
    %10447 = vmatpush1.bf16.msra.mxu0 %v9667
    %10448 = vmatprep.subr.bf16.mxu0 %v9672
    %10449 = vmatpush1.bf16.msra.mxu0 %v9671
    %10450 = vmatprep.subr.bf16.mxu0 %v9676
    %10451 = vmatpush1.bf16.msra.mxu0 %v9675
    %10452 = vmatprep.subr.bf16.mxu0 %v9680
    %10453 = vmatpush1.bf16.msra.mxu0 %v9679
    %10454 = vmatprep.subr.bf16.mxu0 %v9684
    %10455 = vmatpush1.bf16.msra.mxu0 %v9683
    %10456 = vmatprep.subr.bf16.mxu0 %v9688
    %10457 = vmatpush1.bf16.msra.mxu0 %v9687
    %10458 = vmatprep.subr.bf16.mxu0 %v9692
    %10459 = vmatpush1.bf16.msra.mxu0 %v9691
    %10460 = vmatprep.subr.bf16.mxu0 %v9696
    %10461 = vmatpush1.bf16.msra.mxu0 %v9695
    %10462 = vmatprep.subr.bf16.mxu0 %v9700
    %10463 = vmatpush1.bf16.msra.mxu0 %v9699
    %10464 = vmatprep.subr.bf16.mxu0 %v9704
    %10465 = vmatpush1.bf16.msra.mxu0 %v9703
    %10466 = vmatprep.subr.bf16.mxu0 %v9708
    %10467 = vmatpush1.bf16.msra.mxu0 %v9707
    %10468 = vmatprep.mubr.bf16.mxu0 %v8764
    %10469 = vmatmul.mubr.bf16.gmra.mrb[0].mxu0 %v8763
    %v10470 = vpop.f32.mrb[0].mxu0
    %v10471 = vadd.f32 %v8754, %v10470
    %v10472 = vpop.f32.mrb[0].mxu0
    %v10473 = vadd.f32 %v8758, %v10472
    %v10474 = vpop.f32.mrb[0].mxu0
    %v10475 = vadd.f32 %v8754, %v10474
    %v10476 = vpop.f32.mrb[0].mxu0
    %v10477 = vadd.f32 %v8758, %v10476
    %10478 = vdwg.mxu0
    %10479 = vmatprep.subr.bf16.mxu0 %v9712
    %10480 = vmatpush1.bf16.msra.mxu0 %v9711
    %10481 = vmatprep.subr.bf16.mxu0 %v9716
    %10482 = vmatpush1.bf16.msra.mxu0 %v9715
    %10483 = vmatprep.subr.bf16.mxu0 %v9720
    %10484 = vmatpush1.bf16.msra.mxu0 %v9719
    %10485 = vmatprep.subr.bf16.mxu0 %v9724
    %10486 = vmatpush1.bf16.msra.mxu0 %v9723
    %10487 = vmatprep.subr.bf16.mxu0 %v9728
    %10488 = vmatpush1.bf16.msra.mxu0 %v9727
    %10489 = vmatprep.subr.bf16.mxu0 %v9732
    %10490 = vmatpush1.bf16.msra.mxu0 %v9731
    %10491 = vmatprep.subr.bf16.mxu0 %v9736
    %10492 = vmatpush1.bf16.msra.mxu0 %v9735
    %10493 = vmatprep.subr.bf16.mxu0 %v9740
    %10494 = vmatpush1.bf16.msra.mxu0 %v9739
    %10495 = vmatprep.subr.bf16.mxu0 %v9744
    %10496 = vmatpush1.bf16.msra.mxu0 %v9743
    %10497 = vmatprep.subr.bf16.mxu0 %v9748
    %10498 = vmatpush1.bf16.msra.mxu0 %v9747
    %10499 = vmatprep.subr.bf16.mxu0 %v9752
    %10500 = vmatpush1.bf16.msra.mxu0 %v9751
    %10501 = vmatprep.subr.bf16.mxu0 %v9756
    %10502 = vmatpush1.bf16.msra.mxu0 %v9755
    %10503 = vmatprep.subr.bf16.mxu0 %v9760
    %10504 = vmatpush1.bf16.msra.mxu0 %v9759
    %10505 = vmatprep.subr.bf16.mxu0 %v9764
    %10506 = vmatpush1.bf16.msra.mxu0 %v9763
    %10507 = vmatprep.subr.bf16.mxu0 %v9768
    %10508 = vmatpush1.bf16.msra.mxu0 %v9767
    %10509 = vmatprep.subr.bf16.mxu0 %v9772
    %10510 = vmatpush1.bf16.msra.mxu0 %v9771
    %10511 = vmatprep.mubr.bf16.mxu0 %v8766
    %10512 = vmatmul.mubr.bf16.gmra.mrb[0].mxu0 %v8765
    %v10513 = vpop.f32.mrb[0].mxu0
    %v10514 = vadd.f32 %v10471, %v10513
    %v10515 = vpop.f32.mrb[0].mxu0
    %v10516 = vadd.f32 %v10473, %v10515
    %v10517 = vpop.f32.mrb[0].mxu0
    %v10518 = vadd.f32 %v10475, %v10517
    %v10519 = vpop.f32.mrb[0].mxu0
    %v10520 = vadd.f32 %v10477, %v10519
    %10521 = vdwg.mxu0
    %10522 = vmatprep.subr.bf16.mxu0 %v9776
    %10523 = vmatpush1.bf16.msra.mxu0 %v9775
    %10524 = vmatprep.subr.bf16.mxu0 %v9780
    %10525 = vmatpush1.bf16.msra.mxu0 %v9779
    %10526 = vmatprep.subr.bf16.mxu0 %v9784
    %10527 = vmatpush1.bf16.msra.mxu0 %v9783
    %10528 = vmatprep.subr.bf16.mxu0 %v9788
    %10529 = vmatpush1.bf16.msra.mxu0 %v9787
    %10530 = vmatprep.subr.bf16.mxu0 %v9792
    %10531 = vmatpush1.bf16.msra.mxu0 %v9791
    %10532 = vmatprep.subr.bf16.mxu0 %v9796
    %10533 = vmatpush1.bf16.msra.mxu0 %v9795
    %10534 = vmatprep.subr.bf16.mxu0 %v9800
    %10535 = vmatpush1.bf16.msra.mxu0 %v9799
    %10536 = vmatprep.subr.bf16.mxu0 %v9804
    %10537 = vmatpush1.bf16.msra.mxu0 %v9803
    %10538 = vmatprep.subr.bf16.mxu0 %v9808
    %10539 = vmatpush1.bf16.msra.mxu0 %v9807
    %10540 = vmatprep.subr.bf16.mxu0 %v9812
    %10541 = vmatpush1.bf16.msra.mxu0 %v9811
    %10542 = vmatprep.subr.bf16.mxu0 %v9816
    %10543 = vmatpush1.bf16.msra.mxu0 %v9815
    %10544 = vmatprep.subr.bf16.mxu0 %v9820
    %10545 = vmatpush1.bf16.msra.mxu0 %v9819
    %10546 = vmatprep.subr.bf16.mxu0 %v9824
    %10547 = vmatpush1.bf16.msra.mxu0 %v9823
    %10548 = vmatprep.subr.bf16.mxu0 %v9828
    %10549 = vmatpush1.bf16.msra.mxu0 %v9827
    %10550 = vmatprep.subr.bf16.mxu0 %v9832
    %10551 = vmatpush1.bf16.msra.mxu0 %v9831
    %10552 = vmatprep.subr.bf16.mxu0 %v9836
    %10553 = vmatpush1.bf16.msra.mxu0 %v9835
    %10554 = vmatprep.mubr.bf16.mxu0 %v8768
    %10555 = vmatmul.mubr.bf16.gmra.mrb[0].mxu0 %v8767
    %v10556 = vpop.f32.mrb[0].mxu0
    %v10557 = vadd.f32 %v10514, %v10556
    %v10558 = vpop.f32.mrb[0].mxu0
    %v10559 = vadd.f32 %v10516, %v10558
    %v10560 = vpop.f32.mrb[0].mxu0
    %v10561 = vadd.f32 %v10518, %v10560
    %v10562 = vpop.f32.mrb[0].mxu0
    %v10563 = vadd.f32 %v10520, %v10562
    %10564 = vdwg.mxu0
    %10565 = vmatprep.subr.bf16.mxu0 %v9840
    %10566 = vmatpush1.bf16.msra.mxu0 %v9839
    %10567 = vmatprep.subr.bf16.mxu0 %v9844
    %10568 = vmatpush1.bf16.msra.mxu0 %v9843
    %10569 = vmatprep.subr.bf16.mxu0 %v9848
    %10570 = vmatpush1.bf16.msra.mxu0 %v9847
    %10571 = vmatprep.subr.bf16.mxu0 %v9852
    %10572 = vmatpush1.bf16.msra.mxu0 %v9851
    %10573 = vmatprep.subr.bf16.mxu0 %v9856
    %10574 = vmatpush1.bf16.msra.mxu0 %v9855
    %10575 = vmatprep.subr.bf16.mxu0 %v9860
    %10576 = vmatpush1.bf16.msra.mxu0 %v9859
    %10577 = vmatprep.subr.bf16.mxu0 %v9864
    %10578 = vmatpush1.bf16.msra.mxu0 %v9863
    %10579 = vmatprep.subr.bf16.mxu0 %v9868
    %10580 = vmatpush1.bf16.msra.mxu0 %v9867
    %10581 = vmatprep.subr.bf16.mxu0 %v9872
    %10582 = vmatpush1.bf16.msra.mxu0 %v9871
    %10583 = vmatprep.subr.bf16.mxu0 %v9876
    %10584 = vmatpush1.bf16.msra.mxu0 %v9875
    %10585 = vmatprep.subr.bf16.mxu0 %v9880
    %10586 = vmatpush1.bf16.msra.mxu0 %v9879
    %10587 = vmatprep.subr.bf16.mxu0 %v9884
    %10588 = vmatpush1.bf16.msra.mxu0 %v9883
    %10589 = vmatprep.subr.bf16.mxu0 %v9888
    %10590 = vmatpush1.bf16.msra.mxu0 %v9887
    %10591 = vmatprep.subr.bf16.mxu0 %v9892
    %10592 = vmatpush1.bf16.msra.mxu0 %v9891
    %10593 = vmatprep.subr.bf16.mxu0 %v9896
    %10594 = vmatpush1.bf16.msra.mxu0 %v9895
    %10595 = vmatprep.subr.bf16.mxu0 %v9900
    %10596 = vmatpush1.bf16.msra.mxu0 %v9899
    %10597 = vmatprep.mubr.bf16.mxu0 %v8770
    %10598 = vmatmul.mubr.bf16.gmra.mrb[0].mxu0 %v8769
    %v10599 = vpop.f32.mrb[0].mxu0
    %v10600 = vadd.f32 %v10557, %v10599
    %v10601 = vpop.f32.mrb[0].mxu0
    %v10602 = vadd.f32 %v10559, %v10601
    %v10603 = vpop.f32.mrb[0].mxu0
    %v10604 = vadd.f32 %v10561, %v10603
    %v10605 = vpop.f32.mrb[0].mxu0
    %v10606 = vadd.f32 %v10563, %v10605
    %10607 = vdwg.mxu0
    %10608 = vmatprep.subr.bf16.mxu0 %v9904
    %10609 = vmatpush1.bf16.msra.mxu0 %v9903
    %10610 = vmatprep.subr.bf16.mxu0 %v9908
    %10611 = vmatpush1.bf16.msra.mxu0 %v9907
    %10612 = vmatprep.subr.bf16.mxu0 %v9912
    %10613 = vmatpush1.bf16.msra.mxu0 %v9911
    %10614 = vmatprep.subr.bf16.mxu0 %v9916
    %10615 = vmatpush1.bf16.msra.mxu0 %v9915
    %10616 = vmatprep.subr.bf16.mxu0 %v9920
    %10617 = vmatpush1.bf16.msra.mxu0 %v9919
    %10618 = vmatprep.subr.bf16.mxu0 %v9924
    %10619 = vmatpush1.bf16.msra.mxu0 %v9923
    %10620 = vmatprep.subr.bf16.mxu0 %v9928
    %10621 = vmatpush1.bf16.msra.mxu0 %v9927
    %10622 = vmatprep.subr.bf16.mxu0 %v9932
    %10623 = vmatpush1.bf16.msra.mxu0 %v9931
    %10624 = vmatprep.subr.bf16.mxu0 0
    %10625 = vmatpush1.bf16.msra.mxu0 0
    %10626 = vmatprep.subr.bf16.mxu0 0
    %10627 = vmatpush1.bf16.msra.mxu0 0
    %10628 = vmatprep.subr.bf16.mxu0 0
    %10629 = vmatpush1.bf16.msra.mxu0 0
    %10630 = vmatprep.subr.bf16.mxu0 0
    %10631 = vmatpush1.bf16.msra.mxu0 0
    %10632 = vmatprep.subr.bf16.mxu0 0
    %10633 = vmatpush1.bf16.msra.mxu0 0
    %10634 = vmatprep.subr.bf16.mxu0 0
    %10635 = vmatpush1.bf16.msra.mxu0 0
    %10636 = vmatprep.subr.bf16.mxu0 0
    %10637 = vmatpush1.bf16.msra.mxu0 0
    %10638 = vmatprep.subr.bf16.mxu0 0
    %10639 = vmatpush1.bf16.msra.mxu0 0
    %10640 = vmatprep.mubr.bf16.mxu0 0
    %10641 = vmatmul.mubr.bf16.gmra.mrb[0].mxu0 %v8771
    %v10642 = vpop.f32.mrb[0].mxu0
    %v10643 = vadd.f32 %v10600, %v10642
    %v10644 = vpop.f32.mrb[0].mxu0
    %v10645 = vadd.f32 %v10602, %v10644
    %v10646 = vpop.f32.mrb[0].mxu0
    %v10647 = vadd.f32 %v10604, %v10646
    %v10648 = vpop.f32.mrb[0].mxu0
    %v10649 = vadd.f32 %v10606, %v10648
    %10650 = vdwg.mxu0
    %v10651 = vmax.f32 %v10428, 0.0
    %v10652 = vmax.f32 %v10430, 0.0
    %v10653 = vmax.f32 %v10643, 0.0
    %v10654 = vmax.f32 %v10645, 0.0
    %v10655 = vmax.f32 %v10432, 0.0
    %v10656 = vmax.f32 %v10434, 0.0
    %v10657 = vmax.f32 %v10647, 0.0
    %v10658 = vmax.f32 %v10649, 0.0
    %v10667 = vcombine.low %v10651, %v10652
    %v10668 = vcombine.high %v10651, %v10652
    %v10669 = vcombine.low %v10653, %v10654
    %v10670 = vcombine.high %v10653, %v10654
    %v10672 = vunpack.c.l.s4 1983009808
    %v10673 = vunpack.c.0.s8 %v10672
    %v10674 = vlaneseq
    %v10675 = vshrl.u32 %v10674, 7
    %v10676 = vsub.s32 %v10673, %v10675
    %v10677 = vrot.slane %v10667, %v10676
    %v10679 = vunpack.c.l.s4 1983009808
    %v10680 = vunpack.c.0.s8 %v10679
    %v10681 = vlaneseq
    %v10682 = vshrl.u32 %v10681, 7
    %v10683 = vsub.s32 %v10680, %v10682
    %v10684 = vrot.slane %v10668, %v10683
    %v10686 = vunpack.c.l.s4 1983009808
    %v10687 = vunpack.c.0.s8 %v10686
    %v10688 = vlaneseq
    %v10689 = vshrl.u32 %v10688, 7
    %v10690 = vsub.s32 %v10687, %v10689
    %v10691 = vrot.slane %v10669, %v10690
    %v10693 = vunpack.c.l.s4 1983009808
    %v10694 = vunpack.c.0.s8 %v10693
    %v10695 = vlaneseq
    %v10696 = vshrl.u32 %v10695, 7
    %v10697 = vsub.s32 %v10694, %v10696
    %v10698 = vrot.slane %v10670, %v10697
    %v10699 = vcombine.low %v10677, %v10691
    %v10700 = vcombine.high %v10677, %v10691
    %v10701 = vcombine.low %v10684, %v10698
    %v10702 = vcombine.high %v10684, %v10698
    %v10703 = vcombine.low %v10655, %v10656
    %v10704 = vcombine.high %v10655, %v10656
    %v10705 = vcombine.low %v10657, %v10658
    %v10706 = vcombine.high %v10657, %v10658
    %v10708 = vunpack.c.l.s4 1983009808
    %v10709 = vunpack.c.0.s8 %v10708
    %v10710 = vlaneseq
    %v10711 = vshrl.u32 %v10710, 7
    %v10712 = vsub.s32 %v10709, %v10711
    %v10713 = vrot.slane %v10703, %v10712
    %v10715 = vunpack.c.l.s4 1983009808
    %v10716 = vunpack.c.0.s8 %v10715
    %v10717 = vlaneseq
    %v10718 = vshrl.u32 %v10717, 7
    %v10719 = vsub.s32 %v10716, %v10718
    %v10720 = vrot.slane %v10704, %v10719
    %v10722 = vunpack.c.l.s4 1983009808
    %v10723 = vunpack.c.0.s8 %v10722
    %v10724 = vlaneseq
    %v10725 = vshrl.u32 %v10724, 7
    %v10726 = vsub.s32 %v10723, %v10725
    %v10727 = vrot.slane %v10705, %v10726
    %v10729 = vunpack.c.l.s4 1983009808
    %v10730 = vunpack.c.0.s8 %v10729
    %v10731 = vlaneseq
    %v10732 = vshrl.u32 %v10731, 7
    %v10733 = vsub.s32 %v10730, %v10732
    %v10734 = vrot.slane %v10706, %v10733
    %v10735 = vcombine.low %v10713, %v10727
    %v10736 = vcombine.high %v10713, %v10727
    %v10737 = vcombine.low %v10720, %v10734
    %v10738 = vcombine.high %v10720, %v10734
    %v10747 = vrot.slane %v10699, 7
    %v10748 = vrot.slane %v10747, 2
    %v10749 = vrot.slane %v10700, 7
    %v10750 = vrot.slane %v10749, 2
    %v10751 = vrot.slane %v10701, 7
    %v10752 = vrot.slane %v10751, 2
    %v10753 = vrot.slane %v10702, 7
    %v10754 = vrot.slane %v10753, 2
    %v10755 = vrot.slane %v10735, 7
    %v10756 = vrot.slane %v10755, 2
    %v10757 = vrot.slane %v10736, 7
    %v10758 = vrot.slane %v10757, 2
    %v10759 = vrot.slane %v10737, 7
    %v10760 = vrot.slane %v10759, 2
    %v10761 = vrot.slane %v10738, 7
    %v10762 = vrot.slane %v10761, 2
    %v10771 = vadd.f32 %v10699, %v10748
    %v10772 = vadd.f32 %v10700, %v10750
    %v10773 = vadd.f32 %v10701, %v10752
    %v10774 = vadd.f32 %v10702, %v10754
    %v10775 = vadd.f32 %v10735, %v10756
    %v10776 = vadd.f32 %v10736, %v10758
    %v10777 = vadd.f32 %v10737, %v10760
    %v10778 = vadd.f32 %v10738, %v10762
    %v10787 = vlaneseq
    %v10788 = vshrl.u32 %v10787, 7
    %v10789 = vsub.s32 0, %v10788
    %v10790 = vrot.slane %v10771, %v10789
    %v10791 = vlaneseq
    %v10792 = vshrl.u32 %v10791, 7
    %v10793 = vsub.s32 2, %v10792
    %v10794 = vrot.slane %v10771, %v10793
    %v10795 = vlaneseq
    %v10796 = vshrl.u32 %v10795, 7
    %v10797 = vsub.s32 4, %v10796
    %v10798 = vrot.slane %v10771, %v10797
    %v10799 = vlaneseq
    %v10800 = vshrl.u32 %v10799, 7
    %v10801 = vsub.s32 6, %v10800
    %v10802 = vrot.slane %v10771, %v10801
    %v10803 = vlaneseq
    %v10804 = vshrl.u32 %v10803, 7
    %v10805 = vsub.s32 0, %v10804
    %v10806 = vrot.slane %v10772, %v10805
    %v10807 = vlaneseq
    %v10808 = vshrl.u32 %v10807, 7
    %v10809 = vsub.s32 2, %v10808
    %v10810 = vrot.slane %v10772, %v10809
    %v10811 = vlaneseq
    %v10812 = vshrl.u32 %v10811, 7
    %v10813 = vsub.s32 4, %v10812
    %v10814 = vrot.slane %v10772, %v10813
    %v10815 = vlaneseq
    %v10816 = vshrl.u32 %v10815, 7
    %v10817 = vsub.s32 6, %v10816
    %v10818 = vrot.slane %v10772, %v10817
    %v10819 = vlaneseq
    %v10820 = vshrl.u32 %v10819, 7
    %v10821 = vsub.s32 0, %v10820
    %v10822 = vrot.slane %v10773, %v10821
    %v10823 = vlaneseq
    %v10824 = vshrl.u32 %v10823, 7
    %v10825 = vsub.s32 2, %v10824
    %v10826 = vrot.slane %v10773, %v10825
    %v10827 = vlaneseq
    %v10828 = vshrl.u32 %v10827, 7
    %v10829 = vsub.s32 4, %v10828
    %v10830 = vrot.slane %v10773, %v10829
    %v10831 = vlaneseq
    %v10832 = vshrl.u32 %v10831, 7
    %v10833 = vsub.s32 6, %v10832
    %v10834 = vrot.slane %v10773, %v10833
    %v10835 = vlaneseq
    %v10836 = vshrl.u32 %v10835, 7
    %v10837 = vsub.s32 0, %v10836
    %v10838 = vrot.slane %v10774, %v10837
    %v10839 = vlaneseq
    %v10840 = vshrl.u32 %v10839, 7
    %v10841 = vsub.s32 2, %v10840
    %v10842 = vrot.slane %v10774, %v10841
    %v10843 = vlaneseq
    %v10844 = vshrl.u32 %v10843, 7
    %v10845 = vsub.s32 4, %v10844
    %v10846 = vrot.slane %v10774, %v10845
    %v10847 = vlaneseq
    %v10848 = vshrl.u32 %v10847, 7
    %v10849 = vsub.s32 6, %v10848
    %v10850 = vrot.slane %v10774, %v10849
    %v10851 = vlaneseq
    %v10852 = vshrl.u32 %v10851, 7
    %v10853 = vsub.s32 0, %v10852
    %v10854 = vrot.slane %v10775, %v10853
    %v10855 = vlaneseq
    %v10856 = vshrl.u32 %v10855, 7
    %v10857 = vsub.s32 2, %v10856
    %v10858 = vrot.slane %v10775, %v10857
    %v10859 = vlaneseq
    %v10860 = vshrl.u32 %v10859, 7
    %v10861 = vsub.s32 4, %v10860
    %v10862 = vrot.slane %v10775, %v10861
    %v10863 = vlaneseq
    %v10864 = vshrl.u32 %v10863, 7
    %v10865 = vsub.s32 6, %v10864
    %v10866 = vrot.slane %v10775, %v10865
    %v10867 = vlaneseq
    %v10868 = vshrl.u32 %v10867, 7
    %v10869 = vsub.s32 0, %v10868
    %v10870 = vrot.slane %v10776, %v10869
    %v10871 = vlaneseq
    %v10872 = vshrl.u32 %v10871, 7
    %v10873 = vsub.s32 2, %v10872
    %v10874 = vrot.slane %v10776, %v10873
    %v10875 = vlaneseq
    %v10876 = vshrl.u32 %v10875, 7
    %v10877 = vsub.s32 4, %v10876
    %v10878 = vrot.slane %v10776, %v10877
    %v10879 = vlaneseq
    %v10880 = vshrl.u32 %v10879, 7
    %v10881 = vsub.s32 6, %v10880
    %v10882 = vrot.slane %v10776, %v10881
    %v10883 = vlaneseq
    %v10884 = vshrl.u32 %v10883, 7
    %v10885 = vsub.s32 0, %v10884
    %v10886 = vrot.slane %v10777, %v10885
    %v10887 = vlaneseq
    %v10888 = vshrl.u32 %v10887, 7
    %v10889 = vsub.s32 2, %v10888
    %v10890 = vrot.slane %v10777, %v10889
    %v10891 = vlaneseq
    %v10892 = vshrl.u32 %v10891, 7
    %v10893 = vsub.s32 4, %v10892
    %v10894 = vrot.slane %v10777, %v10893
    %v10895 = vlaneseq
    %v10896 = vshrl.u32 %v10895, 7
    %v10897 = vsub.s32 6, %v10896
    %v10898 = vrot.slane %v10777, %v10897
    %v10899 = vlaneseq
    %v10900 = vshrl.u32 %v10899, 7
    %v10901 = vsub.s32 0, %v10900
    %v10902 = vrot.slane %v10778, %v10901
    %v10903 = vlaneseq
    %v10904 = vshrl.u32 %v10903, 7
    %v10905 = vsub.s32 2, %v10904
    %v10906 = vrot.slane %v10778, %v10905
    %v10907 = vlaneseq
    %v10908 = vshrl.u32 %v10907, 7
    %v10909 = vsub.s32 4, %v10908
    %v10910 = vrot.slane %v10778, %v10909
    %v10911 = vlaneseq
    %v10912 = vshrl.u32 %v10911, 7
    %v10913 = vsub.s32 6, %v10912
    %v10914 = vrot.slane %v10778, %v10913
    %v10947 = vpack.c.bf16 %v10790, %v10790
    %v10948 = vpack.c.bf16 %v10794, %v10794
    %v10949 = vpack.c.bf16 %v10798, %v10798
    %v10950 = vpack.c.bf16 %v10802, %v10802
    %v10951 = vpack.c.bf16 %v10806, %v10806
    %v10952 = vpack.c.bf16 %v10810, %v10810
    %v10953 = vpack.c.bf16 %v10814, %v10814
    %v10954 = vpack.c.bf16 %v10818, %v10818
    %v10955 = vpack.c.bf16 %v10822, %v10822
    %v10956 = vpack.c.bf16 %v10826, %v10826
    %v10957 = vpack.c.bf16 %v10830, %v10830
    %v10958 = vpack.c.bf16 %v10834, %v10834
    %v10959 = vpack.c.bf16 %v10838, %v10838
    %v10960 = vpack.c.bf16 %v10842, %v10842
    %v10961 = vpack.c.bf16 %v10846, %v10846
    %v10962 = vpack.c.bf16 %v10850, %v10850
    %v10963 = vpack.c.bf16 %v10854, %v10854
    %v10964 = vpack.c.bf16 %v10858, %v10858
    %v10965 = vpack.c.bf16 %v10862, %v10862
    %v10966 = vpack.c.bf16 %v10866, %v10866
    %v10967 = vpack.c.bf16 %v10870, %v10870
    %v10968 = vpack.c.bf16 %v10874, %v10874
    %v10969 = vpack.c.bf16 %v10878, %v10878
    %v10970 = vpack.c.bf16 %v10882, %v10882
    %v10971 = vpack.c.bf16 %v10886, %v10886
    %v10972 = vpack.c.bf16 %v10890, %v10890
    %v10973 = vpack.c.bf16 %v10894, %v10894
    %v10974 = vpack.c.bf16 %v10898, %v10898
    %v10975 = vpack.c.bf16 %v10902, %v10902
    %v10976 = vpack.c.bf16 %v10906, %v10906
    %v10977 = vpack.c.bf16 %v10910, %v10910
    %v10978 = vpack.c.bf16 %v10914, %v10914
    %v10979 = vld [vmem:[#allocation18] sm:$0xff]
    %v10980 = vld [vmem:[#allocation18 + $0x8] sm:$0xff]
    %v10981 = vld [vmem:[#allocation18 + $0x10] sm:$0xff]
    %v10982 = vld [vmem:[#allocation18 + $0x18] sm:$0xff]
    %v10983 = vld [vmem:[#allocation18 + $0x20] sm:$0xff]
    %v10984 = vld [vmem:[#allocation18 + $0x28] sm:$0xff]
    %v10985 = vld [vmem:[#allocation18 + $0x30] sm:$0xff]
    %v10986 = vld [vmem:[#allocation18 + $0x38] sm:$0xff]
    %v10987 = vld [vmem:[#allocation18 + $0x40] sm:$0xff]
    %v10988 = vld [vmem:[#allocation18 + $0x48] sm:$0xff]
    %v10989 = vld [vmem:[#allocation18 + $0x50] sm:$0xff]
    %v10990 = vld [vmem:[#allocation18 + $0x58] sm:$0xff]
    %v10991 = vld [vmem:[#allocation18 + $0x60] sm:$0xff]
    %v10992 = vld [vmem:[#allocation18 + $0x68] sm:$0xff]
    %v10993 = vld [vmem:[#allocation18 + $0x70] sm:$0xff]
    %v10994 = vld [vmem:[#allocation18 + $0x78] sm:$0xff]
    %v10995 = vld [vmem:[#allocation18 + $0x80] sm:$0xff]
    %v10996 = vld [vmem:[#allocation18 + $0x88] sm:$0xff]
    %v10997 = vld [vmem:[#allocation18 + $0x90] sm:$0xff]
    %v10998 = vld [vmem:[#allocation18 + $0x98] sm:$0xff]
    %v10999 = vld [vmem:[#allocation18 + $0xa0] sm:$0xff]
    %v11000 = vld [vmem:[#allocation18 + $0xa8] sm:$0xff]
    %v11001 = vld [vmem:[#allocation18 + $0xb0] sm:$0xff]
    %v11002 = vld [vmem:[#allocation18 + $0xb8] sm:$0xff]
    %v11003 = vld [vmem:[#allocation18 + $0xc0] sm:$0xff]
    %v11004 = vld [vmem:[#allocation18 + $0xc8] sm:$0xff]
    %v11005 = vld [vmem:[#allocation18 + $0xd0] sm:$0xff]
    %v11006 = vld [vmem:[#allocation18 + $0xd8] sm:$0xff]
    %v11007 = vld [vmem:[#allocation18 + $0xe0] sm:$0xff]
    %v11008 = vld [vmem:[#allocation18 + $0xe8] sm:$0xff]
    %v11009 = vld [vmem:[#allocation18 + $0xf0] sm:$0xff]
    %v11010 = vld [vmem:[#allocation18 + $0xf8] sm:$0xff]
    %v11011 = vld [vmem:[#allocation18 + $0x100] sm:$0xff]
    %v11012 = vld [vmem:[#allocation18 + $0x108] sm:$0xff]
    %v11013 = vld [vmem:[#allocation18 + $0x110] sm:$0xff]
    %v11014 = vld [vmem:[#allocation18 + $0x118] sm:$0xff]
    %v11015 = vld [vmem:[#allocation18 + $0x120] sm:$0xff]
    %v11016 = vld [vmem:[#allocation18 + $0x128] sm:$0xff]
    %v11017 = vld [vmem:[#allocation18 + $0x130] sm:$0xff]
    %v11018 = vld [vmem:[#allocation18 + $0x138] sm:$0xff]
    %v11019 = vld [vmem:[#allocation18 + $0x140] sm:$0xff]
    %v11020 = vld [vmem:[#allocation18 + $0x148] sm:$0xff]
    %v11021 = vld [vmem:[#allocation18 + $0x150] sm:$0xff]
    %v11022 = vld [vmem:[#allocation18 + $0x158] sm:$0xff]
    %v11023 = vld [vmem:[#allocation18 + $0x160] sm:$0xff]
    %v11024 = vld [vmem:[#allocation18 + $0x168] sm:$0xff]
    %v11025 = vld [vmem:[#allocation18 + $0x170] sm:$0xff]
    %v11026 = vld [vmem:[#allocation18 + $0x178] sm:$0xff]
    %v11027 = vld [vmem:[#allocation18 + $0x180] sm:$0xff]
    %v11028 = vld [vmem:[#allocation18 + $0x188] sm:$0xff]
    %v11029 = vld [vmem:[#allocation18 + $0x190] sm:$0xff]
    %v11030 = vld [vmem:[#allocation18 + $0x198] sm:$0xff]
    %v11031 = vld [vmem:[#allocation18 + $0x1a0] sm:$0xff]
    %v11032 = vld [vmem:[#allocation18 + $0x1a8] sm:$0xff]
    %v11033 = vld [vmem:[#allocation18 + $0x1b0] sm:$0xff]
    %v11034 = vld [vmem:[#allocation18 + $0x1b8] sm:$0xff]
    %v11035 = vld [vmem:[#allocation18 + $0x1c0] sm:$0xff]
    %v11036 = vld [vmem:[#allocation18 + $0x1c8] sm:$0xff]
    %v11037 = vld [vmem:[#allocation18 + $0x1d0] sm:$0xff]
    %v11038 = vld [vmem:[#allocation18 + $0x1d8] sm:$0xff]
    %v11039 = vld [vmem:[#allocation18 + $0x1e0] sm:$0xff]
    %v11040 = vld [vmem:[#allocation18 + $0x1e8] sm:$0xff]
    %v11041 = vld [vmem:[#allocation18 + $0x1f0] sm:$0xff]
    %v11042 = vld [vmem:[#allocation18 + $0x1f8] sm:$0xff]
    %v11075 = vunpack.c.l.b16 %v10947
    %v11076 = vunpack.c.l.b16 %v10948
    %v11077 = vunpack.c.l.b16 %v10949
    %v11078 = vunpack.c.l.b16 %v10950
    %v11079 = vunpack.c.l.b16 %v10951
    %v11080 = vunpack.c.l.b16 %v10952
    %v11081 = vunpack.c.l.b16 %v10953
    %v11082 = vunpack.c.l.b16 %v10954
    %v11083 = vunpack.c.l.b16 %v10955
    %v11084 = vunpack.c.l.b16 %v10956
    %v11085 = vunpack.c.l.b16 %v10957
    %v11086 = vunpack.c.l.b16 %v10958
    %v11087 = vunpack.c.l.b16 %v10959
    %v11088 = vunpack.c.l.b16 %v10960
    %v11089 = vunpack.c.l.b16 %v10961
    %v11090 = vunpack.c.l.b16 %v10962
    %v11091 = vunpack.c.l.b16 %v10963
    %v11092 = vunpack.c.l.b16 %v10964
    %v11093 = vunpack.c.l.b16 %v10965
    %v11094 = vunpack.c.l.b16 %v10966
    %v11095 = vunpack.c.l.b16 %v10967
    %v11096 = vunpack.c.l.b16 %v10968
    %v11097 = vunpack.c.l.b16 %v10969
    %v11098 = vunpack.c.l.b16 %v10970
    %v11099 = vunpack.c.l.b16 %v10971
    %v11100 = vunpack.c.l.b16 %v10972
    %v11101 = vunpack.c.l.b16 %v10973
    %v11102 = vunpack.c.l.b16 %v10974
    %v11103 = vunpack.c.l.b16 %v10975
    %v11104 = vunpack.c.l.b16 %v10976
    %v11105 = vunpack.c.l.b16 %v10977
    %v11106 = vunpack.c.l.b16 %v10978
    %v11107 = vrot.slane %v11079, 7
    %v11108 = vsel %vm2910, %v11107, %v11075
    %v11109 = vrot.slane %v11083, 6
    %v11110 = vsel %vm2913, %v11109, %v11108
    %v11111 = vrot.slane %v11087, 5
    %v11112 = vsel %vm2916, %v11111, %v11110
    %v11113 = vrot.slane %v11091, 4
    %v11114 = vsel %vm2919, %v11113, %v11112
    %v11115 = vrot.slane %v11095, 3
    %v11116 = vsel %vm2922, %v11115, %v11114
    %v11117 = vrot.slane %v11099, 2
    %v11118 = vsel %vm2925, %v11117, %v11116
    %v11119 = vrot.slane %v11103, 1
    %v11120 = vsel %vm2928, %v11119, %v11118
    %v11121 = vrot.slane %v11080, 7
    %v11122 = vsel %vm2910, %v11121, %v11076
    %v11123 = vrot.slane %v11084, 6
    %v11124 = vsel %vm2913, %v11123, %v11122
    %v11125 = vrot.slane %v11088, 5
    %v11126 = vsel %vm2916, %v11125, %v11124
    %v11127 = vrot.slane %v11092, 4
    %v11128 = vsel %vm2919, %v11127, %v11126
    %v11129 = vrot.slane %v11096, 3
    %v11130 = vsel %vm2922, %v11129, %v11128
    %v11131 = vrot.slane %v11100, 2
    %v11132 = vsel %vm2925, %v11131, %v11130
    %v11133 = vrot.slane %v11104, 1
    %v11134 = vsel %vm2928, %v11133, %v11132
    %v11135 = vrot.slane %v11081, 7
    %v11136 = vsel %vm2910, %v11135, %v11077
    %v11137 = vrot.slane %v11085, 6
    %v11138 = vsel %vm2913, %v11137, %v11136
    %v11139 = vrot.slane %v11089, 5
    %v11140 = vsel %vm2916, %v11139, %v11138
    %v11141 = vrot.slane %v11093, 4
    %v11142 = vsel %vm2919, %v11141, %v11140
    %v11143 = vrot.slane %v11097, 3
    %v11144 = vsel %vm2922, %v11143, %v11142
    %v11145 = vrot.slane %v11101, 2
    %v11146 = vsel %vm2925, %v11145, %v11144
    %v11147 = vrot.slane %v11105, 1
    %v11148 = vsel %vm2928, %v11147, %v11146
    %v11149 = vrot.slane %v11082, 7
    %v11150 = vsel %vm2910, %v11149, %v11078
    %v11151 = vrot.slane %v11086, 6
    %v11152 = vsel %vm2913, %v11151, %v11150
    %v11153 = vrot.slane %v11090, 5
    %v11154 = vsel %vm2916, %v11153, %v11152
    %v11155 = vrot.slane %v11094, 4
    %v11156 = vsel %vm2919, %v11155, %v11154
    %v11157 = vrot.slane %v11098, 3
    %v11158 = vsel %vm2922, %v11157, %v11156
    %v11159 = vrot.slane %v11102, 2
    %v11160 = vsel %vm2925, %v11159, %v11158
    %v11161 = vrot.slane %v11106, 1
    %v11162 = vsel %vm2928, %v11161, %v11160
    %v11163 = vpack.c.b16 %v11120, %v11120
    %v11164 = vpack.c.b16 %v11134, %v11134
    %v11165 = vpack.c.b16 %v11148, %v11148
    %v11166 = vpack.c.b16 %v11162, %v11162
    %v11235 = vunpack.c.l.b16 %v10979
    %v11236 = vunpack.c.h.b16 %v10979
    %v11237 = vunpack.c.l.b16 %v10980
    %v11238 = vunpack.c.h.b16 %v10980
    %v11239 = vunpack.c.l.b16 %v10981
    %v11240 = vunpack.c.h.b16 %v10981
    %v11241 = vunpack.c.l.b16 %v10982
    %v11242 = vunpack.c.h.b16 %v10982
    %v11243 = vunpack.c.l.b16 %v10983
    %v11244 = vunpack.c.h.b16 %v10983
    %v11245 = vunpack.c.l.b16 %v10984
    %v11246 = vunpack.c.h.b16 %v10984
    %v11247 = vunpack.c.l.b16 %v10985
    %v11248 = vunpack.c.h.b16 %v10985
    %v11249 = vunpack.c.l.b16 %v10986
    %v11250 = vunpack.c.h.b16 %v10986
    %v11251 = vunpack.c.l.b16 %v10987
    %v11252 = vunpack.c.h.b16 %v10987
    %v11253 = vunpack.c.l.b16 %v10988
    %v11254 = vunpack.c.h.b16 %v10988
    %v11255 = vunpack.c.l.b16 %v10989
    %v11256 = vunpack.c.h.b16 %v10989
    %v11257 = vunpack.c.l.b16 %v10990
    %v11258 = vunpack.c.h.b16 %v10990
    %v11259 = vunpack.c.l.b16 %v10991
    %v11260 = vunpack.c.h.b16 %v10991
    %v11261 = vunpack.c.l.b16 %v10992
    %v11262 = vunpack.c.h.b16 %v10992
    %v11263 = vunpack.c.l.b16 %v10993
    %v11264 = vunpack.c.h.b16 %v10993
    %v11265 = vunpack.c.l.b16 %v10994
    %v11266 = vunpack.c.h.b16 %v10994
    %v11267 = vunpack.c.l.b16 %v10995
    %v11268 = vunpack.c.h.b16 %v10995
    %v11269 = vunpack.c.l.b16 %v10996
    %v11270 = vunpack.c.h.b16 %v10996
    %v11271 = vunpack.c.l.b16 %v10997
    %v11272 = vunpack.c.h.b16 %v10997
    %v11273 = vunpack.c.l.b16 %v10998
    %v11274 = vunpack.c.h.b16 %v10998
    %v11275 = vunpack.c.l.b16 %v10999
    %v11276 = vunpack.c.h.b16 %v10999
    %v11277 = vunpack.c.l.b16 %v11000
    %v11278 = vunpack.c.h.b16 %v11000
    %v11279 = vunpack.c.l.b16 %v11001
    %v11280 = vunpack.c.h.b16 %v11001
    %v11281 = vunpack.c.l.b16 %v11002
    %v11282 = vunpack.c.h.b16 %v11002
    %v11283 = vunpack.c.l.b16 %v11003
    %v11284 = vunpack.c.h.b16 %v11003
    %v11285 = vunpack.c.l.b16 %v11004
    %v11286 = vunpack.c.h.b16 %v11004
    %v11287 = vunpack.c.l.b16 %v11005
    %v11288 = vunpack.c.h.b16 %v11005
    %v11289 = vunpack.c.l.b16 %v11006
    %v11290 = vunpack.c.h.b16 %v11006
    %v11291 = vunpack.c.l.b16 %v11007
    %v11292 = vunpack.c.h.b16 %v11007
    %v11293 = vunpack.c.l.b16 %v11008
    %v11294 = vunpack.c.h.b16 %v11008
    %v11295 = vunpack.c.l.b16 %v11009
    %v11296 = vunpack.c.h.b16 %v11009
    %v11297 = vunpack.c.l.b16 %v11010
    %v11298 = vunpack.c.h.b16 %v11010
    %v11299 = vunpack.c.l.b16 %v11011
    %v11300 = vunpack.c.h.b16 %v11011
    %v11301 = vunpack.c.l.b16 %v11012
    %v11302 = vunpack.c.h.b16 %v11012
    %v11303 = vunpack.c.l.b16 %v11013
    %v11304 = vunpack.c.h.b16 %v11013
    %v11305 = vunpack.c.l.b16 %v11014
    %v11306 = vunpack.c.h.b16 %v11014
    %v11307 = vunpack.c.l.b16 %v11015
    %v11308 = vunpack.c.h.b16 %v11015
    %v11309 = vunpack.c.l.b16 %v11016
    %v11310 = vunpack.c.h.b16 %v11016
    %v11311 = vunpack.c.l.b16 %v11017
    %v11312 = vunpack.c.h.b16 %v11017
    %v11313 = vunpack.c.l.b16 %v11018
    %v11314 = vunpack.c.h.b16 %v11018
    %v11315 = vunpack.c.l.b16 %v11019
    %v11316 = vunpack.c.h.b16 %v11019
    %v11317 = vunpack.c.l.b16 %v11020
    %v11318 = vunpack.c.h.b16 %v11020
    %v11319 = vunpack.c.l.b16 %v11021
    %v11320 = vunpack.c.h.b16 %v11021
    %v11321 = vunpack.c.l.b16 %v11022
    %v11322 = vunpack.c.h.b16 %v11022
    %v11323 = vunpack.c.l.b16 %v11023
    %v11324 = vunpack.c.h.b16 %v11023
    %v11325 = vunpack.c.l.b16 %v11024
    %v11326 = vunpack.c.h.b16 %v11024
    %v11327 = vunpack.c.l.b16 %v11025
    %v11328 = vunpack.c.h.b16 %v11025
    %v11329 = vunpack.c.l.b16 %v11026
    %v11330 = vunpack.c.h.b16 %v11026
    %v11331 = vunpack.c.l.b16 %v11027
    %v11332 = vunpack.c.h.b16 %v11027
    %v11333 = vunpack.c.l.b16 %v11028
    %v11334 = vunpack.c.h.b16 %v11028
    %v11335 = vunpack.c.l.b16 %v11029
    %v11336 = vunpack.c.h.b16 %v11029
    %v11337 = vunpack.c.l.b16 %v11030
    %v11338 = vunpack.c.h.b16 %v11030
    %v11339 = vunpack.c.l.b16 %v11031
    %v11340 = vunpack.c.h.b16 %v11031
    %v11341 = vunpack.c.l.b16 %v11032
    %v11342 = vunpack.c.h.b16 %v11032
    %v11343 = vunpack.c.l.b16 %v11033
    %v11344 = vunpack.c.h.b16 %v11033
    %v11345 = vunpack.c.l.b16 %v11034
    %v11346 = vunpack.c.h.b16 %v11034
    %v11347 = vunpack.c.l.b16 %v11035
    %v11348 = vunpack.c.h.b16 %v11035
    %v11349 = vunpack.c.l.b16 %v11036
    %v11350 = vunpack.c.h.b16 %v11036
    %v11351 = vunpack.c.l.b16 %v11037
    %v11352 = vunpack.c.h.b16 %v11037
    %v11353 = vunpack.c.l.b16 %v11038
    %v11354 = vunpack.c.h.b16 %v11038
    %v11355 = vunpack.c.l.b16 %v11039
    %v11356 = vunpack.c.h.b16 %v11039
    %v11357 = vunpack.c.l.b16 %v11040
    %v11358 = vunpack.c.h.b16 %v11040
    %v11359 = vunpack.c.l.b16 %v11041
    %v11360 = vunpack.c.h.b16 %v11041
    %v11361 = vunpack.c.l.b16 %v11042
    %v11362 = vunpack.c.h.b16 %v11042
    %v11363 = vpack.c.b16 %v11237, %v11235
    %v11364 = vpack.c.b16 %v11238, %v11236
    %v11365 = vpack.c.b16 %v11241, %v11239
    %v11366 = vpack.c.b16 %v11242, %v11240
    %v11367 = vpack.c.b16 %v11245, %v11243
    %v11368 = vpack.c.b16 %v11246, %v11244
    %v11369 = vpack.c.b16 %v11249, %v11247
    %v11370 = vpack.c.b16 %v11250, %v11248
    %v11371 = vpack.c.b16 %v11253, %v11251
    %v11372 = vpack.c.b16 %v11254, %v11252
    %v11373 = vpack.c.b16 %v11257, %v11255
    %v11374 = vpack.c.b16 %v11258, %v11256
    %v11375 = vpack.c.b16 %v11261, %v11259
    %v11376 = vpack.c.b16 %v11262, %v11260
    %v11377 = vpack.c.b16 %v11265, %v11263
    %v11378 = vpack.c.b16 %v11266, %v11264
    %v11379 = vpack.c.b16 %v11269, %v11267
    %v11380 = vpack.c.b16 %v11270, %v11268
    %v11381 = vpack.c.b16 %v11273, %v11271
    %v11382 = vpack.c.b16 %v11274, %v11272
    %v11383 = vpack.c.b16 %v11277, %v11275
    %v11384 = vpack.c.b16 %v11278, %v11276
    %v11385 = vpack.c.b16 %v11281, %v11279
    %v11386 = vpack.c.b16 %v11282, %v11280
    %v11387 = vpack.c.b16 %v11285, %v11283
    %v11388 = vpack.c.b16 %v11286, %v11284
    %v11389 = vpack.c.b16 %v11289, %v11287
    %v11390 = vpack.c.b16 %v11290, %v11288
    %v11391 = vpack.c.b16 %v11293, %v11291
    %v11392 = vpack.c.b16 %v11294, %v11292
    %v11393 = vpack.c.b16 %v11297, %v11295
    %v11394 = vpack.c.b16 %v11298, %v11296
    %v11395 = vpack.c.b16 %v11301, %v11299
    %v11396 = vpack.c.b16 %v11302, %v11300
    %v11397 = vpack.c.b16 %v11305, %v11303
    %v11398 = vpack.c.b16 %v11306, %v11304
    %v11399 = vpack.c.b16 %v11309, %v11307
    %v11400 = vpack.c.b16 %v11310, %v11308
    %v11401 = vpack.c.b16 %v11313, %v11311
    %v11402 = vpack.c.b16 %v11314, %v11312
    %v11403 = vpack.c.b16 %v11317, %v11315
    %v11404 = vpack.c.b16 %v11318, %v11316
    %v11405 = vpack.c.b16 %v11321, %v11319
    %v11406 = vpack.c.b16 %v11322, %v11320
    %v11407 = vpack.c.b16 %v11325, %v11323
    %v11408 = vpack.c.b16 %v11326, %v11324
    %v11409 = vpack.c.b16 %v11329, %v11327
    %v11410 = vpack.c.b16 %v11330, %v11328
    %v11411 = vpack.c.b16 %v11333, %v11331
    %v11412 = vpack.c.b16 %v11334, %v11332
    %v11413 = vpack.c.b16 %v11337, %v11335
    %v11414 = vpack.c.b16 %v11338, %v11336
    %v11415 = vpack.c.b16 %v11341, %v11339
    %v11416 = vpack.c.b16 %v11342, %v11340
    %v11417 = vpack.c.b16 %v11345, %v11343
    %v11418 = vpack.c.b16 %v11346, %v11344
    %v11419 = vpack.c.b16 %v11349, %v11347
    %v11420 = vpack.c.b16 %v11350, %v11348
    %v11421 = vpack.c.b16 %v11353, %v11351
    %v11422 = vpack.c.b16 %v11354, %v11352
    %v11423 = vpack.c.b16 %v11357, %v11355
    %v11424 = vpack.c.b16 %v11358, %v11356
    %v11425 = vpack.c.b16 %v11361, %v11359
    %v11426 = vpack.c.b16 %v11362, %v11360
    %11491 = vmatprep.subr.bf16.mxu0 %v11364
    %11492 = vmatpush1.bf16.msra.mxu0 %v11363
    %11493 = vmatprep.subr.bf16.mxu0 %v11366
    %11494 = vmatpush1.bf16.msra.mxu0 %v11365
    %11495 = vmatprep.subr.bf16.mxu0 %v11368
    %11496 = vmatpush1.bf16.msra.mxu0 %v11367
    %11497 = vmatprep.subr.bf16.mxu0 %v11370
    %11498 = vmatpush1.bf16.msra.mxu0 %v11369
    %11499 = vmatprep.subr.bf16.mxu0 %v11372
    %11500 = vmatpush1.bf16.msra.mxu0 %v11371
    %11501 = vmatprep.subr.bf16.mxu0 %v11374
    %11502 = vmatpush1.bf16.msra.mxu0 %v11373
    %11503 = vmatprep.subr.bf16.mxu0 %v11376
    %11504 = vmatpush1.bf16.msra.mxu0 %v11375
    %11505 = vmatprep.subr.bf16.mxu0 %v11378
    %11506 = vmatpush1.bf16.msra.mxu0 %v11377
    %11507 = vmatprep.subr.bf16.mxu0 %v11380
    %11508 = vmatpush1.bf16.msra.mxu0 %v11379
    %11509 = vmatprep.subr.bf16.mxu0 %v11382
    %11510 = vmatpush1.bf16.msra.mxu0 %v11381
    %11511 = vmatprep.subr.bf16.mxu0 %v11384
    %11512 = vmatpush1.bf16.msra.mxu0 %v11383
    %11513 = vmatprep.subr.bf16.mxu0 %v11386
    %11514 = vmatpush1.bf16.msra.mxu0 %v11385
    %11515 = vmatprep.subr.bf16.mxu0 %v11388
    %11516 = vmatpush1.bf16.msra.mxu0 %v11387
    %11517 = vmatprep.subr.bf16.mxu0 %v11390
    %11518 = vmatpush1.bf16.msra.mxu0 %v11389
    %11519 = vmatprep.subr.bf16.mxu0 %v11392
    %11520 = vmatpush1.bf16.msra.mxu0 %v11391
    %11521 = vmatprep.subr.bf16.mxu0 %v11394
    %11522 = vmatpush1.bf16.msra.mxu0 %v11393
    %11523 = vmatprep.mubr.bf16.mxu0 %v11164
    %11524 = vmatmul.mubr.bf16.gmra.mrb[0].mxu0 %v11163
    %v11525 = vpop.f32.mrb[0].mxu0
    %v11526 = vadd.f32 0.0, %v11525
    %v11527 = vpop.f32.mrb[0].mxu0
    %v11528 = vadd.f32 0.0, %v11527
    %v11529 = vpop.f32.mrb[0].mxu0
    %v11530 = vpop.f32.mrb[0].mxu0
    %11531 = vdwg.mxu0
    %11532 = vmatprep.subr.bf16.mxu0 %v11396
    %11533 = vmatpush1.bf16.msra.mxu0 %v11395
    %11534 = vmatprep.subr.bf16.mxu0 %v11398
    %11535 = vmatpush1.bf16.msra.mxu0 %v11397
    %11536 = vmatprep.subr.bf16.mxu0 %v11400
    %11537 = vmatpush1.bf16.msra.mxu0 %v11399
    %11538 = vmatprep.subr.bf16.mxu0 %v11402
    %11539 = vmatpush1.bf16.msra.mxu0 %v11401
    %11540 = vmatprep.subr.bf16.mxu0 %v11404
    %11541 = vmatpush1.bf16.msra.mxu0 %v11403
    %11542 = vmatprep.subr.bf16.mxu0 %v11406
    %11543 = vmatpush1.bf16.msra.mxu0 %v11405
    %11544 = vmatprep.subr.bf16.mxu0 %v11408
    %11545 = vmatpush1.bf16.msra.mxu0 %v11407
    %11546 = vmatprep.subr.bf16.mxu0 %v11410
    %11547 = vmatpush1.bf16.msra.mxu0 %v11409
    %11548 = vmatprep.subr.bf16.mxu0 %v11412
    %11549 = vmatpush1.bf16.msra.mxu0 %v11411
    %11550 = vmatprep.subr.bf16.mxu0 %v11414
    %11551 = vmatpush1.bf16.msra.mxu0 %v11413
    %11552 = vmatprep.subr.bf16.mxu0 %v11416
    %11553 = vmatpush1.bf16.msra.mxu0 %v11415
    %11554 = vmatprep.subr.bf16.mxu0 %v11418
    %11555 = vmatpush1.bf16.msra.mxu0 %v11417
    %11556 = vmatprep.subr.bf16.mxu0 %v11420
    %11557 = vmatpush1.bf16.msra.mxu0 %v11419
    %11558 = vmatprep.subr.bf16.mxu0 %v11422
    %11559 = vmatpush1.bf16.msra.mxu0 %v11421
    %11560 = vmatprep.subr.bf16.mxu0 %v11424
    %11561 = vmatpush1.bf16.msra.mxu0 %v11423
    %11562 = vmatprep.subr.bf16.mxu0 %v11426
    %11563 = vmatpush1.bf16.msra.mxu0 %v11425
    %11564 = vmatprep.mubr.bf16.mxu0 %v11166
    %11565 = vmatmul.mubr.bf16.gmra.mrb[0].mxu0 %v11165
    %v11566 = vpop.f32.mrb[0].mxu0
    %v11567 = vadd.f32 %v11526, %v11566
    %v11568 = vpop.f32.mrb[0].mxu0
    %v11569 = vadd.f32 %v11528, %v11568
    %v11570 = vpop.f32.mrb[0].mxu0
    %v11571 = vpop.f32.mrb[0].mxu0
    %11572 = vdwg.mxu0
    %v11575 = vcombine.low %v11567, %v11569
    %v11576 = vcombine.high %v11567, %v11569
    %v11579 = vcombine.high %v11575, %v11575
    %v11580 = vcombine.high %v11576, %v11576
    %v11583 = vpack.c.bf16 %v11575, %v11575
    %v11584 = vpack.c.bf16 %v11579, %v11579
    %v11585 = vpack.c.bf16 %v11576, %v11576
    %v11586 = vpack.c.bf16 %v11580, %v11580
    %v11587 = vld [vmem:[#allocation19] sm:$0xf]
    %v11588 = vld [vmem:[#allocation19 + $0x4] sm:$0xf]
    %v11589 = vld [vmem:[#allocation19 + $0x8] sm:$0xf]
    %v11590 = vld [vmem:[#allocation19 + $0xc] sm:$0xf]
    %v11591 = vld [vmem:[#allocation19 + $0x10] sm:$0xf]
    %v11592 = vld [vmem:[#allocation19 + $0x14] sm:$0xf]
    %v11593 = vld [vmem:[#allocation19 + $0x18] sm:$0xf]
    %v11594 = vld [vmem:[#allocation19 + $0x1c] sm:$0xf]
    %v11595 = vld [vmem:[#allocation19 + $0x20] sm:$0xf]
    %v11596 = vld [vmem:[#allocation19 + $0x24] sm:$0xf]
    %v11597 = vld [vmem:[#allocation19 + $0x28] sm:$0xf]
    %v11598 = vld [vmem:[#allocation19 + $0x2c] sm:$0xf]
    %v11599 = vld [vmem:[#allocation19 + $0x30] sm:$0xf]
    %v11600 = vld [vmem:[#allocation19 + $0x34] sm:$0xf]
    %v11601 = vld [vmem:[#allocation19 + $0x38] sm:$0xf]
    %v11602 = vld [vmem:[#allocation19 + $0x3c] sm:$0xf]
    %v11603 = vld [vmem:[#allocation19 + $0x40] sm:$0xf]
    %v11604 = vld [vmem:[#allocation19 + $0x44] sm:$0xf]
    %v11605 = vld [vmem:[#allocation19 + $0x48] sm:$0xf]
    %v11606 = vld [vmem:[#allocation19 + $0x4c] sm:$0xf]
    %v11607 = vld [vmem:[#allocation19 + $0x50] sm:$0xf]
    %v11608 = vld [vmem:[#allocation19 + $0x54] sm:$0xf]
    %v11609 = vld [vmem:[#allocation19 + $0x58] sm:$0xf]
    %v11610 = vld [vmem:[#allocation19 + $0x5c] sm:$0xf]
    %v11611 = vld [vmem:[#allocation19 + $0x60] sm:$0xf]
    %v11612 = vld [vmem:[#allocation19 + $0x64] sm:$0xf]
    %v11613 = vld [vmem:[#allocation19 + $0x68] sm:$0xf]
    %v11614 = vld [vmem:[#allocation19 + $0x6c] sm:$0xf]
    %v11615 = vld [vmem:[#allocation19 + $0x70] sm:$0xf]
    %v11616 = vld [vmem:[#allocation19 + $0x74] sm:$0xf]
    %v11617 = vld [vmem:[#allocation19 + $0x78] sm:$0xf]
    %v11618 = vld [vmem:[#allocation19 + $0x7c] sm:$0xf]
    %s11619 = scalar_lea.vmem [#allocation19], 128
    %v11620 = vld [vmem:[%s11619] sm:$0xf]
    %v11621 = vld [vmem:[%s11619 + $0x4] sm:$0xf]
    %v11622 = vld [vmem:[%s11619 + $0x8] sm:$0xf]
    %v11623 = vld [vmem:[%s11619 + $0xc] sm:$0xf]
    %v11624 = vld [vmem:[%s11619 + $0x10] sm:$0xf]
    %v11625 = vld [vmem:[%s11619 + $0x14] sm:$0xf]
    %v11626 = vld [vmem:[%s11619 + $0x18] sm:$0xf]
    %v11627 = vld [vmem:[%s11619 + $0x1c] sm:$0xf]
    %v11628 = vld [vmem:[%s11619 + $0x20] sm:$0xf]
    %v11629 = vld [vmem:[%s11619 + $0x24] sm:$0xf]
    %v11630 = vld [vmem:[%s11619 + $0x28] sm:$0xf]
    %v11631 = vld [vmem:[%s11619 + $0x2c] sm:$0xf]
    %v11632 = vld [vmem:[%s11619 + $0x30] sm:$0xf]
    %v11633 = vld [vmem:[%s11619 + $0x34] sm:$0xf]
    %v11634 = vld [vmem:[%s11619 + $0x38] sm:$0xf]
    %v11635 = vld [vmem:[%s11619 + $0x3c] sm:$0xf]
    %v11636 = vld [vmem:[%s11619 + $0x40] sm:$0xf]
    %v11637 = vld [vmem:[%s11619 + $0x44] sm:$0xf]
    %v11638 = vld [vmem:[%s11619 + $0x48] sm:$0xf]
    %v11639 = vld [vmem:[%s11619 + $0x4c] sm:$0xf]
    %v11640 = vld [vmem:[%s11619 + $0x50] sm:$0xf]
    %v11641 = vld [vmem:[%s11619 + $0x54] sm:$0xf]
    %v11642 = vld [vmem:[%s11619 + $0x58] sm:$0xf]
    %v11643 = vld [vmem:[%s11619 + $0x5c] sm:$0xf]
    %v11644 = vld [vmem:[%s11619 + $0x60] sm:$0xf]
    %v11645 = vld [vmem:[%s11619 + $0x64] sm:$0xf]
    %v11646 = vld [vmem:[%s11619 + $0x68] sm:$0xf]
    %v11647 = vld [vmem:[%s11619 + $0x6c] sm:$0xf]
    %v11648 = vld [vmem:[%s11619 + $0x70] sm:$0xf]
    %v11649 = vld [vmem:[%s11619 + $0x74] sm:$0xf]
    %v11650 = vld [vmem:[%s11619 + $0x78] sm:$0xf]
    %v11651 = vld [vmem:[%s11619 + $0x7c] sm:$0xf]
    %v11656 = vunpack.c.l.b16 %v11583
    %v11657 = vunpack.c.l.b16 %v11584
    %v11658 = vunpack.c.l.b16 %v11585
    %v11659 = vunpack.c.l.b16 %v11586
    %v11660 = vrot.slane %v11656, 1
    %v11661 = vsel %vm2910, %v11658, %v11660
    %v11662 = vrot.slane %v11657, 1
    %v11663 = vsel %vm2910, %v11659, %v11662
    %v11664 = vpack.c.b16 %v11661, %v11661
    %v11665 = vpack.c.b16 %v11663, %v11663
    %v11700 = vunpack.c.l.b16 %v11620
    %v11701 = vunpack.c.l.b16 %v11621
    %v11702 = vunpack.c.l.b16 %v11622
    %v11703 = vunpack.c.l.b16 %v11623
    %v11704 = vunpack.c.l.b16 %v11624
    %v11705 = vunpack.c.l.b16 %v11625
    %v11706 = vunpack.c.l.b16 %v11626
    %v11707 = vunpack.c.l.b16 %v11627
    %v11708 = vunpack.c.l.b16 %v11628
    %v11709 = vunpack.c.l.b16 %v11629
    %v11710 = vunpack.c.l.b16 %v11630
    %v11711 = vunpack.c.l.b16 %v11631
    %v11712 = vunpack.c.l.b16 %v11632
    %v11713 = vunpack.c.l.b16 %v11633
    %v11714 = vunpack.c.l.b16 %v11634
    %v11715 = vunpack.c.l.b16 %v11635
    %v11716 = vunpack.c.l.b16 %v11636
    %v11717 = vunpack.c.l.b16 %v11637
    %v11718 = vunpack.c.l.b16 %v11638
    %v11719 = vunpack.c.l.b16 %v11639
    %v11720 = vunpack.c.l.b16 %v11640
    %v11721 = vunpack.c.l.b16 %v11641
    %v11722 = vunpack.c.l.b16 %v11642
    %v11723 = vunpack.c.l.b16 %v11643
    %v11724 = vunpack.c.l.b16 %v11644
    %v11725 = vunpack.c.l.b16 %v11645
    %v11726 = vunpack.c.l.b16 %v11646
    %v11727 = vunpack.c.l.b16 %v11647
    %v11728 = vunpack.c.l.b16 %v11648
    %v11729 = vunpack.c.l.b16 %v11649
    %v11730 = vunpack.c.l.b16 %v11650
    %v11731 = vunpack.c.l.b16 %v11651
    %v11732 = vpack.c.b16 %v11701, %v11700
    %v11733 = vpack.c.b16 %v11703, %v11702
    %v11734 = vpack.c.b16 %v11705, %v11704
    %v11735 = vpack.c.b16 %v11707, %v11706
    %v11736 = vpack.c.b16 %v11709, %v11708
    %v11737 = vpack.c.b16 %v11711, %v11710
    %v11738 = vpack.c.b16 %v11713, %v11712
    %v11739 = vpack.c.b16 %v11715, %v11714
    %v11740 = vpack.c.b16 %v11717, %v11716
    %v11741 = vpack.c.b16 %v11719, %v11718
    %v11742 = vpack.c.b16 %v11721, %v11720
    %v11743 = vpack.c.b16 %v11723, %v11722
    %v11744 = vpack.c.b16 %v11725, %v11724
    %v11745 = vpack.c.b16 %v11727, %v11726
    %v11746 = vpack.c.b16 %v11729, %v11728
    %v11747 = vpack.c.b16 %v11731, %v11730
    %11764 = vmatprep.subr.bf16.mxu0 0
    %11765 = vmatpush1.bf16.msra.mxu0 %v11732
    %11766 = vmatprep.subr.bf16.mxu0 0
    %11767 = vmatpush1.bf16.msra.mxu0 %v11733
    %11768 = vmatprep.subr.bf16.mxu0 0
    %11769 = vmatpush1.bf16.msra.mxu0 %v11734
    %11770 = vmatprep.subr.bf16.mxu0 0
    %11771 = vmatpush1.bf16.msra.mxu0 %v11735
    %11772 = vmatprep.subr.bf16.mxu0 0
    %11773 = vmatpush1.bf16.msra.mxu0 %v11736
    %11774 = vmatprep.subr.bf16.mxu0 0
    %11775 = vmatpush1.bf16.msra.mxu0 %v11737
    %11776 = vmatprep.subr.bf16.mxu0 0
    %11777 = vmatpush1.bf16.msra.mxu0 %v11738
    %11778 = vmatprep.subr.bf16.mxu0 0
    %11779 = vmatpush1.bf16.msra.mxu0 %v11739
    %11780 = vmatprep.subr.bf16.mxu0 0
    %11781 = vmatpush1.bf16.msra.mxu0 %v11740
    %11782 = vmatprep.subr.bf16.mxu0 0
    %11783 = vmatpush1.bf16.msra.mxu0 %v11741
    %11784 = vmatprep.subr.bf16.mxu0 0
    %11785 = vmatpush1.bf16.msra.mxu0 %v11742
    %11786 = vmatprep.subr.bf16.mxu0 0
    %11787 = vmatpush1.bf16.msra.mxu0 %v11743
    %11788 = vmatprep.subr.bf16.mxu0 0
    %11789 = vmatpush1.bf16.msra.mxu0 %v11744
    %11790 = vmatprep.subr.bf16.mxu0 0
    %11791 = vmatpush1.bf16.msra.mxu0 %v11745
    %11792 = vmatprep.subr.bf16.mxu0 0
    %11793 = vmatpush1.bf16.msra.mxu0 %v11746
    %11794 = vmatprep.subr.bf16.mxu0 0
    %11795 = vmatpush1.bf16.msra.mxu0 %v11747
    %11796 = vmatprep.mubr.bf16.mxu0 %v11665
    %11797 = vmatmul.mubr.bf16.gmra.mrb[0].mxu0 %v11664
    %v11798 = vpop.f32.mrb[0].mxu0
    %v11799 = vadd.f32 0.0, %v11798
    %v11800 = vpop.f32.mrb[0].mxu0
    %v11801 = vpop.f32.mrb[0].mxu0
    %v11802 = vpop.f32.mrb[0].mxu0
    %11803 = vdwg.mxu0
    %v11804 = vrot.slane %v11658, 7
    %v11805 = vsel %vm2910, %v11804, %v11656
    %v11806 = vrot.slane %v11659, 7
    %v11807 = vsel %vm2910, %v11806, %v11657
    %v11808 = vpack.c.b16 %v11805, %v11805
    %v11809 = vpack.c.b16 %v11807, %v11807
    %v11844 = vunpack.c.l.b16 %v11587
    %v11845 = vunpack.c.l.b16 %v11588
    %v11846 = vunpack.c.l.b16 %v11589
    %v11847 = vunpack.c.l.b16 %v11590
    %v11848 = vunpack.c.l.b16 %v11591
    %v11849 = vunpack.c.l.b16 %v11592
    %v11850 = vunpack.c.l.b16 %v11593
    %v11851 = vunpack.c.l.b16 %v11594
    %v11852 = vunpack.c.l.b16 %v11595
    %v11853 = vunpack.c.l.b16 %v11596
    %v11854 = vunpack.c.l.b16 %v11597
    %v11855 = vunpack.c.l.b16 %v11598
    %v11856 = vunpack.c.l.b16 %v11599
    %v11857 = vunpack.c.l.b16 %v11600
    %v11858 = vunpack.c.l.b16 %v11601
    %v11859 = vunpack.c.l.b16 %v11602
    %v11860 = vunpack.c.l.b16 %v11603
    %v11861 = vunpack.c.l.b16 %v11604
    %v11862 = vunpack.c.l.b16 %v11605
    %v11863 = vunpack.c.l.b16 %v11606
    %v11864 = vunpack.c.l.b16 %v11607
    %v11865 = vunpack.c.l.b16 %v11608
    %v11866 = vunpack.c.l.b16 %v11609
    %v11867 = vunpack.c.l.b16 %v11610
    %v11868 = vunpack.c.l.b16 %v11611
    %v11869 = vunpack.c.l.b16 %v11612
    %v11870 = vunpack.c.l.b16 %v11613
    %v11871 = vunpack.c.l.b16 %v11614
    %v11872 = vunpack.c.l.b16 %v11615
    %v11873 = vunpack.c.l.b16 %v11616
    %v11874 = vunpack.c.l.b16 %v11617
    %v11875 = vunpack.c.l.b16 %v11618
    %v11876 = vpack.c.b16 %v11845, %v11844
    %v11877 = vpack.c.b16 %v11847, %v11846
    %v11878 = vpack.c.b16 %v11849, %v11848
    %v11879 = vpack.c.b16 %v11851, %v11850
    %v11880 = vpack.c.b16 %v11853, %v11852
    %v11881 = vpack.c.b16 %v11855, %v11854
    %v11882 = vpack.c.b16 %v11857, %v11856
    %v11883 = vpack.c.b16 %v11859, %v11858
    %v11884 = vpack.c.b16 %v11861, %v11860
    %v11885 = vpack.c.b16 %v11863, %v11862
    %v11886 = vpack.c.b16 %v11865, %v11864
    %v11887 = vpack.c.b16 %v11867, %v11866
    %v11888 = vpack.c.b16 %v11869, %v11868
    %v11889 = vpack.c.b16 %v11871, %v11870
    %v11890 = vpack.c.b16 %v11873, %v11872
    %v11891 = vpack.c.b16 %v11875, %v11874
    %11908 = vmatprep.subr.bf16.mxu0 0
    %11909 = vmatpush1.bf16.msra.mxu0 %v11876
    %11910 = vmatprep.subr.bf16.mxu0 0
    %11911 = vmatpush1.bf16.msra.mxu0 %v11877
    %11912 = vmatprep.subr.bf16.mxu0 0
    %11913 = vmatpush1.bf16.msra.mxu0 %v11878
    %11914 = vmatprep.subr.bf16.mxu0 0
    %11915 = vmatpush1.bf16.msra.mxu0 %v11879
    %11916 = vmatprep.subr.bf16.mxu0 0
    %11917 = vmatpush1.bf16.msra.mxu0 %v11880
    %11918 = vmatprep.subr.bf16.mxu0 0
    %11919 = vmatpush1.bf16.msra.mxu0 %v11881
    %11920 = vmatprep.subr.bf16.mxu0 0
    %11921 = vmatpush1.bf16.msra.mxu0 %v11882
    %11922 = vmatprep.subr.bf16.mxu0 0
    %11923 = vmatpush1.bf16.msra.mxu0 %v11883
    %11924 = vmatprep.subr.bf16.mxu0 0
    %11925 = vmatpush1.bf16.msra.mxu0 %v11884
    %11926 = vmatprep.subr.bf16.mxu0 0
    %11927 = vmatpush1.bf16.msra.mxu0 %v11885
    %11928 = vmatprep.subr.bf16.mxu0 0
    %11929 = vmatpush1.bf16.msra.mxu0 %v11886
    %11930 = vmatprep.subr.bf16.mxu0 0
    %11931 = vmatpush1.bf16.msra.mxu0 %v11887
    %11932 = vmatprep.subr.bf16.mxu0 0
    %11933 = vmatpush1.bf16.msra.mxu0 %v11888
    %11934 = vmatprep.subr.bf16.mxu0 0
    %11935 = vmatpush1.bf16.msra.mxu0 %v11889
    %11936 = vmatprep.subr.bf16.mxu0 0
    %11937 = vmatpush1.bf16.msra.mxu0 %v11890
    %11938 = vmatprep.subr.bf16.mxu0 0
    %11939 = vmatpush1.bf16.msra.mxu0 %v11891
    %11940 = vmatprep.mubr.bf16.mxu0 %v11809
    %11941 = vmatmul.mubr.bf16.gmra.mrb[0].mxu0 %v11808
    %v11942 = vpop.f32.mrb[0].mxu0
    %v11943 = vadd.f32 %v11799, %v11942
    %v11944 = vpop.f32.mrb[0].mxu0
    %v11945 = vpop.f32.mrb[0].mxu0
    %v11946 = vpop.f32.mrb[0].mxu0
    %11947 = vdwg.mxu0
    %s11948 = scalar_lea.vmem [#allocation19], 256
    %v11949 = vld [vmem:[%s11948] sm:$0xf]
    %v11950 = vld [vmem:[%s11948 + $0x4] sm:$0xf]
    %v11951 = vld [vmem:[%s11948 + $0x8] sm:$0xf]
    %v11952 = vld [vmem:[%s11948 + $0xc] sm:$0xf]
    %v11953 = vld [vmem:[%s11948 + $0x10] sm:$0xf]
    %v11954 = vld [vmem:[%s11948 + $0x14] sm:$0xf]
    %v11955 = vld [vmem:[%s11948 + $0x18] sm:$0xf]
    %v11956 = vld [vmem:[%s11948 + $0x1c] sm:$0xf]
    %v11957 = vld [vmem:[%s11948 + $0x20] sm:$0xf]
    %v11958 = vld [vmem:[%s11948 + $0x24] sm:$0xf]
    %v11959 = vld [vmem:[%s11948 + $0x28] sm:$0xf]
    %v11960 = vld [vmem:[%s11948 + $0x2c] sm:$0xf]
    %v11961 = vld [vmem:[%s11948 + $0x30] sm:$0xf]
    %v11962 = vld [vmem:[%s11948 + $0x34] sm:$0xf]
    %v11963 = vld [vmem:[%s11948 + $0x38] sm:$0xf]
    %v11964 = vld [vmem:[%s11948 + $0x3c] sm:$0xf]
    %v11965 = vld [vmem:[%s11948 + $0x40] sm:$0xf]
    %v11966 = vld [vmem:[%s11948 + $0x44] sm:$0xf]
    %v11967 = vld [vmem:[%s11948 + $0x48] sm:$0xf]
    %v11968 = vld [vmem:[%s11948 + $0x4c] sm:$0xf]
    %v11969 = vld [vmem:[%s11948 + $0x50] sm:$0xf]
    %v11970 = vld [vmem:[%s11948 + $0x54] sm:$0xf]
    %v11971 = vld [vmem:[%s11948 + $0x58] sm:$0xf]
    %v11972 = vld [vmem:[%s11948 + $0x5c] sm:$0xf]
    %v11973 = vld [vmem:[%s11948 + $0x60] sm:$0xf]
    %v11974 = vld [vmem:[%s11948 + $0x64] sm:$0xf]
    %v11975 = vld [vmem:[%s11948 + $0x68] sm:$0xf]
    %v11976 = vld [vmem:[%s11948 + $0x6c] sm:$0xf]
    %v11977 = vld [vmem:[%s11948 + $0x70] sm:$0xf]
    %v11978 = vld [vmem:[%s11948 + $0x74] sm:$0xf]
    %v11979 = vld [vmem:[%s11948 + $0x78] sm:$0xf]
    %v11980 = vld [vmem:[%s11948 + $0x7c] sm:$0xf]
    %v11981 = vrot.slane %v11656, 2
    %v11982 = vrot.slane %v11658, 1
    %v11983 = vsel %vm2910, %v11982, %v11981
    %v11984 = vrot.slane %v11657, 2
    %v11985 = vrot.slane %v11659, 1
    %v11986 = vsel %vm2910, %v11985, %v11984
    %v11987 = vpack.c.b16 %v11983, %v11983
    %v11988 = vpack.c.b16 %v11986, %v11986
    %v12023 = vunpack.c.l.b16 %v11949
    %v12024 = vunpack.c.l.b16 %v11950
    %v12025 = vunpack.c.l.b16 %v11951
    %v12026 = vunpack.c.l.b16 %v11952
    %v12027 = vunpack.c.l.b16 %v11953
    %v12028 = vunpack.c.l.b16 %v11954
    %v12029 = vunpack.c.l.b16 %v11955
    %v12030 = vunpack.c.l.b16 %v11956
    %v12031 = vunpack.c.l.b16 %v11957
    %v12032 = vunpack.c.l.b16 %v11958
    %v12033 = vunpack.c.l.b16 %v11959
    %v12034 = vunpack.c.l.b16 %v11960
    %v12035 = vunpack.c.l.b16 %v11961
    %v12036 = vunpack.c.l.b16 %v11962
    %v12037 = vunpack.c.l.b16 %v11963
    %v12038 = vunpack.c.l.b16 %v11964
    %v12039 = vunpack.c.l.b16 %v11965
    %v12040 = vunpack.c.l.b16 %v11966
    %v12041 = vunpack.c.l.b16 %v11967
    %v12042 = vunpack.c.l.b16 %v11968
    %v12043 = vunpack.c.l.b16 %v11969
    %v12044 = vunpack.c.l.b16 %v11970
    %v12045 = vunpack.c.l.b16 %v11971
    %v12046 = vunpack.c.l.b16 %v11972
    %v12047 = vunpack.c.l.b16 %v11973
    %v12048 = vunpack.c.l.b16 %v11974
    %v12049 = vunpack.c.l.b16 %v11975
    %v12050 = vunpack.c.l.b16 %v11976
    %v12051 = vunpack.c.l.b16 %v11977
    %v12052 = vunpack.c.l.b16 %v11978
    %v12053 = vunpack.c.l.b16 %v11979
    %v12054 = vunpack.c.l.b16 %v11980
    %v12055 = vpack.c.b16 %v12024, %v12023
    %v12056 = vpack.c.b16 %v12026, %v12025
    %v12057 = vpack.c.b16 %v12028, %v12027
    %v12058 = vpack.c.b16 %v12030, %v12029
    %v12059 = vpack.c.b16 %v12032, %v12031
    %v12060 = vpack.c.b16 %v12034, %v12033
    %v12061 = vpack.c.b16 %v12036, %v12035
    %v12062 = vpack.c.b16 %v12038, %v12037
    %v12063 = vpack.c.b16 %v12040, %v12039
    %v12064 = vpack.c.b16 %v12042, %v12041
    %v12065 = vpack.c.b16 %v12044, %v12043
    %v12066 = vpack.c.b16 %v12046, %v12045
    %v12067 = vpack.c.b16 %v12048, %v12047
    %v12068 = vpack.c.b16 %v12050, %v12049
    %v12069 = vpack.c.b16 %v12052, %v12051
    %v12070 = vpack.c.b16 %v12054, %v12053
    %12087 = vmatprep.subr.bf16.mxu0 0
    %12088 = vmatpush1.bf16.msra.mxu0 %v12055
    %12089 = vmatprep.subr.bf16.mxu0 0
    %12090 = vmatpush1.bf16.msra.mxu0 %v12056
    %12091 = vmatprep.subr.bf16.mxu0 0
    %12092 = vmatpush1.bf16.msra.mxu0 %v12057
    %12093 = vmatprep.subr.bf16.mxu0 0
    %12094 = vmatpush1.bf16.msra.mxu0 %v12058
    %12095 = vmatprep.subr.bf16.mxu0 0
    %12096 = vmatpush1.bf16.msra.mxu0 %v12059
    %12097 = vmatprep.subr.bf16.mxu0 0
    %12098 = vmatpush1.bf16.msra.mxu0 %v12060
    %12099 = vmatprep.subr.bf16.mxu0 0
    %12100 = vmatpush1.bf16.msra.mxu0 %v12061
    %12101 = vmatprep.subr.bf16.mxu0 0
    %12102 = vmatpush1.bf16.msra.mxu0 %v12062
    %12103 = vmatprep.subr.bf16.mxu0 0
    %12104 = vmatpush1.bf16.msra.mxu0 %v12063
    %12105 = vmatprep.subr.bf16.mxu0 0
    %12106 = vmatpush1.bf16.msra.mxu0 %v12064
    %12107 = vmatprep.subr.bf16.mxu0 0
    %12108 = vmatpush1.bf16.msra.mxu0 %v12065
    %12109 = vmatprep.subr.bf16.mxu0 0
    %12110 = vmatpush1.bf16.msra.mxu0 %v12066
    %12111 = vmatprep.subr.bf16.mxu0 0
    %12112 = vmatpush1.bf16.msra.mxu0 %v12067
    %12113 = vmatprep.subr.bf16.mxu0 0
    %12114 = vmatpush1.bf16.msra.mxu0 %v12068
    %12115 = vmatprep.subr.bf16.mxu0 0
    %12116 = vmatpush1.bf16.msra.mxu0 %v12069
    %12117 = vmatprep.subr.bf16.mxu0 0
    %12118 = vmatpush1.bf16.msra.mxu0 %v12070
    %12119 = vmatprep.mubr.bf16.mxu0 %v11988
    %12120 = vmatmul.mubr.bf16.gmra.mrb[0].mxu0 %v11987
    %v12121 = vpop.f32.mrb[0].mxu0
    %v12122 = vadd.f32 0.0, %v12121
    %v12123 = vpop.f32.mrb[0].mxu0
    %v12124 = vpop.f32.mrb[0].mxu0
    %v12125 = vpop.f32.mrb[0].mxu0
    %12126 = vdwg.mxu0
    %v12127 = vadd.f32 %v11943, %v12122
    %s12128 = scalar_lea.vmem [#allocation19], 384
    %v12129 = vld [vmem:[%s12128] sm:$0xf]
    %v12130 = vld [vmem:[%s12128 + $0x4] sm:$0xf]
    %v12131 = vld [vmem:[%s12128 + $0x8] sm:$0xf]
    %v12132 = vld [vmem:[%s12128 + $0xc] sm:$0xf]
    %v12133 = vld [vmem:[%s12128 + $0x10] sm:$0xf]
    %v12134 = vld [vmem:[%s12128 + $0x14] sm:$0xf]
    %v12135 = vld [vmem:[%s12128 + $0x18] sm:$0xf]
    %v12136 = vld [vmem:[%s12128 + $0x1c] sm:$0xf]
    %v12137 = vld [vmem:[%s12128 + $0x20] sm:$0xf]
    %v12138 = vld [vmem:[%s12128 + $0x24] sm:$0xf]
    %v12139 = vld [vmem:[%s12128 + $0x28] sm:$0xf]
    %v12140 = vld [vmem:[%s12128 + $0x2c] sm:$0xf]
    %v12141 = vld [vmem:[%s12128 + $0x30] sm:$0xf]
    %v12142 = vld [vmem:[%s12128 + $0x34] sm:$0xf]
    %v12143 = vld [vmem:[%s12128 + $0x38] sm:$0xf]
    %v12144 = vld [vmem:[%s12128 + $0x3c] sm:$0xf]
    %v12145 = vld [vmem:[%s12128 + $0x40] sm:$0xf]
    %v12146 = vld [vmem:[%s12128 + $0x44] sm:$0xf]
    %v12147 = vld [vmem:[%s12128 + $0x48] sm:$0xf]
    %v12148 = vld [vmem:[%s12128 + $0x4c] sm:$0xf]
    %v12149 = vld [vmem:[%s12128 + $0x50] sm:$0xf]
    %v12150 = vld [vmem:[%s12128 + $0x54] sm:$0xf]
    %v12151 = vld [vmem:[%s12128 + $0x58] sm:$0xf]
    %v12152 = vld [vmem:[%s12128 + $0x5c] sm:$0xf]
    %v12153 = vld [vmem:[%s12128 + $0x60] sm:$0xf]
    %v12154 = vld [vmem:[%s12128 + $0x64] sm:$0xf]
    %v12155 = vld [vmem:[%s12128 + $0x68] sm:$0xf]
    %v12156 = vld [vmem:[%s12128 + $0x6c] sm:$0xf]
    %v12157 = vld [vmem:[%s12128 + $0x70] sm:$0xf]
    %v12158 = vld [vmem:[%s12128 + $0x74] sm:$0xf]
    %v12159 = vld [vmem:[%s12128 + $0x78] sm:$0xf]
    %v12160 = vld [vmem:[%s12128 + $0x7c] sm:$0xf]
    %v12161 = vrot.slane %v11656, 3
    %v12162 = vrot.slane %v11658, 2
    %v12163 = vsel %vm2910, %v12162, %v12161
    %v12164 = vrot.slane %v11657, 3
    %v12165 = vrot.slane %v11659, 2
    %v12166 = vsel %vm2910, %v12165, %v12164
    %v12167 = vpack.c.b16 %v12163, %v12163
    %v12168 = vpack.c.b16 %v12166, %v12166
    %v12203 = vunpack.c.l.b16 %v12129
    %v12204 = vunpack.c.l.b16 %v12130
    %v12205 = vunpack.c.l.b16 %v12131
    %v12206 = vunpack.c.l.b16 %v12132
    %v12207 = vunpack.c.l.b16 %v12133
    %v12208 = vunpack.c.l.b16 %v12134
    %v12209 = vunpack.c.l.b16 %v12135
    %v12210 = vunpack.c.l.b16 %v12136
    %v12211 = vunpack.c.l.b16 %v12137
    %v12212 = vunpack.c.l.b16 %v12138
    %v12213 = vunpack.c.l.b16 %v12139
    %v12214 = vunpack.c.l.b16 %v12140
    %v12215 = vunpack.c.l.b16 %v12141
    %v12216 = vunpack.c.l.b16 %v12142
    %v12217 = vunpack.c.l.b16 %v12143
    %v12218 = vunpack.c.l.b16 %v12144
    %v12219 = vunpack.c.l.b16 %v12145
    %v12220 = vunpack.c.l.b16 %v12146
    %v12221 = vunpack.c.l.b16 %v12147
    %v12222 = vunpack.c.l.b16 %v12148
    %v12223 = vunpack.c.l.b16 %v12149
    %v12224 = vunpack.c.l.b16 %v12150
    %v12225 = vunpack.c.l.b16 %v12151
    %v12226 = vunpack.c.l.b16 %v12152
    %v12227 = vunpack.c.l.b16 %v12153
    %v12228 = vunpack.c.l.b16 %v12154
    %v12229 = vunpack.c.l.b16 %v12155
    %v12230 = vunpack.c.l.b16 %v12156
    %v12231 = vunpack.c.l.b16 %v12157
    %v12232 = vunpack.c.l.b16 %v12158
    %v12233 = vunpack.c.l.b16 %v12159
    %v12234 = vunpack.c.l.b16 %v12160
    %v12235 = vpack.c.b16 %v12204, %v12203
    %v12236 = vpack.c.b16 %v12206, %v12205
    %v12237 = vpack.c.b16 %v12208, %v12207
    %v12238 = vpack.c.b16 %v12210, %v12209
    %v12239 = vpack.c.b16 %v12212, %v12211
    %v12240 = vpack.c.b16 %v12214, %v12213
    %v12241 = vpack.c.b16 %v12216, %v12215
    %v12242 = vpack.c.b16 %v12218, %v12217
    %v12243 = vpack.c.b16 %v12220, %v12219
    %v12244 = vpack.c.b16 %v12222, %v12221
    %v12245 = vpack.c.b16 %v12224, %v12223
    %v12246 = vpack.c.b16 %v12226, %v12225
    %v12247 = vpack.c.b16 %v12228, %v12227
    %v12248 = vpack.c.b16 %v12230, %v12229
    %v12249 = vpack.c.b16 %v12232, %v12231
    %v12250 = vpack.c.b16 %v12234, %v12233
    %12267 = vmatprep.subr.bf16.mxu0 0
    %12268 = vmatpush1.bf16.msra.mxu0 %v12235
    %12269 = vmatprep.subr.bf16.mxu0 0
    %12270 = vmatpush1.bf16.msra.mxu0 %v12236
    %12271 = vmatprep.subr.bf16.mxu0 0
    %12272 = vmatpush1.bf16.msra.mxu0 %v12237
    %12273 = vmatprep.subr.bf16.mxu0 0
    %12274 = vmatpush1.bf16.msra.mxu0 %v12238
    %12275 = vmatprep.subr.bf16.mxu0 0
    %12276 = vmatpush1.bf16.msra.mxu0 %v12239
    %12277 = vmatprep.subr.bf16.mxu0 0
    %12278 = vmatpush1.bf16.msra.mxu0 %v12240
    %12279 = vmatprep.subr.bf16.mxu0 0
    %12280 = vmatpush1.bf16.msra.mxu0 %v12241
    %12281 = vmatprep.subr.bf16.mxu0 0
    %12282 = vmatpush1.bf16.msra.mxu0 %v12242
    %12283 = vmatprep.subr.bf16.mxu0 0
    %12284 = vmatpush1.bf16.msra.mxu0 %v12243
    %12285 = vmatprep.subr.bf16.mxu0 0
    %12286 = vmatpush1.bf16.msra.mxu0 %v12244
    %12287 = vmatprep.subr.bf16.mxu0 0
    %12288 = vmatpush1.bf16.msra.mxu0 %v12245
    %12289 = vmatprep.subr.bf16.mxu0 0
    %12290 = vmatpush1.bf16.msra.mxu0 %v12246
    %12291 = vmatprep.subr.bf16.mxu0 0
    %12292 = vmatpush1.bf16.msra.mxu0 %v12247
    %12293 = vmatprep.subr.bf16.mxu0 0
    %12294 = vmatpush1.bf16.msra.mxu0 %v12248
    %12295 = vmatprep.subr.bf16.mxu0 0
    %12296 = vmatpush1.bf16.msra.mxu0 %v12249
    %12297 = vmatprep.subr.bf16.mxu0 0
    %12298 = vmatpush1.bf16.msra.mxu0 %v12250
    %12299 = vmatprep.mubr.bf16.mxu0 %v12168
    %12300 = vmatmul.mubr.bf16.gmra.mrb[0].mxu0 %v12167
    %v12301 = vpop.f32.mrb[0].mxu0
    %v12302 = vadd.f32 0.0, %v12301
    %v12303 = vpop.f32.mrb[0].mxu0
    %v12304 = vpop.f32.mrb[0].mxu0
    %v12305 = vpop.f32.mrb[0].mxu0
    %12306 = vdwg.mxu0
    %v12307 = vadd.f32 %v12127, %v12302
    %v12308 = vld [vmem:[#allocation21] sm:$0x1]
    %v12310 = vlaneseq
    %v12311 = vshrl.u32 %v12310, 7
    %v12312 = vsub.s32 0, %v12311
    %v12313 = vrot.slane %v12308, %v12312
    %v12315 = vadd.f32 %v12307, %v12313
    %v12316 = vmax.f32 %v12315, 0.0
    %v12317 = vpack.c.bf16 %v12316, %v12316
    %v12318 = vld [vmem:[#allocation22] sm:$0xf]
    %v12319 = vld [vmem:[#allocation22 + $0x4] sm:$0xf]
    %v12320 = vld [vmem:[#allocation22 + $0x8] sm:$0xf]
    %v12321 = vld [vmem:[#allocation22 + $0xc] sm:$0xf]
    %v12322 = vld [vmem:[#allocation22 + $0x10] sm:$0xf]
    %v12323 = vld [vmem:[#allocation22 + $0x14] sm:$0xf]
    %v12324 = vld [vmem:[#allocation22 + $0x18] sm:$0xf]
    %v12325 = vld [vmem:[#allocation22 + $0x1c] sm:$0xf]
    %v12326 = vld [vmem:[#allocation22 + $0x20] sm:$0xf]
    %v12327 = vld [vmem:[#allocation22 + $0x24] sm:$0xf]
    %v12328 = vld [vmem:[#allocation22 + $0x28] sm:$0xf]
    %v12329 = vld [vmem:[#allocation22 + $0x2c] sm:$0xf]
    %v12330 = vld [vmem:[#allocation22 + $0x30] sm:$0xf]
    %v12331 = vld [vmem:[#allocation22 + $0x34] sm:$0xf]
    %v12332 = vld [vmem:[#allocation22 + $0x38] sm:$0xf]
    %v12333 = vld [vmem:[#allocation22 + $0x3c] sm:$0xf]
    %v12334 = vld [vmem:[#allocation24] sm:$0x1]
    %v12336 = vlaneseq
    %v12337 = vshrl.u32 %v12336, 7
    %v12338 = vsub.s32 0, %v12337
    %v12339 = vrot.slane %v12334, %v12338
    %v12357 = vunpack.c.l.b16 %v12318
    %v12358 = vunpack.c.l.b16 %v12319
    %v12359 = vunpack.c.l.b16 %v12320
    %v12360 = vunpack.c.l.b16 %v12321
    %v12361 = vunpack.c.l.b16 %v12322
    %v12362 = vunpack.c.l.b16 %v12323
    %v12363 = vunpack.c.l.b16 %v12324
    %v12364 = vunpack.c.l.b16 %v12325
    %v12365 = vunpack.c.l.b16 %v12326
    %v12366 = vunpack.c.l.b16 %v12327
    %v12367 = vunpack.c.l.b16 %v12328
    %v12368 = vunpack.c.l.b16 %v12329
    %v12369 = vunpack.c.l.b16 %v12330
    %v12370 = vunpack.c.l.b16 %v12331
    %v12371 = vunpack.c.l.b16 %v12332
    %v12372 = vunpack.c.l.b16 %v12333
    %v12373 = vpack.c.b16 %v12358, %v12357
    %v12374 = vpack.c.b16 %v12360, %v12359
    %v12375 = vpack.c.b16 %v12362, %v12361
    %v12376 = vpack.c.b16 %v12364, %v12363
    %v12377 = vpack.c.b16 %v12366, %v12365
    %v12378 = vpack.c.b16 %v12368, %v12367
    %v12379 = vpack.c.b16 %v12370, %v12369
    %v12380 = vpack.c.b16 %v12372, %v12371
    %12389 = vmatprep.subr.bf16.mxu0 0
    %12390 = vmatpush1.bf16.msra.mxu0 %v12373
    %12391 = vmatprep.subr.bf16.mxu0 0
    %12392 = vmatpush1.bf16.msra.mxu0 %v12374
    %12393 = vmatprep.subr.bf16.mxu0 0
    %12394 = vmatpush1.bf16.msra.mxu0 %v12375
    %12395 = vmatprep.subr.bf16.mxu0 0
    %12396 = vmatpush1.bf16.msra.mxu0 %v12376
    %12397 = vmatprep.subr.bf16.mxu0 0
    %12398 = vmatpush1.bf16.msra.mxu0 %v12377
    %12399 = vmatprep.subr.bf16.mxu0 0
    %12400 = vmatpush1.bf16.msra.mxu0 %v12378
    %12401 = vmatprep.subr.bf16.mxu0 0
    %12402 = vmatpush1.bf16.msra.mxu0 %v12379
    %12403 = vmatprep.subr.bf16.mxu0 0
    %12404 = vmatpush1.bf16.msra.mxu0 %v12380
    %12405 = vmatprep.subr.bf16.mxu0 0
    %12406 = vmatpush1.bf16.msra.mxu0 0
    %12407 = vmatprep.subr.bf16.mxu0 0
    %12408 = vmatpush1.bf16.msra.mxu0 0
    %12409 = vmatprep.subr.bf16.mxu0 0
    %12410 = vmatpush1.bf16.msra.mxu0 0
    %12411 = vmatprep.subr.bf16.mxu0 0
    %12412 = vmatpush1.bf16.msra.mxu0 0
    %12413 = vmatprep.subr.bf16.mxu0 0
    %12414 = vmatpush1.bf16.msra.mxu0 0
    %12415 = vmatprep.subr.bf16.mxu0 0
    %12416 = vmatpush1.bf16.msra.mxu0 0
    %12417 = vmatprep.subr.bf16.mxu0 0
    %12418 = vmatpush1.bf16.msra.mxu0 0
    %12419 = vmatprep.subr.bf16.mxu0 0
    %12420 = vmatpush1.bf16.msra.mxu0 0
    %12421 = vmatprep.mubr.bf16.mxu0 0
    %12422 = vmatmul.mubr.bf16.gmra.mrb[0].mxu0 %v12317
    %v12423 = vpop.f32.mrb[0].mxu0
    %v12424 = vadd.f32 %v12339, %v12423
    %v12425 = vpop.f32.mrb[0].mxu0
    %v12426 = vpop.f32.mrb[0].mxu0
    %v12427 = vpop.f32.mrb[0].mxu0
    %12428 = vdwg.mxu0
    %12429 = vst [vmem:[#allocation25] sm:$0x3] %v12424
    // Predicated region
    $region110: #{toy3bn_forward.1} parent=1 // pred_check
      _
    $region111: #{toy3bn_forward.1} parent=1 // pred_check_branch
      %12431 = sbr.rel (0) target = $region113
    $region112: #{toy3bn_forward.1} parent=1 // pred_region
      %s12433 = ssub.s32 32, 32
      %12434 = vsyncadd [#allocation6], %s12433
      %s12436 = sshll.u32 [#allocation25], 4
      %s12437 = int_to_ptr.vmem [resolvable:$true] %s12436
      %12439 = dma.vmem_to_hbm [thread:$0]  %s12437, 32, %s14, [#allocation6]
    $region113: #{toy3bn_forward.1} parent=1 // pred_fallthru
      _
    // Predicated region
    $region114: #{toy3bn_forward.1} parent=1 // pred_check
      _
    $region115: #{toy3bn_forward.1} parent=1 // pred_check_branch
      %12441 = sbr.rel (0) target = $region117
    $region116: #{toy3bn_forward.1} parent=1 // pred_region
      %12442 = dma.done [#allocation6], 32
    $region117: #{toy3bn_forward.1} parent=1 // pred_fallthru
      _
    %12443 = vsyncpa [#allocation5], 1
    %12444 = vsyncpa [#allocation8], 1
    %12445 = vsyncpa [#allocation11], 1
    %12446 = vsyncpa [#allocation14], 1
    %12447 = vsyncpa [#allocation17], 1
    %12448 = vsyncpa [#allocation20], 1
    %12449 = vsyncpa [#allocation23], 1
    %12450 = vsyncpa [#allocation6], 1

</llo_original>
